<compile_context>
chip_gen: v5e
topology: v5e:2x2
jax: 0.10.0
libtpu: 0.0.40
codegen_flags: <defaults>
</compile_context>

<pallas_src>
import functools

import jax
import jax.numpy as jnp
from jax import lax
from jax.experimental import pallas as pl
from jax.experimental.pallas import tpu as pltpu


def _lstm_recurrence_kernel(xg_ref, h0_ref, c0_ref, whh_ref, wih_ref, bias_ref,
                            htop_ref, hn_ref, cn_ref,
                            *, num_layers, hp, tt, t_total, needs_mask, unroll):
    """One grid step == a block of `tt` timesteps.

    The recurrent state lives in the VMEM-resident hn/cn output windows (constant
    index_map => resident across the whole grid, written to HBM once at the end)."""
    s = pl.program_id(0)

    # Initialize recurrent state from (h0, c0) at the first time-block.
    @pl.when(s == 0)
    def _():
        hn_ref[...] = h0_ref[...]
        cn_ref[...] = c0_ref[...]

    def cell(gates, c_prev):
        # Gate layout is (i | f | o | g), each block 128-lane aligned.
        # sigmoid(x) == 0.5*tanh(0.5*x)+0.5 -> one EUP op (tanh) + cheap VALU,
        # applied to the contiguous (Bp, 3*Hp) sigmoid slab in a single call.
        sig = 0.5 * jnp.tanh(0.5 * gates[:, :3 * hp]) + 0.5
        g_g = jnp.tanh(gates[:, 3 * hp:])
        i_g = sig[:, 0 * hp:1 * hp]
        f_g = sig[:, 1 * hp:2 * hp]
        o_g = sig[:, 2 * hp:3 * hp]
        c_new = f_g * c_prev + i_g * g_g
        h_new = o_g * jnp.tanh(c_new)
        return h_new, c_new

    def step(i, carry):
        if needs_mask:
            valid = (s * tt + i) < t_total  # padded timesteps must not touch state

        # ---- layer 0: x-path (relu(emb) @ W_ih + biases) was precomputed outside;
        #      only the recurrent h-path matmul stays on the serial critical path.
        h_prev = hn_ref[0]
        c_prev = cn_ref[0]
        gates = xg_ref[i] + jnp.dot(h_prev, whh_ref[0],
                                    preferred_element_type=jnp.float32)
        h_new, c_new = cell(gates, c_prev)
        if needs_mask:
            h_new = jnp.where(valid, h_new, h_prev)
            c_new = jnp.where(valid, c_new, c_prev)
        hn_ref[0] = h_new
        cn_ref[0] = c_new
        x = h_new

        # ---- layers 1..L-1: two dots summed (no concat materialization); biases
        #      are pre-broadcast to (Bp, 4Hp) so no broadcast is emitted per step.
        for l in range(1, num_layers):
            h_prev = hn_ref[l]
            c_prev = cn_ref[l]
            gates = (jnp.dot(x, wih_ref[l - 1], preferred_element_type=jnp.float32)
                     + jnp.dot(h_prev, whh_ref[l], preferred_element_type=jnp.float32)
                     + bias_ref[l - 1])
            h_new, c_new = cell(gates, c_prev)
            if needs_mask:
                h_new = jnp.where(valid, h_new, h_prev)
                c_new = jnp.where(valid, c_new, c_prev)
            hn_ref[l] = h_new
            cn_ref[l] = c_new
            x = h_new

        htop_ref[i] = x  # lane-dense (Bp, Hp)
        return carry

    # Steps are serially dependent through h/c; cap unroll to bound live vregs.
    lax.fori_loop(0, tt, step, 0, unroll=unroll)


def _round_up(x, m):
    return ((x + m - 1) // m) * m


def _reorder_pad_gates(w, h, hp):
    """(K, 4H) in PyTorch gate order [i|f|g|o] -> (K, 4Hp) in [i|f|o|g].
    Each gate block lands 128-lane aligned; padded columns are exactly zero."""
    k = w.shape[0]
    w4 = w.reshape(k, 4, h)[:, (0, 1, 3, 2), :]
    w4 = jnp.pad(w4, ((0, 0), (0, 0), (0, hp - h)))
    return w4.reshape(k, 4 * hp)


def decoder_lstm_forward(token_ids, h0, c0, params):
    """DecoderLSTM forward (eval mode).  token_ids: (T, B) int32; h0/c0: (L, B, H) f32.
    Returns (log_probs (T, B, O), (h_n, c_n))."""
    T, B = token_ids.shape
    L, _, H = h0.shape

    Bp = _round_up(max(B, 8), 8)        # sublane multiple
    Hp = _round_up(max(H, 128), 128)    # lane multiple -> aligned gate slices

    # Timesteps per grid step: target ~16 so per-grid-step overhead is amortized
    # even for awkward/prime T; padded timesteps are masked in the kernel.
    n_blocks = -(-T // 16)
    TT = -(-T // n_blocks)
    T_pad = TT * n_blocks
    needs_mask = (T_pad != T)

    w_ih_t, w_hh_t = params["w_ih_t"], params["w_hh_t"]    # (L, H, 4H)
    b_sum = params["b_ih"] + params["b_hh"]                # (L, 4H), pre-summed

    # ---- hoisted non-recurrent compute: one big (T*B, H) x (H, 4Hp) pass in XLA,
    # already in the reordered/padded gate layout the kernel expects.
    emb = jnp.take(params["emb_weight"], token_ids, axis=0)        # (T, B, H)
    x0 = jnp.maximum(emb, 0.0)                                     # relu; dropout = id
    wih0 = _reorder_pad_gates(w_ih_t[0], H, Hp)                    # (H, 4Hp)
    b0 = _reorder_pad_gates(b_sum[0][None, :], H, Hp)[0]           # (4Hp,)
    xg = jnp.einsum("tbh,hg->tbg", x0, wih0) + b0                  # (T, B, 4Hp)
    xg = jnp.pad(xg, ((0, T_pad - T), (0, Bp - B), (0, 0))).astype(jnp.float32)

    # ---- recurrent weights (kept in f32: EUP-bound kernel hides the MXU cost and
    # avoids bf16 drift through the recurrence).
    def prep_w(w):  # (H, 4H) -> (Hp, 4Hp), zero-padded rows/cols
        return jnp.pad(_reorder_pad_gates(w, H, Hp), ((0, Hp - H), (0, 0)))

    whh = jnp.stack([prep_w(w_hh_t[l]) for l in range(L)]).astype(jnp.float32)
    if L > 1:
        wih = jnp.stack([prep_w(w_ih_t[l]) for l in range(1, L)]).astype(jnp.float32)
        bias = jnp.stack([
            jnp.broadcast_to(_reorder_pad_gates(b_sum[l][None, :], H, Hp),
                             (Bp, 4 * Hp))
            for l in range(1, L)]).astype(jnp.float32)              # (L-1, Bp, 4Hp)
    else:
        wih = jnp.zeros((1, Hp, 4 * Hp), jnp.float32)               # unused dummies
        bias = jnp.zeros((1, Bp, 4 * Hp), jnp.float32)
    Lm1 = wih.shape[0]

    h0p = jnp.pad(h0, ((0, 0), (0, Bp - B), (0, Hp - H)))
    c0p = jnp.pad(c0, ((0, 0), (0, Bp - B), (0, Hp - H)))

    kernel = functools.partial(
        _lstm_recurrence_kernel, num_layers=L, hp=Hp, tt=TT, t_total=T,
        needs_mask=needs_mask, unroll=min(TT, 8))

    # Explicit scoped-VMEM limit (v5e's default is only 16 MiB of 128 MiB physical).
    f32b = 4
    vmem_need = f32b * 2 * (
        TT * Bp * 4 * Hp          # xg (double-buffered)
        + 2 * L * Bp * Hp         # h0, c0
        + L * Hp * 4 * Hp         # W_hh (all layers)
        + Lm1 * Hp * 4 * Hp       # W_ih (layers 1..L-1)
        + Lm1 * Bp * 4 * Hp       # pre-broadcast biases
        + TT * Bp * Hp            # htop
        + 2 * L * Bp * Hp)        # hn, cn
    vmem_limit = int(min(100 * 1024 * 1024, max(32 * 1024 * 1024, 2 * vmem_need)))

    grid_spec = pltpu.PrefetchScalarGridSpec(
        num_scalar_prefetch=0,
        grid=(T_pad // TT,),
        in_specs=[
            pl.BlockSpec((TT, Bp, 4 * Hp), lambda s: (s, 0, 0)),    # layer-0 gates
            pl.BlockSpec((L, Bp, Hp), lambda s: (0, 0, 0)),         # h0
            pl.BlockSpec((L, Bp, Hp), lambda s: (0, 0, 0)),         # c0
            pl.BlockSpec((L, Hp, 4 * Hp), lambda s: (0, 0, 0)),     # W_hh^T (all layers)
            pl.BlockSpec((Lm1, Hp, 4 * Hp), lambda s: (0, 0, 0)),   # W_ih^T (layers 1..)
            pl.BlockSpec((Lm1, Bp, 4 * Hp), lambda s: (0, 0, 0)),   # pre-broadcast biases
        ],
        out_specs=[
            pl.BlockSpec((TT, Bp, Hp), lambda s: (s, 0, 0)),        # top-layer h, all t
            pl.BlockSpec((L, Bp, Hp), lambda s: (0, 0, 0)),         # h_n (live state)
            pl.BlockSpec((L, Bp, Hp), lambda s: (0, 0, 0)),         # c_n (live state)
        ],
    )

    out_shapes = (
        jax.ShapeDtypeStruct((T_pad, Bp, Hp), jnp.float32),
        jax.ShapeDtypeStruct((L, Bp, Hp), jnp.float32),
        jax.ShapeDtypeStruct((L, Bp, Hp), jnp.float32),
    )

    h_top_p, hn_p, cn_p = pl.pallas_call(
        kernel,
        out_shape=out_shapes,
        grid_spec=grid_spec,
        compiler_params=pltpu.CompilerParams(
            dimension_semantics=("arbitrary",),    # time axis carries recurrent state
            vmem_limit_bytes=vmem_limit),
    )(xg, h0p, c0p, whh, wih, bias)

    h_top = h_top_p[:T, :B, :H]
    h_n = hn_p[:, :B, :H]
    c_n = cn_p[:, :B, :H]

    # ---- hoisted output projection + LogSoftmax(dim=2): one (T*B, H) x (H, O) pass.
    logits = jnp.einsum("tbh,ho->tbo", h_top, params["w_out_t"]) + params["b_out"]
    log_probs = jax.nn.log_softmax(logits, axis=-1)
    return log_probs, (h_n, c_n)


def _init_params(key, hidden_size, output_size, layers):
    """Deterministic parameter init (PyTorch-like uniform(-1/sqrt(H), 1/sqrt(H)))."""
    H, O, L = hidden_size, output_size, layers
    bound = 1.0 / jnp.sqrt(jnp.float32(H))
    keys = jax.random.split(key, 7)

    def u(k, shape):
        return jax.random.uniform(k, shape, jnp.float32, -bound, bound)

    emb_weight = jax.random.normal(keys[0], (O, H), jnp.float32)
    emb_weight = emb_weight.at[1].set(0.0)                # padding_idx=1 -> zero row

    w_ih = u(keys[1], (L, 4 * H, H))   # input_size == hidden_size for every layer
    w_hh = u(keys[2], (L, 4 * H, H))
    b_ih = u(keys[3], (L, 4 * H))
    b_hh = u(keys[4], (L, 4 * H))
    w_out = u(keys[5], (O, H))
    b_out = u(keys[6], (O,))

    return {
        "emb_weight": emb_weight,
        "w_ih_t": jnp.transpose(w_ih, (0, 2, 1)),         # (L, H, 4H)
        "w_hh_t": jnp.transpose(w_hh, (0, 2, 1)),         # (L, H, 4H)
        "b_ih": b_ih,
        "b_hh": b_hh,
        "w_out_t": w_out.T,                               # (H, O)
        "b_out": b_out.reshape(1, O),
    }


def _reference_forward(token_ids, h0, c0, params):
    """Pure-JAX f32 reference mirroring the PyTorch forward (eval mode)."""
    T, B = token_ids.shape
    L, _, H = h0.shape
    emb = jnp.take(params["emb_weight"], token_ids, axis=0)
    x_seq = jnp.maximum(emb, 0.0)
    h, c = h0, c0
    outs = []
    for t in range(T):
        x = x_seq[t]
        h_new, c_new = [], []
        for l in range(L):
            gates = (x @ params["w_ih_t"][l] + h[l] @ params["w_hh_t"][l]
                     + params["b_ih"][l] + params["b_hh"][l])
            i_g = jax.nn.sigmoid(gates[:, 0 * H:1 * H])
            f_g = jax.nn.sigmoid(gates[:, 1 * H:2 * H])
            g_g = jnp.tanh(gates[:, 2 * H:3 * H])
            o_g = jax.nn.sigmoid(gates[:, 3 * H:4 * H])
            cc = f_g * c[l] + i_g * g_g
            hh = o_g * jnp.tanh(cc)
            h_new.append(hh)
            c_new.append(cc)
            x = hh
        h = jnp.stack(h_new)
        c = jnp.stack(c_new)
        outs.append(x)
    out = jnp.stack(outs)                                  # (T, B, H)
    logits = out @ params["w_out_t"] + params["b_out"][0]
    return jax.nn.log_softmax(logits, axis=2), (h, c)


if __name__ == "__main__":
    # Small shapes consistent with the module: hidden=32, vocab(output)=16, 2 layers.
    T, B, H, O, L = 8, 2, 32, 16, 2

    key = jax.random.PRNGKey(0)
    k_par, k_tok, k_h, k_c = jax.random.split(key, 4)

    params = _init_params(k_par, hidden_size=H, output_size=O, layers=L)
    token_ids = jax.random.randint(k_tok, (T, B), 0, O, dtype=jnp.int32)
    h0 = jax.random.normal(k_h, (L, B, H), jnp.float32)
    c0 = jax.random.normal(k_c, (L, B, H), jnp.float32)

    log_probs, (h_n, c_n) = decoder_lstm_forward(token_ids, h0, c0, params)
    jax.block_until_ready((log_probs, h_n, c_n))

    ref_lp, (ref_h, ref_c) = _reference_forward(token_ids, h0, c0, params)
    assert jnp.allclose(log_probs, ref_lp, atol=1e-2, rtol=1e-2), "log-prob mismatch"
    assert jnp.allclose(h_n, ref_h, atol=1e-2, rtol=1e-2), "h_n mismatch"
    assert jnp.allclose(c_n, ref_c, atol=1e-2, rtol=1e-2), "c_n mismatch"

    print("KERNEL_OK")
</pallas_src>

<mosaic_0001>
module attributes {stable_mosaic.version = 11 : i64} {
  func.func @_lstm_recurrence_kernel(%arg0: i32, %arg1: memref<8x8x512xf32, #tpu.memory_space<vmem>>, %arg2: memref<2x8x128xf32, #tpu.memory_space<vmem>>, %arg3: memref<2x8x128xf32, #tpu.memory_space<vmem>>, %arg4: memref<2x128x512xf32, #tpu.memory_space<vmem>>, %arg5: memref<1x128x512xf32, #tpu.memory_space<vmem>>, %arg6: memref<1x8x512xf32, #tpu.memory_space<vmem>>, %arg7: memref<8x8x128xf32, #tpu.memory_space<vmem>>, %arg8: memref<2x8x128xf32, #tpu.memory_space<vmem>>, %arg9: memref<2x8x128xf32, #tpu.memory_space<vmem>>) attributes {dimension_semantics = [#tpu.dimension_semantics<arbitrary>], iteration_bounds = array<i64: 1>, scalar_prefetch = 0 : i64, scratch_operands = 0 : i64, tpu.core_type = #tpu.core_type<tc>, window_params = [{transform_indices = @transform_0, window_bounds = array<i64: 8, 8, 512>}, {pipeline_mode = #tpu.pipeline_mode<synchronous>, transform_indices = @transform_1, window_bounds = array<i64: 2, 8, 128>}, {pipeline_mode = #tpu.pipeline_mode<synchronous>, transform_indices = @transform_2, window_bounds = array<i64: 2, 8, 128>}, {pipeline_mode = #tpu.pipeline_mode<synchronous>, transform_indices = @transform_3, window_bounds = array<i64: 2, 128, 512>}, {pipeline_mode = #tpu.pipeline_mode<synchronous>, transform_indices = @transform_4, window_bounds = array<i64: 1, 128, 512>}, {pipeline_mode = #tpu.pipeline_mode<synchronous>, transform_indices = @transform_5, window_bounds = array<i64: 1, 8, 512>}, {transform_indices = @transform_6, window_bounds = array<i64: 8, 8, 128>}, {pipeline_mode = #tpu.pipeline_mode<synchronous>, transform_indices = @transform_7, window_bounds = array<i64: 2, 8, 128>}, {pipeline_mode = #tpu.pipeline_mode<synchronous>, transform_indices = @transform_8, window_bounds = array<i64: 2, 8, 128>}]} {
    %c0_i32 = arith.constant 0 : i32
    %0 = arith.cmpi eq, %arg0, %c0_i32 : i32
    %1 = arith.extui %0 : i1 to i32
    %c0_i32_0 = arith.constant 0 : i32
    %2 = arith.cmpi ne, %1, %c0_i32_0 : i32
    scf.if %2 {
      %c0_391 = arith.constant 0 : index
      %c0_392 = arith.constant 0 : index
      %c0_393 = arith.constant 0 : index
      %619 = vector.load %arg2[%c0_391, %c0_392, %c0_393] : memref<2x8x128xf32, #tpu.memory_space<vmem>>, vector<2x8x128xf32>
      %c0_394 = arith.constant 0 : index
      %c0_395 = arith.constant 0 : index
      %c0_396 = arith.constant 0 : index
      %620 = vector.load %arg8[%c0_394, %c0_395, %c0_396] : memref<2x8x128xf32, #tpu.memory_space<vmem>>, vector<2x8x128xf32>
      tpu.vector_store %arg8[%c0_394, %c0_395, %c0_396], %619 {strides = array<i32>} : memref<2x8x128xf32, #tpu.memory_space<vmem>>, vector<2x8x128xf32>,
      %c0_397 = arith.constant 0 : index
      %c0_398 = arith.constant 0 : index
      %c0_399 = arith.constant 0 : index
      %621 = vector.load %arg3[%c0_397, %c0_398, %c0_399] : memref<2x8x128xf32, #tpu.memory_space<vmem>>, vector<2x8x128xf32>
      %c0_400 = arith.constant 0 : index
      %c0_401 = arith.constant 0 : index
      %c0_402 = arith.constant 0 : index
      %622 = vector.load %arg9[%c0_400, %c0_401, %c0_402] : memref<2x8x128xf32, #tpu.memory_space<vmem>>, vector<2x8x128xf32>
      tpu.vector_store %arg9[%c0_400, %c0_401, %c0_402], %621 {strides = array<i32>} : memref<2x8x128xf32, #tpu.memory_space<vmem>>, vector<2x8x128xf32>,
    } else {
    }
    %c0_i32_1 = arith.constant 0 : i32
    %c0 = arith.constant 0 : index
    %c0_2 = arith.constant 0 : index
    %c0_3 = arith.constant 0 : index
    %3 = vector.load %arg8[%c0, %c0_2, %c0_3] : memref<2x8x128xf32, #tpu.memory_space<vmem>>, vector<1x8x128xf32>
    %4 = vector.shape_cast %3 : vector<1x8x128xf32> to vector<8x128xf32>
    %c0_4 = arith.constant 0 : index
    %c0_5 = arith.constant 0 : index
    %c0_6 = arith.constant 0 : index
    %5 = vector.load %arg9[%c0_4, %c0_5, %c0_6] : memref<2x8x128xf32, #tpu.memory_space<vmem>>, vector<1x8x128xf32>
    %6 = vector.shape_cast %5 : vector<1x8x128xf32> to vector<8x128xf32>
    %7 = arith.index_cast %c0_i32_1 : i32 to index
    %c0_7 = arith.constant 0 : index
    %c0_8 = arith.constant 0 : index
    %8 = vector.load %arg1[%7, %c0_7, %c0_8] : memref<8x8x512xf32, #tpu.memory_space<vmem>>, vector<1x8x512xf32>
    %9 = vector.shape_cast %8 : vector<1x8x512xf32> to vector<8x512xf32>
    %c0_9 = arith.constant 0 : index
    %c0_10 = arith.constant 0 : index
    %c0_11 = arith.constant 0 : index
    %10 = vector.load %arg4[%c0_9, %c0_10, %c0_11] : memref<2x128x512xf32, #tpu.memory_space<vmem>>, vector<1x128x512xf32>
    %11 = vector.shape_cast %10 : vector<1x128x512xf32> to vector<128x512xf32>
    %cst = arith.constant dense<0.000000e+00> : vector<8x512xf32>
    %12 = tpu.matmul %4, %11, %cst {dimension_numbers = #tpu.dot_dimension_numbers<[1], [0], [0], [1], [0, 0, 1, 1], [], []>} : vector<8x128xf32>, vector<128x512xf32>, vector<8x512xf32> -> vector<8x512xf32>
    %13 = arith.addf %9, %12 : vector<8x512xf32>
    %14 = vector.extract_strided_slice %13 {offsets = [0, 0], sizes = [8, 384], strides = [1, 1]} : vector<8x512xf32> to vector<8x384xf32>
    %cst_12 = arith.constant 5.000000e-01 : f32
    %15 = vector.broadcast %cst_12 : f32 to vector<8x384xf32>
    %16 = arith.mulf %15, %14 : vector<8x384xf32>
    %17 = math.tanh %16 : vector<8x384xf32>
    %cst_13 = arith.constant 5.000000e-01 : f32
    %18 = vector.broadcast %cst_13 : f32 to vector<8x384xf32>
    %19 = arith.mulf %18, %17 : vector<8x384xf32>
    %cst_14 = arith.constant 5.000000e-01 : f32
    %20 = vector.broadcast %cst_14 : f32 to vector<8x384xf32>
    %21 = arith.addf %19, %20 : vector<8x384xf32>
    %22 = vector.extract_strided_slice %13 {offsets = [0, 384], sizes = [8, 128], strides = [1, 1]} : vector<8x512xf32> to vector<8x128xf32>
    %23 = math.tanh %22 : vector<8x128xf32>
    %24 = vector.extract_strided_slice %21 {offsets = [0, 0], sizes = [8, 128], strides = [1, 1]} : vector<8x384xf32> to vector<8x128xf32>
    %25 = vector.extract_strided_slice %21 {offsets = [0, 128], sizes = [8, 128], strides = [1, 1]} : vector<8x384xf32> to vector<8x128xf32>
    %26 = vector.extract_strided_slice %21 {offsets = [0, 256], sizes = [8, 128], strides = [1, 1]} : vector<8x384xf32> to vector<8x128xf32>
    %27 = arith.mulf %25, %6 : vector<8x128xf32>
    %28 = arith.mulf %24, %23 : vector<8x128xf32>
    %29 = arith.addf %27, %28 : vector<8x128xf32>
    %30 = math.tanh %29 : vector<8x128xf32>
    %31 = arith.mulf %26, %30 : vector<8x128xf32>
    %c0_15 = arith.constant 0 : index
    %c0_16 = arith.constant 0 : index
    %c0_17 = arith.constant 0 : index
    %32 = vector.load %arg8[%c0_15, %c0_16, %c0_17] : memref<2x8x128xf32, #tpu.memory_space<vmem>>, vector<1x8x128xf32>
    %33 = vector.shape_cast %32 : vector<1x8x128xf32> to vector<8x128xf32>
    %34 = vector.shape_cast %31 : vector<8x128xf32> to vector<1x8x128xf32>
    tpu.vector_store %arg8[%c0_15, %c0_16, %c0_17], %34 {strides = array<i32>} : memref<2x8x128xf32, #tpu.memory_space<vmem>>, vector<1x8x128xf32>,
    %c0_18 = arith.constant 0 : index
    %c0_19 = arith.constant 0 : index
    %c0_20 = arith.constant 0 : index
    %35 = vector.load %arg9[%c0_18, %c0_19, %c0_20] : memref<2x8x128xf32, #tpu.memory_space<vmem>>, vector<1x8x128xf32>
    %36 = vector.shape_cast %35 : vector<1x8x128xf32> to vector<8x128xf32>
    %37 = vector.shape_cast %29 : vector<8x128xf32> to vector<1x8x128xf32>
    tpu.vector_store %arg9[%c0_18, %c0_19, %c0_20], %37 {strides = array<i32>} : memref<2x8x128xf32, #tpu.memory_space<vmem>>, vector<1x8x128xf32>,
    %c1 = arith.constant 1 : index
    %c0_21 = arith.constant 0 : index
    %c0_22 = arith.constant 0 : index
    %38 = vector.load %arg8[%c1, %c0_21, %c0_22] : memref<2x8x128xf32, #tpu.memory_space<vmem>>, vector<1x8x128xf32>
    %39 = vector.shape_cast %38 : vector<1x8x128xf32> to vector<8x128xf32>
    %c1_23 = arith.constant 1 : index
    %c0_24 = arith.constant 0 : index
    %c0_25 = arith.constant 0 : index
    %40 = vector.load %arg9[%c1_23, %c0_24, %c0_25] : memref<2x8x128xf32, #tpu.memory_space<vmem>>, vector<1x8x128xf32>
    %41 = vector.shape_cast %40 : vector<1x8x128xf32> to vector<8x128xf32>
    %c0_26 = arith.constant 0 : index
    %c0_27 = arith.constant 0 : index
    %c0_28 = arith.constant 0 : index
    %42 = vector.load %arg5[%c0_26, %c0_27, %c0_28] : memref<1x128x512xf32, #tpu.memory_space<vmem>>, vector<1x128x512xf32>
    %43 = vector.shape_cast %42 : vector<1x128x512xf32> to vector<128x512xf32>
    %cst_29 = arith.constant dense<0.000000e+00> : vector<8x512xf32>
    %44 = tpu.matmul %31, %43, %cst_29 {dimension_numbers = #tpu.dot_dimension_numbers<[1], [0], [0], [1], [0, 0, 1, 1], [], []>} : vector<8x128xf32>, vector<128x512xf32>, vector<8x512xf32> -> vector<8x512xf32>
    %c1_30 = arith.constant 1 : index
    %c0_31 = arith.constant 0 : index
    %c0_32 = arith.constant 0 : index
    %45 = vector.load %arg4[%c1_30, %c0_31, %c0_32] : memref<2x128x512xf32, #tpu.memory_space<vmem>>, vector<1x128x512xf32>
    %46 = vector.shape_cast %45 : vector<1x128x512xf32> to vector<128x512xf32>
    %cst_33 = arith.constant dense<0.000000e+00> : vector<8x512xf32>
    %47 = tpu.matmul %39, %46, %cst_33 {dimension_numbers = #tpu.dot_dimension_numbers<[1], [0], [0], [1], [0, 0, 1, 1], [], []>} : vector<8x128xf32>, vector<128x512xf32>, vector<8x512xf32> -> vector<8x512xf32>
    %48 = arith.addf %44, %47 : vector<8x512xf32>
    %c0_34 = arith.constant 0 : index
    %c0_35 = arith.constant 0 : index
    %c0_36 = arith.constant 0 : index
    %49 = vector.load %arg6[%c0_34, %c0_35, %c0_36] : memref<1x8x512xf32, #tpu.memory_space<vmem>>, vector<1x8x512xf32>
    %50 = vector.shape_cast %49 : vector<1x8x512xf32> to vector<8x512xf32>
    %51 = arith.addf %48, %50 : vector<8x512xf32>
    %52 = vector.extract_strided_slice %51 {offsets = [0, 0], sizes = [8, 384], strides = [1, 1]} : vector<8x512xf32> to vector<8x384xf32>
    %cst_37 = arith.constant 5.000000e-01 : f32
    %53 = vector.broadcast %cst_37 : f32 to vector<8x384xf32>
    %54 = arith.mulf %53, %52 : vector<8x384xf32>
    %55 = math.tanh %54 : vector<8x384xf32>
    %cst_38 = arith.constant 5.000000e-01 : f32
    %56 = vector.broadcast %cst_38 : f32 to vector<8x384xf32>
    %57 = arith.mulf %56, %55 : vector<8x384xf32>
    %cst_39 = arith.constant 5.000000e-01 : f32
    %58 = vector.broadcast %cst_39 : f32 to vector<8x384xf32>
    %59 = arith.addf %57, %58 : vector<8x384xf32>
    %60 = vector.extract_strided_slice %51 {offsets = [0, 384], sizes = [8, 128], strides = [1, 1]} : vector<8x512xf32> to vector<8x128xf32>
    %61 = math.tanh %60 : vector<8x128xf32>
    %62 = vector.extract_strided_slice %59 {offsets = [0, 0], sizes = [8, 128], strides = [1, 1]} : vector<8x384xf32> to vector<8x128xf32>
    %63 = vector.extract_strided_slice %59 {offsets = [0, 128], sizes = [8, 128], strides = [1, 1]} : vector<8x384xf32> to vector<8x128xf32>
    %64 = vector.extract_strided_slice %59 {offsets = [0, 256], sizes = [8, 128], strides = [1, 1]} : vector<8x384xf32> to vector<8x128xf32>
    %65 = arith.mulf %63, %41 : vector<8x128xf32>
    %66 = arith.mulf %62, %61 : vector<8x128xf32>
    %67 = arith.addf %65, %66 : vector<8x128xf32>
    %68 = math.tanh %67 : vector<8x128xf32>
    %69 = arith.mulf %64, %68 : vector<8x128xf32>
    %c1_40 = arith.constant 1 : index
    %c0_41 = arith.constant 0 : index
    %c0_42 = arith.constant 0 : index
    %70 = vector.load %arg8[%c1_40, %c0_41, %c0_42] : memref<2x8x128xf32, #tpu.memory_space<vmem>>, vector<1x8x128xf32>
    %71 = vector.shape_cast %70 : vector<1x8x128xf32> to vector<8x128xf32>
    %72 = vector.shape_cast %69 : vector<8x128xf32> to vector<1x8x128xf32>
    tpu.vector_store %arg8[%c1_40, %c0_41, %c0_42], %72 {strides = array<i32>} : memref<2x8x128xf32, #tpu.memory_space<vmem>>, vector<1x8x128xf32>,
    %c1_43 = arith.constant 1 : index
    %c0_44 = arith.constant 0 : index
    %c0_45 = arith.constant 0 : index
    %73 = vector.load %arg9[%c1_43, %c0_44, %c0_45] : memref<2x8x128xf32, #tpu.memory_space<vmem>>, vector<1x8x128xf32>
    %74 = vector.shape_cast %73 : vector<1x8x128xf32> to vector<8x128xf32>
    %75 = vector.shape_cast %67 : vector<8x128xf32> to vector<1x8x128xf32>
    tpu.vector_store %arg9[%c1_43, %c0_44, %c0_45], %75 {strides = array<i32>} : memref<2x8x128xf32, #tpu.memory_space<vmem>>, vector<1x8x128xf32>,
    %76 = arith.index_cast %c0_i32_1 : i32 to index
    %c0_46 = arith.constant 0 : index
    %c0_47 = arith.constant 0 : index
    %77 = vector.load %arg7[%76, %c0_46, %c0_47] : memref<8x8x128xf32, #tpu.memory_space<vmem>>, vector<1x8x128xf32>
    %78 = vector.shape_cast %77 : vector<1x8x128xf32> to vector<8x128xf32>
    %79 = vector.shape_cast %69 : vector<8x128xf32> to vector<1x8x128xf32>
    tpu.vector_store %arg7[%76, %c0_46, %c0_47], %79 {strides = array<i32>} : memref<8x8x128xf32, #tpu.memory_space<vmem>>, vector<1x8x128xf32>,
    %c1_i32 = arith.constant 1 : i32
    %c0_48 = arith.constant 0 : index
    %c0_49 = arith.constant 0 : index
    %c0_50 = arith.constant 0 : index
    %80 = vector.load %arg8[%c0_48, %c0_49, %c0_50] : memref<2x8x128xf32, #tpu.memory_space<vmem>>, vector<1x8x128xf32>
    %81 = vector.shape_cast %80 : vector<1x8x128xf32> to vector<8x128xf32>
    %c0_51 = arith.constant 0 : index
    %c0_52 = arith.constant 0 : index
    %c0_53 = arith.constant 0 : index
    %82 = vector.load %arg9[%c0_51, %c0_52, %c0_53] : memref<2x8x128xf32, #tpu.memory_space<vmem>>, vector<1x8x128xf32>
    %83 = vector.shape_cast %82 : vector<1x8x128xf32> to vector<8x128xf32>
    %84 = arith.index_cast %c1_i32 : i32 to index
    %c0_54 = arith.constant 0 : index
    %c0_55 = arith.constant 0 : index
    %85 = vector.load %arg1[%84, %c0_54, %c0_55] : memref<8x8x512xf32, #tpu.memory_space<vmem>>, vector<1x8x512xf32>
    %86 = vector.shape_cast %85 : vector<1x8x512xf32> to vector<8x512xf32>
    %c0_56 = arith.constant 0 : index
    %c0_57 = arith.constant 0 : index
    %c0_58 = arith.constant 0 : index
    %87 = vector.load %arg4[%c0_56, %c0_57, %c0_58] : memref<2x128x512xf32, #tpu.memory_space<vmem>>, vector<1x128x512xf32>
    %88 = vector.shape_cast %87 : vector<1x128x512xf32> to vector<128x512xf32>
    %cst_59 = arith.constant dense<0.000000e+00> : vector<8x512xf32>
    %89 = tpu.matmul %81, %88, %cst_59 {dimension_numbers = #tpu.dot_dimension_numbers<[1], [0], [0], [1], [0, 0, 1, 1], [], []>} : vector<8x128xf32>, vector<128x512xf32>, vector<8x512xf32> -> vector<8x512xf32>
    %90 = arith.addf %86, %89 : vector<8x512xf32>
    %91 = vector.extract_strided_slice %90 {offsets = [0, 0], sizes = [8, 384], strides = [1, 1]} : vector<8x512xf32> to vector<8x384xf32>
    %cst_60 = arith.constant 5.000000e-01 : f32
    %92 = vector.broadcast %cst_60 : f32 to vector<8x384xf32>
    %93 = arith.mulf %92, %91 : vector<8x384xf32>
    %94 = math.tanh %93 : vector<8x384xf32>
    %cst_61 = arith.constant 5.000000e-01 : f32
    %95 = vector.broadcast %cst_61 : f32 to vector<8x384xf32>
    %96 = arith.mulf %95, %94 : vector<8x384xf32>
    %cst_62 = arith.constant 5.000000e-01 : f32
    %97 = vector.broadcast %cst_62 : f32 to vector<8x384xf32>
    %98 = arith.addf %96, %97 : vector<8x384xf32>
    %99 = vector.extract_strided_slice %90 {offsets = [0, 384], sizes = [8, 128], strides = [1, 1]} : vector<8x512xf32> to vector<8x128xf32>
    %100 = math.tanh %99 : vector<8x128xf32>
    %101 = vector.extract_strided_slice %98 {offsets = [0, 0], sizes = [8, 128], strides = [1, 1]} : vector<8x384xf32> to vector<8x128xf32>
    %102 = vector.extract_strided_slice %98 {offsets = [0, 128], sizes = [8, 128], strides = [1, 1]} : vector<8x384xf32> to vector<8x128xf32>
    %103 = vector.extract_strided_slice %98 {offsets = [0, 256], sizes = [8, 128], strides = [1, 1]} : vector<8x384xf32> to vector<8x128xf32>
    %104 = arith.mulf %102, %83 : vector<8x128xf32>
    %105 = arith.mulf %101, %100 : vector<8x128xf32>
    %106 = arith.addf %104, %105 : vector<8x128xf32>
    %107 = math.tanh %106 : vector<8x128xf32>
    %108 = arith.mulf %103, %107 : vector<8x128xf32>
    %c0_63 = arith.constant 0 : index
    %c0_64 = arith.constant 0 : index
    %c0_65 = arith.constant 0 : index
    %109 = vector.load %arg8[%c0_63, %c0_64, %c0_65] : memref<2x8x128xf32, #tpu.memory_space<vmem>>, vector<1x8x128xf32>
    %110 = vector.shape_cast %109 : vector<1x8x128xf32> to vector<8x128xf32>
    %111 = vector.shape_cast %108 : vector<8x128xf32> to vector<1x8x128xf32>
    tpu.vector_store %arg8[%c0_63, %c0_64, %c0_65], %111 {strides = array<i32>} : memref<2x8x128xf32, #tpu.memory_space<vmem>>, vector<1x8x128xf32>,
    %c0_66 = arith.constant 0 : index
    %c0_67 = arith.constant 0 : index
    %c0_68 = arith.constant 0 : index
    %112 = vector.load %arg9[%c0_66, %c0_67, %c0_68] : memref<2x8x128xf32, #tpu.memory_space<vmem>>, vector<1x8x128xf32>
    %113 = vector.shape_cast %112 : vector<1x8x128xf32> to vector<8x128xf32>
    %114 = vector.shape_cast %106 : vector<8x128xf32> to vector<1x8x128xf32>
    tpu.vector_store %arg9[%c0_66, %c0_67, %c0_68], %114 {strides = array<i32>} : memref<2x8x128xf32, #tpu.memory_space<vmem>>, vector<1x8x128xf32>,
    %c1_69 = arith.constant 1 : index
    %c0_70 = arith.constant 0 : index
    %c0_71 = arith.constant 0 : index
    %115 = vector.load %arg8[%c1_69, %c0_70, %c0_71] : memref<2x8x128xf32, #tpu.memory_space<vmem>>, vector<1x8x128xf32>
    %116 = vector.shape_cast %115 : vector<1x8x128xf32> to vector<8x128xf32>
    %c1_72 = arith.constant 1 : index
    %c0_73 = arith.constant 0 : index
    %c0_74 = arith.constant 0 : index
    %117 = vector.load %arg9[%c1_72, %c0_73, %c0_74] : memref<2x8x128xf32, #tpu.memory_space<vmem>>, vector<1x8x128xf32>
    %118 = vector.shape_cast %117 : vector<1x8x128xf32> to vector<8x128xf32>
    %c0_75 = arith.constant 0 : index
    %c0_76 = arith.constant 0 : index
    %c0_77 = arith.constant 0 : index
    %119 = vector.load %arg5[%c0_75, %c0_76, %c0_77] : memref<1x128x512xf32, #tpu.memory_space<vmem>>, vector<1x128x512xf32>
    %120 = vector.shape_cast %119 : vector<1x128x512xf32> to vector<128x512xf32>
    %cst_78 = arith.constant dense<0.000000e+00> : vector<8x512xf32>
    %121 = tpu.matmul %108, %120, %cst_78 {dimension_numbers = #tpu.dot_dimension_numbers<[1], [0], [0], [1], [0, 0, 1, 1], [], []>} : vector<8x128xf32>, vector<128x512xf32>, vector<8x512xf32> -> vector<8x512xf32>
    %c1_79 = arith.constant 1 : index
    %c0_80 = arith.constant 0 : index
    %c0_81 = arith.constant 0 : index
    %122 = vector.load %arg4[%c1_79, %c0_80, %c0_81] : memref<2x128x512xf32, #tpu.memory_space<vmem>>, vector<1x128x512xf32>
    %123 = vector.shape_cast %122 : vector<1x128x512xf32> to vector<128x512xf32>
    %cst_82 = arith.constant dense<0.000000e+00> : vector<8x512xf32>
    %124 = tpu.matmul %116, %123, %cst_82 {dimension_numbers = #tpu.dot_dimension_numbers<[1], [0], [0], [1], [0, 0, 1, 1], [], []>} : vector<8x128xf32>, vector<128x512xf32>, vector<8x512xf32> -> vector<8x512xf32>
    %125 = arith.addf %121, %124 : vector<8x512xf32>
    %c0_83 = arith.constant 0 : index
    %c0_84 = arith.constant 0 : index
    %c0_85 = arith.constant 0 : index
    %126 = vector.load %arg6[%c0_83, %c0_84, %c0_85] : memref<1x8x512xf32, #tpu.memory_space<vmem>>, vector<1x8x512xf32>
    %127 = vector.shape_cast %126 : vector<1x8x512xf32> to vector<8x512xf32>
    %128 = arith.addf %125, %127 : vector<8x512xf32>
    %129 = vector.extract_strided_slice %128 {offsets = [0, 0], sizes = [8, 384], strides = [1, 1]} : vector<8x512xf32> to vector<8x384xf32>
    %cst_86 = arith.constant 5.000000e-01 : f32
    %130 = vector.broadcast %cst_86 : f32 to vector<8x384xf32>
    %131 = arith.mulf %130, %129 : vector<8x384xf32>
    %132 = math.tanh %131 : vector<8x384xf32>
    %cst_87 = arith.constant 5.000000e-01 : f32
    %133 = vector.broadcast %cst_87 : f32 to vector<8x384xf32>
    %134 = arith.mulf %133, %132 : vector<8x384xf32>
    %cst_88 = arith.constant 5.000000e-01 : f32
    %135 = vector.broadcast %cst_88 : f32 to vector<8x384xf32>
    %136 = arith.addf %134, %135 : vector<8x384xf32>
    %137 = vector.extract_strided_slice %128 {offsets = [0, 384], sizes = [8, 128], strides = [1, 1]} : vector<8x512xf32> to vector<8x128xf32>
    %138 = math.tanh %137 : vector<8x128xf32>
    %139 = vector.extract_strided_slice %136 {offsets = [0, 0], sizes = [8, 128], strides = [1, 1]} : vector<8x384xf32> to vector<8x128xf32>
    %140 = vector.extract_strided_slice %136 {offsets = [0, 128], sizes = [8, 128], strides = [1, 1]} : vector<8x384xf32> to vector<8x128xf32>
    %141 = vector.extract_strided_slice %136 {offsets = [0, 256], sizes = [8, 128], strides = [1, 1]} : vector<8x384xf32> to vector<8x128xf32>
    %142 = arith.mulf %140, %118 : vector<8x128xf32>
    %143 = arith.mulf %139, %138 : vector<8x128xf32>
    %144 = arith.addf %142, %143 : vector<8x128xf32>
    %145 = math.tanh %144 : vector<8x128xf32>
    %146 = arith.mulf %141, %145 : vector<8x128xf32>
    %c1_89 = arith.constant 1 : index
    %c0_90 = arith.constant 0 : index
    %c0_91 = arith.constant 0 : index
    %147 = vector.load %arg8[%c1_89, %c0_90, %c0_91] : memref<2x8x128xf32, #tpu.memory_space<vmem>>, vector<1x8x128xf32>
    %148 = vector.shape_cast %147 : vector<1x8x128xf32> to vector<8x128xf32>
    %149 = vector.shape_cast %146 : vector<8x128xf32> to vector<1x8x128xf32>
    tpu.vector_store %arg8[%c1_89, %c0_90, %c0_91], %149 {strides = array<i32>} : memref<2x8x128xf32, #tpu.memory_space<vmem>>, vector<1x8x128xf32>,
    %c1_92 = arith.constant 1 : index
    %c0_93 = arith.constant 0 : index
    %c0_94 = arith.constant 0 : index
    %150 = vector.load %arg9[%c1_92, %c0_93, %c0_94] : memref<2x8x128xf32, #tpu.memory_space<vmem>>, vector<1x8x128xf32>
    %151 = vector.shape_cast %150 : vector<1x8x128xf32> to vector<8x128xf32>
    %152 = vector.shape_cast %144 : vector<8x128xf32> to vector<1x8x128xf32>
    tpu.vector_store %arg9[%c1_92, %c0_93, %c0_94], %152 {strides = array<i32>} : memref<2x8x128xf32, #tpu.memory_space<vmem>>, vector<1x8x128xf32>,
    %153 = arith.index_cast %c1_i32 : i32 to index
    %c0_95 = arith.constant 0 : index
    %c0_96 = arith.constant 0 : index
    %154 = vector.load %arg7[%153, %c0_95, %c0_96] : memref<8x8x128xf32, #tpu.memory_space<vmem>>, vector<1x8x128xf32>
    %155 = vector.shape_cast %154 : vector<1x8x128xf32> to vector<8x128xf32>
    %156 = vector.shape_cast %146 : vector<8x128xf32> to vector<1x8x128xf32>
    tpu.vector_store %arg7[%153, %c0_95, %c0_96], %156 {strides = array<i32>} : memref<8x8x128xf32, #tpu.memory_space<vmem>>, vector<1x8x128xf32>,
    %c2_i32 = arith.constant 2 : i32
    %c0_97 = arith.constant 0 : index
    %c0_98 = arith.constant 0 : index
    %c0_99 = arith.constant 0 : index
    %157 = vector.load %arg8[%c0_97, %c0_98, %c0_99] : memref<2x8x128xf32, #tpu.memory_space<vmem>>, vector<1x8x128xf32>
    %158 = vector.shape_cast %157 : vector<1x8x128xf32> to vector<8x128xf32>
    %c0_100 = arith.constant 0 : index
    %c0_101 = arith.constant 0 : index
    %c0_102 = arith.constant 0 : index
    %159 = vector.load %arg9[%c0_100, %c0_101, %c0_102] : memref<2x8x128xf32, #tpu.memory_space<vmem>>, vector<1x8x128xf32>
    %160 = vector.shape_cast %159 : vector<1x8x128xf32> to vector<8x128xf32>
    %161 = arith.index_cast %c2_i32 : i32 to index
    %c0_103 = arith.constant 0 : index
    %c0_104 = arith.constant 0 : index
    %162 = vector.load %arg1[%161, %c0_103, %c0_104] : memref<8x8x512xf32, #tpu.memory_space<vmem>>, vector<1x8x512xf32>
    %163 = vector.shape_cast %162 : vector<1x8x512xf32> to vector<8x512xf32>
    %c0_105 = arith.constant 0 : index
    %c0_106 = arith.constant 0 : index
    %c0_107 = arith.constant 0 : index
    %164 = vector.load %arg4[%c0_105, %c0_106, %c0_107] : memref<2x128x512xf32, #tpu.memory_space<vmem>>, vector<1x128x512xf32>
    %165 = vector.shape_cast %164 : vector<1x128x512xf32> to vector<128x512xf32>
    %cst_108 = arith.constant dense<0.000000e+00> : vector<8x512xf32>
    %166 = tpu.matmul %158, %165, %cst_108 {dimension_numbers = #tpu.dot_dimension_numbers<[1], [0], [0], [1], [0, 0, 1, 1], [], []>} : vector<8x128xf32>, vector<128x512xf32>, vector<8x512xf32> -> vector<8x512xf32>
    %167 = arith.addf %163, %166 : vector<8x512xf32>
    %168 = vector.extract_strided_slice %167 {offsets = [0, 0], sizes = [8, 384], strides = [1, 1]} : vector<8x512xf32> to vector<8x384xf32>
    %cst_109 = arith.constant 5.000000e-01 : f32
    %169 = vector.broadcast %cst_109 : f32 to vector<8x384xf32>
    %170 = arith.mulf %169, %168 : vector<8x384xf32>
    %171 = math.tanh %170 : vector<8x384xf32>
    %cst_110 = arith.constant 5.000000e-01 : f32
    %172 = vector.broadcast %cst_110 : f32 to vector<8x384xf32>
    %173 = arith.mulf %172, %171 : vector<8x384xf32>
    %cst_111 = arith.constant 5.000000e-01 : f32
    %174 = vector.broadcast %cst_111 : f32 to vector<8x384xf32>
    %175 = arith.addf %173, %174 : vector<8x384xf32>
    %176 = vector.extract_strided_slice %167 {offsets = [0, 384], sizes = [8, 128], strides = [1, 1]} : vector<8x512xf32> to vector<8x128xf32>
    %177 = math.tanh %176 : vector<8x128xf32>
    %178 = vector.extract_strided_slice %175 {offsets = [0, 0], sizes = [8, 128], strides = [1, 1]} : vector<8x384xf32> to vector<8x128xf32>
    %179 = vector.extract_strided_slice %175 {offsets = [0, 128], sizes = [8, 128], strides = [1, 1]} : vector<8x384xf32> to vector<8x128xf32>
    %180 = vector.extract_strided_slice %175 {offsets = [0, 256], sizes = [8, 128], strides = [1, 1]} : vector<8x384xf32> to vector<8x128xf32>
    %181 = arith.mulf %179, %160 : vector<8x128xf32>
    %182 = arith.mulf %178, %177 : vector<8x128xf32>
    %183 = arith.addf %181, %182 : vector<8x128xf32>
    %184 = math.tanh %183 : vector<8x128xf32>
    %185 = arith.mulf %180, %184 : vector<8x128xf32>
    %c0_112 = arith.constant 0 : index
    %c0_113 = arith.constant 0 : index
    %c0_114 = arith.constant 0 : index
    %186 = vector.load %arg8[%c0_112, %c0_113, %c0_114] : memref<2x8x128xf32, #tpu.memory_space<vmem>>, vector<1x8x128xf32>
    %187 = vector.shape_cast %186 : vector<1x8x128xf32> to vector<8x128xf32>
    %188 = vector.shape_cast %185 : vector<8x128xf32> to vector<1x8x128xf32>
    tpu.vector_store %arg8[%c0_112, %c0_113, %c0_114], %188 {strides = array<i32>} : memref<2x8x128xf32, #tpu.memory_space<vmem>>, vector<1x8x128xf32>,
    %c0_115 = arith.constant 0 : index
    %c0_116 = arith.constant 0 : index
    %c0_117 = arith.constant 0 : index
    %189 = vector.load %arg9[%c0_115, %c0_116, %c0_117] : memref<2x8x128xf32, #tpu.memory_space<vmem>>, vector<1x8x128xf32>
    %190 = vector.shape_cast %189 : vector<1x8x128xf32> to vector<8x128xf32>
    %191 = vector.shape_cast %183 : vector<8x128xf32> to vector<1x8x128xf32>
    tpu.vector_store %arg9[%c0_115, %c0_116, %c0_117], %191 {strides = array<i32>} : memref<2x8x128xf32, #tpu.memory_space<vmem>>, vector<1x8x128xf32>,
    %c1_118 = arith.constant 1 : index
    %c0_119 = arith.constant 0 : index
    %c0_120 = arith.constant 0 : index
    %192 = vector.load %arg8[%c1_118, %c0_119, %c0_120] : memref<2x8x128xf32, #tpu.memory_space<vmem>>, vector<1x8x128xf32>
    %193 = vector.shape_cast %192 : vector<1x8x128xf32> to vector<8x128xf32>
    %c1_121 = arith.constant 1 : index
    %c0_122 = arith.constant 0 : index
    %c0_123 = arith.constant 0 : index
    %194 = vector.load %arg9[%c1_121, %c0_122, %c0_123] : memref<2x8x128xf32, #tpu.memory_space<vmem>>, vector<1x8x128xf32>
    %195 = vector.shape_cast %194 : vector<1x8x128xf32> to vector<8x128xf32>
    %c0_124 = arith.constant 0 : index
    %c0_125 = arith.constant 0 : index
    %c0_126 = arith.constant 0 : index
    %196 = vector.load %arg5[%c0_124, %c0_125, %c0_126] : memref<1x128x512xf32, #tpu.memory_space<vmem>>, vector<1x128x512xf32>
    %197 = vector.shape_cast %196 : vector<1x128x512xf32> to vector<128x512xf32>
    %cst_127 = arith.constant dense<0.000000e+00> : vector<8x512xf32>
    %198 = tpu.matmul %185, %197, %cst_127 {dimension_numbers = #tpu.dot_dimension_numbers<[1], [0], [0], [1], [0, 0, 1, 1], [], []>} : vector<8x128xf32>, vector<128x512xf32>, vector<8x512xf32> -> vector<8x512xf32>
    %c1_128 = arith.constant 1 : index
    %c0_129 = arith.constant 0 : index
    %c0_130 = arith.constant 0 : index
    %199 = vector.load %arg4[%c1_128, %c0_129, %c0_130] : memref<2x128x512xf32, #tpu.memory_space<vmem>>, vector<1x128x512xf32>
    %200 = vector.shape_cast %199 : vector<1x128x512xf32> to vector<128x512xf32>
    %cst_131 = arith.constant dense<0.000000e+00> : vector<8x512xf32>
    %201 = tpu.matmul %193, %200, %cst_131 {dimension_numbers = #tpu.dot_dimension_numbers<[1], [0], [0], [1], [0, 0, 1, 1], [], []>} : vector<8x128xf32>, vector<128x512xf32>, vector<8x512xf32> -> vector<8x512xf32>
    %202 = arith.addf %198, %201 : vector<8x512xf32>
    %c0_132 = arith.constant 0 : index
    %c0_133 = arith.constant 0 : index
    %c0_134 = arith.constant 0 : index
    %203 = vector.load %arg6[%c0_132, %c0_133, %c0_134] : memref<1x8x512xf32, #tpu.memory_space<vmem>>, vector<1x8x512xf32>
    %204 = vector.shape_cast %203 : vector<1x8x512xf32> to vector<8x512xf32>
    %205 = arith.addf %202, %204 : vector<8x512xf32>
    %206 = vector.extract_strided_slice %205 {offsets = [0, 0], sizes = [8, 384], strides = [1, 1]} : vector<8x512xf32> to vector<8x384xf32>
    %cst_135 = arith.constant 5.000000e-01 : f32
    %207 = vector.broadcast %cst_135 : f32 to vector<8x384xf32>
    %208 = arith.mulf %207, %206 : vector<8x384xf32>
    %209 = math.tanh %208 : vector<8x384xf32>
    %cst_136 = arith.constant 5.000000e-01 : f32
    %210 = vector.broadcast %cst_136 : f32 to vector<8x384xf32>
    %211 = arith.mulf %210, %209 : vector<8x384xf32>
    %cst_137 = arith.constant 5.000000e-01 : f32
    %212 = vector.broadcast %cst_137 : f32 to vector<8x384xf32>
    %213 = arith.addf %211, %212 : vector<8x384xf32>
    %214 = vector.extract_strided_slice %205 {offsets = [0, 384], sizes = [8, 128], strides = [1, 1]} : vector<8x512xf32> to vector<8x128xf32>
    %215 = math.tanh %214 : vector<8x128xf32>
    %216 = vector.extract_strided_slice %213 {offsets = [0, 0], sizes = [8, 128], strides = [1, 1]} : vector<8x384xf32> to vector<8x128xf32>
    %217 = vector.extract_strided_slice %213 {offsets = [0, 128], sizes = [8, 128], strides = [1, 1]} : vector<8x384xf32> to vector<8x128xf32>
    %218 = vector.extract_strided_slice %213 {offsets = [0, 256], sizes = [8, 128], strides = [1, 1]} : vector<8x384xf32> to vector<8x128xf32>
    %219 = arith.mulf %217, %195 : vector<8x128xf32>
    %220 = arith.mulf %216, %215 : vector<8x128xf32>
    %221 = arith.addf %219, %220 : vector<8x128xf32>
    %222 = math.tanh %221 : vector<8x128xf32>
    %223 = arith.mulf %218, %222 : vector<8x128xf32>
    %c1_138 = arith.constant 1 : index
    %c0_139 = arith.constant 0 : index
    %c0_140 = arith.constant 0 : index
    %224 = vector.load %arg8[%c1_138, %c0_139, %c0_140] : memref<2x8x128xf32, #tpu.memory_space<vmem>>, vector<1x8x128xf32>
    %225 = vector.shape_cast %224 : vector<1x8x128xf32> to vector<8x128xf32>
    %226 = vector.shape_cast %223 : vector<8x128xf32> to vector<1x8x128xf32>
    tpu.vector_store %arg8[%c1_138, %c0_139, %c0_140], %226 {strides = array<i32>} : memref<2x8x128xf32, #tpu.memory_space<vmem>>, vector<1x8x128xf32>,
    %c1_141 = arith.constant 1 : index
    %c0_142 = arith.constant 0 : index
    %c0_143 = arith.constant 0 : index
    %227 = vector.load %arg9[%c1_141, %c0_142, %c0_143] : memref<2x8x128xf32, #tpu.memory_space<vmem>>, vector<1x8x128xf32>
    %228 = vector.shape_cast %227 : vector<1x8x128xf32> to vector<8x128xf32>
    %229 = vector.shape_cast %221 : vector<8x128xf32> to vector<1x8x128xf32>
    tpu.vector_store %arg9[%c1_141, %c0_142, %c0_143], %229 {strides = array<i32>} : memref<2x8x128xf32, #tpu.memory_space<vmem>>, vector<1x8x128xf32>,
    %230 = arith.index_cast %c2_i32 : i32 to index
    %c0_144 = arith.constant 0 : index
    %c0_145 = arith.constant 0 : index
    %231 = vector.load %arg7[%230, %c0_144, %c0_145] : memref<8x8x128xf32, #tpu.memory_space<vmem>>, vector<1x8x128xf32>
    %232 = vector.shape_cast %231 : vector<1x8x128xf32> to vector<8x128xf32>
    %233 = vector.shape_cast %223 : vector<8x128xf32> to vector<1x8x128xf32>
    tpu.vector_store %arg7[%230, %c0_144, %c0_145], %233 {strides = array<i32>} : memref<8x8x128xf32, #tpu.memory_space<vmem>>, vector<1x8x128xf32>,
    %c3_i32 = arith.constant 3 : i32
    %c0_146 = arith.constant 0 : index
    %c0_147 = arith.constant 0 : index
    %c0_148 = arith.constant 0 : index
    %234 = vector.load %arg8[%c0_146, %c0_147, %c0_148] : memref<2x8x128xf32, #tpu.memory_space<vmem>>, vector<1x8x128xf32>
    %235 = vector.shape_cast %234 : vector<1x8x128xf32> to vector<8x128xf32>
    %c0_149 = arith.constant 0 : index
    %c0_150 = arith.constant 0 : index
    %c0_151 = arith.constant 0 : index
    %236 = vector.load %arg9[%c0_149, %c0_150, %c0_151] : memref<2x8x128xf32, #tpu.memory_space<vmem>>, vector<1x8x128xf32>
    %237 = vector.shape_cast %236 : vector<1x8x128xf32> to vector<8x128xf32>
    %238 = arith.index_cast %c3_i32 : i32 to index
    %c0_152 = arith.constant 0 : index
    %c0_153 = arith.constant 0 : index
    %239 = vector.load %arg1[%238, %c0_152, %c0_153] : memref<8x8x512xf32, #tpu.memory_space<vmem>>, vector<1x8x512xf32>
    %240 = vector.shape_cast %239 : vector<1x8x512xf32> to vector<8x512xf32>
    %c0_154 = arith.constant 0 : index
    %c0_155 = arith.constant 0 : index
    %c0_156 = arith.constant 0 : index
    %241 = vector.load %arg4[%c0_154, %c0_155, %c0_156] : memref<2x128x512xf32, #tpu.memory_space<vmem>>, vector<1x128x512xf32>
    %242 = vector.shape_cast %241 : vector<1x128x512xf32> to vector<128x512xf32>
    %cst_157 = arith.constant dense<0.000000e+00> : vector<8x512xf32>
    %243 = tpu.matmul %235, %242, %cst_157 {dimension_numbers = #tpu.dot_dimension_numbers<[1], [0], [0], [1], [0, 0, 1, 1], [], []>} : vector<8x128xf32>, vector<128x512xf32>, vector<8x512xf32> -> vector<8x512xf32>
    %244 = arith.addf %240, %243 : vector<8x512xf32>
    %245 = vector.extract_strided_slice %244 {offsets = [0, 0], sizes = [8, 384], strides = [1, 1]} : vector<8x512xf32> to vector<8x384xf32>
    %cst_158 = arith.constant 5.000000e-01 : f32
    %246 = vector.broadcast %cst_158 : f32 to vector<8x384xf32>
    %247 = arith.mulf %246, %245 : vector<8x384xf32>
    %248 = math.tanh %247 : vector<8x384xf32>
    %cst_159 = arith.constant 5.000000e-01 : f32
    %249 = vector.broadcast %cst_159 : f32 to vector<8x384xf32>
    %250 = arith.mulf %249, %248 : vector<8x384xf32>
    %cst_160 = arith.constant 5.000000e-01 : f32
    %251 = vector.broadcast %cst_160 : f32 to vector<8x384xf32>
    %252 = arith.addf %250, %251 : vector<8x384xf32>
    %253 = vector.extract_strided_slice %244 {offsets = [0, 384], sizes = [8, 128], strides = [1, 1]} : vector<8x512xf32> to vector<8x128xf32>
    %254 = math.tanh %253 : vector<8x128xf32>
    %255 = vector.extract_strided_slice %252 {offsets = [0, 0], sizes = [8, 128], strides = [1, 1]} : vector<8x384xf32> to vector<8x128xf32>
    %256 = vector.extract_strided_slice %252 {offsets = [0, 128], sizes = [8, 128], strides = [1, 1]} : vector<8x384xf32> to vector<8x128xf32>
    %257 = vector.extract_strided_slice %252 {offsets = [0, 256], sizes = [8, 128], strides = [1, 1]} : vector<8x384xf32> to vector<8x128xf32>
    %258 = arith.mulf %256, %237 : vector<8x128xf32>
    %259 = arith.mulf %255, %254 : vector<8x128xf32>
    %260 = arith.addf %258, %259 : vector<8x128xf32>
    %261 = math.tanh %260 : vector<8x128xf32>
    %262 = arith.mulf %257, %261 : vector<8x128xf32>
    %c0_161 = arith.constant 0 : index
    %c0_162 = arith.constant 0 : index
    %c0_163 = arith.constant 0 : index
    %263 = vector.load %arg8[%c0_161, %c0_162, %c0_163] : memref<2x8x128xf32, #tpu.memory_space<vmem>>, vector<1x8x128xf32>
    %264 = vector.shape_cast %263 : vector<1x8x128xf32> to vector<8x128xf32>
    %265 = vector.shape_cast %262 : vector<8x128xf32> to vector<1x8x128xf32>
    tpu.vector_store %arg8[%c0_161, %c0_162, %c0_163], %265 {strides = array<i32>} : memref<2x8x128xf32, #tpu.memory_space<vmem>>, vector<1x8x128xf32>,
    %c0_164 = arith.constant 0 : index
    %c0_165 = arith.constant 0 : index
    %c0_166 = arith.constant 0 : index
    %266 = vector.load %arg9[%c0_164, %c0_165, %c0_166] : memref<2x8x128xf32, #tpu.memory_space<vmem>>, vector<1x8x128xf32>
    %267 = vector.shape_cast %266 : vector<1x8x128xf32> to vector<8x128xf32>
    %268 = vector.shape_cast %260 : vector<8x128xf32> to vector<1x8x128xf32>
    tpu.vector_store %arg9[%c0_164, %c0_165, %c0_166], %268 {strides = array<i32>} : memref<2x8x128xf32, #tpu.memory_space<vmem>>, vector<1x8x128xf32>,
    %c1_167 = arith.constant 1 : index
    %c0_168 = arith.constant 0 : index
    %c0_169 = arith.constant 0 : index
    %269 = vector.load %arg8[%c1_167, %c0_168, %c0_169] : memref<2x8x128xf32, #tpu.memory_space<vmem>>, vector<1x8x128xf32>
    %270 = vector.shape_cast %269 : vector<1x8x128xf32> to vector<8x128xf32>
    %c1_170 = arith.constant 1 : index
    %c0_171 = arith.constant 0 : index
    %c0_172 = arith.constant 0 : index
    %271 = vector.load %arg9[%c1_170, %c0_171, %c0_172] : memref<2x8x128xf32, #tpu.memory_space<vmem>>, vector<1x8x128xf32>
    %272 = vector.shape_cast %271 : vector<1x8x128xf32> to vector<8x128xf32>
    %c0_173 = arith.constant 0 : index
    %c0_174 = arith.constant 0 : index
    %c0_175 = arith.constant 0 : index
    %273 = vector.load %arg5[%c0_173, %c0_174, %c0_175] : memref<1x128x512xf32, #tpu.memory_space<vmem>>, vector<1x128x512xf32>
    %274 = vector.shape_cast %273 : vector<1x128x512xf32> to vector<128x512xf32>
    %cst_176 = arith.constant dense<0.000000e+00> : vector<8x512xf32>
    %275 = tpu.matmul %262, %274, %cst_176 {dimension_numbers = #tpu.dot_dimension_numbers<[1], [0], [0], [1], [0, 0, 1, 1], [], []>} : vector<8x128xf32>, vector<128x512xf32>, vector<8x512xf32> -> vector<8x512xf32>
    %c1_177 = arith.constant 1 : index
    %c0_178 = arith.constant 0 : index
    %c0_179 = arith.constant 0 : index
    %276 = vector.load %arg4[%c1_177, %c0_178, %c0_179] : memref<2x128x512xf32, #tpu.memory_space<vmem>>, vector<1x128x512xf32>
    %277 = vector.shape_cast %276 : vector<1x128x512xf32> to vector<128x512xf32>
    %cst_180 = arith.constant dense<0.000000e+00> : vector<8x512xf32>
    %278 = tpu.matmul %270, %277, %cst_180 {dimension_numbers = #tpu.dot_dimension_numbers<[1], [0], [0], [1], [0, 0, 1, 1], [], []>} : vector<8x128xf32>, vector<128x512xf32>, vector<8x512xf32> -> vector<8x512xf32>
    %279 = arith.addf %275, %278 : vector<8x512xf32>
    %c0_181 = arith.constant 0 : index
    %c0_182 = arith.constant 0 : index
    %c0_183 = arith.constant 0 : index
    %280 = vector.load %arg6[%c0_181, %c0_182, %c0_183] : memref<1x8x512xf32, #tpu.memory_space<vmem>>, vector<1x8x512xf32>
    %281 = vector.shape_cast %280 : vector<1x8x512xf32> to vector<8x512xf32>
    %282 = arith.addf %279, %281 : vector<8x512xf32>
    %283 = vector.extract_strided_slice %282 {offsets = [0, 0], sizes = [8, 384], strides = [1, 1]} : vector<8x512xf32> to vector<8x384xf32>
    %cst_184 = arith.constant 5.000000e-01 : f32
    %284 = vector.broadcast %cst_184 : f32 to vector<8x384xf32>
    %285 = arith.mulf %284, %283 : vector<8x384xf32>
    %286 = math.tanh %285 : vector<8x384xf32>
    %cst_185 = arith.constant 5.000000e-01 : f32
    %287 = vector.broadcast %cst_185 : f32 to vector<8x384xf32>
    %288 = arith.mulf %287, %286 : vector<8x384xf32>
    %cst_186 = arith.constant 5.000000e-01 : f32
    %289 = vector.broadcast %cst_186 : f32 to vector<8x384xf32>
    %290 = arith.addf %288, %289 : vector<8x384xf32>
    %291 = vector.extract_strided_slice %282 {offsets = [0, 384], sizes = [8, 128], strides = [1, 1]} : vector<8x512xf32> to vector<8x128xf32>
    %292 = math.tanh %291 : vector<8x128xf32>
    %293 = vector.extract_strided_slice %290 {offsets = [0, 0], sizes = [8, 128], strides = [1, 1]} : vector<8x384xf32> to vector<8x128xf32>
    %294 = vector.extract_strided_slice %290 {offsets = [0, 128], sizes = [8, 128], strides = [1, 1]} : vector<8x384xf32> to vector<8x128xf32>
    %295 = vector.extract_strided_slice %290 {offsets = [0, 256], sizes = [8, 128], strides = [1, 1]} : vector<8x384xf32> to vector<8x128xf32>
    %296 = arith.mulf %294, %272 : vector<8x128xf32>
    %297 = arith.mulf %293, %292 : vector<8x128xf32>
    %298 = arith.addf %296, %297 : vector<8x128xf32>
    %299 = math.tanh %298 : vector<8x128xf32>
    %300 = arith.mulf %295, %299 : vector<8x128xf32>
    %c1_187 = arith.constant 1 : index
    %c0_188 = arith.constant 0 : index
    %c0_189 = arith.constant 0 : index
    %301 = vector.load %arg8[%c1_187, %c0_188, %c0_189] : memref<2x8x128xf32, #tpu.memory_space<vmem>>, vector<1x8x128xf32>
    %302 = vector.shape_cast %301 : vector<1x8x128xf32> to vector<8x128xf32>
    %303 = vector.shape_cast %300 : vector<8x128xf32> to vector<1x8x128xf32>
    tpu.vector_store %arg8[%c1_187, %c0_188, %c0_189], %303 {strides = array<i32>} : memref<2x8x128xf32, #tpu.memory_space<vmem>>, vector<1x8x128xf32>,
    %c1_190 = arith.constant 1 : index
    %c0_191 = arith.constant 0 : index
    %c0_192 = arith.constant 0 : index
    %304 = vector.load %arg9[%c1_190, %c0_191, %c0_192] : memref<2x8x128xf32, #tpu.memory_space<vmem>>, vector<1x8x128xf32>
    %305 = vector.shape_cast %304 : vector<1x8x128xf32> to vector<8x128xf32>
    %306 = vector.shape_cast %298 : vector<8x128xf32> to vector<1x8x128xf32>
    tpu.vector_store %arg9[%c1_190, %c0_191, %c0_192], %306 {strides = array<i32>} : memref<2x8x128xf32, #tpu.memory_space<vmem>>, vector<1x8x128xf32>,
    %307 = arith.index_cast %c3_i32 : i32 to index
    %c0_193 = arith.constant 0 : index
    %c0_194 = arith.constant 0 : index
    %308 = vector.load %arg7[%307, %c0_193, %c0_194] : memref<8x8x128xf32, #tpu.memory_space<vmem>>, vector<1x8x128xf32>
    %309 = vector.shape_cast %308 : vector<1x8x128xf32> to vector<8x128xf32>
    %310 = vector.shape_cast %300 : vector<8x128xf32> to vector<1x8x128xf32>
    tpu.vector_store %arg7[%307, %c0_193, %c0_194], %310 {strides = array<i32>} : memref<8x8x128xf32, #tpu.memory_space<vmem>>, vector<1x8x128xf32>,
    %c4_i32 = arith.constant 4 : i32
    %c0_195 = arith.constant 0 : index
    %c0_196 = arith.constant 0 : index
    %c0_197 = arith.constant 0 : index
    %311 = vector.load %arg8[%c0_195, %c0_196, %c0_197] : memref<2x8x128xf32, #tpu.memory_space<vmem>>, vector<1x8x128xf32>
    %312 = vector.shape_cast %311 : vector<1x8x128xf32> to vector<8x128xf32>
    %c0_198 = arith.constant 0 : index
    %c0_199 = arith.constant 0 : index
    %c0_200 = arith.constant 0 : index
    %313 = vector.load %arg9[%c0_198, %c0_199, %c0_200] : memref<2x8x128xf32, #tpu.memory_space<vmem>>, vector<1x8x128xf32>
    %314 = vector.shape_cast %313 : vector<1x8x128xf32> to vector<8x128xf32>
    %315 = arith.index_cast %c4_i32 : i32 to index
    %c0_201 = arith.constant 0 : index
    %c0_202 = arith.constant 0 : index
    %316 = vector.load %arg1[%315, %c0_201, %c0_202] : memref<8x8x512xf32, #tpu.memory_space<vmem>>, vector<1x8x512xf32>
    %317 = vector.shape_cast %316 : vector<1x8x512xf32> to vector<8x512xf32>
    %c0_203 = arith.constant 0 : index
    %c0_204 = arith.constant 0 : index
    %c0_205 = arith.constant 0 : index
    %318 = vector.load %arg4[%c0_203, %c0_204, %c0_205] : memref<2x128x512xf32, #tpu.memory_space<vmem>>, vector<1x128x512xf32>
    %319 = vector.shape_cast %318 : vector<1x128x512xf32> to vector<128x512xf32>
    %cst_206 = arith.constant dense<0.000000e+00> : vector<8x512xf32>
    %320 = tpu.matmul %312, %319, %cst_206 {dimension_numbers = #tpu.dot_dimension_numbers<[1], [0], [0], [1], [0, 0, 1, 1], [], []>} : vector<8x128xf32>, vector<128x512xf32>, vector<8x512xf32> -> vector<8x512xf32>
    %321 = arith.addf %317, %320 : vector<8x512xf32>
    %322 = vector.extract_strided_slice %321 {offsets = [0, 0], sizes = [8, 384], strides = [1, 1]} : vector<8x512xf32> to vector<8x384xf32>
    %cst_207 = arith.constant 5.000000e-01 : f32
    %323 = vector.broadcast %cst_207 : f32 to vector<8x384xf32>
    %324 = arith.mulf %323, %322 : vector<8x384xf32>
    %325 = math.tanh %324 : vector<8x384xf32>
    %cst_208 = arith.constant 5.000000e-01 : f32
    %326 = vector.broadcast %cst_208 : f32 to vector<8x384xf32>
    %327 = arith.mulf %326, %325 : vector<8x384xf32>
    %cst_209 = arith.constant 5.000000e-01 : f32
    %328 = vector.broadcast %cst_209 : f32 to vector<8x384xf32>
    %329 = arith.addf %327, %328 : vector<8x384xf32>
    %330 = vector.extract_strided_slice %321 {offsets = [0, 384], sizes = [8, 128], strides = [1, 1]} : vector<8x512xf32> to vector<8x128xf32>
    %331 = math.tanh %330 : vector<8x128xf32>
    %332 = vector.extract_strided_slice %329 {offsets = [0, 0], sizes = [8, 128], strides = [1, 1]} : vector<8x384xf32> to vector<8x128xf32>
    %333 = vector.extract_strided_slice %329 {offsets = [0, 128], sizes = [8, 128], strides = [1, 1]} : vector<8x384xf32> to vector<8x128xf32>
    %334 = vector.extract_strided_slice %329 {offsets = [0, 256], sizes = [8, 128], strides = [1, 1]} : vector<8x384xf32> to vector<8x128xf32>
    %335 = arith.mulf %333, %314 : vector<8x128xf32>
    %336 = arith.mulf %332, %331 : vector<8x128xf32>
    %337 = arith.addf %335, %336 : vector<8x128xf32>
    %338 = math.tanh %337 : vector<8x128xf32>
    %339 = arith.mulf %334, %338 : vector<8x128xf32>
    %c0_210 = arith.constant 0 : index
    %c0_211 = arith.constant 0 : index
    %c0_212 = arith.constant 0 : index
    %340 = vector.load %arg8[%c0_210, %c0_211, %c0_212] : memref<2x8x128xf32, #tpu.memory_space<vmem>>, vector<1x8x128xf32>
    %341 = vector.shape_cast %340 : vector<1x8x128xf32> to vector<8x128xf32>
    %342 = vector.shape_cast %339 : vector<8x128xf32> to vector<1x8x128xf32>
    tpu.vector_store %arg8[%c0_210, %c0_211, %c0_212], %342 {strides = array<i32>} : memref<2x8x128xf32, #tpu.memory_space<vmem>>, vector<1x8x128xf32>,
    %c0_213 = arith.constant 0 : index
    %c0_214 = arith.constant 0 : index
    %c0_215 = arith.constant 0 : index
    %343 = vector.load %arg9[%c0_213, %c0_214, %c0_215] : memref<2x8x128xf32, #tpu.memory_space<vmem>>, vector<1x8x128xf32>
    %344 = vector.shape_cast %343 : vector<1x8x128xf32> to vector<8x128xf32>
    %345 = vector.shape_cast %337 : vector<8x128xf32> to vector<1x8x128xf32>
    tpu.vector_store %arg9[%c0_213, %c0_214, %c0_215], %345 {strides = array<i32>} : memref<2x8x128xf32, #tpu.memory_space<vmem>>, vector<1x8x128xf32>,
    %c1_216 = arith.constant 1 : index
    %c0_217 = arith.constant 0 : index
    %c0_218 = arith.constant 0 : index
    %346 = vector.load %arg8[%c1_216, %c0_217, %c0_218] : memref<2x8x128xf32, #tpu.memory_space<vmem>>, vector<1x8x128xf32>
    %347 = vector.shape_cast %346 : vector<1x8x128xf32> to vector<8x128xf32>
    %c1_219 = arith.constant 1 : index
    %c0_220 = arith.constant 0 : index
    %c0_221 = arith.constant 0 : index
    %348 = vector.load %arg9[%c1_219, %c0_220, %c0_221] : memref<2x8x128xf32, #tpu.memory_space<vmem>>, vector<1x8x128xf32>
    %349 = vector.shape_cast %348 : vector<1x8x128xf32> to vector<8x128xf32>
    %c0_222 = arith.constant 0 : index
    %c0_223 = arith.constant 0 : index
    %c0_224 = arith.constant 0 : index
    %350 = vector.load %arg5[%c0_222, %c0_223, %c0_224] : memref<1x128x512xf32, #tpu.memory_space<vmem>>, vector<1x128x512xf32>
    %351 = vector.shape_cast %350 : vector<1x128x512xf32> to vector<128x512xf32>
    %cst_225 = arith.constant dense<0.000000e+00> : vector<8x512xf32>
    %352 = tpu.matmul %339, %351, %cst_225 {dimension_numbers = #tpu.dot_dimension_numbers<[1], [0], [0], [1], [0, 0, 1, 1], [], []>} : vector<8x128xf32>, vector<128x512xf32>, vector<8x512xf32> -> vector<8x512xf32>
    %c1_226 = arith.constant 1 : index
    %c0_227 = arith.constant 0 : index
    %c0_228 = arith.constant 0 : index
    %353 = vector.load %arg4[%c1_226, %c0_227, %c0_228] : memref<2x128x512xf32, #tpu.memory_space<vmem>>, vector<1x128x512xf32>
    %354 = vector.shape_cast %353 : vector<1x128x512xf32> to vector<128x512xf32>
    %cst_229 = arith.constant dense<0.000000e+00> : vector<8x512xf32>
    %355 = tpu.matmul %347, %354, %cst_229 {dimension_numbers = #tpu.dot_dimension_numbers<[1], [0], [0], [1], [0, 0, 1, 1], [], []>} : vector<8x128xf32>, vector<128x512xf32>, vector<8x512xf32> -> vector<8x512xf32>
    %356 = arith.addf %352, %355 : vector<8x512xf32>
    %c0_230 = arith.constant 0 : index
    %c0_231 = arith.constant 0 : index
    %c0_232 = arith.constant 0 : index
    %357 = vector.load %arg6[%c0_230, %c0_231, %c0_232] : memref<1x8x512xf32, #tpu.memory_space<vmem>>, vector<1x8x512xf32>
    %358 = vector.shape_cast %357 : vector<1x8x512xf32> to vector<8x512xf32>
    %359 = arith.addf %356, %358 : vector<8x512xf32>
    %360 = vector.extract_strided_slice %359 {offsets = [0, 0], sizes = [8, 384], strides = [1, 1]} : vector<8x512xf32> to vector<8x384xf32>
    %cst_233 = arith.constant 5.000000e-01 : f32
    %361 = vector.broadcast %cst_233 : f32 to vector<8x384xf32>
    %362 = arith.mulf %361, %360 : vector<8x384xf32>
    %363 = math.tanh %362 : vector<8x384xf32>
    %cst_234 = arith.constant 5.000000e-01 : f32
    %364 = vector.broadcast %cst_234 : f32 to vector<8x384xf32>
    %365 = arith.mulf %364, %363 : vector<8x384xf32>
    %cst_235 = arith.constant 5.000000e-01 : f32
    %366 = vector.broadcast %cst_235 : f32 to vector<8x384xf32>
    %367 = arith.addf %365, %366 : vector<8x384xf32>
    %368 = vector.extract_strided_slice %359 {offsets = [0, 384], sizes = [8, 128], strides = [1, 1]} : vector<8x512xf32> to vector<8x128xf32>
    %369 = math.tanh %368 : vector<8x128xf32>
    %370 = vector.extract_strided_slice %367 {offsets = [0, 0], sizes = [8, 128], strides = [1, 1]} : vector<8x384xf32> to vector<8x128xf32>
    %371 = vector.extract_strided_slice %367 {offsets = [0, 128], sizes = [8, 128], strides = [1, 1]} : vector<8x384xf32> to vector<8x128xf32>
    %372 = vector.extract_strided_slice %367 {offsets = [0, 256], sizes = [8, 128], strides = [1, 1]} : vector<8x384xf32> to vector<8x128xf32>
    %373 = arith.mulf %371, %349 : vector<8x128xf32>
    %374 = arith.mulf %370, %369 : vector<8x128xf32>
    %375 = arith.addf %373, %374 : vector<8x128xf32>
    %376 = math.tanh %375 : vector<8x128xf32>
    %377 = arith.mulf %372, %376 : vector<8x128xf32>
    %c1_236 = arith.constant 1 : index
    %c0_237 = arith.constant 0 : index
    %c0_238 = arith.constant 0 : index
    %378 = vector.load %arg8[%c1_236, %c0_237, %c0_238] : memref<2x8x128xf32, #tpu.memory_space<vmem>>, vector<1x8x128xf32>
    %379 = vector.shape_cast %378 : vector<1x8x128xf32> to vector<8x128xf32>
    %380 = vector.shape_cast %377 : vector<8x128xf32> to vector<1x8x128xf32>
    tpu.vector_store %arg8[%c1_236, %c0_237, %c0_238], %380 {strides = array<i32>} : memref<2x8x128xf32, #tpu.memory_space<vmem>>, vector<1x8x128xf32>,
    %c1_239 = arith.constant 1 : index
    %c0_240 = arith.constant 0 : index
    %c0_241 = arith.constant 0 : index
    %381 = vector.load %arg9[%c1_239, %c0_240, %c0_241] : memref<2x8x128xf32, #tpu.memory_space<vmem>>, vector<1x8x128xf32>
    %382 = vector.shape_cast %381 : vector<1x8x128xf32> to vector<8x128xf32>
    %383 = vector.shape_cast %375 : vector<8x128xf32> to vector<1x8x128xf32>
    tpu.vector_store %arg9[%c1_239, %c0_240, %c0_241], %383 {strides = array<i32>} : memref<2x8x128xf32, #tpu.memory_space<vmem>>, vector<1x8x128xf32>,
    %384 = arith.index_cast %c4_i32 : i32 to index
    %c0_242 = arith.constant 0 : index
    %c0_243 = arith.constant 0 : index
    %385 = vector.load %arg7[%384, %c0_242, %c0_243] : memref<8x8x128xf32, #tpu.memory_space<vmem>>, vector<1x8x128xf32>
    %386 = vector.shape_cast %385 : vector<1x8x128xf32> to vector<8x128xf32>
    %387 = vector.shape_cast %377 : vector<8x128xf32> to vector<1x8x128xf32>
    tpu.vector_store %arg7[%384, %c0_242, %c0_243], %387 {strides = array<i32>} : memref<8x8x128xf32, #tpu.memory_space<vmem>>, vector<1x8x128xf32>,
    %c5_i32 = arith.constant 5 : i32
    %c0_244 = arith.constant 0 : index
    %c0_245 = arith.constant 0 : index
    %c0_246 = arith.constant 0 : index
    %388 = vector.load %arg8[%c0_244, %c0_245, %c0_246] : memref<2x8x128xf32, #tpu.memory_space<vmem>>, vector<1x8x128xf32>
    %389 = vector.shape_cast %388 : vector<1x8x128xf32> to vector<8x128xf32>
    %c0_247 = arith.constant 0 : index
    %c0_248 = arith.constant 0 : index
    %c0_249 = arith.constant 0 : index
    %390 = vector.load %arg9[%c0_247, %c0_248, %c0_249] : memref<2x8x128xf32, #tpu.memory_space<vmem>>, vector<1x8x128xf32>
    %391 = vector.shape_cast %390 : vector<1x8x128xf32> to vector<8x128xf32>
    %392 = arith.index_cast %c5_i32 : i32 to index
    %c0_250 = arith.constant 0 : index
    %c0_251 = arith.constant 0 : index
    %393 = vector.load %arg1[%392, %c0_250, %c0_251] : memref<8x8x512xf32, #tpu.memory_space<vmem>>, vector<1x8x512xf32>
    %394 = vector.shape_cast %393 : vector<1x8x512xf32> to vector<8x512xf32>
    %c0_252 = arith.constant 0 : index
    %c0_253 = arith.constant 0 : index
    %c0_254 = arith.constant 0 : index
    %395 = vector.load %arg4[%c0_252, %c0_253, %c0_254] : memref<2x128x512xf32, #tpu.memory_space<vmem>>, vector<1x128x512xf32>
    %396 = vector.shape_cast %395 : vector<1x128x512xf32> to vector<128x512xf32>
    %cst_255 = arith.constant dense<0.000000e+00> : vector<8x512xf32>
    %397 = tpu.matmul %389, %396, %cst_255 {dimension_numbers = #tpu.dot_dimension_numbers<[1], [0], [0], [1], [0, 0, 1, 1], [], []>} : vector<8x128xf32>, vector<128x512xf32>, vector<8x512xf32> -> vector<8x512xf32>
    %398 = arith.addf %394, %397 : vector<8x512xf32>
    %399 = vector.extract_strided_slice %398 {offsets = [0, 0], sizes = [8, 384], strides = [1, 1]} : vector<8x512xf32> to vector<8x384xf32>
    %cst_256 = arith.constant 5.000000e-01 : f32
    %400 = vector.broadcast %cst_256 : f32 to vector<8x384xf32>
    %401 = arith.mulf %400, %399 : vector<8x384xf32>
    %402 = math.tanh %401 : vector<8x384xf32>
    %cst_257 = arith.constant 5.000000e-01 : f32
    %403 = vector.broadcast %cst_257 : f32 to vector<8x384xf32>
    %404 = arith.mulf %403, %402 : vector<8x384xf32>
    %cst_258 = arith.constant 5.000000e-01 : f32
    %405 = vector.broadcast %cst_258 : f32 to vector<8x384xf32>
    %406 = arith.addf %404, %405 : vector<8x384xf32>
    %407 = vector.extract_strided_slice %398 {offsets = [0, 384], sizes = [8, 128], strides = [1, 1]} : vector<8x512xf32> to vector<8x128xf32>
    %408 = math.tanh %407 : vector<8x128xf32>
    %409 = vector.extract_strided_slice %406 {offsets = [0, 0], sizes = [8, 128], strides = [1, 1]} : vector<8x384xf32> to vector<8x128xf32>
    %410 = vector.extract_strided_slice %406 {offsets = [0, 128], sizes = [8, 128], strides = [1, 1]} : vector<8x384xf32> to vector<8x128xf32>
    %411 = vector.extract_strided_slice %406 {offsets = [0, 256], sizes = [8, 128], strides = [1, 1]} : vector<8x384xf32> to vector<8x128xf32>
    %412 = arith.mulf %410, %391 : vector<8x128xf32>
    %413 = arith.mulf %409, %408 : vector<8x128xf32>
    %414 = arith.addf %412, %413 : vector<8x128xf32>
    %415 = math.tanh %414 : vector<8x128xf32>
    %416 = arith.mulf %411, %415 : vector<8x128xf32>
    %c0_259 = arith.constant 0 : index
    %c0_260 = arith.constant 0 : index
    %c0_261 = arith.constant 0 : index
    %417 = vector.load %arg8[%c0_259, %c0_260, %c0_261] : memref<2x8x128xf32, #tpu.memory_space<vmem>>, vector<1x8x128xf32>
    %418 = vector.shape_cast %417 : vector<1x8x128xf32> to vector<8x128xf32>
    %419 = vector.shape_cast %416 : vector<8x128xf32> to vector<1x8x128xf32>
    tpu.vector_store %arg8[%c0_259, %c0_260, %c0_261], %419 {strides = array<i32>} : memref<2x8x128xf32, #tpu.memory_space<vmem>>, vector<1x8x128xf32>,
    %c0_262 = arith.constant 0 : index
    %c0_263 = arith.constant 0 : index
    %c0_264 = arith.constant 0 : index
    %420 = vector.load %arg9[%c0_262, %c0_263, %c0_264] : memref<2x8x128xf32, #tpu.memory_space<vmem>>, vector<1x8x128xf32>
    %421 = vector.shape_cast %420 : vector<1x8x128xf32> to vector<8x128xf32>
    %422 = vector.shape_cast %414 : vector<8x128xf32> to vector<1x8x128xf32>
    tpu.vector_store %arg9[%c0_262, %c0_263, %c0_264], %422 {strides = array<i32>} : memref<2x8x128xf32, #tpu.memory_space<vmem>>, vector<1x8x128xf32>,
    %c1_265 = arith.constant 1 : index
    %c0_266 = arith.constant 0 : index
    %c0_267 = arith.constant 0 : index
    %423 = vector.load %arg8[%c1_265, %c0_266, %c0_267] : memref<2x8x128xf32, #tpu.memory_space<vmem>>, vector<1x8x128xf32>
    %424 = vector.shape_cast %423 : vector<1x8x128xf32> to vector<8x128xf32>
    %c1_268 = arith.constant 1 : index
    %c0_269 = arith.constant 0 : index
    %c0_270 = arith.constant 0 : index
    %425 = vector.load %arg9[%c1_268, %c0_269, %c0_270] : memref<2x8x128xf32, #tpu.memory_space<vmem>>, vector<1x8x128xf32>
    %426 = vector.shape_cast %425 : vector<1x8x128xf32> to vector<8x128xf32>
    %c0_271 = arith.constant 0 : index
    %c0_272 = arith.constant 0 : index
    %c0_273 = arith.constant 0 : index
    %427 = vector.load %arg5[%c0_271, %c0_272, %c0_273] : memref<1x128x512xf32, #tpu.memory_space<vmem>>, vector<1x128x512xf32>
    %428 = vector.shape_cast %427 : vector<1x128x512xf32> to vector<128x512xf32>
    %cst_274 = arith.constant dense<0.000000e+00> : vector<8x512xf32>
    %429 = tpu.matmul %416, %428, %cst_274 {dimension_numbers = #tpu.dot_dimension_numbers<[1], [0], [0], [1], [0, 0, 1, 1], [], []>} : vector<8x128xf32>, vector<128x512xf32>, vector<8x512xf32> -> vector<8x512xf32>
    %c1_275 = arith.constant 1 : index
    %c0_276 = arith.constant 0 : index
    %c0_277 = arith.constant 0 : index
    %430 = vector.load %arg4[%c1_275, %c0_276, %c0_277] : memref<2x128x512xf32, #tpu.memory_space<vmem>>, vector<1x128x512xf32>
    %431 = vector.shape_cast %430 : vector<1x128x512xf32> to vector<128x512xf32>
    %cst_278 = arith.constant dense<0.000000e+00> : vector<8x512xf32>
    %432 = tpu.matmul %424, %431, %cst_278 {dimension_numbers = #tpu.dot_dimension_numbers<[1], [0], [0], [1], [0, 0, 1, 1], [], []>} : vector<8x128xf32>, vector<128x512xf32>, vector<8x512xf32> -> vector<8x512xf32>
    %433 = arith.addf %429, %432 : vector<8x512xf32>
    %c0_279 = arith.constant 0 : index
    %c0_280 = arith.constant 0 : index
    %c0_281 = arith.constant 0 : index
    %434 = vector.load %arg6[%c0_279, %c0_280, %c0_281] : memref<1x8x512xf32, #tpu.memory_space<vmem>>, vector<1x8x512xf32>
    %435 = vector.shape_cast %434 : vector<1x8x512xf32> to vector<8x512xf32>
    %436 = arith.addf %433, %435 : vector<8x512xf32>
    %437 = vector.extract_strided_slice %436 {offsets = [0, 0], sizes = [8, 384], strides = [1, 1]} : vector<8x512xf32> to vector<8x384xf32>
    %cst_282 = arith.constant 5.000000e-01 : f32
    %438 = vector.broadcast %cst_282 : f32 to vector<8x384xf32>
    %439 = arith.mulf %438, %437 : vector<8x384xf32>
    %440 = math.tanh %439 : vector<8x384xf32>
    %cst_283 = arith.constant 5.000000e-01 : f32
    %441 = vector.broadcast %cst_283 : f32 to vector<8x384xf32>
    %442 = arith.mulf %441, %440 : vector<8x384xf32>
    %cst_284 = arith.constant 5.000000e-01 : f32
    %443 = vector.broadcast %cst_284 : f32 to vector<8x384xf32>
    %444 = arith.addf %442, %443 : vector<8x384xf32>
    %445 = vector.extract_strided_slice %436 {offsets = [0, 384], sizes = [8, 128], strides = [1, 1]} : vector<8x512xf32> to vector<8x128xf32>
    %446 = math.tanh %445 : vector<8x128xf32>
    %447 = vector.extract_strided_slice %444 {offsets = [0, 0], sizes = [8, 128], strides = [1, 1]} : vector<8x384xf32> to vector<8x128xf32>
    %448 = vector.extract_strided_slice %444 {offsets = [0, 128], sizes = [8, 128], strides = [1, 1]} : vector<8x384xf32> to vector<8x128xf32>
    %449 = vector.extract_strided_slice %444 {offsets = [0, 256], sizes = [8, 128], strides = [1, 1]} : vector<8x384xf32> to vector<8x128xf32>
    %450 = arith.mulf %448, %426 : vector<8x128xf32>
    %451 = arith.mulf %447, %446 : vector<8x128xf32>
    %452 = arith.addf %450, %451 : vector<8x128xf32>
    %453 = math.tanh %452 : vector<8x128xf32>
    %454 = arith.mulf %449, %453 : vector<8x128xf32>
    %c1_285 = arith.constant 1 : index
    %c0_286 = arith.constant 0 : index
    %c0_287 = arith.constant 0 : index
    %455 = vector.load %arg8[%c1_285, %c0_286, %c0_287] : memref<2x8x128xf32, #tpu.memory_space<vmem>>, vector<1x8x128xf32>
    %456 = vector.shape_cast %455 : vector<1x8x128xf32> to vector<8x128xf32>
    %457 = vector.shape_cast %454 : vector<8x128xf32> to vector<1x8x128xf32>
    tpu.vector_store %arg8[%c1_285, %c0_286, %c0_287], %457 {strides = array<i32>} : memref<2x8x128xf32, #tpu.memory_space<vmem>>, vector<1x8x128xf32>,
    %c1_288 = arith.constant 1 : index
    %c0_289 = arith.constant 0 : index
    %c0_290 = arith.constant 0 : index
    %458 = vector.load %arg9[%c1_288, %c0_289, %c0_290] : memref<2x8x128xf32, #tpu.memory_space<vmem>>, vector<1x8x128xf32>
    %459 = vector.shape_cast %458 : vector<1x8x128xf32> to vector<8x128xf32>
    %460 = vector.shape_cast %452 : vector<8x128xf32> to vector<1x8x128xf32>
    tpu.vector_store %arg9[%c1_288, %c0_289, %c0_290], %460 {strides = array<i32>} : memref<2x8x128xf32, #tpu.memory_space<vmem>>, vector<1x8x128xf32>,
    %461 = arith.index_cast %c5_i32 : i32 to index
    %c0_291 = arith.constant 0 : index
    %c0_292 = arith.constant 0 : index
    %462 = vector.load %arg7[%461, %c0_291, %c0_292] : memref<8x8x128xf32, #tpu.memory_space<vmem>>, vector<1x8x128xf32>
    %463 = vector.shape_cast %462 : vector<1x8x128xf32> to vector<8x128xf32>
    %464 = vector.shape_cast %454 : vector<8x128xf32> to vector<1x8x128xf32>
    tpu.vector_store %arg7[%461, %c0_291, %c0_292], %464 {strides = array<i32>} : memref<8x8x128xf32, #tpu.memory_space<vmem>>, vector<1x8x128xf32>,
    %c6_i32 = arith.constant 6 : i32
    %c0_293 = arith.constant 0 : index
    %c0_294 = arith.constant 0 : index
    %c0_295 = arith.constant 0 : index
    %465 = vector.load %arg8[%c0_293, %c0_294, %c0_295] : memref<2x8x128xf32, #tpu.memory_space<vmem>>, vector<1x8x128xf32>
    %466 = vector.shape_cast %465 : vector<1x8x128xf32> to vector<8x128xf32>
    %c0_296 = arith.constant 0 : index
    %c0_297 = arith.constant 0 : index
    %c0_298 = arith.constant 0 : index
    %467 = vector.load %arg9[%c0_296, %c0_297, %c0_298] : memref<2x8x128xf32, #tpu.memory_space<vmem>>, vector<1x8x128xf32>
    %468 = vector.shape_cast %467 : vector<1x8x128xf32> to vector<8x128xf32>
    %469 = arith.index_cast %c6_i32 : i32 to index
    %c0_299 = arith.constant 0 : index
    %c0_300 = arith.constant 0 : index
    %470 = vector.load %arg1[%469, %c0_299, %c0_300] : memref<8x8x512xf32, #tpu.memory_space<vmem>>, vector<1x8x512xf32>
    %471 = vector.shape_cast %470 : vector<1x8x512xf32> to vector<8x512xf32>
    %c0_301 = arith.constant 0 : index
    %c0_302 = arith.constant 0 : index
    %c0_303 = arith.constant 0 : index
    %472 = vector.load %arg4[%c0_301, %c0_302, %c0_303] : memref<2x128x512xf32, #tpu.memory_space<vmem>>, vector<1x128x512xf32>
    %473 = vector.shape_cast %472 : vector<1x128x512xf32> to vector<128x512xf32>
    %cst_304 = arith.constant dense<0.000000e+00> : vector<8x512xf32>
    %474 = tpu.matmul %466, %473, %cst_304 {dimension_numbers = #tpu.dot_dimension_numbers<[1], [0], [0], [1], [0, 0, 1, 1], [], []>} : vector<8x128xf32>, vector<128x512xf32>, vector<8x512xf32> -> vector<8x512xf32>
    %475 = arith.addf %471, %474 : vector<8x512xf32>
    %476 = vector.extract_strided_slice %475 {offsets = [0, 0], sizes = [8, 384], strides = [1, 1]} : vector<8x512xf32> to vector<8x384xf32>
    %cst_305 = arith.constant 5.000000e-01 : f32
    %477 = vector.broadcast %cst_305 : f32 to vector<8x384xf32>
    %478 = arith.mulf %477, %476 : vector<8x384xf32>
    %479 = math.tanh %478 : vector<8x384xf32>
    %cst_306 = arith.constant 5.000000e-01 : f32
    %480 = vector.broadcast %cst_306 : f32 to vector<8x384xf32>
    %481 = arith.mulf %480, %479 : vector<8x384xf32>
    %cst_307 = arith.constant 5.000000e-01 : f32
    %482 = vector.broadcast %cst_307 : f32 to vector<8x384xf32>
    %483 = arith.addf %481, %482 : vector<8x384xf32>
    %484 = vector.extract_strided_slice %475 {offsets = [0, 384], sizes = [8, 128], strides = [1, 1]} : vector<8x512xf32> to vector<8x128xf32>
    %485 = math.tanh %484 : vector<8x128xf32>
    %486 = vector.extract_strided_slice %483 {offsets = [0, 0], sizes = [8, 128], strides = [1, 1]} : vector<8x384xf32> to vector<8x128xf32>
    %487 = vector.extract_strided_slice %483 {offsets = [0, 128], sizes = [8, 128], strides = [1, 1]} : vector<8x384xf32> to vector<8x128xf32>
    %488 = vector.extract_strided_slice %483 {offsets = [0, 256], sizes = [8, 128], strides = [1, 1]} : vector<8x384xf32> to vector<8x128xf32>
    %489 = arith.mulf %487, %468 : vector<8x128xf32>
    %490 = arith.mulf %486, %485 : vector<8x128xf32>
    %491 = arith.addf %489, %490 : vector<8x128xf32>
    %492 = math.tanh %491 : vector<8x128xf32>
    %493 = arith.mulf %488, %492 : vector<8x128xf32>
    %c0_308 = arith.constant 0 : index
    %c0_309 = arith.constant 0 : index
    %c0_310 = arith.constant 0 : index
    %494 = vector.load %arg8[%c0_308, %c0_309, %c0_310] : memref<2x8x128xf32, #tpu.memory_space<vmem>>, vector<1x8x128xf32>
    %495 = vector.shape_cast %494 : vector<1x8x128xf32> to vector<8x128xf32>
    %496 = vector.shape_cast %493 : vector<8x128xf32> to vector<1x8x128xf32>
    tpu.vector_store %arg8[%c0_308, %c0_309, %c0_310], %496 {strides = array<i32>} : memref<2x8x128xf32, #tpu.memory_space<vmem>>, vector<1x8x128xf32>,
    %c0_311 = arith.constant 0 : index
    %c0_312 = arith.constant 0 : index
    %c0_313 = arith.constant 0 : index
    %497 = vector.load %arg9[%c0_311, %c0_312, %c0_313] : memref<2x8x128xf32, #tpu.memory_space<vmem>>, vector<1x8x128xf32>
    %498 = vector.shape_cast %497 : vector<1x8x128xf32> to vector<8x128xf32>
    %499 = vector.shape_cast %491 : vector<8x128xf32> to vector<1x8x128xf32>
    tpu.vector_store %arg9[%c0_311, %c0_312, %c0_313], %499 {strides = array<i32>} : memref<2x8x128xf32, #tpu.memory_space<vmem>>, vector<1x8x128xf32>,
    %c1_314 = arith.constant 1 : index
    %c0_315 = arith.constant 0 : index
    %c0_316 = arith.constant 0 : index
    %500 = vector.load %arg8[%c1_314, %c0_315, %c0_316] : memref<2x8x128xf32, #tpu.memory_space<vmem>>, vector<1x8x128xf32>
    %501 = vector.shape_cast %500 : vector<1x8x128xf32> to vector<8x128xf32>
    %c1_317 = arith.constant 1 : index
    %c0_318 = arith.constant 0 : index
    %c0_319 = arith.constant 0 : index
    %502 = vector.load %arg9[%c1_317, %c0_318, %c0_319] : memref<2x8x128xf32, #tpu.memory_space<vmem>>, vector<1x8x128xf32>
    %503 = vector.shape_cast %502 : vector<1x8x128xf32> to vector<8x128xf32>
    %c0_320 = arith.constant 0 : index
    %c0_321 = arith.constant 0 : index
    %c0_322 = arith.constant 0 : index
    %504 = vector.load %arg5[%c0_320, %c0_321, %c0_322] : memref<1x128x512xf32, #tpu.memory_space<vmem>>, vector<1x128x512xf32>
    %505 = vector.shape_cast %504 : vector<1x128x512xf32> to vector<128x512xf32>
    %cst_323 = arith.constant dense<0.000000e+00> : vector<8x512xf32>
    %506 = tpu.matmul %493, %505, %cst_323 {dimension_numbers = #tpu.dot_dimension_numbers<[1], [0], [0], [1], [0, 0, 1, 1], [], []>} : vector<8x128xf32>, vector<128x512xf32>, vector<8x512xf32> -> vector<8x512xf32>
    %c1_324 = arith.constant 1 : index
    %c0_325 = arith.constant 0 : index
    %c0_326 = arith.constant 0 : index
    %507 = vector.load %arg4[%c1_324, %c0_325, %c0_326] : memref<2x128x512xf32, #tpu.memory_space<vmem>>, vector<1x128x512xf32>
    %508 = vector.shape_cast %507 : vector<1x128x512xf32> to vector<128x512xf32>
    %cst_327 = arith.constant dense<0.000000e+00> : vector<8x512xf32>
    %509 = tpu.matmul %501, %508, %cst_327 {dimension_numbers = #tpu.dot_dimension_numbers<[1], [0], [0], [1], [0, 0, 1, 1], [], []>} : vector<8x128xf32>, vector<128x512xf32>, vector<8x512xf32> -> vector<8x512xf32>
    %510 = arith.addf %506, %509 : vector<8x512xf32>
    %c0_328 = arith.constant 0 : index
    %c0_329 = arith.constant 0 : index
    %c0_330 = arith.constant 0 : index
    %511 = vector.load %arg6[%c0_328, %c0_329, %c0_330] : memref<1x8x512xf32, #tpu.memory_space<vmem>>, vector<1x8x512xf32>
    %512 = vector.shape_cast %511 : vector<1x8x512xf32> to vector<8x512xf32>
    %513 = arith.addf %510, %512 : vector<8x512xf32>
    %514 = vector.extract_strided_slice %513 {offsets = [0, 0], sizes = [8, 384], strides = [1, 1]} : vector<8x512xf32> to vector<8x384xf32>
    %cst_331 = arith.constant 5.000000e-01 : f32
    %515 = vector.broadcast %cst_331 : f32 to vector<8x384xf32>
    %516 = arith.mulf %515, %514 : vector<8x384xf32>
    %517 = math.tanh %516 : vector<8x384xf32>
    %cst_332 = arith.constant 5.000000e-01 : f32
    %518 = vector.broadcast %cst_332 : f32 to vector<8x384xf32>
    %519 = arith.mulf %518, %517 : vector<8x384xf32>
    %cst_333 = arith.constant 5.000000e-01 : f32
    %520 = vector.broadcast %cst_333 : f32 to vector<8x384xf32>
    %521 = arith.addf %519, %520 : vector<8x384xf32>
    %522 = vector.extract_strided_slice %513 {offsets = [0, 384], sizes = [8, 128], strides = [1, 1]} : vector<8x512xf32> to vector<8x128xf32>
    %523 = math.tanh %522 : vector<8x128xf32>
    %524 = vector.extract_strided_slice %521 {offsets = [0, 0], sizes = [8, 128], strides = [1, 1]} : vector<8x384xf32> to vector<8x128xf32>
    %525 = vector.extract_strided_slice %521 {offsets = [0, 128], sizes = [8, 128], strides = [1, 1]} : vector<8x384xf32> to vector<8x128xf32>
    %526 = vector.extract_strided_slice %521 {offsets = [0, 256], sizes = [8, 128], strides = [1, 1]} : vector<8x384xf32> to vector<8x128xf32>
    %527 = arith.mulf %525, %503 : vector<8x128xf32>
    %528 = arith.mulf %524, %523 : vector<8x128xf32>
    %529 = arith.addf %527, %528 : vector<8x128xf32>
    %530 = math.tanh %529 : vector<8x128xf32>
    %531 = arith.mulf %526, %530 : vector<8x128xf32>
    %c1_334 = arith.constant 1 : index
    %c0_335 = arith.constant 0 : index
    %c0_336 = arith.constant 0 : index
    %532 = vector.load %arg8[%c1_334, %c0_335, %c0_336] : memref<2x8x128xf32, #tpu.memory_space<vmem>>, vector<1x8x128xf32>
    %533 = vector.shape_cast %532 : vector<1x8x128xf32> to vector<8x128xf32>
    %534 = vector.shape_cast %531 : vector<8x128xf32> to vector<1x8x128xf32>
    tpu.vector_store %arg8[%c1_334, %c0_335, %c0_336], %534 {strides = array<i32>} : memref<2x8x128xf32, #tpu.memory_space<vmem>>, vector<1x8x128xf32>,
    %c1_337 = arith.constant 1 : index
    %c0_338 = arith.constant 0 : index
    %c0_339 = arith.constant 0 : index
    %535 = vector.load %arg9[%c1_337, %c0_338, %c0_339] : memref<2x8x128xf32, #tpu.memory_space<vmem>>, vector<1x8x128xf32>
    %536 = vector.shape_cast %535 : vector<1x8x128xf32> to vector<8x128xf32>
    %537 = vector.shape_cast %529 : vector<8x128xf32> to vector<1x8x128xf32>
    tpu.vector_store %arg9[%c1_337, %c0_338, %c0_339], %537 {strides = array<i32>} : memref<2x8x128xf32, #tpu.memory_space<vmem>>, vector<1x8x128xf32>,
    %538 = arith.index_cast %c6_i32 : i32 to index
    %c0_340 = arith.constant 0 : index
    %c0_341 = arith.constant 0 : index
    %539 = vector.load %arg7[%538, %c0_340, %c0_341] : memref<8x8x128xf32, #tpu.memory_space<vmem>>, vector<1x8x128xf32>
    %540 = vector.shape_cast %539 : vector<1x8x128xf32> to vector<8x128xf32>
    %541 = vector.shape_cast %531 : vector<8x128xf32> to vector<1x8x128xf32>
    tpu.vector_store %arg7[%538, %c0_340, %c0_341], %541 {strides = array<i32>} : memref<8x8x128xf32, #tpu.memory_space<vmem>>, vector<1x8x128xf32>,
    %c7_i32 = arith.constant 7 : i32
    %c0_342 = arith.constant 0 : index
    %c0_343 = arith.constant 0 : index
    %c0_344 = arith.constant 0 : index
    %542 = vector.load %arg8[%c0_342, %c0_343, %c0_344] : memref<2x8x128xf32, #tpu.memory_space<vmem>>, vector<1x8x128xf32>
    %543 = vector.shape_cast %542 : vector<1x8x128xf32> to vector<8x128xf32>
    %c0_345 = arith.constant 0 : index
    %c0_346 = arith.constant 0 : index
    %c0_347 = arith.constant 0 : index
    %544 = vector.load %arg9[%c0_345, %c0_346, %c0_347] : memref<2x8x128xf32, #tpu.memory_space<vmem>>, vector<1x8x128xf32>
    %545 = vector.shape_cast %544 : vector<1x8x128xf32> to vector<8x128xf32>
    %546 = arith.index_cast %c7_i32 : i32 to index
    %c0_348 = arith.constant 0 : index
    %c0_349 = arith.constant 0 : index
    %547 = vector.load %arg1[%546, %c0_348, %c0_349] : memref<8x8x512xf32, #tpu.memory_space<vmem>>, vector<1x8x512xf32>
    %548 = vector.shape_cast %547 : vector<1x8x512xf32> to vector<8x512xf32>
    %c0_350 = arith.constant 0 : index
    %c0_351 = arith.constant 0 : index
    %c0_352 = arith.constant 0 : index
    %549 = vector.load %arg4[%c0_350, %c0_351, %c0_352] : memref<2x128x512xf32, #tpu.memory_space<vmem>>, vector<1x128x512xf32>
    %550 = vector.shape_cast %549 : vector<1x128x512xf32> to vector<128x512xf32>
    %cst_353 = arith.constant dense<0.000000e+00> : vector<8x512xf32>
    %551 = tpu.matmul %543, %550, %cst_353 {dimension_numbers = #tpu.dot_dimension_numbers<[1], [0], [0], [1], [0, 0, 1, 1], [], []>} : vector<8x128xf32>, vector<128x512xf32>, vector<8x512xf32> -> vector<8x512xf32>
    %552 = arith.addf %548, %551 : vector<8x512xf32>
    %553 = vector.extract_strided_slice %552 {offsets = [0, 0], sizes = [8, 384], strides = [1, 1]} : vector<8x512xf32> to vector<8x384xf32>
    %cst_354 = arith.constant 5.000000e-01 : f32
    %554 = vector.broadcast %cst_354 : f32 to vector<8x384xf32>
    %555 = arith.mulf %554, %553 : vector<8x384xf32>
    %556 = math.tanh %555 : vector<8x384xf32>
    %cst_355 = arith.constant 5.000000e-01 : f32
    %557 = vector.broadcast %cst_355 : f32 to vector<8x384xf32>
    %558 = arith.mulf %557, %556 : vector<8x384xf32>
    %cst_356 = arith.constant 5.000000e-01 : f32
    %559 = vector.broadcast %cst_356 : f32 to vector<8x384xf32>
    %560 = arith.addf %558, %559 : vector<8x384xf32>
    %561 = vector.extract_strided_slice %552 {offsets = [0, 384], sizes = [8, 128], strides = [1, 1]} : vector<8x512xf32> to vector<8x128xf32>
    %562 = math.tanh %561 : vector<8x128xf32>
    %563 = vector.extract_strided_slice %560 {offsets = [0, 0], sizes = [8, 128], strides = [1, 1]} : vector<8x384xf32> to vector<8x128xf32>
    %564 = vector.extract_strided_slice %560 {offsets = [0, 128], sizes = [8, 128], strides = [1, 1]} : vector<8x384xf32> to vector<8x128xf32>
    %565 = vector.extract_strided_slice %560 {offsets = [0, 256], sizes = [8, 128], strides = [1, 1]} : vector<8x384xf32> to vector<8x128xf32>
    %566 = arith.mulf %564, %545 : vector<8x128xf32>
    %567 = arith.mulf %563, %562 : vector<8x128xf32>
    %568 = arith.addf %566, %567 : vector<8x128xf32>
    %569 = math.tanh %568 : vector<8x128xf32>
    %570 = arith.mulf %565, %569 : vector<8x128xf32>
    %c0_357 = arith.constant 0 : index
    %c0_358 = arith.constant 0 : index
    %c0_359 = arith.constant 0 : index
    %571 = vector.load %arg8[%c0_357, %c0_358, %c0_359] : memref<2x8x128xf32, #tpu.memory_space<vmem>>, vector<1x8x128xf32>
    %572 = vector.shape_cast %571 : vector<1x8x128xf32> to vector<8x128xf32>
    %573 = vector.shape_cast %570 : vector<8x128xf32> to vector<1x8x128xf32>
    tpu.vector_store %arg8[%c0_357, %c0_358, %c0_359], %573 {strides = array<i32>} : memref<2x8x128xf32, #tpu.memory_space<vmem>>, vector<1x8x128xf32>,
    %c0_360 = arith.constant 0 : index
    %c0_361 = arith.constant 0 : index
    %c0_362 = arith.constant 0 : index
    %574 = vector.load %arg9[%c0_360, %c0_361, %c0_362] : memref<2x8x128xf32, #tpu.memory_space<vmem>>, vector<1x8x128xf32>
    %575 = vector.shape_cast %574 : vector<1x8x128xf32> to vector<8x128xf32>
    %576 = vector.shape_cast %568 : vector<8x128xf32> to vector<1x8x128xf32>
    tpu.vector_store %arg9[%c0_360, %c0_361, %c0_362], %576 {strides = array<i32>} : memref<2x8x128xf32, #tpu.memory_space<vmem>>, vector<1x8x128xf32>,
    %c1_363 = arith.constant 1 : index
    %c0_364 = arith.constant 0 : index
    %c0_365 = arith.constant 0 : index
    %577 = vector.load %arg8[%c1_363, %c0_364, %c0_365] : memref<2x8x128xf32, #tpu.memory_space<vmem>>, vector<1x8x128xf32>
    %578 = vector.shape_cast %577 : vector<1x8x128xf32> to vector<8x128xf32>
    %c1_366 = arith.constant 1 : index
    %c0_367 = arith.constant 0 : index
    %c0_368 = arith.constant 0 : index
    %579 = vector.load %arg9[%c1_366, %c0_367, %c0_368] : memref<2x8x128xf32, #tpu.memory_space<vmem>>, vector<1x8x128xf32>
    %580 = vector.shape_cast %579 : vector<1x8x128xf32> to vector<8x128xf32>
    %c0_369 = arith.constant 0 : index
    %c0_370 = arith.constant 0 : index
    %c0_371 = arith.constant 0 : index
    %581 = vector.load %arg5[%c0_369, %c0_370, %c0_371] : memref<1x128x512xf32, #tpu.memory_space<vmem>>, vector<1x128x512xf32>
    %582 = vector.shape_cast %581 : vector<1x128x512xf32> to vector<128x512xf32>
    %cst_372 = arith.constant dense<0.000000e+00> : vector<8x512xf32>
    %583 = tpu.matmul %570, %582, %cst_372 {dimension_numbers = #tpu.dot_dimension_numbers<[1], [0], [0], [1], [0, 0, 1, 1], [], []>} : vector<8x128xf32>, vector<128x512xf32>, vector<8x512xf32> -> vector<8x512xf32>
    %c1_373 = arith.constant 1 : index
    %c0_374 = arith.constant 0 : index
    %c0_375 = arith.constant 0 : index
    %584 = vector.load %arg4[%c1_373, %c0_374, %c0_375] : memref<2x128x512xf32, #tpu.memory_space<vmem>>, vector<1x128x512xf32>
    %585 = vector.shape_cast %584 : vector<1x128x512xf32> to vector<128x512xf32>
    %cst_376 = arith.constant dense<0.000000e+00> : vector<8x512xf32>
    %586 = tpu.matmul %578, %585, %cst_376 {dimension_numbers = #tpu.dot_dimension_numbers<[1], [0], [0], [1], [0, 0, 1, 1], [], []>} : vector<8x128xf32>, vector<128x512xf32>, vector<8x512xf32> -> vector<8x512xf32>
    %587 = arith.addf %583, %586 : vector<8x512xf32>
    %c0_377 = arith.constant 0 : index
    %c0_378 = arith.constant 0 : index
    %c0_379 = arith.constant 0 : index
    %588 = vector.load %arg6[%c0_377, %c0_378, %c0_379] : memref<1x8x512xf32, #tpu.memory_space<vmem>>, vector<1x8x512xf32>
    %589 = vector.shape_cast %588 : vector<1x8x512xf32> to vector<8x512xf32>
    %590 = arith.addf %587, %589 : vector<8x512xf32>
    %591 = vector.extract_strided_slice %590 {offsets = [0, 0], sizes = [8, 384], strides = [1, 1]} : vector<8x512xf32> to vector<8x384xf32>
    %cst_380 = arith.constant 5.000000e-01 : f32
    %592 = vector.broadcast %cst_380 : f32 to vector<8x384xf32>
    %593 = arith.mulf %592, %591 : vector<8x384xf32>
    %594 = math.tanh %593 : vector<8x384xf32>
    %cst_381 = arith.constant 5.000000e-01 : f32
    %595 = vector.broadcast %cst_381 : f32 to vector<8x384xf32>
    %596 = arith.mulf %595, %594 : vector<8x384xf32>
    %cst_382 = arith.constant 5.000000e-01 : f32
    %597 = vector.broadcast %cst_382 : f32 to vector<8x384xf32>
    %598 = arith.addf %596, %597 : vector<8x384xf32>
    %599 = vector.extract_strided_slice %590 {offsets = [0, 384], sizes = [8, 128], strides = [1, 1]} : vector<8x512xf32> to vector<8x128xf32>
    %600 = math.tanh %599 : vector<8x128xf32>
    %601 = vector.extract_strided_slice %598 {offsets = [0, 0], sizes = [8, 128], strides = [1, 1]} : vector<8x384xf32> to vector<8x128xf32>
    %602 = vector.extract_strided_slice %598 {offsets = [0, 128], sizes = [8, 128], strides = [1, 1]} : vector<8x384xf32> to vector<8x128xf32>
    %603 = vector.extract_strided_slice %598 {offsets = [0, 256], sizes = [8, 128], strides = [1, 1]} : vector<8x384xf32> to vector<8x128xf32>
    %604 = arith.mulf %602, %580 : vector<8x128xf32>
    %605 = arith.mulf %601, %600 : vector<8x128xf32>
    %606 = arith.addf %604, %605 : vector<8x128xf32>
    %607 = math.tanh %606 : vector<8x128xf32>
    %608 = arith.mulf %603, %607 : vector<8x128xf32>
    %c1_383 = arith.constant 1 : index
    %c0_384 = arith.constant 0 : index
    %c0_385 = arith.constant 0 : index
    %609 = vector.load %arg8[%c1_383, %c0_384, %c0_385] : memref<2x8x128xf32, #tpu.memory_space<vmem>>, vector<1x8x128xf32>
    %610 = vector.shape_cast %609 : vector<1x8x128xf32> to vector<8x128xf32>
    %611 = vector.shape_cast %608 : vector<8x128xf32> to vector<1x8x128xf32>
    tpu.vector_store %arg8[%c1_383, %c0_384, %c0_385], %611 {strides = array<i32>} : memref<2x8x128xf32, #tpu.memory_space<vmem>>, vector<1x8x128xf32>,
    %c1_386 = arith.constant 1 : index
    %c0_387 = arith.constant 0 : index
    %c0_388 = arith.constant 0 : index
    %612 = vector.load %arg9[%c1_386, %c0_387, %c0_388] : memref<2x8x128xf32, #tpu.memory_space<vmem>>, vector<1x8x128xf32>
    %613 = vector.shape_cast %612 : vector<1x8x128xf32> to vector<8x128xf32>
    %614 = vector.shape_cast %606 : vector<8x128xf32> to vector<1x8x128xf32>
    tpu.vector_store %arg9[%c1_386, %c0_387, %c0_388], %614 {strides = array<i32>} : memref<2x8x128xf32, #tpu.memory_space<vmem>>, vector<1x8x128xf32>,
    %615 = arith.index_cast %c7_i32 : i32 to index
    %c0_389 = arith.constant 0 : index
    %c0_390 = arith.constant 0 : index
    %616 = vector.load %arg7[%615, %c0_389, %c0_390] : memref<8x8x128xf32, #tpu.memory_space<vmem>>, vector<1x8x128xf32>
    %617 = vector.shape_cast %616 : vector<1x8x128xf32> to vector<8x128xf32>
    %618 = vector.shape_cast %608 : vector<8x128xf32> to vector<1x8x128xf32>
    tpu.vector_store %arg7[%615, %c0_389, %c0_390], %618 {strides = array<i32>} : memref<8x8x128xf32, #tpu.memory_space<vmem>>, vector<1x8x128xf32>,
    %c8_i32 = arith.constant 8 : i32
    return
  }
  func.func @transform_0(%arg0: i32) -> (i32, i32, i32) {
    %c0_i32 = arith.constant 0 : i32
    %c0_i32_0 = arith.constant 0 : i32
    %c0_i32_1 = arith.constant 0 : i32
    return %arg0, %c0_i32, %c0_i32_0 : i32, i32, i32
  }
  func.func @transform_1(%arg0: i32) -> (i32, i32, i32) {
    %c0_i32 = arith.constant 0 : i32
    %c0_i32_0 = arith.constant 0 : i32
    %c0_i32_1 = arith.constant 0 : i32
    %c0_i32_2 = arith.constant 0 : i32
    return %c0_i32, %c0_i32_0, %c0_i32_1 : i32, i32, i32
  }
  func.func @transform_2(%arg0: i32) -> (i32, i32, i32) {
    %c0_i32 = arith.constant 0 : i32
    %c0_i32_0 = arith.constant 0 : i32
    %c0_i32_1 = arith.constant 0 : i32
    %c0_i32_2 = arith.constant 0 : i32
    return %c0_i32, %c0_i32_0, %c0_i32_1 : i32, i32, i32
  }
  func.func @transform_3(%arg0: i32) -> (i32, i32, i32) {
    %c0_i32 = arith.constant 0 : i32
    %c0_i32_0 = arith.constant 0 : i32
    %c0_i32_1 = arith.constant 0 : i32
    %c0_i32_2 = arith.constant 0 : i32
    return %c0_i32, %c0_i32_0, %c0_i32_1 : i32, i32, i32
  }
  func.func @transform_4(%arg0: i32) -> (i32, i32, i32) {
    %c0_i32 = arith.constant 0 : i32
    %c0_i32_0 = arith.constant 0 : i32
    %c0_i32_1 = arith.constant 0 : i32
    %c0_i32_2 = arith.constant 0 : i32
    return %c0_i32, %c0_i32_0, %c0_i32_1 : i32, i32, i32
  }
  func.func @transform_5(%arg0: i32) -> (i32, i32, i32) {
    %c0_i32 = arith.constant 0 : i32
    %c0_i32_0 = arith.constant 0 : i32
    %c0_i32_1 = arith.constant 0 : i32
    %c0_i32_2 = arith.constant 0 : i32
    return %c0_i32, %c0_i32_0, %c0_i32_1 : i32, i32, i32
  }
  func.func @transform_6(%arg0: i32) -> (i32, i32, i32) {
    %c0_i32 = arith.constant 0 : i32
    %c0_i32_0 = arith.constant 0 : i32
    %c0_i32_1 = arith.constant 0 : i32
    return %arg0, %c0_i32, %c0_i32_0 : i32, i32, i32
  }
  func.func @transform_7(%arg0: i32) -> (i32, i32, i32) {
    %c0_i32 = arith.constant 0 : i32
    %c0_i32_0 = arith.constant 0 : i32
    %c0_i32_1 = arith.constant 0 : i32
    %c0_i32_2 = arith.constant 0 : i32
    return %c0_i32, %c0_i32_0, %c0_i32_1 : i32, i32, i32
  }
  func.func @transform_8(%arg0: i32) -> (i32, i32, i32) {
    %c0_i32 = arith.constant 0 : i32
    %c0_i32_0 = arith.constant 0 : i32
    %c0_i32_1 = arith.constant 0 : i32
    %c0_i32_2 = arith.constant 0 : i32
    return %c0_i32, %c0_i32_0, %c0_i32_1 : i32, i32, i32
  }
}

</mosaic_0001>

<llo_original>
// kernel: tpu_custom_call.1
$region0: #{tpu_custom_call.1}
  #allocation0 [shape = 'u32[]', space=smem, size = 0x4, offset = 0x4, fixed_abs, tag = 'smem constant byte address 0x4 - core index']
  #allocation1 [shape = 'u32[72,128]{1,0:T(1,128)}', space=vmem, size = 0x9000, scoped, tag = 'internal scratch']
  %s0 = inlined_call_operand.hbm [shape: f32[8,8,512], index: 0, kind: input, shape index: {}]
  %s1 = inlined_call_operand.hbm [shape: f32[2,8,128], index: 1, kind: input, shape index: {}]
  %s2 = inlined_call_operand.hbm [shape: f32[2,8,128], index: 2, kind: input, shape index: {}]
  %s3 = inlined_call_operand.hbm [shape: f32[2,128,512], index: 3, kind: input, shape index: {}]
  %s4 = inlined_call_operand.hbm [shape: f32[1,128,512], index: 4, kind: input, shape index: {}]
  %s5 = inlined_call_operand.hbm [shape: f32[1,8,512], index: 5, kind: input, shape index: {}]
  %s6 = inlined_call_operand.hbm [shape: f32[8,8,128], index: 6, kind: output, shape index: {0}]
  %s7 = inlined_call_operand.hbm [shape: f32[2,8,128], index: 7, kind: output, shape index: {1}]
  %s8 = inlined_call_operand.hbm [shape: f32[2,8,128], index: 8, kind: output, shape index: {2}]
  %9 = xla_tuple %s6, %s7, %s8
  %s10 = sld [smem:[#allocation0]]
  $region78: #{tpu_custom_call.1} parent=0
    _
  %s12 = ssub.s32 1, %s10
  %s13 = scalar_select 0, %s12, %s10
  $region1: #{tpu_custom_call.1} parent=0
    #allocation2 [shape = 'u8[131072]{0}', space=vmem, size = 0x20000, scoped, tag = 'input window, operand 0, single buffered']
    #allocation3 [shape = 's32[1]{0}', space=sflag, size = 0x4, scoped, tag = 'scoped memory for tpu_custom_call.1']
    #allocation4 [shape = 's32[1]{0}', space=sflag, size = 0x4, scoped, tag = 'scoped memory for tpu_custom_call.1']
    #allocation5 [shape = 'u8[8192]{0}', space=vmem, size = 0x2000, scoped, tag = 'input window, operand 1, single buffered']
    #allocation6 [shape = 's32[1]{0}', space=sflag, size = 0x4, scoped, tag = 'scoped memory for tpu_custom_call.1']
    #allocation7 [shape = 'u8[8192]{0}', space=vmem, size = 0x2000, scoped, tag = 'input window, operand 2, single buffered']
    #allocation8 [shape = 'u8[524288]{0}', space=vmem, size = 0x80000, scoped, tag = 'input window, operand 3, single buffered']
    #allocation9 [shape = 's32[1]{0}', space=sflag, size = 0x4, scoped, tag = 'scoped memory for tpu_custom_call.1']
    #allocation10 [shape = 'u8[262144]{0}', space=vmem, size = 0x40000, scoped, tag = 'input window, operand 4, single buffered']
    #allocation11 [shape = 'u8[16384]{0}', space=vmem, size = 0x4000, scoped, tag = 'input window, operand 5, single buffered']
    #allocation12 [shape = 's32[1]{0}', space=sflag, size = 0x4, scoped, tag = 'scoped memory for tpu_custom_call.1']
    #allocation13 [shape = 'u8[32768]{0}', space=vmem, size = 0x8000, scoped, tag = 'output window, operand 0, single buffered']
    #allocation14 [shape = 'u8[8192]{0}', space=vmem, size = 0x2000, scoped, tag = 'output window, operand 1, single buffered']
    #allocation15 [shape = 's32[1]{0}', space=sflag, size = 0x4, scoped, tag = 'scoped memory for tpu_custom_call.1']
    #allocation16 [shape = 'u8[8192]{0}', space=vmem, size = 0x2000, scoped, tag = 'output window, operand 2, single buffered']
    %14 = vsyncpa [#allocation3], 0
    %15 = vsyncpa [#allocation6], 0
    %16 = vsyncpa [#allocation9], 0
    %17 = vsyncpa [#allocation12], 0
    %18 = vsyncpa [#allocation4], 0
    %19 = vsyncpa [#allocation15], 0
    // Predicated region
    $region2: #{tpu_custom_call.1} parent=1 // pred_check
      _
    $region3: #{tpu_custom_call.1} parent=1 // pred_check_branch
      %21 = sbr.rel (0) target = $region5
    $region4: #{tpu_custom_call.1} parent=1 // pred_region
      %23 = vsyncadd [#allocation3], 0
      %s24 = sshll.u32 %s0, 4
      %s25 = int_to_ptr.hbm [resolvable:$true] %s24
      %s26 = sshll.u32 [#allocation2], 4
      %s27 = int_to_ptr.vmem [resolvable:$true] %s26
      %32 = dma.hbm_to_vmem [thread:$0]  %s25, 4096, %s27, [#allocation3], 512, 512, 32
    $region5: #{tpu_custom_call.1} parent=1 // pred_fallthru
      _
    // Predicated region
    $region6: #{tpu_custom_call.1} parent=1 // pred_check
      _
    $region7: #{tpu_custom_call.1} parent=1 // pred_check_branch
      %34 = sbr.rel (0) target = $region9
    $region8: #{tpu_custom_call.1} parent=1 // pred_region
      %36 = vsyncadd [#allocation6], 0
      %s37 = sshll.u32 %s1, 4
      %s38 = int_to_ptr.hbm [resolvable:$true] %s37
      %s39 = sshll.u32 [#allocation5], 4
      %s40 = int_to_ptr.vmem [resolvable:$true] %s39
      %45 = dma.hbm_to_vmem [thread:$0]  %s38, 256, %s40, [#allocation6], 128, 128, 8
    $region9: #{tpu_custom_call.1} parent=1 // pred_fallthru
      _
    // Predicated region
    $region10: #{tpu_custom_call.1} parent=1 // pred_check
      _
    $region11: #{tpu_custom_call.1} parent=1 // pred_check_branch
      %47 = sbr.rel (0) target = $region13
    $region12: #{tpu_custom_call.1} parent=1 // pred_region
      %49 = vsyncadd [#allocation6], 0
      %s50 = sshll.u32 %s2, 4
      %s51 = int_to_ptr.hbm [resolvable:$true] %s50
      %s52 = sshll.u32 [#allocation7], 4
      %s53 = int_to_ptr.vmem [resolvable:$true] %s52
      %58 = dma.hbm_to_vmem [thread:$0]  %s51, 256, %s53, [#allocation6], 128, 128, 8
    $region13: #{tpu_custom_call.1} parent=1 // pred_fallthru
      _
    // Predicated region
    $region14: #{tpu_custom_call.1} parent=1 // pred_check
      _
    $region15: #{tpu_custom_call.1} parent=1 // pred_check_branch
      %60 = sbr.rel (0) target = $region17
    $region16: #{tpu_custom_call.1} parent=1 // pred_region
      %62 = vsyncadd [#allocation9], 0
      %s63 = sshll.u32 %s3, 4
      %s64 = int_to_ptr.hbm [resolvable:$true] %s63
      %s65 = sshll.u32 [#allocation8], 4
      %s66 = int_to_ptr.vmem [resolvable:$true] %s65
      %71 = dma.hbm_to_vmem [thread:$0]  %s64, 16384, %s66, [#allocation9], 512, 512, 32
    $region17: #{tpu_custom_call.1} parent=1 // pred_fallthru
      _
    // Predicated region
    $region18: #{tpu_custom_call.1} parent=1 // pred_check
      _
    $region19: #{tpu_custom_call.1} parent=1 // pred_check_branch
      %73 = sbr.rel (0) target = $region21
    $region20: #{tpu_custom_call.1} parent=1 // pred_region
      %75 = vsyncadd [#allocation9], 0
      %s76 = sshll.u32 %s4, 4
      %s77 = int_to_ptr.hbm [resolvable:$true] %s76
      %s78 = sshll.u32 [#allocation10], 4
      %s79 = int_to_ptr.vmem [resolvable:$true] %s78
      %84 = dma.hbm_to_vmem [thread:$0]  %s77, 8192, %s79, [#allocation9], 512, 512, 32
    $region21: #{tpu_custom_call.1} parent=1 // pred_fallthru
      _
    // Predicated region
    $region22: #{tpu_custom_call.1} parent=1 // pred_check
      _
    $region23: #{tpu_custom_call.1} parent=1 // pred_check_branch
      %86 = sbr.rel (0) target = $region25
    $region24: #{tpu_custom_call.1} parent=1 // pred_region
      %88 = vsyncadd [#allocation12], 0
      %s90 = sshll.u32 %s5, 4
      %s91 = int_to_ptr.hbm [resolvable:$true] %s90
      %s92 = sshll.u32 [#allocation11], 4
      %s93 = int_to_ptr.vmem [resolvable:$true] %s92
      %95 = dma.hbm_to_vmem [thread:$0]  %s91, 512, %s93, [#allocation12]
    $region25: #{tpu_custom_call.1} parent=1 // pred_fallthru
      _
    // Predicated region
    $region26: #{tpu_custom_call.1} parent=1 // pred_check
      _
    $region27: #{tpu_custom_call.1} parent=1 // pred_check_branch
      %97 = sbr.rel (0) target = $region29
    $region28: #{tpu_custom_call.1} parent=1 // pred_region
      %99 = dma.done [#allocation3], 4096
    $region29: #{tpu_custom_call.1} parent=1 // pred_fallthru
      _
    // Predicated region
    $region30: #{tpu_custom_call.1} parent=1 // pred_check
      _
    $region31: #{tpu_custom_call.1} parent=1 // pred_check_branch
      %101 = sbr.rel (0) target = $region33
    $region32: #{tpu_custom_call.1} parent=1 // pred_region
      %103 = dma.done [#allocation6], 256
    $region33: #{tpu_custom_call.1} parent=1 // pred_fallthru
      _
    // Predicated region
    $region34: #{tpu_custom_call.1} parent=1 // pred_check
      _
    $region35: #{tpu_custom_call.1} parent=1 // pred_check_branch
      %105 = sbr.rel (0) target = $region37
    $region36: #{tpu_custom_call.1} parent=1 // pred_region
      %107 = dma.done [#allocation6], 256
    $region37: #{tpu_custom_call.1} parent=1 // pred_fallthru
      _
    // Predicated region
    $region38: #{tpu_custom_call.1} parent=1 // pred_check
      _
    $region39: #{tpu_custom_call.1} parent=1 // pred_check_branch
      %109 = sbr.rel (0) target = $region41
    $region40: #{tpu_custom_call.1} parent=1 // pred_region
      %111 = dma.done [#allocation9], 16384
    $region41: #{tpu_custom_call.1} parent=1 // pred_fallthru
      _
    // Predicated region
    $region42: #{tpu_custom_call.1} parent=1 // pred_check
      _
    $region43: #{tpu_custom_call.1} parent=1 // pred_check_branch
      %113 = sbr.rel (0) target = $region45
    $region44: #{tpu_custom_call.1} parent=1 // pred_region
      %115 = dma.done [#allocation9], 8192
    $region45: #{tpu_custom_call.1} parent=1 // pred_fallthru
      _
    // Predicated region
    $region46: #{tpu_custom_call.1} parent=1 // pred_check
      _
    $region47: #{tpu_custom_call.1} parent=1 // pred_check_branch
      %117 = sbr.rel (0) target = $region49
    $region48: #{tpu_custom_call.1} parent=1 // pred_region
      %119 = dma.done [#allocation12], 512
    $region49: #{tpu_custom_call.1} parent=1 // pred_fallthru
      _
    %p120 = scmp.eq.s32.totalorder 0, 0
    // Predicated region
    $region50: #{tpu_custom_call.1} parent=1 // pred_check
      %p121 = pneg %p120
    $region51: #{tpu_custom_call.1} parent=1 // pred_check_branch
      %123 = sbr.rel (%p121) target = $region53
    $region52: #{tpu_custom_call.1} parent=1 // pred_region
      %v124 = vld [vmem:[#allocation5] sm:$0xff]
      %v125 = vld [vmem:[#allocation5 + $0x8] sm:$0xff]
      %126 = vst [vmem:[#allocation14] sm:$0xff] %v124
      %127 = vst [vmem:[#allocation14 + $0x8] sm:$0xff] %v125
      %v128 = vld [vmem:[#allocation7] sm:$0xff]
      %v129 = vld [vmem:[#allocation7 + $0x8] sm:$0xff]
      %130 = vst [vmem:[#allocation16] sm:$0xff] %v128
      %131 = vst [vmem:[#allocation16 + $0x8] sm:$0xff] %v129
    $region53: #{tpu_custom_call.1} parent=1 // pred_fallthru
      _
    %v132 = vld [vmem:[#allocation14] sm:$0xff]
    %v133 = vld [vmem:[#allocation16] sm:$0xff]
    %v134 = vld [vmem:[#allocation2] sm:$0xff]
    %v135 = vld [vmem:[#allocation2 + $0x8] sm:$0xff]
    %v136 = vld [vmem:[#allocation2 + $0x10] sm:$0xff]
    %v137 = vld [vmem:[#allocation2 + $0x18] sm:$0xff]
    %v138 = vld [vmem:[#allocation8] sm:$0xff]
    %v139 = vld [vmem:[#allocation8 + $0x8] sm:$0xff]
    %v140 = vld [vmem:[#allocation8 + $0x10] sm:$0xff]
    %v141 = vld [vmem:[#allocation8 + $0x18] sm:$0xff]
    %v142 = vld [vmem:[#allocation8 + $0x20] sm:$0xff]
    %v143 = vld [vmem:[#allocation8 + $0x28] sm:$0xff]
    %v144 = vld [vmem:[#allocation8 + $0x30] sm:$0xff]
    %v145 = vld [vmem:[#allocation8 + $0x38] sm:$0xff]
    %v146 = vld [vmem:[#allocation8 + $0x40] sm:$0xff]
    %v147 = vld [vmem:[#allocation8 + $0x48] sm:$0xff]
    %v148 = vld [vmem:[#allocation8 + $0x50] sm:$0xff]
    %v149 = vld [vmem:[#allocation8 + $0x58] sm:$0xff]
    %v150 = vld [vmem:[#allocation8 + $0x60] sm:$0xff]
    %v151 = vld [vmem:[#allocation8 + $0x68] sm:$0xff]
    %v152 = vld [vmem:[#allocation8 + $0x70] sm:$0xff]
    %v153 = vld [vmem:[#allocation8 + $0x78] sm:$0xff]
    %v154 = vld [vmem:[#allocation8 + $0x80] sm:$0xff]
    %v155 = vld [vmem:[#allocation8 + $0x88] sm:$0xff]
    %v156 = vld [vmem:[#allocation8 + $0x90] sm:$0xff]
    %v157 = vld [vmem:[#allocation8 + $0x98] sm:$0xff]
    %v158 = vld [vmem:[#allocation8 + $0xa0] sm:$0xff]
    %v159 = vld [vmem:[#allocation8 + $0xa8] sm:$0xff]
    %v160 = vld [vmem:[#allocation8 + $0xb0] sm:$0xff]
    %v161 = vld [vmem:[#allocation8 + $0xb8] sm:$0xff]
    %v162 = vld [vmem:[#allocation8 + $0xc0] sm:$0xff]
    %v163 = vld [vmem:[#allocation8 + $0xc8] sm:$0xff]
    %v164 = vld [vmem:[#allocation8 + $0xd0] sm:$0xff]
    %v165 = vld [vmem:[#allocation8 + $0xd8] sm:$0xff]
    %v166 = vld [vmem:[#allocation8 + $0xe0] sm:$0xff]
    %v167 = vld [vmem:[#allocation8 + $0xe8] sm:$0xff]
    %v168 = vld [vmem:[#allocation8 + $0xf0] sm:$0xff]
    %v169 = vld [vmem:[#allocation8 + $0xf8] sm:$0xff]
    %v170 = vld [vmem:[#allocation8 + $0x100] sm:$0xff]
    %v171 = vld [vmem:[#allocation8 + $0x108] sm:$0xff]
    %v172 = vld [vmem:[#allocation8 + $0x110] sm:$0xff]
    %v173 = vld [vmem:[#allocation8 + $0x118] sm:$0xff]
    %v174 = vld [vmem:[#allocation8 + $0x120] sm:$0xff]
    %v175 = vld [vmem:[#allocation8 + $0x128] sm:$0xff]
    %v176 = vld [vmem:[#allocation8 + $0x130] sm:$0xff]
    %v177 = vld [vmem:[#allocation8 + $0x138] sm:$0xff]
    %v178 = vld [vmem:[#allocation8 + $0x140] sm:$0xff]
    %v179 = vld [vmem:[#allocation8 + $0x148] sm:$0xff]
    %v180 = vld [vmem:[#allocation8 + $0x150] sm:$0xff]
    %v181 = vld [vmem:[#allocation8 + $0x158] sm:$0xff]
    %v182 = vld [vmem:[#allocation8 + $0x160] sm:$0xff]
    %v183 = vld [vmem:[#allocation8 + $0x168] sm:$0xff]
    %v184 = vld [vmem:[#allocation8 + $0x170] sm:$0xff]
    %v185 = vld [vmem:[#allocation8 + $0x178] sm:$0xff]
    %v186 = vld [vmem:[#allocation8 + $0x180] sm:$0xff]
    %v187 = vld [vmem:[#allocation8 + $0x188] sm:$0xff]
    %v188 = vld [vmem:[#allocation8 + $0x190] sm:$0xff]
    %v189 = vld [vmem:[#allocation8 + $0x198] sm:$0xff]
    %v190 = vld [vmem:[#allocation8 + $0x1a0] sm:$0xff]
    %v191 = vld [vmem:[#allocation8 + $0x1a8] sm:$0xff]
    %v192 = vld [vmem:[#allocation8 + $0x1b0] sm:$0xff]
    %v193 = vld [vmem:[#allocation8 + $0x1b8] sm:$0xff]
    %v194 = vld [vmem:[#allocation8 + $0x1c0] sm:$0xff]
    %v195 = vld [vmem:[#allocation8 + $0x1c8] sm:$0xff]
    %v196 = vld [vmem:[#allocation8 + $0x1d0] sm:$0xff]
    %v197 = vld [vmem:[#allocation8 + $0x1d8] sm:$0xff]
    %v198 = vld [vmem:[#allocation8 + $0x1e0] sm:$0xff]
    %v199 = vld [vmem:[#allocation8 + $0x1e8] sm:$0xff]
    %v200 = vld [vmem:[#allocation8 + $0x1f0] sm:$0xff]
    %v201 = vld [vmem:[#allocation8 + $0x1f8] sm:$0xff]
    %202 = vmatpush.msra.mxu0 %v198
    %203 = vmatpush.msra.mxu0 %v194
    %204 = vmatpush.msra.mxu0 %v190
    %205 = vmatpush.msra.mxu0 %v186
    %206 = vmatpush.msra.mxu0 %v182
    %207 = vmatpush.msra.mxu0 %v178
    %208 = vmatpush.msra.mxu0 %v174
    %209 = vmatpush.msra.mxu0 %v170
    %210 = vmatpush.msra.mxu0 %v166
    %211 = vmatpush.msra.mxu0 %v162
    %212 = vmatpush.msra.mxu0 %v158
    %213 = vmatpush.msra.mxu0 %v154
    %214 = vmatpush.msra.mxu0 %v150
    %215 = vmatpush.msra.mxu0 %v146
    %216 = vmatpush.msra.mxu0 %v142
    %217 = vmatpush.msra.mxu0 %v138
    %218 = vmatmul.f32.gmra.mxu0 %v132
    %v219 = vpop.f32.mrf.mxu0
    %v220 = vadd.f32 0.0, %v219
    %221 = vdwg.mxu0
    %222 = vmatpush.msra.mxu0 %v199
    %223 = vmatpush.msra.mxu0 %v195
    %224 = vmatpush.msra.mxu0 %v191
    %225 = vmatpush.msra.mxu0 %v187
    %226 = vmatpush.msra.mxu0 %v183
    %227 = vmatpush.msra.mxu0 %v179
    %228 = vmatpush.msra.mxu0 %v175
    %229 = vmatpush.msra.mxu0 %v171
    %230 = vmatpush.msra.mxu0 %v167
    %231 = vmatpush.msra.mxu0 %v163
    %232 = vmatpush.msra.mxu0 %v159
    %233 = vmatpush.msra.mxu0 %v155
    %234 = vmatpush.msra.mxu0 %v151
    %235 = vmatpush.msra.mxu0 %v147
    %236 = vmatpush.msra.mxu0 %v143
    %237 = vmatpush.msra.mxu0 %v139
    %238 = vmatmul.f32.gmra.mxu0 %v132
    %v239 = vpop.f32.mrf.mxu0
    %v240 = vadd.f32 0.0, %v239
    %241 = vdwg.mxu0
    %242 = vmatpush.msra.mxu0 %v200
    %243 = vmatpush.msra.mxu0 %v196
    %244 = vmatpush.msra.mxu0 %v192
    %245 = vmatpush.msra.mxu0 %v188
    %246 = vmatpush.msra.mxu0 %v184
    %247 = vmatpush.msra.mxu0 %v180
    %248 = vmatpush.msra.mxu0 %v176
    %249 = vmatpush.msra.mxu0 %v172
    %250 = vmatpush.msra.mxu0 %v168
    %251 = vmatpush.msra.mxu0 %v164
    %252 = vmatpush.msra.mxu0 %v160
    %253 = vmatpush.msra.mxu0 %v156
    %254 = vmatpush.msra.mxu0 %v152
    %255 = vmatpush.msra.mxu0 %v148
    %256 = vmatpush.msra.mxu0 %v144
    %257 = vmatpush.msra.mxu0 %v140
    %258 = vmatmul.f32.gmra.mxu0 %v132
    %v259 = vpop.f32.mrf.mxu0
    %v260 = vadd.f32 0.0, %v259
    %261 = vdwg.mxu0
    %262 = vmatpush.msra.mxu0 %v201
    %263 = vmatpush.msra.mxu0 %v197
    %264 = vmatpush.msra.mxu0 %v193
    %265 = vmatpush.msra.mxu0 %v189
    %266 = vmatpush.msra.mxu0 %v185
    %267 = vmatpush.msra.mxu0 %v181
    %268 = vmatpush.msra.mxu0 %v177
    %269 = vmatpush.msra.mxu0 %v173
    %270 = vmatpush.msra.mxu0 %v169
    %271 = vmatpush.msra.mxu0 %v165
    %272 = vmatpush.msra.mxu0 %v161
    %273 = vmatpush.msra.mxu0 %v157
    %274 = vmatpush.msra.mxu0 %v153
    %275 = vmatpush.msra.mxu0 %v149
    %276 = vmatpush.msra.mxu0 %v145
    %277 = vmatpush.msra.mxu0 %v141
    %278 = vmatmul.f32.gmra.mxu0 %v132
    %v279 = vpop.f32.mrf.mxu0
    %v280 = vadd.f32 0.0, %v279
    %281 = vdwg.mxu0
    %v282 = vadd.f32 %v134, %v220
    %v283 = vadd.f32 %v135, %v240
    %v284 = vadd.f32 %v136, %v260
    %v285 = vadd.f32 %v137, %v280
    %v286 = vmul.f32 %v282, 0.5
    %v287 = vmul.f32 %v283, 0.5
    %v288 = vmul.f32 %v284, 0.5
    %v289 = vtanh.pop %v286
    %v290 = vtanh.pop %v287
    %v291 = vtanh.pop %v288
    %v292 = vmul.f32 %v289, 0.5
    %v293 = vmul.f32 %v290, 0.5
    %v294 = vmul.f32 %v291, 0.5
    %v295 = vadd.f32 %v292, 0.5
    %v296 = vadd.f32 %v293, 0.5
    %v297 = vadd.f32 %v294, 0.5
    %v298 = vtanh.pop %v285
    %v299 = vmul.f32 %v296, %v133
    %v300 = vmul.f32 %v295, %v298
    %v301 = vadd.f32 %v299, %v300
    %v302 = vtanh.pop %v301
    %v303 = vmul.f32 %v297, %v302
    %304 = vst [vmem:[#allocation14] sm:$0xff] %v303
    %305 = vst [vmem:[#allocation16] sm:$0xff] %v301
    %s306 = scalar_lea.vmem [#allocation14], 8
    %v307 = vld [vmem:[%s306] sm:$0xff]
    %s308 = scalar_lea.vmem [#allocation16], 8
    %v309 = vld [vmem:[%s308] sm:$0xff]
    %v310 = vld [vmem:[#allocation10] sm:$0xff]
    %v311 = vld [vmem:[#allocation10 + $0x8] sm:$0xff]
    %v312 = vld [vmem:[#allocation10 + $0x10] sm:$0xff]
    %v313 = vld [vmem:[#allocation10 + $0x18] sm:$0xff]
    %v314 = vld [vmem:[#allocation10 + $0x20] sm:$0xff]
    %v315 = vld [vmem:[#allocation10 + $0x28] sm:$0xff]
    %v316 = vld [vmem:[#allocation10 + $0x30] sm:$0xff]
    %v317 = vld [vmem:[#allocation10 + $0x38] sm:$0xff]
    %v318 = vld [vmem:[#allocation10 + $0x40] sm:$0xff]
    %v319 = vld [vmem:[#allocation10 + $0x48] sm:$0xff]
    %v320 = vld [vmem:[#allocation10 + $0x50] sm:$0xff]
    %v321 = vld [vmem:[#allocation10 + $0x58] sm:$0xff]
    %v322 = vld [vmem:[#allocation10 + $0x60] sm:$0xff]
    %v323 = vld [vmem:[#allocation10 + $0x68] sm:$0xff]
    %v324 = vld [vmem:[#allocation10 + $0x70] sm:$0xff]
    %v325 = vld [vmem:[#allocation10 + $0x78] sm:$0xff]
    %v326 = vld [vmem:[#allocation10 + $0x80] sm:$0xff]
    %v327 = vld [vmem:[#allocation10 + $0x88] sm:$0xff]
    %v328 = vld [vmem:[#allocation10 + $0x90] sm:$0xff]
    %v329 = vld [vmem:[#allocation10 + $0x98] sm:$0xff]
    %v330 = vld [vmem:[#allocation10 + $0xa0] sm:$0xff]
    %v331 = vld [vmem:[#allocation10 + $0xa8] sm:$0xff]
    %v332 = vld [vmem:[#allocation10 + $0xb0] sm:$0xff]
    %v333 = vld [vmem:[#allocation10 + $0xb8] sm:$0xff]
    %v334 = vld [vmem:[#allocation10 + $0xc0] sm:$0xff]
    %v335 = vld [vmem:[#allocation10 + $0xc8] sm:$0xff]
    %v336 = vld [vmem:[#allocation10 + $0xd0] sm:$0xff]
    %v337 = vld [vmem:[#allocation10 + $0xd8] sm:$0xff]
    %v338 = vld [vmem:[#allocation10 + $0xe0] sm:$0xff]
    %v339 = vld [vmem:[#allocation10 + $0xe8] sm:$0xff]
    %v340 = vld [vmem:[#allocation10 + $0xf0] sm:$0xff]
    %v341 = vld [vmem:[#allocation10 + $0xf8] sm:$0xff]
    %v342 = vld [vmem:[#allocation10 + $0x100] sm:$0xff]
    %v343 = vld [vmem:[#allocation10 + $0x108] sm:$0xff]
    %v344 = vld [vmem:[#allocation10 + $0x110] sm:$0xff]
    %v345 = vld [vmem:[#allocation10 + $0x118] sm:$0xff]
    %v346 = vld [vmem:[#allocation10 + $0x120] sm:$0xff]
    %v347 = vld [vmem:[#allocation10 + $0x128] sm:$0xff]
    %v348 = vld [vmem:[#allocation10 + $0x130] sm:$0xff]
    %v349 = vld [vmem:[#allocation10 + $0x138] sm:$0xff]
    %v350 = vld [vmem:[#allocation10 + $0x140] sm:$0xff]
    %v351 = vld [vmem:[#allocation10 + $0x148] sm:$0xff]
    %v352 = vld [vmem:[#allocation10 + $0x150] sm:$0xff]
    %v353 = vld [vmem:[#allocation10 + $0x158] sm:$0xff]
    %v354 = vld [vmem:[#allocation10 + $0x160] sm:$0xff]
    %v355 = vld [vmem:[#allocation10 + $0x168] sm:$0xff]
    %v356 = vld [vmem:[#allocation10 + $0x170] sm:$0xff]
    %v357 = vld [vmem:[#allocation10 + $0x178] sm:$0xff]
    %v358 = vld [vmem:[#allocation10 + $0x180] sm:$0xff]
    %v359 = vld [vmem:[#allocation10 + $0x188] sm:$0xff]
    %v360 = vld [vmem:[#allocation10 + $0x190] sm:$0xff]
    %v361 = vld [vmem:[#allocation10 + $0x198] sm:$0xff]
    %v362 = vld [vmem:[#allocation10 + $0x1a0] sm:$0xff]
    %v363 = vld [vmem:[#allocation10 + $0x1a8] sm:$0xff]
    %v364 = vld [vmem:[#allocation10 + $0x1b0] sm:$0xff]
    %v365 = vld [vmem:[#allocation10 + $0x1b8] sm:$0xff]
    %v366 = vld [vmem:[#allocation10 + $0x1c0] sm:$0xff]
    %v367 = vld [vmem:[#allocation10 + $0x1c8] sm:$0xff]
    %v368 = vld [vmem:[#allocation10 + $0x1d0] sm:$0xff]
    %v369 = vld [vmem:[#allocation10 + $0x1d8] sm:$0xff]
    %v370 = vld [vmem:[#allocation10 + $0x1e0] sm:$0xff]
    %v371 = vld [vmem:[#allocation10 + $0x1e8] sm:$0xff]
    %v372 = vld [vmem:[#allocation10 + $0x1f0] sm:$0xff]
    %v373 = vld [vmem:[#allocation10 + $0x1f8] sm:$0xff]
    %s374 = scalar_lea.vmem [#allocation8], 512
    %v375 = vld [vmem:[%s374] sm:$0xff]
    %v376 = vld [vmem:[%s374 + $0x8] sm:$0xff]
    %v377 = vld [vmem:[%s374 + $0x10] sm:$0xff]
    %v378 = vld [vmem:[%s374 + $0x18] sm:$0xff]
    %v379 = vld [vmem:[%s374 + $0x20] sm:$0xff]
    %v380 = vld [vmem:[%s374 + $0x28] sm:$0xff]
    %v381 = vld [vmem:[%s374 + $0x30] sm:$0xff]
    %v382 = vld [vmem:[%s374 + $0x38] sm:$0xff]
    %v383 = vld [vmem:[%s374 + $0x40] sm:$0xff]
    %v384 = vld [vmem:[%s374 + $0x48] sm:$0xff]
    %v385 = vld [vmem:[%s374 + $0x50] sm:$0xff]
    %v386 = vld [vmem:[%s374 + $0x58] sm:$0xff]
    %v387 = vld [vmem:[%s374 + $0x60] sm:$0xff]
    %v388 = vld [vmem:[%s374 + $0x68] sm:$0xff]
    %v389 = vld [vmem:[%s374 + $0x70] sm:$0xff]
    %v390 = vld [vmem:[%s374 + $0x78] sm:$0xff]
    %v391 = vld [vmem:[%s374 + $0x80] sm:$0xff]
    %v392 = vld [vmem:[%s374 + $0x88] sm:$0xff]
    %v393 = vld [vmem:[%s374 + $0x90] sm:$0xff]
    %v394 = vld [vmem:[%s374 + $0x98] sm:$0xff]
    %v395 = vld [vmem:[%s374 + $0xa0] sm:$0xff]
    %v396 = vld [vmem:[%s374 + $0xa8] sm:$0xff]
    %v397 = vld [vmem:[%s374 + $0xb0] sm:$0xff]
    %v398 = vld [vmem:[%s374 + $0xb8] sm:$0xff]
    %v399 = vld [vmem:[%s374 + $0xc0] sm:$0xff]
    %v400 = vld [vmem:[%s374 + $0xc8] sm:$0xff]
    %v401 = vld [vmem:[%s374 + $0xd0] sm:$0xff]
    %v402 = vld [vmem:[%s374 + $0xd8] sm:$0xff]
    %v403 = vld [vmem:[%s374 + $0xe0] sm:$0xff]
    %v404 = vld [vmem:[%s374 + $0xe8] sm:$0xff]
    %v405 = vld [vmem:[%s374 + $0xf0] sm:$0xff]
    %v406 = vld [vmem:[%s374 + $0xf8] sm:$0xff]
    %v407 = vld [vmem:[%s374 + $0x100] sm:$0xff]
    %v408 = vld [vmem:[%s374 + $0x108] sm:$0xff]
    %v409 = vld [vmem:[%s374 + $0x110] sm:$0xff]
    %v410 = vld [vmem:[%s374 + $0x118] sm:$0xff]
    %v411 = vld [vmem:[%s374 + $0x120] sm:$0xff]
    %v412 = vld [vmem:[%s374 + $0x128] sm:$0xff]
    %v413 = vld [vmem:[%s374 + $0x130] sm:$0xff]
    %v414 = vld [vmem:[%s374 + $0x138] sm:$0xff]
    %v415 = vld [vmem:[%s374 + $0x140] sm:$0xff]
    %v416 = vld [vmem:[%s374 + $0x148] sm:$0xff]
    %v417 = vld [vmem:[%s374 + $0x150] sm:$0xff]
    %v418 = vld [vmem:[%s374 + $0x158] sm:$0xff]
    %v419 = vld [vmem:[%s374 + $0x160] sm:$0xff]
    %v420 = vld [vmem:[%s374 + $0x168] sm:$0xff]
    %v421 = vld [vmem:[%s374 + $0x170] sm:$0xff]
    %v422 = vld [vmem:[%s374 + $0x178] sm:$0xff]
    %v423 = vld [vmem:[%s374 + $0x180] sm:$0xff]
    %v424 = vld [vmem:[%s374 + $0x188] sm:$0xff]
    %v425 = vld [vmem:[%s374 + $0x190] sm:$0xff]
    %v426 = vld [vmem:[%s374 + $0x198] sm:$0xff]
    %v427 = vld [vmem:[%s374 + $0x1a0] sm:$0xff]
    %v428 = vld [vmem:[%s374 + $0x1a8] sm:$0xff]
    %v429 = vld [vmem:[%s374 + $0x1b0] sm:$0xff]
    %v430 = vld [vmem:[%s374 + $0x1b8] sm:$0xff]
    %v431 = vld [vmem:[%s374 + $0x1c0] sm:$0xff]
    %v432 = vld [vmem:[%s374 + $0x1c8] sm:$0xff]
    %v433 = vld [vmem:[%s374 + $0x1d0] sm:$0xff]
    %v434 = vld [vmem:[%s374 + $0x1d8] sm:$0xff]
    %v435 = vld [vmem:[%s374 + $0x1e0] sm:$0xff]
    %v436 = vld [vmem:[%s374 + $0x1e8] sm:$0xff]
    %v437 = vld [vmem:[%s374 + $0x1f0] sm:$0xff]
    %v438 = vld [vmem:[%s374 + $0x1f8] sm:$0xff]
    %439 = vmatpush.msra.mxu0 %v435
    %440 = vmatpush.msra.mxu0 %v431
    %441 = vmatpush.msra.mxu0 %v427
    %442 = vmatpush.msra.mxu0 %v423
    %443 = vmatpush.msra.mxu0 %v419
    %444 = vmatpush.msra.mxu0 %v415
    %445 = vmatpush.msra.mxu0 %v411
    %446 = vmatpush.msra.mxu0 %v407
    %447 = vmatpush.msra.mxu0 %v403
    %448 = vmatpush.msra.mxu0 %v399
    %449 = vmatpush.msra.mxu0 %v395
    %450 = vmatpush.msra.mxu0 %v391
    %451 = vmatpush.msra.mxu0 %v387
    %452 = vmatpush.msra.mxu0 %v383
    %453 = vmatpush.msra.mxu0 %v379
    %454 = vmatpush.msra.mxu0 %v375
    %455 = vmatmul.f32.gmra.mxu0 %v307
    %v456 = vpop.f32.mrf.mxu0
    %v457 = vadd.f32 0.0, %v456
    %458 = vdwg.mxu0
    %459 = vmatpush.msra.mxu0 %v436
    %460 = vmatpush.msra.mxu0 %v432
    %461 = vmatpush.msra.mxu0 %v428
    %462 = vmatpush.msra.mxu0 %v424
    %463 = vmatpush.msra.mxu0 %v420
    %464 = vmatpush.msra.mxu0 %v416
    %465 = vmatpush.msra.mxu0 %v412
    %466 = vmatpush.msra.mxu0 %v408
    %467 = vmatpush.msra.mxu0 %v404
    %468 = vmatpush.msra.mxu0 %v400
    %469 = vmatpush.msra.mxu0 %v396
    %470 = vmatpush.msra.mxu0 %v392
    %471 = vmatpush.msra.mxu0 %v388
    %472 = vmatpush.msra.mxu0 %v384
    %473 = vmatpush.msra.mxu0 %v380
    %474 = vmatpush.msra.mxu0 %v376
    %475 = vmatmul.f32.gmra.mxu0 %v307
    %v476 = vpop.f32.mrf.mxu0
    %v477 = vadd.f32 0.0, %v476
    %478 = vdwg.mxu0
    %479 = vmatpush.msra.mxu0 %v437
    %480 = vmatpush.msra.mxu0 %v433
    %481 = vmatpush.msra.mxu0 %v429
    %482 = vmatpush.msra.mxu0 %v425
    %483 = vmatpush.msra.mxu0 %v421
    %484 = vmatpush.msra.mxu0 %v417
    %485 = vmatpush.msra.mxu0 %v413
    %486 = vmatpush.msra.mxu0 %v409
    %487 = vmatpush.msra.mxu0 %v405
    %488 = vmatpush.msra.mxu0 %v401
    %489 = vmatpush.msra.mxu0 %v397
    %490 = vmatpush.msra.mxu0 %v393
    %491 = vmatpush.msra.mxu0 %v389
    %492 = vmatpush.msra.mxu0 %v385
    %493 = vmatpush.msra.mxu0 %v381
    %494 = vmatpush.msra.mxu0 %v377
    %495 = vmatmul.f32.gmra.mxu0 %v307
    %v496 = vpop.f32.mrf.mxu0
    %v497 = vadd.f32 0.0, %v496
    %498 = vdwg.mxu0
    %499 = vmatpush.msra.mxu0 %v438
    %500 = vmatpush.msra.mxu0 %v434
    %501 = vmatpush.msra.mxu0 %v430
    %502 = vmatpush.msra.mxu0 %v426
    %503 = vmatpush.msra.mxu0 %v422
    %504 = vmatpush.msra.mxu0 %v418
    %505 = vmatpush.msra.mxu0 %v414
    %506 = vmatpush.msra.mxu0 %v410
    %507 = vmatpush.msra.mxu0 %v406
    %508 = vmatpush.msra.mxu0 %v402
    %509 = vmatpush.msra.mxu0 %v398
    %510 = vmatpush.msra.mxu0 %v394
    %511 = vmatpush.msra.mxu0 %v390
    %512 = vmatpush.msra.mxu0 %v386
    %513 = vmatpush.msra.mxu0 %v382
    %514 = vmatpush.msra.mxu0 %v378
    %515 = vmatmul.f32.gmra.mxu0 %v307
    %v516 = vpop.f32.mrf.mxu0
    %v517 = vadd.f32 0.0, %v516
    %518 = vdwg.mxu0
    %519 = vmatpush.msra.mxu0 %v370
    %520 = vmatpush.msra.mxu0 %v366
    %521 = vmatpush.msra.mxu0 %v362
    %522 = vmatpush.msra.mxu0 %v358
    %523 = vmatpush.msra.mxu0 %v354
    %524 = vmatpush.msra.mxu0 %v350
    %525 = vmatpush.msra.mxu0 %v346
    %526 = vmatpush.msra.mxu0 %v342
    %527 = vmatpush.msra.mxu0 %v338
    %528 = vmatpush.msra.mxu0 %v334
    %529 = vmatpush.msra.mxu0 %v330
    %530 = vmatpush.msra.mxu0 %v326
    %531 = vmatpush.msra.mxu0 %v322
    %532 = vmatpush.msra.mxu0 %v318
    %533 = vmatpush.msra.mxu0 %v314
    %534 = vmatpush.msra.mxu0 %v310
    %535 = vmatmul.f32.gmra.mxu0 %v303
    %v536 = vpop.f32.mrf.mxu0
    %v537 = vadd.f32 %v457, %v536
    %538 = vdwg.mxu0
    %539 = vmatpush.msra.mxu0 %v371
    %540 = vmatpush.msra.mxu0 %v367
    %541 = vmatpush.msra.mxu0 %v363
    %542 = vmatpush.msra.mxu0 %v359
    %543 = vmatpush.msra.mxu0 %v355
    %544 = vmatpush.msra.mxu0 %v351
    %545 = vmatpush.msra.mxu0 %v347
    %546 = vmatpush.msra.mxu0 %v343
    %547 = vmatpush.msra.mxu0 %v339
    %548 = vmatpush.msra.mxu0 %v335
    %549 = vmatpush.msra.mxu0 %v331
    %550 = vmatpush.msra.mxu0 %v327
    %551 = vmatpush.msra.mxu0 %v323
    %552 = vmatpush.msra.mxu0 %v319
    %553 = vmatpush.msra.mxu0 %v315
    %554 = vmatpush.msra.mxu0 %v311
    %555 = vmatmul.f32.gmra.mxu0 %v303
    %v556 = vpop.f32.mrf.mxu0
    %v557 = vadd.f32 %v477, %v556
    %558 = vdwg.mxu0
    %559 = vmatpush.msra.mxu0 %v372
    %560 = vmatpush.msra.mxu0 %v368
    %561 = vmatpush.msra.mxu0 %v364
    %562 = vmatpush.msra.mxu0 %v360
    %563 = vmatpush.msra.mxu0 %v356
    %564 = vmatpush.msra.mxu0 %v352
    %565 = vmatpush.msra.mxu0 %v348
    %566 = vmatpush.msra.mxu0 %v344
    %567 = vmatpush.msra.mxu0 %v340
    %568 = vmatpush.msra.mxu0 %v336
    %569 = vmatpush.msra.mxu0 %v332
    %570 = vmatpush.msra.mxu0 %v328
    %571 = vmatpush.msra.mxu0 %v324
    %572 = vmatpush.msra.mxu0 %v320
    %573 = vmatpush.msra.mxu0 %v316
    %574 = vmatpush.msra.mxu0 %v312
    %575 = vmatmul.f32.gmra.mxu0 %v303
    %v576 = vpop.f32.mrf.mxu0
    %v577 = vadd.f32 %v497, %v576
    %578 = vdwg.mxu0
    %579 = vmatpush.msra.mxu0 %v373
    %580 = vmatpush.msra.mxu0 %v369
    %581 = vmatpush.msra.mxu0 %v365
    %582 = vmatpush.msra.mxu0 %v361
    %583 = vmatpush.msra.mxu0 %v357
    %584 = vmatpush.msra.mxu0 %v353
    %585 = vmatpush.msra.mxu0 %v349
    %586 = vmatpush.msra.mxu0 %v345
    %587 = vmatpush.msra.mxu0 %v341
    %588 = vmatpush.msra.mxu0 %v337
    %589 = vmatpush.msra.mxu0 %v333
    %590 = vmatpush.msra.mxu0 %v329
    %591 = vmatpush.msra.mxu0 %v325
    %592 = vmatpush.msra.mxu0 %v321
    %593 = vmatpush.msra.mxu0 %v317
    %594 = vmatpush.msra.mxu0 %v313
    %595 = vmatmul.f32.gmra.mxu0 %v303
    %v596 = vpop.f32.mrf.mxu0
    %v597 = vadd.f32 %v517, %v596
    %598 = vdwg.mxu0
    %v599 = vld [vmem:[#allocation11] sm:$0xff]
    %v600 = vld [vmem:[#allocation11 + $0x8] sm:$0xff]
    %v601 = vld [vmem:[#allocation11 + $0x10] sm:$0xff]
    %v602 = vld [vmem:[#allocation11 + $0x18] sm:$0xff]
    %v603 = vadd.f32 %v537, %v599
    %v604 = vadd.f32 %v557, %v600
    %v605 = vadd.f32 %v577, %v601
    %v606 = vadd.f32 %v597, %v602
    %v607 = vmul.f32 %v603, 0.5
    %v608 = vmul.f32 %v604, 0.5
    %v609 = vmul.f32 %v605, 0.5
    %v610 = vtanh.pop %v607
    %v611 = vtanh.pop %v608
    %v612 = vtanh.pop %v609
    %v613 = vmul.f32 %v610, 0.5
    %v614 = vmul.f32 %v611, 0.5
    %v615 = vmul.f32 %v612, 0.5
    %v616 = vadd.f32 %v613, 0.5
    %v617 = vadd.f32 %v614, 0.5
    %v618 = vadd.f32 %v615, 0.5
    %v619 = vtanh.pop %v606
    %v620 = vmul.f32 %v617, %v309
    %v621 = vmul.f32 %v616, %v619
    %v622 = vadd.f32 %v620, %v621
    %v623 = vtanh.pop %v622
    %v624 = vmul.f32 %v618, %v623
    %625 = vst [vmem:[%s306] sm:$0xff] %v624
    %626 = vst [vmem:[%s308] sm:$0xff] %v622
    %627 = vst [vmem:[#allocation13] sm:$0xff] %v624
    %v628 = vld [vmem:[#allocation14] sm:$0xff]
    %v629 = vld [vmem:[#allocation16] sm:$0xff]
    %s630 = scalar_lea.vmem [#allocation2], 32
    %v631 = vld [vmem:[%s630] sm:$0xff]
    %v632 = vld [vmem:[%s630 + $0x8] sm:$0xff]
    %v633 = vld [vmem:[%s630 + $0x10] sm:$0xff]
    %v634 = vld [vmem:[%s630 + $0x18] sm:$0xff]
    %v635 = vld [vmem:[#allocation8] sm:$0xff]
    %v636 = vld [vmem:[#allocation8 + $0x8] sm:$0xff]
    %v637 = vld [vmem:[#allocation8 + $0x10] sm:$0xff]
    %v638 = vld [vmem:[#allocation8 + $0x18] sm:$0xff]
    %v639 = vld [vmem:[#allocation8 + $0x20] sm:$0xff]
    %v640 = vld [vmem:[#allocation8 + $0x28] sm:$0xff]
    %v641 = vld [vmem:[#allocation8 + $0x30] sm:$0xff]
    %v642 = vld [vmem:[#allocation8 + $0x38] sm:$0xff]
    %v643 = vld [vmem:[#allocation8 + $0x40] sm:$0xff]
    %v644 = vld [vmem:[#allocation8 + $0x48] sm:$0xff]
    %v645 = vld [vmem:[#allocation8 + $0x50] sm:$0xff]
    %v646 = vld [vmem:[#allocation8 + $0x58] sm:$0xff]
    %v647 = vld [vmem:[#allocation8 + $0x60] sm:$0xff]
    %v648 = vld [vmem:[#allocation8 + $0x68] sm:$0xff]
    %v649 = vld [vmem:[#allocation8 + $0x70] sm:$0xff]
    %v650 = vld [vmem:[#allocation8 + $0x78] sm:$0xff]
    %v651 = vld [vmem:[#allocation8 + $0x80] sm:$0xff]
    %v652 = vld [vmem:[#allocation8 + $0x88] sm:$0xff]
    %v653 = vld [vmem:[#allocation8 + $0x90] sm:$0xff]
    %v654 = vld [vmem:[#allocation8 + $0x98] sm:$0xff]
    %v655 = vld [vmem:[#allocation8 + $0xa0] sm:$0xff]
    %v656 = vld [vmem:[#allocation8 + $0xa8] sm:$0xff]
    %v657 = vld [vmem:[#allocation8 + $0xb0] sm:$0xff]
    %v658 = vld [vmem:[#allocation8 + $0xb8] sm:$0xff]
    %v659 = vld [vmem:[#allocation8 + $0xc0] sm:$0xff]
    %v660 = vld [vmem:[#allocation8 + $0xc8] sm:$0xff]
    %v661 = vld [vmem:[#allocation8 + $0xd0] sm:$0xff]
    %v662 = vld [vmem:[#allocation8 + $0xd8] sm:$0xff]
    %v663 = vld [vmem:[#allocation8 + $0xe0] sm:$0xff]
    %v664 = vld [vmem:[#allocation8 + $0xe8] sm:$0xff]
    %v665 = vld [vmem:[#allocation8 + $0xf0] sm:$0xff]
    %v666 = vld [vmem:[#allocation8 + $0xf8] sm:$0xff]
    %v667 = vld [vmem:[#allocation8 + $0x100] sm:$0xff]
    %v668 = vld [vmem:[#allocation8 + $0x108] sm:$0xff]
    %v669 = vld [vmem:[#allocation8 + $0x110] sm:$0xff]
    %v670 = vld [vmem:[#allocation8 + $0x118] sm:$0xff]
    %v671 = vld [vmem:[#allocation8 + $0x120] sm:$0xff]
    %v672 = vld [vmem:[#allocation8 + $0x128] sm:$0xff]
    %v673 = vld [vmem:[#allocation8 + $0x130] sm:$0xff]
    %v674 = vld [vmem:[#allocation8 + $0x138] sm:$0xff]
    %v675 = vld [vmem:[#allocation8 + $0x140] sm:$0xff]
    %v676 = vld [vmem:[#allocation8 + $0x148] sm:$0xff]
    %v677 = vld [vmem:[#allocation8 + $0x150] sm:$0xff]
    %v678 = vld [vmem:[#allocation8 + $0x158] sm:$0xff]
    %v679 = vld [vmem:[#allocation8 + $0x160] sm:$0xff]
    %v680 = vld [vmem:[#allocation8 + $0x168] sm:$0xff]
    %v681 = vld [vmem:[#allocation8 + $0x170] sm:$0xff]
    %v682 = vld [vmem:[#allocation8 + $0x178] sm:$0xff]
    %v683 = vld [vmem:[#allocation8 + $0x180] sm:$0xff]
    %v684 = vld [vmem:[#allocation8 + $0x188] sm:$0xff]
    %v685 = vld [vmem:[#allocation8 + $0x190] sm:$0xff]
    %v686 = vld [vmem:[#allocation8 + $0x198] sm:$0xff]
    %v687 = vld [vmem:[#allocation8 + $0x1a0] sm:$0xff]
    %v688 = vld [vmem:[#allocation8 + $0x1a8] sm:$0xff]
    %v689 = vld [vmem:[#allocation8 + $0x1b0] sm:$0xff]
    %v690 = vld [vmem:[#allocation8 + $0x1b8] sm:$0xff]
    %v691 = vld [vmem:[#allocation8 + $0x1c0] sm:$0xff]
    %v692 = vld [vmem:[#allocation8 + $0x1c8] sm:$0xff]
    %v693 = vld [vmem:[#allocation8 + $0x1d0] sm:$0xff]
    %v694 = vld [vmem:[#allocation8 + $0x1d8] sm:$0xff]
    %v695 = vld [vmem:[#allocation8 + $0x1e0] sm:$0xff]
    %v696 = vld [vmem:[#allocation8 + $0x1e8] sm:$0xff]
    %v697 = vld [vmem:[#allocation8 + $0x1f0] sm:$0xff]
    %v698 = vld [vmem:[#allocation8 + $0x1f8] sm:$0xff]
    %699 = vmatpush.msra.mxu0 %v695
    %700 = vmatpush.msra.mxu0 %v691
    %701 = vmatpush.msra.mxu0 %v687
    %702 = vmatpush.msra.mxu0 %v683
    %703 = vmatpush.msra.mxu0 %v679
    %704 = vmatpush.msra.mxu0 %v675
    %705 = vmatpush.msra.mxu0 %v671
    %706 = vmatpush.msra.mxu0 %v667
    %707 = vmatpush.msra.mxu0 %v663
    %708 = vmatpush.msra.mxu0 %v659
    %709 = vmatpush.msra.mxu0 %v655
    %710 = vmatpush.msra.mxu0 %v651
    %711 = vmatpush.msra.mxu0 %v647
    %712 = vmatpush.msra.mxu0 %v643
    %713 = vmatpush.msra.mxu0 %v639
    %714 = vmatpush.msra.mxu0 %v635
    %715 = vmatmul.f32.gmra.mxu0 %v628
    %v716 = vpop.f32.mrf.mxu0
    %v717 = vadd.f32 0.0, %v716
    %718 = vdwg.mxu0
    %719 = vmatpush.msra.mxu0 %v696
    %720 = vmatpush.msra.mxu0 %v692
    %721 = vmatpush.msra.mxu0 %v688
    %722 = vmatpush.msra.mxu0 %v684
    %723 = vmatpush.msra.mxu0 %v680
    %724 = vmatpush.msra.mxu0 %v676
    %725 = vmatpush.msra.mxu0 %v672
    %726 = vmatpush.msra.mxu0 %v668
    %727 = vmatpush.msra.mxu0 %v664
    %728 = vmatpush.msra.mxu0 %v660
    %729 = vmatpush.msra.mxu0 %v656
    %730 = vmatpush.msra.mxu0 %v652
    %731 = vmatpush.msra.mxu0 %v648
    %732 = vmatpush.msra.mxu0 %v644
    %733 = vmatpush.msra.mxu0 %v640
    %734 = vmatpush.msra.mxu0 %v636
    %735 = vmatmul.f32.gmra.mxu0 %v628
    %v736 = vpop.f32.mrf.mxu0
    %v737 = vadd.f32 0.0, %v736
    %738 = vdwg.mxu0
    %739 = vmatpush.msra.mxu0 %v697
    %740 = vmatpush.msra.mxu0 %v693
    %741 = vmatpush.msra.mxu0 %v689
    %742 = vmatpush.msra.mxu0 %v685
    %743 = vmatpush.msra.mxu0 %v681
    %744 = vmatpush.msra.mxu0 %v677
    %745 = vmatpush.msra.mxu0 %v673
    %746 = vmatpush.msra.mxu0 %v669
    %747 = vmatpush.msra.mxu0 %v665
    %748 = vmatpush.msra.mxu0 %v661
    %749 = vmatpush.msra.mxu0 %v657
    %750 = vmatpush.msra.mxu0 %v653
    %751 = vmatpush.msra.mxu0 %v649
    %752 = vmatpush.msra.mxu0 %v645
    %753 = vmatpush.msra.mxu0 %v641
    %754 = vmatpush.msra.mxu0 %v637
    %755 = vmatmul.f32.gmra.mxu0 %v628
    %v756 = vpop.f32.mrf.mxu0
    %v757 = vadd.f32 0.0, %v756
    %758 = vdwg.mxu0
    %759 = vmatpush.msra.mxu0 %v698
    %760 = vmatpush.msra.mxu0 %v694
    %761 = vmatpush.msra.mxu0 %v690
    %762 = vmatpush.msra.mxu0 %v686
    %763 = vmatpush.msra.mxu0 %v682
    %764 = vmatpush.msra.mxu0 %v678
    %765 = vmatpush.msra.mxu0 %v674
    %766 = vmatpush.msra.mxu0 %v670
    %767 = vmatpush.msra.mxu0 %v666
    %768 = vmatpush.msra.mxu0 %v662
    %769 = vmatpush.msra.mxu0 %v658
    %770 = vmatpush.msra.mxu0 %v654
    %771 = vmatpush.msra.mxu0 %v650
    %772 = vmatpush.msra.mxu0 %v646
    %773 = vmatpush.msra.mxu0 %v642
    %774 = vmatpush.msra.mxu0 %v638
    %775 = vmatmul.f32.gmra.mxu0 %v628
    %v776 = vpop.f32.mrf.mxu0
    %v777 = vadd.f32 0.0, %v776
    %778 = vdwg.mxu0
    %v779 = vadd.f32 %v631, %v717
    %v780 = vadd.f32 %v632, %v737
    %v781 = vadd.f32 %v633, %v757
    %v782 = vadd.f32 %v634, %v777
    %v783 = vmul.f32 %v779, 0.5
    %v784 = vmul.f32 %v780, 0.5
    %v785 = vmul.f32 %v781, 0.5
    %v786 = vtanh.pop %v783
    %v787 = vtanh.pop %v784
    %v788 = vtanh.pop %v785
    %v789 = vmul.f32 %v786, 0.5
    %v790 = vmul.f32 %v787, 0.5
    %v791 = vmul.f32 %v788, 0.5
    %v792 = vadd.f32 %v789, 0.5
    %v793 = vadd.f32 %v790, 0.5
    %v794 = vadd.f32 %v791, 0.5
    %v795 = vtanh.pop %v782
    %v796 = vmul.f32 %v793, %v629
    %v797 = vmul.f32 %v792, %v795
    %v798 = vadd.f32 %v796, %v797
    %v799 = vtanh.pop %v798
    %v800 = vmul.f32 %v794, %v799
    %801 = vst [vmem:[#allocation14] sm:$0xff] %v800
    %802 = vst [vmem:[#allocation16] sm:$0xff] %v798
    %v803 = vld [vmem:[%s306] sm:$0xff]
    %v804 = vld [vmem:[%s308] sm:$0xff]
    %v805 = vld [vmem:[#allocation10] sm:$0xff]
    %v806 = vld [vmem:[#allocation10 + $0x8] sm:$0xff]
    %v807 = vld [vmem:[#allocation10 + $0x10] sm:$0xff]
    %v808 = vld [vmem:[#allocation10 + $0x18] sm:$0xff]
    %v809 = vld [vmem:[#allocation10 + $0x20] sm:$0xff]
    %v810 = vld [vmem:[#allocation10 + $0x28] sm:$0xff]
    %v811 = vld [vmem:[#allocation10 + $0x30] sm:$0xff]
    %v812 = vld [vmem:[#allocation10 + $0x38] sm:$0xff]
    %v813 = vld [vmem:[#allocation10 + $0x40] sm:$0xff]
    %v814 = vld [vmem:[#allocation10 + $0x48] sm:$0xff]
    %v815 = vld [vmem:[#allocation10 + $0x50] sm:$0xff]
    %v816 = vld [vmem:[#allocation10 + $0x58] sm:$0xff]
    %v817 = vld [vmem:[#allocation10 + $0x60] sm:$0xff]
    %v818 = vld [vmem:[#allocation10 + $0x68] sm:$0xff]
    %v819 = vld [vmem:[#allocation10 + $0x70] sm:$0xff]
    %v820 = vld [vmem:[#allocation10 + $0x78] sm:$0xff]
    %v821 = vld [vmem:[#allocation10 + $0x80] sm:$0xff]
    %v822 = vld [vmem:[#allocation10 + $0x88] sm:$0xff]
    %v823 = vld [vmem:[#allocation10 + $0x90] sm:$0xff]
    %v824 = vld [vmem:[#allocation10 + $0x98] sm:$0xff]
    %v825 = vld [vmem:[#allocation10 + $0xa0] sm:$0xff]
    %v826 = vld [vmem:[#allocation10 + $0xa8] sm:$0xff]
    %v827 = vld [vmem:[#allocation10 + $0xb0] sm:$0xff]
    %v828 = vld [vmem:[#allocation10 + $0xb8] sm:$0xff]
    %v829 = vld [vmem:[#allocation10 + $0xc0] sm:$0xff]
    %v830 = vld [vmem:[#allocation10 + $0xc8] sm:$0xff]
    %v831 = vld [vmem:[#allocation10 + $0xd0] sm:$0xff]
    %v832 = vld [vmem:[#allocation10 + $0xd8] sm:$0xff]
    %v833 = vld [vmem:[#allocation10 + $0xe0] sm:$0xff]
    %v834 = vld [vmem:[#allocation10 + $0xe8] sm:$0xff]
    %v835 = vld [vmem:[#allocation10 + $0xf0] sm:$0xff]
    %v836 = vld [vmem:[#allocation10 + $0xf8] sm:$0xff]
    %v837 = vld [vmem:[#allocation10 + $0x100] sm:$0xff]
    %v838 = vld [vmem:[#allocation10 + $0x108] sm:$0xff]
    %v839 = vld [vmem:[#allocation10 + $0x110] sm:$0xff]
    %v840 = vld [vmem:[#allocation10 + $0x118] sm:$0xff]
    %v841 = vld [vmem:[#allocation10 + $0x120] sm:$0xff]
    %v842 = vld [vmem:[#allocation10 + $0x128] sm:$0xff]
    %v843 = vld [vmem:[#allocation10 + $0x130] sm:$0xff]
    %v844 = vld [vmem:[#allocation10 + $0x138] sm:$0xff]
    %v845 = vld [vmem:[#allocation10 + $0x140] sm:$0xff]
    %v846 = vld [vmem:[#allocation10 + $0x148] sm:$0xff]
    %v847 = vld [vmem:[#allocation10 + $0x150] sm:$0xff]
    %v848 = vld [vmem:[#allocation10 + $0x158] sm:$0xff]
    %v849 = vld [vmem:[#allocation10 + $0x160] sm:$0xff]
    %v850 = vld [vmem:[#allocation10 + $0x168] sm:$0xff]
    %v851 = vld [vmem:[#allocation10 + $0x170] sm:$0xff]
    %v852 = vld [vmem:[#allocation10 + $0x178] sm:$0xff]
    %v853 = vld [vmem:[#allocation10 + $0x180] sm:$0xff]
    %v854 = vld [vmem:[#allocation10 + $0x188] sm:$0xff]
    %v855 = vld [vmem:[#allocation10 + $0x190] sm:$0xff]
    %v856 = vld [vmem:[#allocation10 + $0x198] sm:$0xff]
    %v857 = vld [vmem:[#allocation10 + $0x1a0] sm:$0xff]
    %v858 = vld [vmem:[#allocation10 + $0x1a8] sm:$0xff]
    %v859 = vld [vmem:[#allocation10 + $0x1b0] sm:$0xff]
    %v860 = vld [vmem:[#allocation10 + $0x1b8] sm:$0xff]
    %v861 = vld [vmem:[#allocation10 + $0x1c0] sm:$0xff]
    %v862 = vld [vmem:[#allocation10 + $0x1c8] sm:$0xff]
    %v863 = vld [vmem:[#allocation10 + $0x1d0] sm:$0xff]
    %v864 = vld [vmem:[#allocation10 + $0x1d8] sm:$0xff]
    %v865 = vld [vmem:[#allocation10 + $0x1e0] sm:$0xff]
    %v866 = vld [vmem:[#allocation10 + $0x1e8] sm:$0xff]
    %v867 = vld [vmem:[#allocation10 + $0x1f0] sm:$0xff]
    %v868 = vld [vmem:[#allocation10 + $0x1f8] sm:$0xff]
    %v869 = vld [vmem:[%s374] sm:$0xff]
    %v870 = vld [vmem:[%s374 + $0x8] sm:$0xff]
    %v871 = vld [vmem:[%s374 + $0x10] sm:$0xff]
    %v872 = vld [vmem:[%s374 + $0x18] sm:$0xff]
    %v873 = vld [vmem:[%s374 + $0x20] sm:$0xff]
    %v874 = vld [vmem:[%s374 + $0x28] sm:$0xff]
    %v875 = vld [vmem:[%s374 + $0x30] sm:$0xff]
    %v876 = vld [vmem:[%s374 + $0x38] sm:$0xff]
    %v877 = vld [vmem:[%s374 + $0x40] sm:$0xff]
    %v878 = vld [vmem:[%s374 + $0x48] sm:$0xff]
    %v879 = vld [vmem:[%s374 + $0x50] sm:$0xff]
    %v880 = vld [vmem:[%s374 + $0x58] sm:$0xff]
    %v881 = vld [vmem:[%s374 + $0x60] sm:$0xff]
    %v882 = vld [vmem:[%s374 + $0x68] sm:$0xff]
    %v883 = vld [vmem:[%s374 + $0x70] sm:$0xff]
    %v884 = vld [vmem:[%s374 + $0x78] sm:$0xff]
    %v885 = vld [vmem:[%s374 + $0x80] sm:$0xff]
    %v886 = vld [vmem:[%s374 + $0x88] sm:$0xff]
    %v887 = vld [vmem:[%s374 + $0x90] sm:$0xff]
    %v888 = vld [vmem:[%s374 + $0x98] sm:$0xff]
    %v889 = vld [vmem:[%s374 + $0xa0] sm:$0xff]
    %v890 = vld [vmem:[%s374 + $0xa8] sm:$0xff]
    %v891 = vld [vmem:[%s374 + $0xb0] sm:$0xff]
    %v892 = vld [vmem:[%s374 + $0xb8] sm:$0xff]
    %v893 = vld [vmem:[%s374 + $0xc0] sm:$0xff]
    %v894 = vld [vmem:[%s374 + $0xc8] sm:$0xff]
    %v895 = vld [vmem:[%s374 + $0xd0] sm:$0xff]
    %v896 = vld [vmem:[%s374 + $0xd8] sm:$0xff]
    %v897 = vld [vmem:[%s374 + $0xe0] sm:$0xff]
    %v898 = vld [vmem:[%s374 + $0xe8] sm:$0xff]
    %v899 = vld [vmem:[%s374 + $0xf0] sm:$0xff]
    %v900 = vld [vmem:[%s374 + $0xf8] sm:$0xff]
    %v901 = vld [vmem:[%s374 + $0x100] sm:$0xff]
    %v902 = vld [vmem:[%s374 + $0x108] sm:$0xff]
    %v903 = vld [vmem:[%s374 + $0x110] sm:$0xff]
    %v904 = vld [vmem:[%s374 + $0x118] sm:$0xff]
    %v905 = vld [vmem:[%s374 + $0x120] sm:$0xff]
    %v906 = vld [vmem:[%s374 + $0x128] sm:$0xff]
    %v907 = vld [vmem:[%s374 + $0x130] sm:$0xff]
    %v908 = vld [vmem:[%s374 + $0x138] sm:$0xff]
    %v909 = vld [vmem:[%s374 + $0x140] sm:$0xff]
    %v910 = vld [vmem:[%s374 + $0x148] sm:$0xff]
    %v911 = vld [vmem:[%s374 + $0x150] sm:$0xff]
    %v912 = vld [vmem:[%s374 + $0x158] sm:$0xff]
    %v913 = vld [vmem:[%s374 + $0x160] sm:$0xff]
    %v914 = vld [vmem:[%s374 + $0x168] sm:$0xff]
    %v915 = vld [vmem:[%s374 + $0x170] sm:$0xff]
    %v916 = vld [vmem:[%s374 + $0x178] sm:$0xff]
    %v917 = vld [vmem:[%s374 + $0x180] sm:$0xff]
    %v918 = vld [vmem:[%s374 + $0x188] sm:$0xff]
    %v919 = vld [vmem:[%s374 + $0x190] sm:$0xff]
    %v920 = vld [vmem:[%s374 + $0x198] sm:$0xff]
    %v921 = vld [vmem:[%s374 + $0x1a0] sm:$0xff]
    %v922 = vld [vmem:[%s374 + $0x1a8] sm:$0xff]
    %v923 = vld [vmem:[%s374 + $0x1b0] sm:$0xff]
    %v924 = vld [vmem:[%s374 + $0x1b8] sm:$0xff]
    %v925 = vld [vmem:[%s374 + $0x1c0] sm:$0xff]
    %v926 = vld [vmem:[%s374 + $0x1c8] sm:$0xff]
    %v927 = vld [vmem:[%s374 + $0x1d0] sm:$0xff]
    %v928 = vld [vmem:[%s374 + $0x1d8] sm:$0xff]
    %v929 = vld [vmem:[%s374 + $0x1e0] sm:$0xff]
    %v930 = vld [vmem:[%s374 + $0x1e8] sm:$0xff]
    %v931 = vld [vmem:[%s374 + $0x1f0] sm:$0xff]
    %v932 = vld [vmem:[%s374 + $0x1f8] sm:$0xff]
    %933 = vmatpush.msra.mxu0 %v929
    %934 = vmatpush.msra.mxu0 %v925
    %935 = vmatpush.msra.mxu0 %v921
    %936 = vmatpush.msra.mxu0 %v917
    %937 = vmatpush.msra.mxu0 %v913
    %938 = vmatpush.msra.mxu0 %v909
    %939 = vmatpush.msra.mxu0 %v905
    %940 = vmatpush.msra.mxu0 %v901
    %941 = vmatpush.msra.mxu0 %v897
    %942 = vmatpush.msra.mxu0 %v893
    %943 = vmatpush.msra.mxu0 %v889
    %944 = vmatpush.msra.mxu0 %v885
    %945 = vmatpush.msra.mxu0 %v881
    %946 = vmatpush.msra.mxu0 %v877
    %947 = vmatpush.msra.mxu0 %v873
    %948 = vmatpush.msra.mxu0 %v869
    %949 = vmatmul.f32.gmra.mxu0 %v803
    %v950 = vpop.f32.mrf.mxu0
    %v951 = vadd.f32 0.0, %v950
    %952 = vdwg.mxu0
    %953 = vmatpush.msra.mxu0 %v930
    %954 = vmatpush.msra.mxu0 %v926
    %955 = vmatpush.msra.mxu0 %v922
    %956 = vmatpush.msra.mxu0 %v918
    %957 = vmatpush.msra.mxu0 %v914
    %958 = vmatpush.msra.mxu0 %v910
    %959 = vmatpush.msra.mxu0 %v906
    %960 = vmatpush.msra.mxu0 %v902
    %961 = vmatpush.msra.mxu0 %v898
    %962 = vmatpush.msra.mxu0 %v894
    %963 = vmatpush.msra.mxu0 %v890
    %964 = vmatpush.msra.mxu0 %v886
    %965 = vmatpush.msra.mxu0 %v882
    %966 = vmatpush.msra.mxu0 %v878
    %967 = vmatpush.msra.mxu0 %v874
    %968 = vmatpush.msra.mxu0 %v870
    %969 = vmatmul.f32.gmra.mxu0 %v803
    %v970 = vpop.f32.mrf.mxu0
    %v971 = vadd.f32 0.0, %v970
    %972 = vdwg.mxu0
    %973 = vmatpush.msra.mxu0 %v931
    %974 = vmatpush.msra.mxu0 %v927
    %975 = vmatpush.msra.mxu0 %v923
    %976 = vmatpush.msra.mxu0 %v919
    %977 = vmatpush.msra.mxu0 %v915
    %978 = vmatpush.msra.mxu0 %v911
    %979 = vmatpush.msra.mxu0 %v907
    %980 = vmatpush.msra.mxu0 %v903
    %981 = vmatpush.msra.mxu0 %v899
    %982 = vmatpush.msra.mxu0 %v895
    %983 = vmatpush.msra.mxu0 %v891
    %984 = vmatpush.msra.mxu0 %v887
    %985 = vmatpush.msra.mxu0 %v883
    %986 = vmatpush.msra.mxu0 %v879
    %987 = vmatpush.msra.mxu0 %v875
    %988 = vmatpush.msra.mxu0 %v871
    %989 = vmatmul.f32.gmra.mxu0 %v803
    %v990 = vpop.f32.mrf.mxu0
    %v991 = vadd.f32 0.0, %v990
    %992 = vdwg.mxu0
    %993 = vmatpush.msra.mxu0 %v932
    %994 = vmatpush.msra.mxu0 %v928
    %995 = vmatpush.msra.mxu0 %v924
    %996 = vmatpush.msra.mxu0 %v920
    %997 = vmatpush.msra.mxu0 %v916
    %998 = vmatpush.msra.mxu0 %v912
    %999 = vmatpush.msra.mxu0 %v908
    %1000 = vmatpush.msra.mxu0 %v904
    %1001 = vmatpush.msra.mxu0 %v900
    %1002 = vmatpush.msra.mxu0 %v896
    %1003 = vmatpush.msra.mxu0 %v892
    %1004 = vmatpush.msra.mxu0 %v888
    %1005 = vmatpush.msra.mxu0 %v884
    %1006 = vmatpush.msra.mxu0 %v880
    %1007 = vmatpush.msra.mxu0 %v876
    %1008 = vmatpush.msra.mxu0 %v872
    %1009 = vmatmul.f32.gmra.mxu0 %v803
    %v1010 = vpop.f32.mrf.mxu0
    %v1011 = vadd.f32 0.0, %v1010
    %1012 = vdwg.mxu0
    %1013 = vmatpush.msra.mxu0 %v865
    %1014 = vmatpush.msra.mxu0 %v861
    %1015 = vmatpush.msra.mxu0 %v857
    %1016 = vmatpush.msra.mxu0 %v853
    %1017 = vmatpush.msra.mxu0 %v849
    %1018 = vmatpush.msra.mxu0 %v845
    %1019 = vmatpush.msra.mxu0 %v841
    %1020 = vmatpush.msra.mxu0 %v837
    %1021 = vmatpush.msra.mxu0 %v833
    %1022 = vmatpush.msra.mxu0 %v829
    %1023 = vmatpush.msra.mxu0 %v825
    %1024 = vmatpush.msra.mxu0 %v821
    %1025 = vmatpush.msra.mxu0 %v817
    %1026 = vmatpush.msra.mxu0 %v813
    %1027 = vmatpush.msra.mxu0 %v809
    %1028 = vmatpush.msra.mxu0 %v805
    %1029 = vmatmul.f32.gmra.mxu0 %v800
    %v1030 = vpop.f32.mrf.mxu0
    %v1031 = vadd.f32 %v951, %v1030
    %1032 = vdwg.mxu0
    %1033 = vmatpush.msra.mxu0 %v866
    %1034 = vmatpush.msra.mxu0 %v862
    %1035 = vmatpush.msra.mxu0 %v858
    %1036 = vmatpush.msra.mxu0 %v854
    %1037 = vmatpush.msra.mxu0 %v850
    %1038 = vmatpush.msra.mxu0 %v846
    %1039 = vmatpush.msra.mxu0 %v842
    %1040 = vmatpush.msra.mxu0 %v838
    %1041 = vmatpush.msra.mxu0 %v834
    %1042 = vmatpush.msra.mxu0 %v830
    %1043 = vmatpush.msra.mxu0 %v826
    %1044 = vmatpush.msra.mxu0 %v822
    %1045 = vmatpush.msra.mxu0 %v818
    %1046 = vmatpush.msra.mxu0 %v814
    %1047 = vmatpush.msra.mxu0 %v810
    %1048 = vmatpush.msra.mxu0 %v806
    %1049 = vmatmul.f32.gmra.mxu0 %v800
    %v1050 = vpop.f32.mrf.mxu0
    %v1051 = vadd.f32 %v971, %v1050
    %1052 = vdwg.mxu0
    %1053 = vmatpush.msra.mxu0 %v867
    %1054 = vmatpush.msra.mxu0 %v863
    %1055 = vmatpush.msra.mxu0 %v859
    %1056 = vmatpush.msra.mxu0 %v855
    %1057 = vmatpush.msra.mxu0 %v851
    %1058 = vmatpush.msra.mxu0 %v847
    %1059 = vmatpush.msra.mxu0 %v843
    %1060 = vmatpush.msra.mxu0 %v839
    %1061 = vmatpush.msra.mxu0 %v835
    %1062 = vmatpush.msra.mxu0 %v831
    %1063 = vmatpush.msra.mxu0 %v827
    %1064 = vmatpush.msra.mxu0 %v823
    %1065 = vmatpush.msra.mxu0 %v819
    %1066 = vmatpush.msra.mxu0 %v815
    %1067 = vmatpush.msra.mxu0 %v811
    %1068 = vmatpush.msra.mxu0 %v807
    %1069 = vmatmul.f32.gmra.mxu0 %v800
    %v1070 = vpop.f32.mrf.mxu0
    %v1071 = vadd.f32 %v991, %v1070
    %1072 = vdwg.mxu0
    %1073 = vmatpush.msra.mxu0 %v868
    %1074 = vmatpush.msra.mxu0 %v864
    %1075 = vmatpush.msra.mxu0 %v860
    %1076 = vmatpush.msra.mxu0 %v856
    %1077 = vmatpush.msra.mxu0 %v852
    %1078 = vmatpush.msra.mxu0 %v848
    %1079 = vmatpush.msra.mxu0 %v844
    %1080 = vmatpush.msra.mxu0 %v840
    %1081 = vmatpush.msra.mxu0 %v836
    %1082 = vmatpush.msra.mxu0 %v832
    %1083 = vmatpush.msra.mxu0 %v828
    %1084 = vmatpush.msra.mxu0 %v824
    %1085 = vmatpush.msra.mxu0 %v820
    %1086 = vmatpush.msra.mxu0 %v816
    %1087 = vmatpush.msra.mxu0 %v812
    %1088 = vmatpush.msra.mxu0 %v808
    %1089 = vmatmul.f32.gmra.mxu0 %v800
    %v1090 = vpop.f32.mrf.mxu0
    %v1091 = vadd.f32 %v1011, %v1090
    %1092 = vdwg.mxu0
    %v1093 = vld [vmem:[#allocation11] sm:$0xff]
    %v1094 = vld [vmem:[#allocation11 + $0x8] sm:$0xff]
    %v1095 = vld [vmem:[#allocation11 + $0x10] sm:$0xff]
    %v1096 = vld [vmem:[#allocation11 + $0x18] sm:$0xff]
    %v1097 = vadd.f32 %v1031, %v1093
    %v1098 = vadd.f32 %v1051, %v1094
    %v1099 = vadd.f32 %v1071, %v1095
    %v1100 = vadd.f32 %v1091, %v1096
    %v1101 = vmul.f32 %v1097, 0.5
    %v1102 = vmul.f32 %v1098, 0.5
    %v1103 = vmul.f32 %v1099, 0.5
    %v1104 = vtanh.pop %v1101
    %v1105 = vtanh.pop %v1102
    %v1106 = vtanh.pop %v1103
    %v1107 = vmul.f32 %v1104, 0.5
    %v1108 = vmul.f32 %v1105, 0.5
    %v1109 = vmul.f32 %v1106, 0.5
    %v1110 = vadd.f32 %v1107, 0.5
    %v1111 = vadd.f32 %v1108, 0.5
    %v1112 = vadd.f32 %v1109, 0.5
    %v1113 = vtanh.pop %v1100
    %v1114 = vmul.f32 %v1111, %v804
    %v1115 = vmul.f32 %v1110, %v1113
    %v1116 = vadd.f32 %v1114, %v1115
    %v1117 = vtanh.pop %v1116
    %v1118 = vmul.f32 %v1112, %v1117
    %1119 = vst [vmem:[%s306] sm:$0xff] %v1118
    %1120 = vst [vmem:[%s308] sm:$0xff] %v1116
    %s1121 = scalar_lea.vmem [#allocation13], 8
    %1122 = vst [vmem:[%s1121] sm:$0xff] %v1118
    %v1123 = vld [vmem:[#allocation14] sm:$0xff]
    %v1124 = vld [vmem:[#allocation16] sm:$0xff]
    %s1125 = scalar_lea.vmem [#allocation2], 64
    %v1126 = vld [vmem:[%s1125] sm:$0xff]
    %v1127 = vld [vmem:[%s1125 + $0x8] sm:$0xff]
    %v1128 = vld [vmem:[%s1125 + $0x10] sm:$0xff]
    %v1129 = vld [vmem:[%s1125 + $0x18] sm:$0xff]
    %v1130 = vld [vmem:[#allocation8] sm:$0xff]
    %v1131 = vld [vmem:[#allocation8 + $0x8] sm:$0xff]
    %v1132 = vld [vmem:[#allocation8 + $0x10] sm:$0xff]
    %v1133 = vld [vmem:[#allocation8 + $0x18] sm:$0xff]
    %v1134 = vld [vmem:[#allocation8 + $0x20] sm:$0xff]
    %v1135 = vld [vmem:[#allocation8 + $0x28] sm:$0xff]
    %v1136 = vld [vmem:[#allocation8 + $0x30] sm:$0xff]
    %v1137 = vld [vmem:[#allocation8 + $0x38] sm:$0xff]
    %v1138 = vld [vmem:[#allocation8 + $0x40] sm:$0xff]
    %v1139 = vld [vmem:[#allocation8 + $0x48] sm:$0xff]
    %v1140 = vld [vmem:[#allocation8 + $0x50] sm:$0xff]
    %v1141 = vld [vmem:[#allocation8 + $0x58] sm:$0xff]
    %v1142 = vld [vmem:[#allocation8 + $0x60] sm:$0xff]
    %v1143 = vld [vmem:[#allocation8 + $0x68] sm:$0xff]
    %v1144 = vld [vmem:[#allocation8 + $0x70] sm:$0xff]
    %v1145 = vld [vmem:[#allocation8 + $0x78] sm:$0xff]
    %v1146 = vld [vmem:[#allocation8 + $0x80] sm:$0xff]
    %v1147 = vld [vmem:[#allocation8 + $0x88] sm:$0xff]
    %v1148 = vld [vmem:[#allocation8 + $0x90] sm:$0xff]
    %v1149 = vld [vmem:[#allocation8 + $0x98] sm:$0xff]
    %v1150 = vld [vmem:[#allocation8 + $0xa0] sm:$0xff]
    %v1151 = vld [vmem:[#allocation8 + $0xa8] sm:$0xff]
    %v1152 = vld [vmem:[#allocation8 + $0xb0] sm:$0xff]
    %v1153 = vld [vmem:[#allocation8 + $0xb8] sm:$0xff]
    %v1154 = vld [vmem:[#allocation8 + $0xc0] sm:$0xff]
    %v1155 = vld [vmem:[#allocation8 + $0xc8] sm:$0xff]
    %v1156 = vld [vmem:[#allocation8 + $0xd0] sm:$0xff]
    %v1157 = vld [vmem:[#allocation8 + $0xd8] sm:$0xff]
    %v1158 = vld [vmem:[#allocation8 + $0xe0] sm:$0xff]
    %v1159 = vld [vmem:[#allocation8 + $0xe8] sm:$0xff]
    %v1160 = vld [vmem:[#allocation8 + $0xf0] sm:$0xff]
    %v1161 = vld [vmem:[#allocation8 + $0xf8] sm:$0xff]
    %v1162 = vld [vmem:[#allocation8 + $0x100] sm:$0xff]
    %v1163 = vld [vmem:[#allocation8 + $0x108] sm:$0xff]
    %v1164 = vld [vmem:[#allocation8 + $0x110] sm:$0xff]
    %v1165 = vld [vmem:[#allocation8 + $0x118] sm:$0xff]
    %v1166 = vld [vmem:[#allocation8 + $0x120] sm:$0xff]
    %v1167 = vld [vmem:[#allocation8 + $0x128] sm:$0xff]
    %v1168 = vld [vmem:[#allocation8 + $0x130] sm:$0xff]
    %v1169 = vld [vmem:[#allocation8 + $0x138] sm:$0xff]
    %v1170 = vld [vmem:[#allocation8 + $0x140] sm:$0xff]
    %v1171 = vld [vmem:[#allocation8 + $0x148] sm:$0xff]
    %v1172 = vld [vmem:[#allocation8 + $0x150] sm:$0xff]
    %v1173 = vld [vmem:[#allocation8 + $0x158] sm:$0xff]
    %v1174 = vld [vmem:[#allocation8 + $0x160] sm:$0xff]
    %v1175 = vld [vmem:[#allocation8 + $0x168] sm:$0xff]
    %v1176 = vld [vmem:[#allocation8 + $0x170] sm:$0xff]
    %v1177 = vld [vmem:[#allocation8 + $0x178] sm:$0xff]
    %v1178 = vld [vmem:[#allocation8 + $0x180] sm:$0xff]
    %v1179 = vld [vmem:[#allocation8 + $0x188] sm:$0xff]
    %v1180 = vld [vmem:[#allocation8 + $0x190] sm:$0xff]
    %v1181 = vld [vmem:[#allocation8 + $0x198] sm:$0xff]
    %v1182 = vld [vmem:[#allocation8 + $0x1a0] sm:$0xff]
    %v1183 = vld [vmem:[#allocation8 + $0x1a8] sm:$0xff]
    %v1184 = vld [vmem:[#allocation8 + $0x1b0] sm:$0xff]
    %v1185 = vld [vmem:[#allocation8 + $0x1b8] sm:$0xff]
    %v1186 = vld [vmem:[#allocation8 + $0x1c0] sm:$0xff]
    %v1187 = vld [vmem:[#allocation8 + $0x1c8] sm:$0xff]
    %v1188 = vld [vmem:[#allocation8 + $0x1d0] sm:$0xff]
    %v1189 = vld [vmem:[#allocation8 + $0x1d8] sm:$0xff]
    %v1190 = vld [vmem:[#allocation8 + $0x1e0] sm:$0xff]
    %v1191 = vld [vmem:[#allocation8 + $0x1e8] sm:$0xff]
    %v1192 = vld [vmem:[#allocation8 + $0x1f0] sm:$0xff]
    %v1193 = vld [vmem:[#allocation8 + $0x1f8] sm:$0xff]
    %1194 = vmatpush.msra.mxu0 %v1190
    %1195 = vmatpush.msra.mxu0 %v1186
    %1196 = vmatpush.msra.mxu0 %v1182
    %1197 = vmatpush.msra.mxu0 %v1178
    %1198 = vmatpush.msra.mxu0 %v1174
    %1199 = vmatpush.msra.mxu0 %v1170
    %1200 = vmatpush.msra.mxu0 %v1166
    %1201 = vmatpush.msra.mxu0 %v1162
    %1202 = vmatpush.msra.mxu0 %v1158
    %1203 = vmatpush.msra.mxu0 %v1154
    %1204 = vmatpush.msra.mxu0 %v1150
    %1205 = vmatpush.msra.mxu0 %v1146
    %1206 = vmatpush.msra.mxu0 %v1142
    %1207 = vmatpush.msra.mxu0 %v1138
    %1208 = vmatpush.msra.mxu0 %v1134
    %1209 = vmatpush.msra.mxu0 %v1130
    %1210 = vmatmul.f32.gmra.mxu0 %v1123
    %v1211 = vpop.f32.mrf.mxu0
    %v1212 = vadd.f32 0.0, %v1211
    %1213 = vdwg.mxu0
    %1214 = vmatpush.msra.mxu0 %v1191
    %1215 = vmatpush.msra.mxu0 %v1187
    %1216 = vmatpush.msra.mxu0 %v1183
    %1217 = vmatpush.msra.mxu0 %v1179
    %1218 = vmatpush.msra.mxu0 %v1175
    %1219 = vmatpush.msra.mxu0 %v1171
    %1220 = vmatpush.msra.mxu0 %v1167
    %1221 = vmatpush.msra.mxu0 %v1163
    %1222 = vmatpush.msra.mxu0 %v1159
    %1223 = vmatpush.msra.mxu0 %v1155
    %1224 = vmatpush.msra.mxu0 %v1151
    %1225 = vmatpush.msra.mxu0 %v1147
    %1226 = vmatpush.msra.mxu0 %v1143
    %1227 = vmatpush.msra.mxu0 %v1139
    %1228 = vmatpush.msra.mxu0 %v1135
    %1229 = vmatpush.msra.mxu0 %v1131
    %1230 = vmatmul.f32.gmra.mxu0 %v1123
    %v1231 = vpop.f32.mrf.mxu0
    %v1232 = vadd.f32 0.0, %v1231
    %1233 = vdwg.mxu0
    %1234 = vmatpush.msra.mxu0 %v1192
    %1235 = vmatpush.msra.mxu0 %v1188
    %1236 = vmatpush.msra.mxu0 %v1184
    %1237 = vmatpush.msra.mxu0 %v1180
    %1238 = vmatpush.msra.mxu0 %v1176
    %1239 = vmatpush.msra.mxu0 %v1172
    %1240 = vmatpush.msra.mxu0 %v1168
    %1241 = vmatpush.msra.mxu0 %v1164
    %1242 = vmatpush.msra.mxu0 %v1160
    %1243 = vmatpush.msra.mxu0 %v1156
    %1244 = vmatpush.msra.mxu0 %v1152
    %1245 = vmatpush.msra.mxu0 %v1148
    %1246 = vmatpush.msra.mxu0 %v1144
    %1247 = vmatpush.msra.mxu0 %v1140
    %1248 = vmatpush.msra.mxu0 %v1136
    %1249 = vmatpush.msra.mxu0 %v1132
    %1250 = vmatmul.f32.gmra.mxu0 %v1123
    %v1251 = vpop.f32.mrf.mxu0
    %v1252 = vadd.f32 0.0, %v1251
    %1253 = vdwg.mxu0
    %1254 = vmatpush.msra.mxu0 %v1193
    %1255 = vmatpush.msra.mxu0 %v1189
    %1256 = vmatpush.msra.mxu0 %v1185
    %1257 = vmatpush.msra.mxu0 %v1181
    %1258 = vmatpush.msra.mxu0 %v1177
    %1259 = vmatpush.msra.mxu0 %v1173
    %1260 = vmatpush.msra.mxu0 %v1169
    %1261 = vmatpush.msra.mxu0 %v1165
    %1262 = vmatpush.msra.mxu0 %v1161
    %1263 = vmatpush.msra.mxu0 %v1157
    %1264 = vmatpush.msra.mxu0 %v1153
    %1265 = vmatpush.msra.mxu0 %v1149
    %1266 = vmatpush.msra.mxu0 %v1145
    %1267 = vmatpush.msra.mxu0 %v1141
    %1268 = vmatpush.msra.mxu0 %v1137
    %1269 = vmatpush.msra.mxu0 %v1133
    %1270 = vmatmul.f32.gmra.mxu0 %v1123
    %v1271 = vpop.f32.mrf.mxu0
    %v1272 = vadd.f32 0.0, %v1271
    %1273 = vdwg.mxu0
    %v1274 = vadd.f32 %v1126, %v1212
    %v1275 = vadd.f32 %v1127, %v1232
    %v1276 = vadd.f32 %v1128, %v1252
    %v1277 = vadd.f32 %v1129, %v1272
    %v1278 = vmul.f32 %v1274, 0.5
    %v1279 = vmul.f32 %v1275, 0.5
    %v1280 = vmul.f32 %v1276, 0.5
    %v1281 = vtanh.pop %v1278
    %v1282 = vtanh.pop %v1279
    %v1283 = vtanh.pop %v1280
    %v1284 = vmul.f32 %v1281, 0.5
    %v1285 = vmul.f32 %v1282, 0.5
    %v1286 = vmul.f32 %v1283, 0.5
    %v1287 = vadd.f32 %v1284, 0.5
    %v1288 = vadd.f32 %v1285, 0.5
    %v1289 = vadd.f32 %v1286, 0.5
    %v1290 = vtanh.pop %v1277
    %v1291 = vmul.f32 %v1288, %v1124
    %v1292 = vmul.f32 %v1287, %v1290
    %v1293 = vadd.f32 %v1291, %v1292
    %v1294 = vtanh.pop %v1293
    %v1295 = vmul.f32 %v1289, %v1294
    %1296 = vst [vmem:[#allocation14] sm:$0xff] %v1295
    %1297 = vst [vmem:[#allocation16] sm:$0xff] %v1293
    %v1298 = vld [vmem:[%s306] sm:$0xff]
    %v1299 = vld [vmem:[%s308] sm:$0xff]
    %v1300 = vld [vmem:[#allocation10] sm:$0xff]
    %v1301 = vld [vmem:[#allocation10 + $0x8] sm:$0xff]
    %v1302 = vld [vmem:[#allocation10 + $0x10] sm:$0xff]
    %v1303 = vld [vmem:[#allocation10 + $0x18] sm:$0xff]
    %v1304 = vld [vmem:[#allocation10 + $0x20] sm:$0xff]
    %v1305 = vld [vmem:[#allocation10 + $0x28] sm:$0xff]
    %v1306 = vld [vmem:[#allocation10 + $0x30] sm:$0xff]
    %v1307 = vld [vmem:[#allocation10 + $0x38] sm:$0xff]
    %v1308 = vld [vmem:[#allocation10 + $0x40] sm:$0xff]
    %v1309 = vld [vmem:[#allocation10 + $0x48] sm:$0xff]
    %v1310 = vld [vmem:[#allocation10 + $0x50] sm:$0xff]
    %v1311 = vld [vmem:[#allocation10 + $0x58] sm:$0xff]
    %v1312 = vld [vmem:[#allocation10 + $0x60] sm:$0xff]
    %v1313 = vld [vmem:[#allocation10 + $0x68] sm:$0xff]
    %v1314 = vld [vmem:[#allocation10 + $0x70] sm:$0xff]
    %v1315 = vld [vmem:[#allocation10 + $0x78] sm:$0xff]
    %v1316 = vld [vmem:[#allocation10 + $0x80] sm:$0xff]
    %v1317 = vld [vmem:[#allocation10 + $0x88] sm:$0xff]
    %v1318 = vld [vmem:[#allocation10 + $0x90] sm:$0xff]
    %v1319 = vld [vmem:[#allocation10 + $0x98] sm:$0xff]
    %v1320 = vld [vmem:[#allocation10 + $0xa0] sm:$0xff]
    %v1321 = vld [vmem:[#allocation10 + $0xa8] sm:$0xff]
    %v1322 = vld [vmem:[#allocation10 + $0xb0] sm:$0xff]
    %v1323 = vld [vmem:[#allocation10 + $0xb8] sm:$0xff]
    %v1324 = vld [vmem:[#allocation10 + $0xc0] sm:$0xff]
    %v1325 = vld [vmem:[#allocation10 + $0xc8] sm:$0xff]
    %v1326 = vld [vmem:[#allocation10 + $0xd0] sm:$0xff]
    %v1327 = vld [vmem:[#allocation10 + $0xd8] sm:$0xff]
    %v1328 = vld [vmem:[#allocation10 + $0xe0] sm:$0xff]
    %v1329 = vld [vmem:[#allocation10 + $0xe8] sm:$0xff]
    %v1330 = vld [vmem:[#allocation10 + $0xf0] sm:$0xff]
    %v1331 = vld [vmem:[#allocation10 + $0xf8] sm:$0xff]
    %v1332 = vld [vmem:[#allocation10 + $0x100] sm:$0xff]
    %v1333 = vld [vmem:[#allocation10 + $0x108] sm:$0xff]
    %v1334 = vld [vmem:[#allocation10 + $0x110] sm:$0xff]
    %v1335 = vld [vmem:[#allocation10 + $0x118] sm:$0xff]
    %v1336 = vld [vmem:[#allocation10 + $0x120] sm:$0xff]
    %v1337 = vld [vmem:[#allocation10 + $0x128] sm:$0xff]
    %v1338 = vld [vmem:[#allocation10 + $0x130] sm:$0xff]
    %v1339 = vld [vmem:[#allocation10 + $0x138] sm:$0xff]
    %v1340 = vld [vmem:[#allocation10 + $0x140] sm:$0xff]
    %v1341 = vld [vmem:[#allocation10 + $0x148] sm:$0xff]
    %v1342 = vld [vmem:[#allocation10 + $0x150] sm:$0xff]
    %v1343 = vld [vmem:[#allocation10 + $0x158] sm:$0xff]
    %v1344 = vld [vmem:[#allocation10 + $0x160] sm:$0xff]
    %v1345 = vld [vmem:[#allocation10 + $0x168] sm:$0xff]
    %v1346 = vld [vmem:[#allocation10 + $0x170] sm:$0xff]
    %v1347 = vld [vmem:[#allocation10 + $0x178] sm:$0xff]
    %v1348 = vld [vmem:[#allocation10 + $0x180] sm:$0xff]
    %v1349 = vld [vmem:[#allocation10 + $0x188] sm:$0xff]
    %v1350 = vld [vmem:[#allocation10 + $0x190] sm:$0xff]
    %v1351 = vld [vmem:[#allocation10 + $0x198] sm:$0xff]
    %v1352 = vld [vmem:[#allocation10 + $0x1a0] sm:$0xff]
    %v1353 = vld [vmem:[#allocation10 + $0x1a8] sm:$0xff]
    %v1354 = vld [vmem:[#allocation10 + $0x1b0] sm:$0xff]
    %v1355 = vld [vmem:[#allocation10 + $0x1b8] sm:$0xff]
    %v1356 = vld [vmem:[#allocation10 + $0x1c0] sm:$0xff]
    %v1357 = vld [vmem:[#allocation10 + $0x1c8] sm:$0xff]
    %v1358 = vld [vmem:[#allocation10 + $0x1d0] sm:$0xff]
    %v1359 = vld [vmem:[#allocation10 + $0x1d8] sm:$0xff]
    %v1360 = vld [vmem:[#allocation10 + $0x1e0] sm:$0xff]
    %v1361 = vld [vmem:[#allocation10 + $0x1e8] sm:$0xff]
    %v1362 = vld [vmem:[#allocation10 + $0x1f0] sm:$0xff]
    %v1363 = vld [vmem:[#allocation10 + $0x1f8] sm:$0xff]
    %v1364 = vld [vmem:[%s374] sm:$0xff]
    %v1365 = vld [vmem:[%s374 + $0x8] sm:$0xff]
    %v1366 = vld [vmem:[%s374 + $0x10] sm:$0xff]
    %v1367 = vld [vmem:[%s374 + $0x18] sm:$0xff]
    %v1368 = vld [vmem:[%s374 + $0x20] sm:$0xff]
    %v1369 = vld [vmem:[%s374 + $0x28] sm:$0xff]
    %v1370 = vld [vmem:[%s374 + $0x30] sm:$0xff]
    %v1371 = vld [vmem:[%s374 + $0x38] sm:$0xff]
    %v1372 = vld [vmem:[%s374 + $0x40] sm:$0xff]
    %v1373 = vld [vmem:[%s374 + $0x48] sm:$0xff]
    %v1374 = vld [vmem:[%s374 + $0x50] sm:$0xff]
    %v1375 = vld [vmem:[%s374 + $0x58] sm:$0xff]
    %v1376 = vld [vmem:[%s374 + $0x60] sm:$0xff]
    %v1377 = vld [vmem:[%s374 + $0x68] sm:$0xff]
    %v1378 = vld [vmem:[%s374 + $0x70] sm:$0xff]
    %v1379 = vld [vmem:[%s374 + $0x78] sm:$0xff]
    %v1380 = vld [vmem:[%s374 + $0x80] sm:$0xff]
    %v1381 = vld [vmem:[%s374 + $0x88] sm:$0xff]
    %v1382 = vld [vmem:[%s374 + $0x90] sm:$0xff]
    %v1383 = vld [vmem:[%s374 + $0x98] sm:$0xff]
    %v1384 = vld [vmem:[%s374 + $0xa0] sm:$0xff]
    %v1385 = vld [vmem:[%s374 + $0xa8] sm:$0xff]
    %v1386 = vld [vmem:[%s374 + $0xb0] sm:$0xff]
    %v1387 = vld [vmem:[%s374 + $0xb8] sm:$0xff]
    %v1388 = vld [vmem:[%s374 + $0xc0] sm:$0xff]
    %v1389 = vld [vmem:[%s374 + $0xc8] sm:$0xff]
    %v1390 = vld [vmem:[%s374 + $0xd0] sm:$0xff]
    %v1391 = vld [vmem:[%s374 + $0xd8] sm:$0xff]
    %v1392 = vld [vmem:[%s374 + $0xe0] sm:$0xff]
    %v1393 = vld [vmem:[%s374 + $0xe8] sm:$0xff]
    %v1394 = vld [vmem:[%s374 + $0xf0] sm:$0xff]
    %v1395 = vld [vmem:[%s374 + $0xf8] sm:$0xff]
    %v1396 = vld [vmem:[%s374 + $0x100] sm:$0xff]
    %v1397 = vld [vmem:[%s374 + $0x108] sm:$0xff]
    %v1398 = vld [vmem:[%s374 + $0x110] sm:$0xff]
    %v1399 = vld [vmem:[%s374 + $0x118] sm:$0xff]
    %v1400 = vld [vmem:[%s374 + $0x120] sm:$0xff]
    %v1401 = vld [vmem:[%s374 + $0x128] sm:$0xff]
    %v1402 = vld [vmem:[%s374 + $0x130] sm:$0xff]
    %v1403 = vld [vmem:[%s374 + $0x138] sm:$0xff]
    %v1404 = vld [vmem:[%s374 + $0x140] sm:$0xff]
    %v1405 = vld [vmem:[%s374 + $0x148] sm:$0xff]
    %v1406 = vld [vmem:[%s374 + $0x150] sm:$0xff]
    %v1407 = vld [vmem:[%s374 + $0x158] sm:$0xff]
    %v1408 = vld [vmem:[%s374 + $0x160] sm:$0xff]
    %v1409 = vld [vmem:[%s374 + $0x168] sm:$0xff]
    %v1410 = vld [vmem:[%s374 + $0x170] sm:$0xff]
    %v1411 = vld [vmem:[%s374 + $0x178] sm:$0xff]
    %v1412 = vld [vmem:[%s374 + $0x180] sm:$0xff]
    %v1413 = vld [vmem:[%s374 + $0x188] sm:$0xff]
    %v1414 = vld [vmem:[%s374 + $0x190] sm:$0xff]
    %v1415 = vld [vmem:[%s374 + $0x198] sm:$0xff]
    %v1416 = vld [vmem:[%s374 + $0x1a0] sm:$0xff]
    %v1417 = vld [vmem:[%s374 + $0x1a8] sm:$0xff]
    %v1418 = vld [vmem:[%s374 + $0x1b0] sm:$0xff]
    %v1419 = vld [vmem:[%s374 + $0x1b8] sm:$0xff]
    %v1420 = vld [vmem:[%s374 + $0x1c0] sm:$0xff]
    %v1421 = vld [vmem:[%s374 + $0x1c8] sm:$0xff]
    %v1422 = vld [vmem:[%s374 + $0x1d0] sm:$0xff]
    %v1423 = vld [vmem:[%s374 + $0x1d8] sm:$0xff]
    %v1424 = vld [vmem:[%s374 + $0x1e0] sm:$0xff]
    %v1425 = vld [vmem:[%s374 + $0x1e8] sm:$0xff]
    %v1426 = vld [vmem:[%s374 + $0x1f0] sm:$0xff]
    %v1427 = vld [vmem:[%s374 + $0x1f8] sm:$0xff]
    %1428 = vmatpush.msra.mxu0 %v1424
    %1429 = vmatpush.msra.mxu0 %v1420
    %1430 = vmatpush.msra.mxu0 %v1416
    %1431 = vmatpush.msra.mxu0 %v1412
    %1432 = vmatpush.msra.mxu0 %v1408
    %1433 = vmatpush.msra.mxu0 %v1404
    %1434 = vmatpush.msra.mxu0 %v1400
    %1435 = vmatpush.msra.mxu0 %v1396
    %1436 = vmatpush.msra.mxu0 %v1392
    %1437 = vmatpush.msra.mxu0 %v1388
    %1438 = vmatpush.msra.mxu0 %v1384
    %1439 = vmatpush.msra.mxu0 %v1380
    %1440 = vmatpush.msra.mxu0 %v1376
    %1441 = vmatpush.msra.mxu0 %v1372
    %1442 = vmatpush.msra.mxu0 %v1368
    %1443 = vmatpush.msra.mxu0 %v1364
    %1444 = vmatmul.f32.gmra.mxu0 %v1298
    %v1445 = vpop.f32.mrf.mxu0
    %v1446 = vadd.f32 0.0, %v1445
    %1447 = vdwg.mxu0
    %1448 = vmatpush.msra.mxu0 %v1425
    %1449 = vmatpush.msra.mxu0 %v1421
    %1450 = vmatpush.msra.mxu0 %v1417
    %1451 = vmatpush.msra.mxu0 %v1413
    %1452 = vmatpush.msra.mxu0 %v1409
    %1453 = vmatpush.msra.mxu0 %v1405
    %1454 = vmatpush.msra.mxu0 %v1401
    %1455 = vmatpush.msra.mxu0 %v1397
    %1456 = vmatpush.msra.mxu0 %v1393
    %1457 = vmatpush.msra.mxu0 %v1389
    %1458 = vmatpush.msra.mxu0 %v1385
    %1459 = vmatpush.msra.mxu0 %v1381
    %1460 = vmatpush.msra.mxu0 %v1377
    %1461 = vmatpush.msra.mxu0 %v1373
    %1462 = vmatpush.msra.mxu0 %v1369
    %1463 = vmatpush.msra.mxu0 %v1365
    %1464 = vmatmul.f32.gmra.mxu0 %v1298
    %v1465 = vpop.f32.mrf.mxu0
    %v1466 = vadd.f32 0.0, %v1465
    %1467 = vdwg.mxu0
    %1468 = vmatpush.msra.mxu0 %v1426
    %1469 = vmatpush.msra.mxu0 %v1422
    %1470 = vmatpush.msra.mxu0 %v1418
    %1471 = vmatpush.msra.mxu0 %v1414
    %1472 = vmatpush.msra.mxu0 %v1410
    %1473 = vmatpush.msra.mxu0 %v1406
    %1474 = vmatpush.msra.mxu0 %v1402
    %1475 = vmatpush.msra.mxu0 %v1398
    %1476 = vmatpush.msra.mxu0 %v1394
    %1477 = vmatpush.msra.mxu0 %v1390
    %1478 = vmatpush.msra.mxu0 %v1386
    %1479 = vmatpush.msra.mxu0 %v1382
    %1480 = vmatpush.msra.mxu0 %v1378
    %1481 = vmatpush.msra.mxu0 %v1374
    %1482 = vmatpush.msra.mxu0 %v1370
    %1483 = vmatpush.msra.mxu0 %v1366
    %1484 = vmatmul.f32.gmra.mxu0 %v1298
    %v1485 = vpop.f32.mrf.mxu0
    %v1486 = vadd.f32 0.0, %v1485
    %1487 = vdwg.mxu0
    %1488 = vmatpush.msra.mxu0 %v1427
    %1489 = vmatpush.msra.mxu0 %v1423
    %1490 = vmatpush.msra.mxu0 %v1419
    %1491 = vmatpush.msra.mxu0 %v1415
    %1492 = vmatpush.msra.mxu0 %v1411
    %1493 = vmatpush.msra.mxu0 %v1407
    %1494 = vmatpush.msra.mxu0 %v1403
    %1495 = vmatpush.msra.mxu0 %v1399
    %1496 = vmatpush.msra.mxu0 %v1395
    %1497 = vmatpush.msra.mxu0 %v1391
    %1498 = vmatpush.msra.mxu0 %v1387
    %1499 = vmatpush.msra.mxu0 %v1383
    %1500 = vmatpush.msra.mxu0 %v1379
    %1501 = vmatpush.msra.mxu0 %v1375
    %1502 = vmatpush.msra.mxu0 %v1371
    %1503 = vmatpush.msra.mxu0 %v1367
    %1504 = vmatmul.f32.gmra.mxu0 %v1298
    %v1505 = vpop.f32.mrf.mxu0
    %v1506 = vadd.f32 0.0, %v1505
    %1507 = vdwg.mxu0
    %1508 = vmatpush.msra.mxu0 %v1360
    %1509 = vmatpush.msra.mxu0 %v1356
    %1510 = vmatpush.msra.mxu0 %v1352
    %1511 = vmatpush.msra.mxu0 %v1348
    %1512 = vmatpush.msra.mxu0 %v1344
    %1513 = vmatpush.msra.mxu0 %v1340
    %1514 = vmatpush.msra.mxu0 %v1336
    %1515 = vmatpush.msra.mxu0 %v1332
    %1516 = vmatpush.msra.mxu0 %v1328
    %1517 = vmatpush.msra.mxu0 %v1324
    %1518 = vmatpush.msra.mxu0 %v1320
    %1519 = vmatpush.msra.mxu0 %v1316
    %1520 = vmatpush.msra.mxu0 %v1312
    %1521 = vmatpush.msra.mxu0 %v1308
    %1522 = vmatpush.msra.mxu0 %v1304
    %1523 = vmatpush.msra.mxu0 %v1300
    %1524 = vmatmul.f32.gmra.mxu0 %v1295
    %v1525 = vpop.f32.mrf.mxu0
    %v1526 = vadd.f32 %v1446, %v1525
    %1527 = vdwg.mxu0
    %1528 = vmatpush.msra.mxu0 %v1361
    %1529 = vmatpush.msra.mxu0 %v1357
    %1530 = vmatpush.msra.mxu0 %v1353
    %1531 = vmatpush.msra.mxu0 %v1349
    %1532 = vmatpush.msra.mxu0 %v1345
    %1533 = vmatpush.msra.mxu0 %v1341
    %1534 = vmatpush.msra.mxu0 %v1337
    %1535 = vmatpush.msra.mxu0 %v1333
    %1536 = vmatpush.msra.mxu0 %v1329
    %1537 = vmatpush.msra.mxu0 %v1325
    %1538 = vmatpush.msra.mxu0 %v1321
    %1539 = vmatpush.msra.mxu0 %v1317
    %1540 = vmatpush.msra.mxu0 %v1313
    %1541 = vmatpush.msra.mxu0 %v1309
    %1542 = vmatpush.msra.mxu0 %v1305
    %1543 = vmatpush.msra.mxu0 %v1301
    %1544 = vmatmul.f32.gmra.mxu0 %v1295
    %v1545 = vpop.f32.mrf.mxu0
    %v1546 = vadd.f32 %v1466, %v1545
    %1547 = vdwg.mxu0
    %1548 = vmatpush.msra.mxu0 %v1362
    %1549 = vmatpush.msra.mxu0 %v1358
    %1550 = vmatpush.msra.mxu0 %v1354
    %1551 = vmatpush.msra.mxu0 %v1350
    %1552 = vmatpush.msra.mxu0 %v1346
    %1553 = vmatpush.msra.mxu0 %v1342
    %1554 = vmatpush.msra.mxu0 %v1338
    %1555 = vmatpush.msra.mxu0 %v1334
    %1556 = vmatpush.msra.mxu0 %v1330
    %1557 = vmatpush.msra.mxu0 %v1326
    %1558 = vmatpush.msra.mxu0 %v1322
    %1559 = vmatpush.msra.mxu0 %v1318
    %1560 = vmatpush.msra.mxu0 %v1314
    %1561 = vmatpush.msra.mxu0 %v1310
    %1562 = vmatpush.msra.mxu0 %v1306
    %1563 = vmatpush.msra.mxu0 %v1302
    %1564 = vmatmul.f32.gmra.mxu0 %v1295
    %v1565 = vpop.f32.mrf.mxu0
    %v1566 = vadd.f32 %v1486, %v1565
    %1567 = vdwg.mxu0
    %1568 = vmatpush.msra.mxu0 %v1363
    %1569 = vmatpush.msra.mxu0 %v1359
    %1570 = vmatpush.msra.mxu0 %v1355
    %1571 = vmatpush.msra.mxu0 %v1351
    %1572 = vmatpush.msra.mxu0 %v1347
    %1573 = vmatpush.msra.mxu0 %v1343
    %1574 = vmatpush.msra.mxu0 %v1339
    %1575 = vmatpush.msra.mxu0 %v1335
    %1576 = vmatpush.msra.mxu0 %v1331
    %1577 = vmatpush.msra.mxu0 %v1327
    %1578 = vmatpush.msra.mxu0 %v1323
    %1579 = vmatpush.msra.mxu0 %v1319
    %1580 = vmatpush.msra.mxu0 %v1315
    %1581 = vmatpush.msra.mxu0 %v1311
    %1582 = vmatpush.msra.mxu0 %v1307
    %1583 = vmatpush.msra.mxu0 %v1303
    %1584 = vmatmul.f32.gmra.mxu0 %v1295
    %v1585 = vpop.f32.mrf.mxu0
    %v1586 = vadd.f32 %v1506, %v1585
    %1587 = vdwg.mxu0
    %v1588 = vld [vmem:[#allocation11] sm:$0xff]
    %v1589 = vld [vmem:[#allocation11 + $0x8] sm:$0xff]
    %v1590 = vld [vmem:[#allocation11 + $0x10] sm:$0xff]
    %v1591 = vld [vmem:[#allocation11 + $0x18] sm:$0xff]
    %v1592 = vadd.f32 %v1526, %v1588
    %v1593 = vadd.f32 %v1546, %v1589
    %v1594 = vadd.f32 %v1566, %v1590
    %v1595 = vadd.f32 %v1586, %v1591
    %v1596 = vmul.f32 %v1592, 0.5
    %v1597 = vmul.f32 %v1593, 0.5
    %v1598 = vmul.f32 %v1594, 0.5
    %v1599 = vtanh.pop %v1596
    %v1600 = vtanh.pop %v1597
    %v1601 = vtanh.pop %v1598
    %v1602 = vmul.f32 %v1599, 0.5
    %v1603 = vmul.f32 %v1600, 0.5
    %v1604 = vmul.f32 %v1601, 0.5
    %v1605 = vadd.f32 %v1602, 0.5
    %v1606 = vadd.f32 %v1603, 0.5
    %v1607 = vadd.f32 %v1604, 0.5
    %v1608 = vtanh.pop %v1595
    %v1609 = vmul.f32 %v1606, %v1299
    %v1610 = vmul.f32 %v1605, %v1608
    %v1611 = vadd.f32 %v1609, %v1610
    %v1612 = vtanh.pop %v1611
    %v1613 = vmul.f32 %v1607, %v1612
    %1614 = vst [vmem:[%s306] sm:$0xff] %v1613
    %1615 = vst [vmem:[%s308] sm:$0xff] %v1611
    %s1616 = scalar_lea.vmem [#allocation13], 16
    %1617 = vst [vmem:[%s1616] sm:$0xff] %v1613
    %v1618 = vld [vmem:[#allocation14] sm:$0xff]
    %v1619 = vld [vmem:[#allocation16] sm:$0xff]
    %s1620 = scalar_lea.vmem [#allocation2], 96
    %v1621 = vld [vmem:[%s1620] sm:$0xff]
    %v1622 = vld [vmem:[%s1620 + $0x8] sm:$0xff]
    %v1623 = vld [vmem:[%s1620 + $0x10] sm:$0xff]
    %v1624 = vld [vmem:[%s1620 + $0x18] sm:$0xff]
    %v1625 = vld [vmem:[#allocation8] sm:$0xff]
    %v1626 = vld [vmem:[#allocation8 + $0x8] sm:$0xff]
    %v1627 = vld [vmem:[#allocation8 + $0x10] sm:$0xff]
    %v1628 = vld [vmem:[#allocation8 + $0x18] sm:$0xff]
    %v1629 = vld [vmem:[#allocation8 + $0x20] sm:$0xff]
    %v1630 = vld [vmem:[#allocation8 + $0x28] sm:$0xff]
    %v1631 = vld [vmem:[#allocation8 + $0x30] sm:$0xff]
    %v1632 = vld [vmem:[#allocation8 + $0x38] sm:$0xff]
    %v1633 = vld [vmem:[#allocation8 + $0x40] sm:$0xff]
    %v1634 = vld [vmem:[#allocation8 + $0x48] sm:$0xff]
    %v1635 = vld [vmem:[#allocation8 + $0x50] sm:$0xff]
    %v1636 = vld [vmem:[#allocation8 + $0x58] sm:$0xff]
    %v1637 = vld [vmem:[#allocation8 + $0x60] sm:$0xff]
    %v1638 = vld [vmem:[#allocation8 + $0x68] sm:$0xff]
    %v1639 = vld [vmem:[#allocation8 + $0x70] sm:$0xff]
    %v1640 = vld [vmem:[#allocation8 + $0x78] sm:$0xff]
    %v1641 = vld [vmem:[#allocation8 + $0x80] sm:$0xff]
    %v1642 = vld [vmem:[#allocation8 + $0x88] sm:$0xff]
    %v1643 = vld [vmem:[#allocation8 + $0x90] sm:$0xff]
    %v1644 = vld [vmem:[#allocation8 + $0x98] sm:$0xff]
    %v1645 = vld [vmem:[#allocation8 + $0xa0] sm:$0xff]
    %v1646 = vld [vmem:[#allocation8 + $0xa8] sm:$0xff]
    %v1647 = vld [vmem:[#allocation8 + $0xb0] sm:$0xff]
    %v1648 = vld [vmem:[#allocation8 + $0xb8] sm:$0xff]
    %v1649 = vld [vmem:[#allocation8 + $0xc0] sm:$0xff]
    %v1650 = vld [vmem:[#allocation8 + $0xc8] sm:$0xff]
    %v1651 = vld [vmem:[#allocation8 + $0xd0] sm:$0xff]
    %v1652 = vld [vmem:[#allocation8 + $0xd8] sm:$0xff]
    %v1653 = vld [vmem:[#allocation8 + $0xe0] sm:$0xff]
    %v1654 = vld [vmem:[#allocation8 + $0xe8] sm:$0xff]
    %v1655 = vld [vmem:[#allocation8 + $0xf0] sm:$0xff]
    %v1656 = vld [vmem:[#allocation8 + $0xf8] sm:$0xff]
    %v1657 = vld [vmem:[#allocation8 + $0x100] sm:$0xff]
    %v1658 = vld [vmem:[#allocation8 + $0x108] sm:$0xff]
    %v1659 = vld [vmem:[#allocation8 + $0x110] sm:$0xff]
    %v1660 = vld [vmem:[#allocation8 + $0x118] sm:$0xff]
    %v1661 = vld [vmem:[#allocation8 + $0x120] sm:$0xff]
    %v1662 = vld [vmem:[#allocation8 + $0x128] sm:$0xff]
    %v1663 = vld [vmem:[#allocation8 + $0x130] sm:$0xff]
    %v1664 = vld [vmem:[#allocation8 + $0x138] sm:$0xff]
    %v1665 = vld [vmem:[#allocation8 + $0x140] sm:$0xff]
    %v1666 = vld [vmem:[#allocation8 + $0x148] sm:$0xff]
    %v1667 = vld [vmem:[#allocation8 + $0x150] sm:$0xff]
    %v1668 = vld [vmem:[#allocation8 + $0x158] sm:$0xff]
    %v1669 = vld [vmem:[#allocation8 + $0x160] sm:$0xff]
    %v1670 = vld [vmem:[#allocation8 + $0x168] sm:$0xff]
    %v1671 = vld [vmem:[#allocation8 + $0x170] sm:$0xff]
    %v1672 = vld [vmem:[#allocation8 + $0x178] sm:$0xff]
    %v1673 = vld [vmem:[#allocation8 + $0x180] sm:$0xff]
    %v1674 = vld [vmem:[#allocation8 + $0x188] sm:$0xff]
    %v1675 = vld [vmem:[#allocation8 + $0x190] sm:$0xff]
    %v1676 = vld [vmem:[#allocation8 + $0x198] sm:$0xff]
    %v1677 = vld [vmem:[#allocation8 + $0x1a0] sm:$0xff]
    %v1678 = vld [vmem:[#allocation8 + $0x1a8] sm:$0xff]
    %v1679 = vld [vmem:[#allocation8 + $0x1b0] sm:$0xff]
    %v1680 = vld [vmem:[#allocation8 + $0x1b8] sm:$0xff]
    %v1681 = vld [vmem:[#allocation8 + $0x1c0] sm:$0xff]
    %v1682 = vld [vmem:[#allocation8 + $0x1c8] sm:$0xff]
    %v1683 = vld [vmem:[#allocation8 + $0x1d0] sm:$0xff]
    %v1684 = vld [vmem:[#allocation8 + $0x1d8] sm:$0xff]
    %v1685 = vld [vmem:[#allocation8 + $0x1e0] sm:$0xff]
    %v1686 = vld [vmem:[#allocation8 + $0x1e8] sm:$0xff]
    %v1687 = vld [vmem:[#allocation8 + $0x1f0] sm:$0xff]
    %v1688 = vld [vmem:[#allocation8 + $0x1f8] sm:$0xff]
    %1689 = vmatpush.msra.mxu0 %v1685
    %1690 = vmatpush.msra.mxu0 %v1681
    %1691 = vmatpush.msra.mxu0 %v1677
    %1692 = vmatpush.msra.mxu0 %v1673
    %1693 = vmatpush.msra.mxu0 %v1669
    %1694 = vmatpush.msra.mxu0 %v1665
    %1695 = vmatpush.msra.mxu0 %v1661
    %1696 = vmatpush.msra.mxu0 %v1657
    %1697 = vmatpush.msra.mxu0 %v1653
    %1698 = vmatpush.msra.mxu0 %v1649
    %1699 = vmatpush.msra.mxu0 %v1645
    %1700 = vmatpush.msra.mxu0 %v1641
    %1701 = vmatpush.msra.mxu0 %v1637
    %1702 = vmatpush.msra.mxu0 %v1633
    %1703 = vmatpush.msra.mxu0 %v1629
    %1704 = vmatpush.msra.mxu0 %v1625
    %1705 = vmatmul.f32.gmra.mxu0 %v1618
    %v1706 = vpop.f32.mrf.mxu0
    %v1707 = vadd.f32 0.0, %v1706
    %1708 = vdwg.mxu0
    %1709 = vmatpush.msra.mxu0 %v1686
    %1710 = vmatpush.msra.mxu0 %v1682
    %1711 = vmatpush.msra.mxu0 %v1678
    %1712 = vmatpush.msra.mxu0 %v1674
    %1713 = vmatpush.msra.mxu0 %v1670
    %1714 = vmatpush.msra.mxu0 %v1666
    %1715 = vmatpush.msra.mxu0 %v1662
    %1716 = vmatpush.msra.mxu0 %v1658
    %1717 = vmatpush.msra.mxu0 %v1654
    %1718 = vmatpush.msra.mxu0 %v1650
    %1719 = vmatpush.msra.mxu0 %v1646
    %1720 = vmatpush.msra.mxu0 %v1642
    %1721 = vmatpush.msra.mxu0 %v1638
    %1722 = vmatpush.msra.mxu0 %v1634
    %1723 = vmatpush.msra.mxu0 %v1630
    %1724 = vmatpush.msra.mxu0 %v1626
    %1725 = vmatmul.f32.gmra.mxu0 %v1618
    %v1726 = vpop.f32.mrf.mxu0
    %v1727 = vadd.f32 0.0, %v1726
    %1728 = vdwg.mxu0
    %1729 = vmatpush.msra.mxu0 %v1687
    %1730 = vmatpush.msra.mxu0 %v1683
    %1731 = vmatpush.msra.mxu0 %v1679
    %1732 = vmatpush.msra.mxu0 %v1675
    %1733 = vmatpush.msra.mxu0 %v1671
    %1734 = vmatpush.msra.mxu0 %v1667
    %1735 = vmatpush.msra.mxu0 %v1663
    %1736 = vmatpush.msra.mxu0 %v1659
    %1737 = vmatpush.msra.mxu0 %v1655
    %1738 = vmatpush.msra.mxu0 %v1651
    %1739 = vmatpush.msra.mxu0 %v1647
    %1740 = vmatpush.msra.mxu0 %v1643
    %1741 = vmatpush.msra.mxu0 %v1639
    %1742 = vmatpush.msra.mxu0 %v1635
    %1743 = vmatpush.msra.mxu0 %v1631
    %1744 = vmatpush.msra.mxu0 %v1627
    %1745 = vmatmul.f32.gmra.mxu0 %v1618
    %v1746 = vpop.f32.mrf.mxu0
    %v1747 = vadd.f32 0.0, %v1746
    %1748 = vdwg.mxu0
    %1749 = vmatpush.msra.mxu0 %v1688
    %1750 = vmatpush.msra.mxu0 %v1684
    %1751 = vmatpush.msra.mxu0 %v1680
    %1752 = vmatpush.msra.mxu0 %v1676
    %1753 = vmatpush.msra.mxu0 %v1672
    %1754 = vmatpush.msra.mxu0 %v1668
    %1755 = vmatpush.msra.mxu0 %v1664
    %1756 = vmatpush.msra.mxu0 %v1660
    %1757 = vmatpush.msra.mxu0 %v1656
    %1758 = vmatpush.msra.mxu0 %v1652
    %1759 = vmatpush.msra.mxu0 %v1648
    %1760 = vmatpush.msra.mxu0 %v1644
    %1761 = vmatpush.msra.mxu0 %v1640
    %1762 = vmatpush.msra.mxu0 %v1636
    %1763 = vmatpush.msra.mxu0 %v1632
    %1764 = vmatpush.msra.mxu0 %v1628
    %1765 = vmatmul.f32.gmra.mxu0 %v1618
    %v1766 = vpop.f32.mrf.mxu0
    %v1767 = vadd.f32 0.0, %v1766
    %1768 = vdwg.mxu0
    %v1769 = vadd.f32 %v1621, %v1707
    %v1770 = vadd.f32 %v1622, %v1727
    %v1771 = vadd.f32 %v1623, %v1747
    %v1772 = vadd.f32 %v1624, %v1767
    %v1773 = vmul.f32 %v1769, 0.5
    %v1774 = vmul.f32 %v1770, 0.5
    %v1775 = vmul.f32 %v1771, 0.5
    %v1776 = vtanh.pop %v1773
    %v1777 = vtanh.pop %v1774
    %v1778 = vtanh.pop %v1775
    %v1779 = vmul.f32 %v1776, 0.5
    %v1780 = vmul.f32 %v1777, 0.5
    %v1781 = vmul.f32 %v1778, 0.5
    %v1782 = vadd.f32 %v1779, 0.5
    %v1783 = vadd.f32 %v1780, 0.5
    %v1784 = vadd.f32 %v1781, 0.5
    %v1785 = vtanh.pop %v1772
    %v1786 = vmul.f32 %v1783, %v1619
    %v1787 = vmul.f32 %v1782, %v1785
    %v1788 = vadd.f32 %v1786, %v1787
    %v1789 = vtanh.pop %v1788
    %v1790 = vmul.f32 %v1784, %v1789
    %1791 = vst [vmem:[#allocation14] sm:$0xff] %v1790
    %1792 = vst [vmem:[#allocation16] sm:$0xff] %v1788
    %v1793 = vld [vmem:[%s306] sm:$0xff]
    %v1794 = vld [vmem:[%s308] sm:$0xff]
    %v1795 = vld [vmem:[#allocation10] sm:$0xff]
    %v1796 = vld [vmem:[#allocation10 + $0x8] sm:$0xff]
    %v1797 = vld [vmem:[#allocation10 + $0x10] sm:$0xff]
    %v1798 = vld [vmem:[#allocation10 + $0x18] sm:$0xff]
    %v1799 = vld [vmem:[#allocation10 + $0x20] sm:$0xff]
    %v1800 = vld [vmem:[#allocation10 + $0x28] sm:$0xff]
    %v1801 = vld [vmem:[#allocation10 + $0x30] sm:$0xff]
    %v1802 = vld [vmem:[#allocation10 + $0x38] sm:$0xff]
    %v1803 = vld [vmem:[#allocation10 + $0x40] sm:$0xff]
    %v1804 = vld [vmem:[#allocation10 + $0x48] sm:$0xff]
    %v1805 = vld [vmem:[#allocation10 + $0x50] sm:$0xff]
    %v1806 = vld [vmem:[#allocation10 + $0x58] sm:$0xff]
    %v1807 = vld [vmem:[#allocation10 + $0x60] sm:$0xff]
    %v1808 = vld [vmem:[#allocation10 + $0x68] sm:$0xff]
    %v1809 = vld [vmem:[#allocation10 + $0x70] sm:$0xff]
    %v1810 = vld [vmem:[#allocation10 + $0x78] sm:$0xff]
    %v1811 = vld [vmem:[#allocation10 + $0x80] sm:$0xff]
    %v1812 = vld [vmem:[#allocation10 + $0x88] sm:$0xff]
    %v1813 = vld [vmem:[#allocation10 + $0x90] sm:$0xff]
    %v1814 = vld [vmem:[#allocation10 + $0x98] sm:$0xff]
    %v1815 = vld [vmem:[#allocation10 + $0xa0] sm:$0xff]
    %v1816 = vld [vmem:[#allocation10 + $0xa8] sm:$0xff]
    %v1817 = vld [vmem:[#allocation10 + $0xb0] sm:$0xff]
    %v1818 = vld [vmem:[#allocation10 + $0xb8] sm:$0xff]
    %v1819 = vld [vmem:[#allocation10 + $0xc0] sm:$0xff]
    %v1820 = vld [vmem:[#allocation10 + $0xc8] sm:$0xff]
    %v1821 = vld [vmem:[#allocation10 + $0xd0] sm:$0xff]
    %v1822 = vld [vmem:[#allocation10 + $0xd8] sm:$0xff]
    %v1823 = vld [vmem:[#allocation10 + $0xe0] sm:$0xff]
    %v1824 = vld [vmem:[#allocation10 + $0xe8] sm:$0xff]
    %v1825 = vld [vmem:[#allocation10 + $0xf0] sm:$0xff]
    %v1826 = vld [vmem:[#allocation10 + $0xf8] sm:$0xff]
    %v1827 = vld [vmem:[#allocation10 + $0x100] sm:$0xff]
    %v1828 = vld [vmem:[#allocation10 + $0x108] sm:$0xff]
    %v1829 = vld [vmem:[#allocation10 + $0x110] sm:$0xff]
    %v1830 = vld [vmem:[#allocation10 + $0x118] sm:$0xff]
    %v1831 = vld [vmem:[#allocation10 + $0x120] sm:$0xff]
    %v1832 = vld [vmem:[#allocation10 + $0x128] sm:$0xff]
    %v1833 = vld [vmem:[#allocation10 + $0x130] sm:$0xff]
    %v1834 = vld [vmem:[#allocation10 + $0x138] sm:$0xff]
    %v1835 = vld [vmem:[#allocation10 + $0x140] sm:$0xff]
    %v1836 = vld [vmem:[#allocation10 + $0x148] sm:$0xff]
    %v1837 = vld [vmem:[#allocation10 + $0x150] sm:$0xff]
    %v1838 = vld [vmem:[#allocation10 + $0x158] sm:$0xff]
    %v1839 = vld [vmem:[#allocation10 + $0x160] sm:$0xff]
    %v1840 = vld [vmem:[#allocation10 + $0x168] sm:$0xff]
    %v1841 = vld [vmem:[#allocation10 + $0x170] sm:$0xff]
    %v1842 = vld [vmem:[#allocation10 + $0x178] sm:$0xff]
    %v1843 = vld [vmem:[#allocation10 + $0x180] sm:$0xff]
    %v1844 = vld [vmem:[#allocation10 + $0x188] sm:$0xff]
    %v1845 = vld [vmem:[#allocation10 + $0x190] sm:$0xff]
    %v1846 = vld [vmem:[#allocation10 + $0x198] sm:$0xff]
    %v1847 = vld [vmem:[#allocation10 + $0x1a0] sm:$0xff]
    %v1848 = vld [vmem:[#allocation10 + $0x1a8] sm:$0xff]
    %v1849 = vld [vmem:[#allocation10 + $0x1b0] sm:$0xff]
    %v1850 = vld [vmem:[#allocation10 + $0x1b8] sm:$0xff]
    %v1851 = vld [vmem:[#allocation10 + $0x1c0] sm:$0xff]
    %v1852 = vld [vmem:[#allocation10 + $0x1c8] sm:$0xff]
    %v1853 = vld [vmem:[#allocation10 + $0x1d0] sm:$0xff]
    %v1854 = vld [vmem:[#allocation10 + $0x1d8] sm:$0xff]
    %v1855 = vld [vmem:[#allocation10 + $0x1e0] sm:$0xff]
    %v1856 = vld [vmem:[#allocation10 + $0x1e8] sm:$0xff]
    %v1857 = vld [vmem:[#allocation10 + $0x1f0] sm:$0xff]
    %v1858 = vld [vmem:[#allocation10 + $0x1f8] sm:$0xff]
    %v1859 = vld [vmem:[%s374] sm:$0xff]
    %v1860 = vld [vmem:[%s374 + $0x8] sm:$0xff]
    %v1861 = vld [vmem:[%s374 + $0x10] sm:$0xff]
    %v1862 = vld [vmem:[%s374 + $0x18] sm:$0xff]
    %v1863 = vld [vmem:[%s374 + $0x20] sm:$0xff]
    %v1864 = vld [vmem:[%s374 + $0x28] sm:$0xff]
    %v1865 = vld [vmem:[%s374 + $0x30] sm:$0xff]
    %v1866 = vld [vmem:[%s374 + $0x38] sm:$0xff]
    %v1867 = vld [vmem:[%s374 + $0x40] sm:$0xff]
    %v1868 = vld [vmem:[%s374 + $0x48] sm:$0xff]
    %v1869 = vld [vmem:[%s374 + $0x50] sm:$0xff]
    %v1870 = vld [vmem:[%s374 + $0x58] sm:$0xff]
    %v1871 = vld [vmem:[%s374 + $0x60] sm:$0xff]
    %v1872 = vld [vmem:[%s374 + $0x68] sm:$0xff]
    %v1873 = vld [vmem:[%s374 + $0x70] sm:$0xff]
    %v1874 = vld [vmem:[%s374 + $0x78] sm:$0xff]
    %v1875 = vld [vmem:[%s374 + $0x80] sm:$0xff]
    %v1876 = vld [vmem:[%s374 + $0x88] sm:$0xff]
    %v1877 = vld [vmem:[%s374 + $0x90] sm:$0xff]
    %v1878 = vld [vmem:[%s374 + $0x98] sm:$0xff]
    %v1879 = vld [vmem:[%s374 + $0xa0] sm:$0xff]
    %v1880 = vld [vmem:[%s374 + $0xa8] sm:$0xff]
    %v1881 = vld [vmem:[%s374 + $0xb0] sm:$0xff]
    %v1882 = vld [vmem:[%s374 + $0xb8] sm:$0xff]
    %v1883 = vld [vmem:[%s374 + $0xc0] sm:$0xff]
    %v1884 = vld [vmem:[%s374 + $0xc8] sm:$0xff]
    %v1885 = vld [vmem:[%s374 + $0xd0] sm:$0xff]
    %v1886 = vld [vmem:[%s374 + $0xd8] sm:$0xff]
    %v1887 = vld [vmem:[%s374 + $0xe0] sm:$0xff]
    %v1888 = vld [vmem:[%s374 + $0xe8] sm:$0xff]
    %v1889 = vld [vmem:[%s374 + $0xf0] sm:$0xff]
    %v1890 = vld [vmem:[%s374 + $0xf8] sm:$0xff]
    %v1891 = vld [vmem:[%s374 + $0x100] sm:$0xff]
    %v1892 = vld [vmem:[%s374 + $0x108] sm:$0xff]
    %v1893 = vld [vmem:[%s374 + $0x110] sm:$0xff]
    %v1894 = vld [vmem:[%s374 + $0x118] sm:$0xff]
    %v1895 = vld [vmem:[%s374 + $0x120] sm:$0xff]
    %v1896 = vld [vmem:[%s374 + $0x128] sm:$0xff]
    %v1897 = vld [vmem:[%s374 + $0x130] sm:$0xff]
    %v1898 = vld [vmem:[%s374 + $0x138] sm:$0xff]
    %v1899 = vld [vmem:[%s374 + $0x140] sm:$0xff]
    %v1900 = vld [vmem:[%s374 + $0x148] sm:$0xff]
    %v1901 = vld [vmem:[%s374 + $0x150] sm:$0xff]
    %v1902 = vld [vmem:[%s374 + $0x158] sm:$0xff]
    %v1903 = vld [vmem:[%s374 + $0x160] sm:$0xff]
    %v1904 = vld [vmem:[%s374 + $0x168] sm:$0xff]
    %v1905 = vld [vmem:[%s374 + $0x170] sm:$0xff]
    %v1906 = vld [vmem:[%s374 + $0x178] sm:$0xff]
    %v1907 = vld [vmem:[%s374 + $0x180] sm:$0xff]
    %v1908 = vld [vmem:[%s374 + $0x188] sm:$0xff]
    %v1909 = vld [vmem:[%s374 + $0x190] sm:$0xff]
    %v1910 = vld [vmem:[%s374 + $0x198] sm:$0xff]
    %v1911 = vld [vmem:[%s374 + $0x1a0] sm:$0xff]
    %v1912 = vld [vmem:[%s374 + $0x1a8] sm:$0xff]
    %v1913 = vld [vmem:[%s374 + $0x1b0] sm:$0xff]
    %v1914 = vld [vmem:[%s374 + $0x1b8] sm:$0xff]
    %v1915 = vld [vmem:[%s374 + $0x1c0] sm:$0xff]
    %v1916 = vld [vmem:[%s374 + $0x1c8] sm:$0xff]
    %v1917 = vld [vmem:[%s374 + $0x1d0] sm:$0xff]
    %v1918 = vld [vmem:[%s374 + $0x1d8] sm:$0xff]
    %v1919 = vld [vmem:[%s374 + $0x1e0] sm:$0xff]
    %v1920 = vld [vmem:[%s374 + $0x1e8] sm:$0xff]
    %v1921 = vld [vmem:[%s374 + $0x1f0] sm:$0xff]
    %v1922 = vld [vmem:[%s374 + $0x1f8] sm:$0xff]
    %1923 = vmatpush.msra.mxu0 %v1919
    %1924 = vmatpush.msra.mxu0 %v1915
    %1925 = vmatpush.msra.mxu0 %v1911
    %1926 = vmatpush.msra.mxu0 %v1907
    %1927 = vmatpush.msra.mxu0 %v1903
    %1928 = vmatpush.msra.mxu0 %v1899
    %1929 = vmatpush.msra.mxu0 %v1895
    %1930 = vmatpush.msra.mxu0 %v1891
    %1931 = vmatpush.msra.mxu0 %v1887
    %1932 = vmatpush.msra.mxu0 %v1883
    %1933 = vmatpush.msra.mxu0 %v1879
    %1934 = vmatpush.msra.mxu0 %v1875
    %1935 = vmatpush.msra.mxu0 %v1871
    %1936 = vmatpush.msra.mxu0 %v1867
    %1937 = vmatpush.msra.mxu0 %v1863
    %1938 = vmatpush.msra.mxu0 %v1859
    %1939 = vmatmul.f32.gmra.mxu0 %v1793
    %v1940 = vpop.f32.mrf.mxu0
    %v1941 = vadd.f32 0.0, %v1940
    %1942 = vdwg.mxu0
    %1943 = vmatpush.msra.mxu0 %v1920
    %1944 = vmatpush.msra.mxu0 %v1916
    %1945 = vmatpush.msra.mxu0 %v1912
    %1946 = vmatpush.msra.mxu0 %v1908
    %1947 = vmatpush.msra.mxu0 %v1904
    %1948 = vmatpush.msra.mxu0 %v1900
    %1949 = vmatpush.msra.mxu0 %v1896
    %1950 = vmatpush.msra.mxu0 %v1892
    %1951 = vmatpush.msra.mxu0 %v1888
    %1952 = vmatpush.msra.mxu0 %v1884
    %1953 = vmatpush.msra.mxu0 %v1880
    %1954 = vmatpush.msra.mxu0 %v1876
    %1955 = vmatpush.msra.mxu0 %v1872
    %1956 = vmatpush.msra.mxu0 %v1868
    %1957 = vmatpush.msra.mxu0 %v1864
    %1958 = vmatpush.msra.mxu0 %v1860
    %1959 = vmatmul.f32.gmra.mxu0 %v1793
    %v1960 = vpop.f32.mrf.mxu0
    %v1961 = vadd.f32 0.0, %v1960
    %1962 = vdwg.mxu0
    %1963 = vmatpush.msra.mxu0 %v1921
    %1964 = vmatpush.msra.mxu0 %v1917
    %1965 = vmatpush.msra.mxu0 %v1913
    %1966 = vmatpush.msra.mxu0 %v1909
    %1967 = vmatpush.msra.mxu0 %v1905
    %1968 = vmatpush.msra.mxu0 %v1901
    %1969 = vmatpush.msra.mxu0 %v1897
    %1970 = vmatpush.msra.mxu0 %v1893
    %1971 = vmatpush.msra.mxu0 %v1889
    %1972 = vmatpush.msra.mxu0 %v1885
    %1973 = vmatpush.msra.mxu0 %v1881
    %1974 = vmatpush.msra.mxu0 %v1877
    %1975 = vmatpush.msra.mxu0 %v1873
    %1976 = vmatpush.msra.mxu0 %v1869
    %1977 = vmatpush.msra.mxu0 %v1865
    %1978 = vmatpush.msra.mxu0 %v1861
    %1979 = vmatmul.f32.gmra.mxu0 %v1793
    %v1980 = vpop.f32.mrf.mxu0
    %v1981 = vadd.f32 0.0, %v1980
    %1982 = vdwg.mxu0
    %1983 = vmatpush.msra.mxu0 %v1922
    %1984 = vmatpush.msra.mxu0 %v1918
    %1985 = vmatpush.msra.mxu0 %v1914
    %1986 = vmatpush.msra.mxu0 %v1910
    %1987 = vmatpush.msra.mxu0 %v1906
    %1988 = vmatpush.msra.mxu0 %v1902
    %1989 = vmatpush.msra.mxu0 %v1898
    %1990 = vmatpush.msra.mxu0 %v1894
    %1991 = vmatpush.msra.mxu0 %v1890
    %1992 = vmatpush.msra.mxu0 %v1886
    %1993 = vmatpush.msra.mxu0 %v1882
    %1994 = vmatpush.msra.mxu0 %v1878
    %1995 = vmatpush.msra.mxu0 %v1874
    %1996 = vmatpush.msra.mxu0 %v1870
    %1997 = vmatpush.msra.mxu0 %v1866
    %1998 = vmatpush.msra.mxu0 %v1862
    %1999 = vmatmul.f32.gmra.mxu0 %v1793
    %v2000 = vpop.f32.mrf.mxu0
    %v2001 = vadd.f32 0.0, %v2000
    %2002 = vdwg.mxu0
    %2003 = vmatpush.msra.mxu0 %v1855
    %2004 = vmatpush.msra.mxu0 %v1851
    %2005 = vmatpush.msra.mxu0 %v1847
    %2006 = vmatpush.msra.mxu0 %v1843
    %2007 = vmatpush.msra.mxu0 %v1839
    %2008 = vmatpush.msra.mxu0 %v1835
    %2009 = vmatpush.msra.mxu0 %v1831
    %2010 = vmatpush.msra.mxu0 %v1827
    %2011 = vmatpush.msra.mxu0 %v1823
    %2012 = vmatpush.msra.mxu0 %v1819
    %2013 = vmatpush.msra.mxu0 %v1815
    %2014 = vmatpush.msra.mxu0 %v1811
    %2015 = vmatpush.msra.mxu0 %v1807
    %2016 = vmatpush.msra.mxu0 %v1803
    %2017 = vmatpush.msra.mxu0 %v1799
    %2018 = vmatpush.msra.mxu0 %v1795
    %2019 = vmatmul.f32.gmra.mxu0 %v1790
    %v2020 = vpop.f32.mrf.mxu0
    %v2021 = vadd.f32 %v1941, %v2020
    %2022 = vdwg.mxu0
    %2023 = vmatpush.msra.mxu0 %v1856
    %2024 = vmatpush.msra.mxu0 %v1852
    %2025 = vmatpush.msra.mxu0 %v1848
    %2026 = vmatpush.msra.mxu0 %v1844
    %2027 = vmatpush.msra.mxu0 %v1840
    %2028 = vmatpush.msra.mxu0 %v1836
    %2029 = vmatpush.msra.mxu0 %v1832
    %2030 = vmatpush.msra.mxu0 %v1828
    %2031 = vmatpush.msra.mxu0 %v1824
    %2032 = vmatpush.msra.mxu0 %v1820
    %2033 = vmatpush.msra.mxu0 %v1816
    %2034 = vmatpush.msra.mxu0 %v1812
    %2035 = vmatpush.msra.mxu0 %v1808
    %2036 = vmatpush.msra.mxu0 %v1804
    %2037 = vmatpush.msra.mxu0 %v1800
    %2038 = vmatpush.msra.mxu0 %v1796
    %2039 = vmatmul.f32.gmra.mxu0 %v1790
    %v2040 = vpop.f32.mrf.mxu0
    %v2041 = vadd.f32 %v1961, %v2040
    %2042 = vdwg.mxu0
    %2043 = vmatpush.msra.mxu0 %v1857
    %2044 = vmatpush.msra.mxu0 %v1853
    %2045 = vmatpush.msra.mxu0 %v1849
    %2046 = vmatpush.msra.mxu0 %v1845
    %2047 = vmatpush.msra.mxu0 %v1841
    %2048 = vmatpush.msra.mxu0 %v1837
    %2049 = vmatpush.msra.mxu0 %v1833
    %2050 = vmatpush.msra.mxu0 %v1829
    %2051 = vmatpush.msra.mxu0 %v1825
    %2052 = vmatpush.msra.mxu0 %v1821
    %2053 = vmatpush.msra.mxu0 %v1817
    %2054 = vmatpush.msra.mxu0 %v1813
    %2055 = vmatpush.msra.mxu0 %v1809
    %2056 = vmatpush.msra.mxu0 %v1805
    %2057 = vmatpush.msra.mxu0 %v1801
    %2058 = vmatpush.msra.mxu0 %v1797
    %2059 = vmatmul.f32.gmra.mxu0 %v1790
    %v2060 = vpop.f32.mrf.mxu0
    %v2061 = vadd.f32 %v1981, %v2060
    %2062 = vdwg.mxu0
    %2063 = vmatpush.msra.mxu0 %v1858
    %2064 = vmatpush.msra.mxu0 %v1854
    %2065 = vmatpush.msra.mxu0 %v1850
    %2066 = vmatpush.msra.mxu0 %v1846
    %2067 = vmatpush.msra.mxu0 %v1842
    %2068 = vmatpush.msra.mxu0 %v1838
    %2069 = vmatpush.msra.mxu0 %v1834
    %2070 = vmatpush.msra.mxu0 %v1830
    %2071 = vmatpush.msra.mxu0 %v1826
    %2072 = vmatpush.msra.mxu0 %v1822
    %2073 = vmatpush.msra.mxu0 %v1818
    %2074 = vmatpush.msra.mxu0 %v1814
    %2075 = vmatpush.msra.mxu0 %v1810
    %2076 = vmatpush.msra.mxu0 %v1806
    %2077 = vmatpush.msra.mxu0 %v1802
    %2078 = vmatpush.msra.mxu0 %v1798
    %2079 = vmatmul.f32.gmra.mxu0 %v1790
    %v2080 = vpop.f32.mrf.mxu0
    %v2081 = vadd.f32 %v2001, %v2080
    %2082 = vdwg.mxu0
    %v2083 = vld [vmem:[#allocation11] sm:$0xff]
    %v2084 = vld [vmem:[#allocation11 + $0x8] sm:$0xff]
    %v2085 = vld [vmem:[#allocation11 + $0x10] sm:$0xff]
    %v2086 = vld [vmem:[#allocation11 + $0x18] sm:$0xff]
    %v2087 = vadd.f32 %v2021, %v2083
    %v2088 = vadd.f32 %v2041, %v2084
    %v2089 = vadd.f32 %v2061, %v2085
    %v2090 = vadd.f32 %v2081, %v2086
    %v2091 = vmul.f32 %v2087, 0.5
    %v2092 = vmul.f32 %v2088, 0.5
    %v2093 = vmul.f32 %v2089, 0.5
    %v2094 = vtanh.pop %v2091
    %v2095 = vtanh.pop %v2092
    %v2096 = vtanh.pop %v2093
    %v2097 = vmul.f32 %v2094, 0.5
    %v2098 = vmul.f32 %v2095, 0.5
    %v2099 = vmul.f32 %v2096, 0.5
    %v2100 = vadd.f32 %v2097, 0.5
    %v2101 = vadd.f32 %v2098, 0.5
    %v2102 = vadd.f32 %v2099, 0.5
    %v2103 = vtanh.pop %v2090
    %v2104 = vmul.f32 %v2101, %v1794
    %v2105 = vmul.f32 %v2100, %v2103
    %v2106 = vadd.f32 %v2104, %v2105
    %v2107 = vtanh.pop %v2106
    %v2108 = vmul.f32 %v2102, %v2107
    %2109 = vst [vmem:[%s306] sm:$0xff] %v2108
    %2110 = vst [vmem:[%s308] sm:$0xff] %v2106
    %s2111 = scalar_lea.vmem [#allocation13], 24
    %2112 = vst [vmem:[%s2111] sm:$0xff] %v2108
    %v2113 = vld [vmem:[#allocation14] sm:$0xff]
    %v2114 = vld [vmem:[#allocation16] sm:$0xff]
    %s2115 = scalar_lea.vmem [#allocation2], 128
    %v2116 = vld [vmem:[%s2115] sm:$0xff]
    %v2117 = vld [vmem:[%s2115 + $0x8] sm:$0xff]
    %v2118 = vld [vmem:[%s2115 + $0x10] sm:$0xff]
    %v2119 = vld [vmem:[%s2115 + $0x18] sm:$0xff]
    %v2120 = vld [vmem:[#allocation8] sm:$0xff]
    %v2121 = vld [vmem:[#allocation8 + $0x8] sm:$0xff]
    %v2122 = vld [vmem:[#allocation8 + $0x10] sm:$0xff]
    %v2123 = vld [vmem:[#allocation8 + $0x18] sm:$0xff]
    %v2124 = vld [vmem:[#allocation8 + $0x20] sm:$0xff]
    %v2125 = vld [vmem:[#allocation8 + $0x28] sm:$0xff]
    %v2126 = vld [vmem:[#allocation8 + $0x30] sm:$0xff]
    %v2127 = vld [vmem:[#allocation8 + $0x38] sm:$0xff]
    %v2128 = vld [vmem:[#allocation8 + $0x40] sm:$0xff]
    %v2129 = vld [vmem:[#allocation8 + $0x48] sm:$0xff]
    %v2130 = vld [vmem:[#allocation8 + $0x50] sm:$0xff]
    %v2131 = vld [vmem:[#allocation8 + $0x58] sm:$0xff]
    %v2132 = vld [vmem:[#allocation8 + $0x60] sm:$0xff]
    %v2133 = vld [vmem:[#allocation8 + $0x68] sm:$0xff]
    %v2134 = vld [vmem:[#allocation8 + $0x70] sm:$0xff]
    %v2135 = vld [vmem:[#allocation8 + $0x78] sm:$0xff]
    %v2136 = vld [vmem:[#allocation8 + $0x80] sm:$0xff]
    %v2137 = vld [vmem:[#allocation8 + $0x88] sm:$0xff]
    %v2138 = vld [vmem:[#allocation8 + $0x90] sm:$0xff]
    %v2139 = vld [vmem:[#allocation8 + $0x98] sm:$0xff]
    %v2140 = vld [vmem:[#allocation8 + $0xa0] sm:$0xff]
    %v2141 = vld [vmem:[#allocation8 + $0xa8] sm:$0xff]
    %v2142 = vld [vmem:[#allocation8 + $0xb0] sm:$0xff]
    %v2143 = vld [vmem:[#allocation8 + $0xb8] sm:$0xff]
    %v2144 = vld [vmem:[#allocation8 + $0xc0] sm:$0xff]
    %v2145 = vld [vmem:[#allocation8 + $0xc8] sm:$0xff]
    %v2146 = vld [vmem:[#allocation8 + $0xd0] sm:$0xff]
    %v2147 = vld [vmem:[#allocation8 + $0xd8] sm:$0xff]
    %v2148 = vld [vmem:[#allocation8 + $0xe0] sm:$0xff]
    %v2149 = vld [vmem:[#allocation8 + $0xe8] sm:$0xff]
    %v2150 = vld [vmem:[#allocation8 + $0xf0] sm:$0xff]
    %v2151 = vld [vmem:[#allocation8 + $0xf8] sm:$0xff]
    %v2152 = vld [vmem:[#allocation8 + $0x100] sm:$0xff]
    %v2153 = vld [vmem:[#allocation8 + $0x108] sm:$0xff]
    %v2154 = vld [vmem:[#allocation8 + $0x110] sm:$0xff]
    %v2155 = vld [vmem:[#allocation8 + $0x118] sm:$0xff]
    %v2156 = vld [vmem:[#allocation8 + $0x120] sm:$0xff]
    %v2157 = vld [vmem:[#allocation8 + $0x128] sm:$0xff]
    %v2158 = vld [vmem:[#allocation8 + $0x130] sm:$0xff]
    %v2159 = vld [vmem:[#allocation8 + $0x138] sm:$0xff]
    %v2160 = vld [vmem:[#allocation8 + $0x140] sm:$0xff]
    %v2161 = vld [vmem:[#allocation8 + $0x148] sm:$0xff]
    %v2162 = vld [vmem:[#allocation8 + $0x150] sm:$0xff]
    %v2163 = vld [vmem:[#allocation8 + $0x158] sm:$0xff]
    %v2164 = vld [vmem:[#allocation8 + $0x160] sm:$0xff]
    %v2165 = vld [vmem:[#allocation8 + $0x168] sm:$0xff]
    %v2166 = vld [vmem:[#allocation8 + $0x170] sm:$0xff]
    %v2167 = vld [vmem:[#allocation8 + $0x178] sm:$0xff]
    %v2168 = vld [vmem:[#allocation8 + $0x180] sm:$0xff]
    %v2169 = vld [vmem:[#allocation8 + $0x188] sm:$0xff]
    %v2170 = vld [vmem:[#allocation8 + $0x190] sm:$0xff]
    %v2171 = vld [vmem:[#allocation8 + $0x198] sm:$0xff]
    %v2172 = vld [vmem:[#allocation8 + $0x1a0] sm:$0xff]
    %v2173 = vld [vmem:[#allocation8 + $0x1a8] sm:$0xff]
    %v2174 = vld [vmem:[#allocation8 + $0x1b0] sm:$0xff]
    %v2175 = vld [vmem:[#allocation8 + $0x1b8] sm:$0xff]
    %v2176 = vld [vmem:[#allocation8 + $0x1c0] sm:$0xff]
    %v2177 = vld [vmem:[#allocation8 + $0x1c8] sm:$0xff]
    %v2178 = vld [vmem:[#allocation8 + $0x1d0] sm:$0xff]
    %v2179 = vld [vmem:[#allocation8 + $0x1d8] sm:$0xff]
    %v2180 = vld [vmem:[#allocation8 + $0x1e0] sm:$0xff]
    %v2181 = vld [vmem:[#allocation8 + $0x1e8] sm:$0xff]
    %v2182 = vld [vmem:[#allocation8 + $0x1f0] sm:$0xff]
    %v2183 = vld [vmem:[#allocation8 + $0x1f8] sm:$0xff]
    %2184 = vmatpush.msra.mxu0 %v2180
    %2185 = vmatpush.msra.mxu0 %v2176
    %2186 = vmatpush.msra.mxu0 %v2172
    %2187 = vmatpush.msra.mxu0 %v2168
    %2188 = vmatpush.msra.mxu0 %v2164
    %2189 = vmatpush.msra.mxu0 %v2160
    %2190 = vmatpush.msra.mxu0 %v2156
    %2191 = vmatpush.msra.mxu0 %v2152
    %2192 = vmatpush.msra.mxu0 %v2148
    %2193 = vmatpush.msra.mxu0 %v2144
    %2194 = vmatpush.msra.mxu0 %v2140
    %2195 = vmatpush.msra.mxu0 %v2136
    %2196 = vmatpush.msra.mxu0 %v2132
    %2197 = vmatpush.msra.mxu0 %v2128
    %2198 = vmatpush.msra.mxu0 %v2124
    %2199 = vmatpush.msra.mxu0 %v2120
    %2200 = vmatmul.f32.gmra.mxu0 %v2113
    %v2201 = vpop.f32.mrf.mxu0
    %v2202 = vadd.f32 0.0, %v2201
    %2203 = vdwg.mxu0
    %2204 = vmatpush.msra.mxu0 %v2181
    %2205 = vmatpush.msra.mxu0 %v2177
    %2206 = vmatpush.msra.mxu0 %v2173
    %2207 = vmatpush.msra.mxu0 %v2169
    %2208 = vmatpush.msra.mxu0 %v2165
    %2209 = vmatpush.msra.mxu0 %v2161
    %2210 = vmatpush.msra.mxu0 %v2157
    %2211 = vmatpush.msra.mxu0 %v2153
    %2212 = vmatpush.msra.mxu0 %v2149
    %2213 = vmatpush.msra.mxu0 %v2145
    %2214 = vmatpush.msra.mxu0 %v2141
    %2215 = vmatpush.msra.mxu0 %v2137
    %2216 = vmatpush.msra.mxu0 %v2133
    %2217 = vmatpush.msra.mxu0 %v2129
    %2218 = vmatpush.msra.mxu0 %v2125
    %2219 = vmatpush.msra.mxu0 %v2121
    %2220 = vmatmul.f32.gmra.mxu0 %v2113
    %v2221 = vpop.f32.mrf.mxu0
    %v2222 = vadd.f32 0.0, %v2221
    %2223 = vdwg.mxu0
    %2224 = vmatpush.msra.mxu0 %v2182
    %2225 = vmatpush.msra.mxu0 %v2178
    %2226 = vmatpush.msra.mxu0 %v2174
    %2227 = vmatpush.msra.mxu0 %v2170
    %2228 = vmatpush.msra.mxu0 %v2166
    %2229 = vmatpush.msra.mxu0 %v2162
    %2230 = vmatpush.msra.mxu0 %v2158
    %2231 = vmatpush.msra.mxu0 %v2154
    %2232 = vmatpush.msra.mxu0 %v2150
    %2233 = vmatpush.msra.mxu0 %v2146
    %2234 = vmatpush.msra.mxu0 %v2142
    %2235 = vmatpush.msra.mxu0 %v2138
    %2236 = vmatpush.msra.mxu0 %v2134
    %2237 = vmatpush.msra.mxu0 %v2130
    %2238 = vmatpush.msra.mxu0 %v2126
    %2239 = vmatpush.msra.mxu0 %v2122
    %2240 = vmatmul.f32.gmra.mxu0 %v2113
    %v2241 = vpop.f32.mrf.mxu0
    %v2242 = vadd.f32 0.0, %v2241
    %2243 = vdwg.mxu0
    %2244 = vmatpush.msra.mxu0 %v2183
    %2245 = vmatpush.msra.mxu0 %v2179
    %2246 = vmatpush.msra.mxu0 %v2175
    %2247 = vmatpush.msra.mxu0 %v2171
    %2248 = vmatpush.msra.mxu0 %v2167
    %2249 = vmatpush.msra.mxu0 %v2163
    %2250 = vmatpush.msra.mxu0 %v2159
    %2251 = vmatpush.msra.mxu0 %v2155
    %2252 = vmatpush.msra.mxu0 %v2151
    %2253 = vmatpush.msra.mxu0 %v2147
    %2254 = vmatpush.msra.mxu0 %v2143
    %2255 = vmatpush.msra.mxu0 %v2139
    %2256 = vmatpush.msra.mxu0 %v2135
    %2257 = vmatpush.msra.mxu0 %v2131
    %2258 = vmatpush.msra.mxu0 %v2127
    %2259 = vmatpush.msra.mxu0 %v2123
    %2260 = vmatmul.f32.gmra.mxu0 %v2113
    %v2261 = vpop.f32.mrf.mxu0
    %v2262 = vadd.f32 0.0, %v2261
    %2263 = vdwg.mxu0
    %v2264 = vadd.f32 %v2116, %v2202
    %v2265 = vadd.f32 %v2117, %v2222
    %v2266 = vadd.f32 %v2118, %v2242
    %v2267 = vadd.f32 %v2119, %v2262
    %v2268 = vmul.f32 %v2264, 0.5
    %v2269 = vmul.f32 %v2265, 0.5
    %v2270 = vmul.f32 %v2266, 0.5
    %v2271 = vtanh.pop %v2268
    %v2272 = vtanh.pop %v2269
    %v2273 = vtanh.pop %v2270
    %v2274 = vmul.f32 %v2271, 0.5
    %v2275 = vmul.f32 %v2272, 0.5
    %v2276 = vmul.f32 %v2273, 0.5
    %v2277 = vadd.f32 %v2274, 0.5
    %v2278 = vadd.f32 %v2275, 0.5
    %v2279 = vadd.f32 %v2276, 0.5
    %v2280 = vtanh.pop %v2267
    %v2281 = vmul.f32 %v2278, %v2114
    %v2282 = vmul.f32 %v2277, %v2280
    %v2283 = vadd.f32 %v2281, %v2282
    %v2284 = vtanh.pop %v2283
    %v2285 = vmul.f32 %v2279, %v2284
    %2286 = vst [vmem:[#allocation14] sm:$0xff] %v2285
    %2287 = vst [vmem:[#allocation16] sm:$0xff] %v2283
    %v2288 = vld [vmem:[%s306] sm:$0xff]
    %v2289 = vld [vmem:[%s308] sm:$0xff]
    %v2290 = vld [vmem:[#allocation10] sm:$0xff]
    %v2291 = vld [vmem:[#allocation10 + $0x8] sm:$0xff]
    %v2292 = vld [vmem:[#allocation10 + $0x10] sm:$0xff]
    %v2293 = vld [vmem:[#allocation10 + $0x18] sm:$0xff]
    %v2294 = vld [vmem:[#allocation10 + $0x20] sm:$0xff]
    %v2295 = vld [vmem:[#allocation10 + $0x28] sm:$0xff]
    %v2296 = vld [vmem:[#allocation10 + $0x30] sm:$0xff]
    %v2297 = vld [vmem:[#allocation10 + $0x38] sm:$0xff]
    %v2298 = vld [vmem:[#allocation10 + $0x40] sm:$0xff]
    %v2299 = vld [vmem:[#allocation10 + $0x48] sm:$0xff]
    %v2300 = vld [vmem:[#allocation10 + $0x50] sm:$0xff]
    %v2301 = vld [vmem:[#allocation10 + $0x58] sm:$0xff]
    %v2302 = vld [vmem:[#allocation10 + $0x60] sm:$0xff]
    %v2303 = vld [vmem:[#allocation10 + $0x68] sm:$0xff]
    %v2304 = vld [vmem:[#allocation10 + $0x70] sm:$0xff]
    %v2305 = vld [vmem:[#allocation10 + $0x78] sm:$0xff]
    %v2306 = vld [vmem:[#allocation10 + $0x80] sm:$0xff]
    %v2307 = vld [vmem:[#allocation10 + $0x88] sm:$0xff]
    %v2308 = vld [vmem:[#allocation10 + $0x90] sm:$0xff]
    %v2309 = vld [vmem:[#allocation10 + $0x98] sm:$0xff]
    %v2310 = vld [vmem:[#allocation10 + $0xa0] sm:$0xff]
    %v2311 = vld [vmem:[#allocation10 + $0xa8] sm:$0xff]
    %v2312 = vld [vmem:[#allocation10 + $0xb0] sm:$0xff]
    %v2313 = vld [vmem:[#allocation10 + $0xb8] sm:$0xff]
    %v2314 = vld [vmem:[#allocation10 + $0xc0] sm:$0xff]
    %v2315 = vld [vmem:[#allocation10 + $0xc8] sm:$0xff]
    %v2316 = vld [vmem:[#allocation10 + $0xd0] sm:$0xff]
    %v2317 = vld [vmem:[#allocation10 + $0xd8] sm:$0xff]
    %v2318 = vld [vmem:[#allocation10 + $0xe0] sm:$0xff]
    %v2319 = vld [vmem:[#allocation10 + $0xe8] sm:$0xff]
    %v2320 = vld [vmem:[#allocation10 + $0xf0] sm:$0xff]
    %v2321 = vld [vmem:[#allocation10 + $0xf8] sm:$0xff]
    %v2322 = vld [vmem:[#allocation10 + $0x100] sm:$0xff]
    %v2323 = vld [vmem:[#allocation10 + $0x108] sm:$0xff]
    %v2324 = vld [vmem:[#allocation10 + $0x110] sm:$0xff]
    %v2325 = vld [vmem:[#allocation10 + $0x118] sm:$0xff]
    %v2326 = vld [vmem:[#allocation10 + $0x120] sm:$0xff]
    %v2327 = vld [vmem:[#allocation10 + $0x128] sm:$0xff]
    %v2328 = vld [vmem:[#allocation10 + $0x130] sm:$0xff]
    %v2329 = vld [vmem:[#allocation10 + $0x138] sm:$0xff]
    %v2330 = vld [vmem:[#allocation10 + $0x140] sm:$0xff]
    %v2331 = vld [vmem:[#allocation10 + $0x148] sm:$0xff]
    %v2332 = vld [vmem:[#allocation10 + $0x150] sm:$0xff]
    %v2333 = vld [vmem:[#allocation10 + $0x158] sm:$0xff]
    %v2334 = vld [vmem:[#allocation10 + $0x160] sm:$0xff]
    %v2335 = vld [vmem:[#allocation10 + $0x168] sm:$0xff]
    %v2336 = vld [vmem:[#allocation10 + $0x170] sm:$0xff]
    %v2337 = vld [vmem:[#allocation10 + $0x178] sm:$0xff]
    %v2338 = vld [vmem:[#allocation10 + $0x180] sm:$0xff]
    %v2339 = vld [vmem:[#allocation10 + $0x188] sm:$0xff]
    %v2340 = vld [vmem:[#allocation10 + $0x190] sm:$0xff]
    %v2341 = vld [vmem:[#allocation10 + $0x198] sm:$0xff]
    %v2342 = vld [vmem:[#allocation10 + $0x1a0] sm:$0xff]
    %v2343 = vld [vmem:[#allocation10 + $0x1a8] sm:$0xff]
    %v2344 = vld [vmem:[#allocation10 + $0x1b0] sm:$0xff]
    %v2345 = vld [vmem:[#allocation10 + $0x1b8] sm:$0xff]
    %v2346 = vld [vmem:[#allocation10 + $0x1c0] sm:$0xff]
    %v2347 = vld [vmem:[#allocation10 + $0x1c8] sm:$0xff]
    %v2348 = vld [vmem:[#allocation10 + $0x1d0] sm:$0xff]
    %v2349 = vld [vmem:[#allocation10 + $0x1d8] sm:$0xff]
    %v2350 = vld [vmem:[#allocation10 + $0x1e0] sm:$0xff]
    %v2351 = vld [vmem:[#allocation10 + $0x1e8] sm:$0xff]
    %v2352 = vld [vmem:[#allocation10 + $0x1f0] sm:$0xff]
    %v2353 = vld [vmem:[#allocation10 + $0x1f8] sm:$0xff]
    %v2354 = vld [vmem:[%s374] sm:$0xff]
    %v2355 = vld [vmem:[%s374 + $0x8] sm:$0xff]
    %v2356 = vld [vmem:[%s374 + $0x10] sm:$0xff]
    %v2357 = vld [vmem:[%s374 + $0x18] sm:$0xff]
    %v2358 = vld [vmem:[%s374 + $0x20] sm:$0xff]
    %v2359 = vld [vmem:[%s374 + $0x28] sm:$0xff]
    %v2360 = vld [vmem:[%s374 + $0x30] sm:$0xff]
    %v2361 = vld [vmem:[%s374 + $0x38] sm:$0xff]
    %v2362 = vld [vmem:[%s374 + $0x40] sm:$0xff]
    %v2363 = vld [vmem:[%s374 + $0x48] sm:$0xff]
    %v2364 = vld [vmem:[%s374 + $0x50] sm:$0xff]
    %v2365 = vld [vmem:[%s374 + $0x58] sm:$0xff]
    %v2366 = vld [vmem:[%s374 + $0x60] sm:$0xff]
    %v2367 = vld [vmem:[%s374 + $0x68] sm:$0xff]
    %v2368 = vld [vmem:[%s374 + $0x70] sm:$0xff]
    %v2369 = vld [vmem:[%s374 + $0x78] sm:$0xff]
    %v2370 = vld [vmem:[%s374 + $0x80] sm:$0xff]
    %v2371 = vld [vmem:[%s374 + $0x88] sm:$0xff]
    %v2372 = vld [vmem:[%s374 + $0x90] sm:$0xff]
    %v2373 = vld [vmem:[%s374 + $0x98] sm:$0xff]
    %v2374 = vld [vmem:[%s374 + $0xa0] sm:$0xff]
    %v2375 = vld [vmem:[%s374 + $0xa8] sm:$0xff]
    %v2376 = vld [vmem:[%s374 + $0xb0] sm:$0xff]
    %v2377 = vld [vmem:[%s374 + $0xb8] sm:$0xff]
    %v2378 = vld [vmem:[%s374 + $0xc0] sm:$0xff]
    %v2379 = vld [vmem:[%s374 + $0xc8] sm:$0xff]
    %v2380 = vld [vmem:[%s374 + $0xd0] sm:$0xff]
    %v2381 = vld [vmem:[%s374 + $0xd8] sm:$0xff]
    %v2382 = vld [vmem:[%s374 + $0xe0] sm:$0xff]
    %v2383 = vld [vmem:[%s374 + $0xe8] sm:$0xff]
    %v2384 = vld [vmem:[%s374 + $0xf0] sm:$0xff]
    %v2385 = vld [vmem:[%s374 + $0xf8] sm:$0xff]
    %v2386 = vld [vmem:[%s374 + $0x100] sm:$0xff]
    %v2387 = vld [vmem:[%s374 + $0x108] sm:$0xff]
    %v2388 = vld [vmem:[%s374 + $0x110] sm:$0xff]
    %v2389 = vld [vmem:[%s374 + $0x118] sm:$0xff]
    %v2390 = vld [vmem:[%s374 + $0x120] sm:$0xff]
    %v2391 = vld [vmem:[%s374 + $0x128] sm:$0xff]
    %v2392 = vld [vmem:[%s374 + $0x130] sm:$0xff]
    %v2393 = vld [vmem:[%s374 + $0x138] sm:$0xff]
    %v2394 = vld [vmem:[%s374 + $0x140] sm:$0xff]
    %v2395 = vld [vmem:[%s374 + $0x148] sm:$0xff]
    %v2396 = vld [vmem:[%s374 + $0x150] sm:$0xff]
    %v2397 = vld [vmem:[%s374 + $0x158] sm:$0xff]
    %v2398 = vld [vmem:[%s374 + $0x160] sm:$0xff]
    %v2399 = vld [vmem:[%s374 + $0x168] sm:$0xff]
    %v2400 = vld [vmem:[%s374 + $0x170] sm:$0xff]
    %v2401 = vld [vmem:[%s374 + $0x178] sm:$0xff]
    %v2402 = vld [vmem:[%s374 + $0x180] sm:$0xff]
    %v2403 = vld [vmem:[%s374 + $0x188] sm:$0xff]
    %v2404 = vld [vmem:[%s374 + $0x190] sm:$0xff]
    %v2405 = vld [vmem:[%s374 + $0x198] sm:$0xff]
    %v2406 = vld [vmem:[%s374 + $0x1a0] sm:$0xff]
    %v2407 = vld [vmem:[%s374 + $0x1a8] sm:$0xff]
    %v2408 = vld [vmem:[%s374 + $0x1b0] sm:$0xff]
    %v2409 = vld [vmem:[%s374 + $0x1b8] sm:$0xff]
    %v2410 = vld [vmem:[%s374 + $0x1c0] sm:$0xff]
    %v2411 = vld [vmem:[%s374 + $0x1c8] sm:$0xff]
    %v2412 = vld [vmem:[%s374 + $0x1d0] sm:$0xff]
    %v2413 = vld [vmem:[%s374 + $0x1d8] sm:$0xff]
    %v2414 = vld [vmem:[%s374 + $0x1e0] sm:$0xff]
    %v2415 = vld [vmem:[%s374 + $0x1e8] sm:$0xff]
    %v2416 = vld [vmem:[%s374 + $0x1f0] sm:$0xff]
    %v2417 = vld [vmem:[%s374 + $0x1f8] sm:$0xff]
    %2418 = vmatpush.msra.mxu0 %v2414
    %2419 = vmatpush.msra.mxu0 %v2410
    %2420 = vmatpush.msra.mxu0 %v2406
    %2421 = vmatpush.msra.mxu0 %v2402
    %2422 = vmatpush.msra.mxu0 %v2398
    %2423 = vmatpush.msra.mxu0 %v2394
    %2424 = vmatpush.msra.mxu0 %v2390
    %2425 = vmatpush.msra.mxu0 %v2386
    %2426 = vmatpush.msra.mxu0 %v2382
    %2427 = vmatpush.msra.mxu0 %v2378
    %2428 = vmatpush.msra.mxu0 %v2374
    %2429 = vmatpush.msra.mxu0 %v2370
    %2430 = vmatpush.msra.mxu0 %v2366
    %2431 = vmatpush.msra.mxu0 %v2362
    %2432 = vmatpush.msra.mxu0 %v2358
    %2433 = vmatpush.msra.mxu0 %v2354
    %2434 = vmatmul.f32.gmra.mxu0 %v2288
    %v2435 = vpop.f32.mrf.mxu0
    %v2436 = vadd.f32 0.0, %v2435
    %2437 = vdwg.mxu0
    %2438 = vmatpush.msra.mxu0 %v2415
    %2439 = vmatpush.msra.mxu0 %v2411
    %2440 = vmatpush.msra.mxu0 %v2407
    %2441 = vmatpush.msra.mxu0 %v2403
    %2442 = vmatpush.msra.mxu0 %v2399
    %2443 = vmatpush.msra.mxu0 %v2395
    %2444 = vmatpush.msra.mxu0 %v2391
    %2445 = vmatpush.msra.mxu0 %v2387
    %2446 = vmatpush.msra.mxu0 %v2383
    %2447 = vmatpush.msra.mxu0 %v2379
    %2448 = vmatpush.msra.mxu0 %v2375
    %2449 = vmatpush.msra.mxu0 %v2371
    %2450 = vmatpush.msra.mxu0 %v2367
    %2451 = vmatpush.msra.mxu0 %v2363
    %2452 = vmatpush.msra.mxu0 %v2359
    %2453 = vmatpush.msra.mxu0 %v2355
    %2454 = vmatmul.f32.gmra.mxu0 %v2288
    %v2455 = vpop.f32.mrf.mxu0
    %v2456 = vadd.f32 0.0, %v2455
    %2457 = vdwg.mxu0
    %2458 = vmatpush.msra.mxu0 %v2416
    %2459 = vmatpush.msra.mxu0 %v2412
    %2460 = vmatpush.msra.mxu0 %v2408
    %2461 = vmatpush.msra.mxu0 %v2404
    %2462 = vmatpush.msra.mxu0 %v2400
    %2463 = vmatpush.msra.mxu0 %v2396
    %2464 = vmatpush.msra.mxu0 %v2392
    %2465 = vmatpush.msra.mxu0 %v2388
    %2466 = vmatpush.msra.mxu0 %v2384
    %2467 = vmatpush.msra.mxu0 %v2380
    %2468 = vmatpush.msra.mxu0 %v2376
    %2469 = vmatpush.msra.mxu0 %v2372
    %2470 = vmatpush.msra.mxu0 %v2368
    %2471 = vmatpush.msra.mxu0 %v2364
    %2472 = vmatpush.msra.mxu0 %v2360
    %2473 = vmatpush.msra.mxu0 %v2356
    %2474 = vmatmul.f32.gmra.mxu0 %v2288
    %v2475 = vpop.f32.mrf.mxu0
    %v2476 = vadd.f32 0.0, %v2475
    %2477 = vdwg.mxu0
    %2478 = vmatpush.msra.mxu0 %v2417
    %2479 = vmatpush.msra.mxu0 %v2413
    %2480 = vmatpush.msra.mxu0 %v2409
    %2481 = vmatpush.msra.mxu0 %v2405
    %2482 = vmatpush.msra.mxu0 %v2401
    %2483 = vmatpush.msra.mxu0 %v2397
    %2484 = vmatpush.msra.mxu0 %v2393
    %2485 = vmatpush.msra.mxu0 %v2389
    %2486 = vmatpush.msra.mxu0 %v2385
    %2487 = vmatpush.msra.mxu0 %v2381
    %2488 = vmatpush.msra.mxu0 %v2377
    %2489 = vmatpush.msra.mxu0 %v2373
    %2490 = vmatpush.msra.mxu0 %v2369
    %2491 = vmatpush.msra.mxu0 %v2365
    %2492 = vmatpush.msra.mxu0 %v2361
    %2493 = vmatpush.msra.mxu0 %v2357
    %2494 = vmatmul.f32.gmra.mxu0 %v2288
    %v2495 = vpop.f32.mrf.mxu0
    %v2496 = vadd.f32 0.0, %v2495
    %2497 = vdwg.mxu0
    %2498 = vmatpush.msra.mxu0 %v2350
    %2499 = vmatpush.msra.mxu0 %v2346
    %2500 = vmatpush.msra.mxu0 %v2342
    %2501 = vmatpush.msra.mxu0 %v2338
    %2502 = vmatpush.msra.mxu0 %v2334
    %2503 = vmatpush.msra.mxu0 %v2330
    %2504 = vmatpush.msra.mxu0 %v2326
    %2505 = vmatpush.msra.mxu0 %v2322
    %2506 = vmatpush.msra.mxu0 %v2318
    %2507 = vmatpush.msra.mxu0 %v2314
    %2508 = vmatpush.msra.mxu0 %v2310
    %2509 = vmatpush.msra.mxu0 %v2306
    %2510 = vmatpush.msra.mxu0 %v2302
    %2511 = vmatpush.msra.mxu0 %v2298
    %2512 = vmatpush.msra.mxu0 %v2294
    %2513 = vmatpush.msra.mxu0 %v2290
    %2514 = vmatmul.f32.gmra.mxu0 %v2285
    %v2515 = vpop.f32.mrf.mxu0
    %v2516 = vadd.f32 %v2436, %v2515
    %2517 = vdwg.mxu0
    %2518 = vmatpush.msra.mxu0 %v2351
    %2519 = vmatpush.msra.mxu0 %v2347
    %2520 = vmatpush.msra.mxu0 %v2343
    %2521 = vmatpush.msra.mxu0 %v2339
    %2522 = vmatpush.msra.mxu0 %v2335
    %2523 = vmatpush.msra.mxu0 %v2331
    %2524 = vmatpush.msra.mxu0 %v2327
    %2525 = vmatpush.msra.mxu0 %v2323
    %2526 = vmatpush.msra.mxu0 %v2319
    %2527 = vmatpush.msra.mxu0 %v2315
    %2528 = vmatpush.msra.mxu0 %v2311
    %2529 = vmatpush.msra.mxu0 %v2307
    %2530 = vmatpush.msra.mxu0 %v2303
    %2531 = vmatpush.msra.mxu0 %v2299
    %2532 = vmatpush.msra.mxu0 %v2295
    %2533 = vmatpush.msra.mxu0 %v2291
    %2534 = vmatmul.f32.gmra.mxu0 %v2285
    %v2535 = vpop.f32.mrf.mxu0
    %v2536 = vadd.f32 %v2456, %v2535
    %2537 = vdwg.mxu0
    %2538 = vmatpush.msra.mxu0 %v2352
    %2539 = vmatpush.msra.mxu0 %v2348
    %2540 = vmatpush.msra.mxu0 %v2344
    %2541 = vmatpush.msra.mxu0 %v2340
    %2542 = vmatpush.msra.mxu0 %v2336
    %2543 = vmatpush.msra.mxu0 %v2332
    %2544 = vmatpush.msra.mxu0 %v2328
    %2545 = vmatpush.msra.mxu0 %v2324
    %2546 = vmatpush.msra.mxu0 %v2320
    %2547 = vmatpush.msra.mxu0 %v2316
    %2548 = vmatpush.msra.mxu0 %v2312
    %2549 = vmatpush.msra.mxu0 %v2308
    %2550 = vmatpush.msra.mxu0 %v2304
    %2551 = vmatpush.msra.mxu0 %v2300
    %2552 = vmatpush.msra.mxu0 %v2296
    %2553 = vmatpush.msra.mxu0 %v2292
    %2554 = vmatmul.f32.gmra.mxu0 %v2285
    %v2555 = vpop.f32.mrf.mxu0
    %v2556 = vadd.f32 %v2476, %v2555
    %2557 = vdwg.mxu0
    %2558 = vmatpush.msra.mxu0 %v2353
    %2559 = vmatpush.msra.mxu0 %v2349
    %2560 = vmatpush.msra.mxu0 %v2345
    %2561 = vmatpush.msra.mxu0 %v2341
    %2562 = vmatpush.msra.mxu0 %v2337
    %2563 = vmatpush.msra.mxu0 %v2333
    %2564 = vmatpush.msra.mxu0 %v2329
    %2565 = vmatpush.msra.mxu0 %v2325
    %2566 = vmatpush.msra.mxu0 %v2321
    %2567 = vmatpush.msra.mxu0 %v2317
    %2568 = vmatpush.msra.mxu0 %v2313
    %2569 = vmatpush.msra.mxu0 %v2309
    %2570 = vmatpush.msra.mxu0 %v2305
    %2571 = vmatpush.msra.mxu0 %v2301
    %2572 = vmatpush.msra.mxu0 %v2297
    %2573 = vmatpush.msra.mxu0 %v2293
    %2574 = vmatmul.f32.gmra.mxu0 %v2285
    %v2575 = vpop.f32.mrf.mxu0
    %v2576 = vadd.f32 %v2496, %v2575
    %2577 = vdwg.mxu0
    %v2578 = vld [vmem:[#allocation11] sm:$0xff]
    %v2579 = vld [vmem:[#allocation11 + $0x8] sm:$0xff]
    %v2580 = vld [vmem:[#allocation11 + $0x10] sm:$0xff]
    %v2581 = vld [vmem:[#allocation11 + $0x18] sm:$0xff]
    %v2582 = vadd.f32 %v2516, %v2578
    %v2583 = vadd.f32 %v2536, %v2579
    %v2584 = vadd.f32 %v2556, %v2580
    %v2585 = vadd.f32 %v2576, %v2581
    %v2586 = vmul.f32 %v2582, 0.5
    %v2587 = vmul.f32 %v2583, 0.5
    %v2588 = vmul.f32 %v2584, 0.5
    %v2589 = vtanh.pop %v2586
    %v2590 = vtanh.pop %v2587
    %v2591 = vtanh.pop %v2588
    %v2592 = vmul.f32 %v2589, 0.5
    %v2593 = vmul.f32 %v2590, 0.5
    %v2594 = vmul.f32 %v2591, 0.5
    %v2595 = vadd.f32 %v2592, 0.5
    %v2596 = vadd.f32 %v2593, 0.5
    %v2597 = vadd.f32 %v2594, 0.5
    %v2598 = vtanh.pop %v2585
    %v2599 = vmul.f32 %v2596, %v2289
    %v2600 = vmul.f32 %v2595, %v2598
    %v2601 = vadd.f32 %v2599, %v2600
    %v2602 = vtanh.pop %v2601
    %v2603 = vmul.f32 %v2597, %v2602
    %2604 = vst [vmem:[%s306] sm:$0xff] %v2603
    %2605 = vst [vmem:[%s308] sm:$0xff] %v2601
    %s2606 = scalar_lea.vmem [#allocation13], 32
    %2607 = vst [vmem:[%s2606] sm:$0xff] %v2603
    %v2608 = vld [vmem:[#allocation14] sm:$0xff]
    %v2609 = vld [vmem:[#allocation16] sm:$0xff]
    %s2610 = scalar_lea.vmem [#allocation2], 160
    %v2611 = vld [vmem:[%s2610] sm:$0xff]
    %v2612 = vld [vmem:[%s2610 + $0x8] sm:$0xff]
    %v2613 = vld [vmem:[%s2610 + $0x10] sm:$0xff]
    %v2614 = vld [vmem:[%s2610 + $0x18] sm:$0xff]
    %v2615 = vld [vmem:[#allocation8] sm:$0xff]
    %v2616 = vld [vmem:[#allocation8 + $0x8] sm:$0xff]
    %v2617 = vld [vmem:[#allocation8 + $0x10] sm:$0xff]
    %v2618 = vld [vmem:[#allocation8 + $0x18] sm:$0xff]
    %v2619 = vld [vmem:[#allocation8 + $0x20] sm:$0xff]
    %v2620 = vld [vmem:[#allocation8 + $0x28] sm:$0xff]
    %v2621 = vld [vmem:[#allocation8 + $0x30] sm:$0xff]
    %v2622 = vld [vmem:[#allocation8 + $0x38] sm:$0xff]
    %v2623 = vld [vmem:[#allocation8 + $0x40] sm:$0xff]
    %v2624 = vld [vmem:[#allocation8 + $0x48] sm:$0xff]
    %v2625 = vld [vmem:[#allocation8 + $0x50] sm:$0xff]
    %v2626 = vld [vmem:[#allocation8 + $0x58] sm:$0xff]
    %v2627 = vld [vmem:[#allocation8 + $0x60] sm:$0xff]
    %v2628 = vld [vmem:[#allocation8 + $0x68] sm:$0xff]
    %v2629 = vld [vmem:[#allocation8 + $0x70] sm:$0xff]
    %v2630 = vld [vmem:[#allocation8 + $0x78] sm:$0xff]
    %v2631 = vld [vmem:[#allocation8 + $0x80] sm:$0xff]
    %v2632 = vld [vmem:[#allocation8 + $0x88] sm:$0xff]
    %v2633 = vld [vmem:[#allocation8 + $0x90] sm:$0xff]
    %v2634 = vld [vmem:[#allocation8 + $0x98] sm:$0xff]
    %v2635 = vld [vmem:[#allocation8 + $0xa0] sm:$0xff]
    %v2636 = vld [vmem:[#allocation8 + $0xa8] sm:$0xff]
    %v2637 = vld [vmem:[#allocation8 + $0xb0] sm:$0xff]
    %v2638 = vld [vmem:[#allocation8 + $0xb8] sm:$0xff]
    %v2639 = vld [vmem:[#allocation8 + $0xc0] sm:$0xff]
    %v2640 = vld [vmem:[#allocation8 + $0xc8] sm:$0xff]
    %v2641 = vld [vmem:[#allocation8 + $0xd0] sm:$0xff]
    %v2642 = vld [vmem:[#allocation8 + $0xd8] sm:$0xff]
    %v2643 = vld [vmem:[#allocation8 + $0xe0] sm:$0xff]
    %v2644 = vld [vmem:[#allocation8 + $0xe8] sm:$0xff]
    %v2645 = vld [vmem:[#allocation8 + $0xf0] sm:$0xff]
    %v2646 = vld [vmem:[#allocation8 + $0xf8] sm:$0xff]
    %v2647 = vld [vmem:[#allocation8 + $0x100] sm:$0xff]
    %v2648 = vld [vmem:[#allocation8 + $0x108] sm:$0xff]
    %v2649 = vld [vmem:[#allocation8 + $0x110] sm:$0xff]
    %v2650 = vld [vmem:[#allocation8 + $0x118] sm:$0xff]
    %v2651 = vld [vmem:[#allocation8 + $0x120] sm:$0xff]
    %v2652 = vld [vmem:[#allocation8 + $0x128] sm:$0xff]
    %v2653 = vld [vmem:[#allocation8 + $0x130] sm:$0xff]
    %v2654 = vld [vmem:[#allocation8 + $0x138] sm:$0xff]
    %v2655 = vld [vmem:[#allocation8 + $0x140] sm:$0xff]
    %v2656 = vld [vmem:[#allocation8 + $0x148] sm:$0xff]
    %v2657 = vld [vmem:[#allocation8 + $0x150] sm:$0xff]
    %v2658 = vld [vmem:[#allocation8 + $0x158] sm:$0xff]
    %v2659 = vld [vmem:[#allocation8 + $0x160] sm:$0xff]
    %v2660 = vld [vmem:[#allocation8 + $0x168] sm:$0xff]
    %v2661 = vld [vmem:[#allocation8 + $0x170] sm:$0xff]
    %v2662 = vld [vmem:[#allocation8 + $0x178] sm:$0xff]
    %v2663 = vld [vmem:[#allocation8 + $0x180] sm:$0xff]
    %v2664 = vld [vmem:[#allocation8 + $0x188] sm:$0xff]
    %v2665 = vld [vmem:[#allocation8 + $0x190] sm:$0xff]
    %v2666 = vld [vmem:[#allocation8 + $0x198] sm:$0xff]
    %v2667 = vld [vmem:[#allocation8 + $0x1a0] sm:$0xff]
    %v2668 = vld [vmem:[#allocation8 + $0x1a8] sm:$0xff]
    %v2669 = vld [vmem:[#allocation8 + $0x1b0] sm:$0xff]
    %v2670 = vld [vmem:[#allocation8 + $0x1b8] sm:$0xff]
    %v2671 = vld [vmem:[#allocation8 + $0x1c0] sm:$0xff]
    %v2672 = vld [vmem:[#allocation8 + $0x1c8] sm:$0xff]
    %v2673 = vld [vmem:[#allocation8 + $0x1d0] sm:$0xff]
    %v2674 = vld [vmem:[#allocation8 + $0x1d8] sm:$0xff]
    %v2675 = vld [vmem:[#allocation8 + $0x1e0] sm:$0xff]
    %v2676 = vld [vmem:[#allocation8 + $0x1e8] sm:$0xff]
    %v2677 = vld [vmem:[#allocation8 + $0x1f0] sm:$0xff]
    %v2678 = vld [vmem:[#allocation8 + $0x1f8] sm:$0xff]
    %2679 = vmatpush.msra.mxu0 %v2675
    %2680 = vmatpush.msra.mxu0 %v2671
    %2681 = vmatpush.msra.mxu0 %v2667
    %2682 = vmatpush.msra.mxu0 %v2663
    %2683 = vmatpush.msra.mxu0 %v2659
    %2684 = vmatpush.msra.mxu0 %v2655
    %2685 = vmatpush.msra.mxu0 %v2651
    %2686 = vmatpush.msra.mxu0 %v2647
    %2687 = vmatpush.msra.mxu0 %v2643
    %2688 = vmatpush.msra.mxu0 %v2639
    %2689 = vmatpush.msra.mxu0 %v2635
    %2690 = vmatpush.msra.mxu0 %v2631
    %2691 = vmatpush.msra.mxu0 %v2627
    %2692 = vmatpush.msra.mxu0 %v2623
    %2693 = vmatpush.msra.mxu0 %v2619
    %2694 = vmatpush.msra.mxu0 %v2615
    %2695 = vmatmul.f32.gmra.mxu0 %v2608
    %v2696 = vpop.f32.mrf.mxu0
    %v2697 = vadd.f32 0.0, %v2696
    %2698 = vdwg.mxu0
    %2699 = vmatpush.msra.mxu0 %v2676
    %2700 = vmatpush.msra.mxu0 %v2672
    %2701 = vmatpush.msra.mxu0 %v2668
    %2702 = vmatpush.msra.mxu0 %v2664
    %2703 = vmatpush.msra.mxu0 %v2660
    %2704 = vmatpush.msra.mxu0 %v2656
    %2705 = vmatpush.msra.mxu0 %v2652
    %2706 = vmatpush.msra.mxu0 %v2648
    %2707 = vmatpush.msra.mxu0 %v2644
    %2708 = vmatpush.msra.mxu0 %v2640
    %2709 = vmatpush.msra.mxu0 %v2636
    %2710 = vmatpush.msra.mxu0 %v2632
    %2711 = vmatpush.msra.mxu0 %v2628
    %2712 = vmatpush.msra.mxu0 %v2624
    %2713 = vmatpush.msra.mxu0 %v2620
    %2714 = vmatpush.msra.mxu0 %v2616
    %2715 = vmatmul.f32.gmra.mxu0 %v2608
    %v2716 = vpop.f32.mrf.mxu0
    %v2717 = vadd.f32 0.0, %v2716
    %2718 = vdwg.mxu0
    %2719 = vmatpush.msra.mxu0 %v2677
    %2720 = vmatpush.msra.mxu0 %v2673
    %2721 = vmatpush.msra.mxu0 %v2669
    %2722 = vmatpush.msra.mxu0 %v2665
    %2723 = vmatpush.msra.mxu0 %v2661
    %2724 = vmatpush.msra.mxu0 %v2657
    %2725 = vmatpush.msra.mxu0 %v2653
    %2726 = vmatpush.msra.mxu0 %v2649
    %2727 = vmatpush.msra.mxu0 %v2645
    %2728 = vmatpush.msra.mxu0 %v2641
    %2729 = vmatpush.msra.mxu0 %v2637
    %2730 = vmatpush.msra.mxu0 %v2633
    %2731 = vmatpush.msra.mxu0 %v2629
    %2732 = vmatpush.msra.mxu0 %v2625
    %2733 = vmatpush.msra.mxu0 %v2621
    %2734 = vmatpush.msra.mxu0 %v2617
    %2735 = vmatmul.f32.gmra.mxu0 %v2608
    %v2736 = vpop.f32.mrf.mxu0
    %v2737 = vadd.f32 0.0, %v2736
    %2738 = vdwg.mxu0
    %2739 = vmatpush.msra.mxu0 %v2678
    %2740 = vmatpush.msra.mxu0 %v2674
    %2741 = vmatpush.msra.mxu0 %v2670
    %2742 = vmatpush.msra.mxu0 %v2666
    %2743 = vmatpush.msra.mxu0 %v2662
    %2744 = vmatpush.msra.mxu0 %v2658
    %2745 = vmatpush.msra.mxu0 %v2654
    %2746 = vmatpush.msra.mxu0 %v2650
    %2747 = vmatpush.msra.mxu0 %v2646
    %2748 = vmatpush.msra.mxu0 %v2642
    %2749 = vmatpush.msra.mxu0 %v2638
    %2750 = vmatpush.msra.mxu0 %v2634
    %2751 = vmatpush.msra.mxu0 %v2630
    %2752 = vmatpush.msra.mxu0 %v2626
    %2753 = vmatpush.msra.mxu0 %v2622
    %2754 = vmatpush.msra.mxu0 %v2618
    %2755 = vmatmul.f32.gmra.mxu0 %v2608
    %v2756 = vpop.f32.mrf.mxu0
    %v2757 = vadd.f32 0.0, %v2756
    %2758 = vdwg.mxu0
    %v2759 = vadd.f32 %v2611, %v2697
    %v2760 = vadd.f32 %v2612, %v2717
    %v2761 = vadd.f32 %v2613, %v2737
    %v2762 = vadd.f32 %v2614, %v2757
    %v2763 = vmul.f32 %v2759, 0.5
    %v2764 = vmul.f32 %v2760, 0.5
    %v2765 = vmul.f32 %v2761, 0.5
    %v2766 = vtanh.pop %v2763
    %v2767 = vtanh.pop %v2764
    %v2768 = vtanh.pop %v2765
    %v2769 = vmul.f32 %v2766, 0.5
    %v2770 = vmul.f32 %v2767, 0.5
    %v2771 = vmul.f32 %v2768, 0.5
    %v2772 = vadd.f32 %v2769, 0.5
    %v2773 = vadd.f32 %v2770, 0.5
    %v2774 = vadd.f32 %v2771, 0.5
    %v2775 = vtanh.pop %v2762
    %v2776 = vmul.f32 %v2773, %v2609
    %v2777 = vmul.f32 %v2772, %v2775
    %v2778 = vadd.f32 %v2776, %v2777
    %v2779 = vtanh.pop %v2778
    %v2780 = vmul.f32 %v2774, %v2779
    %2781 = vst [vmem:[#allocation14] sm:$0xff] %v2780
    %2782 = vst [vmem:[#allocation16] sm:$0xff] %v2778
    %v2783 = vld [vmem:[%s306] sm:$0xff]
    %v2784 = vld [vmem:[%s308] sm:$0xff]
    %v2785 = vld [vmem:[#allocation10] sm:$0xff]
    %v2786 = vld [vmem:[#allocation10 + $0x8] sm:$0xff]
    %v2787 = vld [vmem:[#allocation10 + $0x10] sm:$0xff]
    %v2788 = vld [vmem:[#allocation10 + $0x18] sm:$0xff]
    %v2789 = vld [vmem:[#allocation10 + $0x20] sm:$0xff]
    %v2790 = vld [vmem:[#allocation10 + $0x28] sm:$0xff]
    %v2791 = vld [vmem:[#allocation10 + $0x30] sm:$0xff]
    %v2792 = vld [vmem:[#allocation10 + $0x38] sm:$0xff]
    %v2793 = vld [vmem:[#allocation10 + $0x40] sm:$0xff]
    %v2794 = vld [vmem:[#allocation10 + $0x48] sm:$0xff]
    %v2795 = vld [vmem:[#allocation10 + $0x50] sm:$0xff]
    %v2796 = vld [vmem:[#allocation10 + $0x58] sm:$0xff]
    %v2797 = vld [vmem:[#allocation10 + $0x60] sm:$0xff]
    %v2798 = vld [vmem:[#allocation10 + $0x68] sm:$0xff]
    %v2799 = vld [vmem:[#allocation10 + $0x70] sm:$0xff]
    %v2800 = vld [vmem:[#allocation10 + $0x78] sm:$0xff]
    %v2801 = vld [vmem:[#allocation10 + $0x80] sm:$0xff]
    %v2802 = vld [vmem:[#allocation10 + $0x88] sm:$0xff]
    %v2803 = vld [vmem:[#allocation10 + $0x90] sm:$0xff]
    %v2804 = vld [vmem:[#allocation10 + $0x98] sm:$0xff]
    %v2805 = vld [vmem:[#allocation10 + $0xa0] sm:$0xff]
    %v2806 = vld [vmem:[#allocation10 + $0xa8] sm:$0xff]
    %v2807 = vld [vmem:[#allocation10 + $0xb0] sm:$0xff]
    %v2808 = vld [vmem:[#allocation10 + $0xb8] sm:$0xff]
    %v2809 = vld [vmem:[#allocation10 + $0xc0] sm:$0xff]
    %v2810 = vld [vmem:[#allocation10 + $0xc8] sm:$0xff]
    %v2811 = vld [vmem:[#allocation10 + $0xd0] sm:$0xff]
    %v2812 = vld [vmem:[#allocation10 + $0xd8] sm:$0xff]
    %v2813 = vld [vmem:[#allocation10 + $0xe0] sm:$0xff]
    %v2814 = vld [vmem:[#allocation10 + $0xe8] sm:$0xff]
    %v2815 = vld [vmem:[#allocation10 + $0xf0] sm:$0xff]
    %v2816 = vld [vmem:[#allocation10 + $0xf8] sm:$0xff]
    %v2817 = vld [vmem:[#allocation10 + $0x100] sm:$0xff]
    %v2818 = vld [vmem:[#allocation10 + $0x108] sm:$0xff]
    %v2819 = vld [vmem:[#allocation10 + $0x110] sm:$0xff]
    %v2820 = vld [vmem:[#allocation10 + $0x118] sm:$0xff]
    %v2821 = vld [vmem:[#allocation10 + $0x120] sm:$0xff]
    %v2822 = vld [vmem:[#allocation10 + $0x128] sm:$0xff]
    %v2823 = vld [vmem:[#allocation10 + $0x130] sm:$0xff]
    %v2824 = vld [vmem:[#allocation10 + $0x138] sm:$0xff]
    %v2825 = vld [vmem:[#allocation10 + $0x140] sm:$0xff]
    %v2826 = vld [vmem:[#allocation10 + $0x148] sm:$0xff]
    %v2827 = vld [vmem:[#allocation10 + $0x150] sm:$0xff]
    %v2828 = vld [vmem:[#allocation10 + $0x158] sm:$0xff]
    %v2829 = vld [vmem:[#allocation10 + $0x160] sm:$0xff]
    %v2830 = vld [vmem:[#allocation10 + $0x168] sm:$0xff]
    %v2831 = vld [vmem:[#allocation10 + $0x170] sm:$0xff]
    %v2832 = vld [vmem:[#allocation10 + $0x178] sm:$0xff]
    %v2833 = vld [vmem:[#allocation10 + $0x180] sm:$0xff]
    %v2834 = vld [vmem:[#allocation10 + $0x188] sm:$0xff]
    %v2835 = vld [vmem:[#allocation10 + $0x190] sm:$0xff]
    %v2836 = vld [vmem:[#allocation10 + $0x198] sm:$0xff]
    %v2837 = vld [vmem:[#allocation10 + $0x1a0] sm:$0xff]
    %v2838 = vld [vmem:[#allocation10 + $0x1a8] sm:$0xff]
    %v2839 = vld [vmem:[#allocation10 + $0x1b0] sm:$0xff]
    %v2840 = vld [vmem:[#allocation10 + $0x1b8] sm:$0xff]
    %v2841 = vld [vmem:[#allocation10 + $0x1c0] sm:$0xff]
    %v2842 = vld [vmem:[#allocation10 + $0x1c8] sm:$0xff]
    %v2843 = vld [vmem:[#allocation10 + $0x1d0] sm:$0xff]
    %v2844 = vld [vmem:[#allocation10 + $0x1d8] sm:$0xff]
    %v2845 = vld [vmem:[#allocation10 + $0x1e0] sm:$0xff]
    %v2846 = vld [vmem:[#allocation10 + $0x1e8] sm:$0xff]
    %v2847 = vld [vmem:[#allocation10 + $0x1f0] sm:$0xff]
    %v2848 = vld [vmem:[#allocation10 + $0x1f8] sm:$0xff]
    %v2849 = vld [vmem:[%s374] sm:$0xff]
    %v2850 = vld [vmem:[%s374 + $0x8] sm:$0xff]
    %v2851 = vld [vmem:[%s374 + $0x10] sm:$0xff]
    %v2852 = vld [vmem:[%s374 + $0x18] sm:$0xff]
    %v2853 = vld [vmem:[%s374 + $0x20] sm:$0xff]
    %v2854 = vld [vmem:[%s374 + $0x28] sm:$0xff]
    %v2855 = vld [vmem:[%s374 + $0x30] sm:$0xff]
    %v2856 = vld [vmem:[%s374 + $0x38] sm:$0xff]
    %v2857 = vld [vmem:[%s374 + $0x40] sm:$0xff]
    %v2858 = vld [vmem:[%s374 + $0x48] sm:$0xff]
    %v2859 = vld [vmem:[%s374 + $0x50] sm:$0xff]
    %v2860 = vld [vmem:[%s374 + $0x58] sm:$0xff]
    %v2861 = vld [vmem:[%s374 + $0x60] sm:$0xff]
    %v2862 = vld [vmem:[%s374 + $0x68] sm:$0xff]
    %v2863 = vld [vmem:[%s374 + $0x70] sm:$0xff]
    %v2864 = vld [vmem:[%s374 + $0x78] sm:$0xff]
    %v2865 = vld [vmem:[%s374 + $0x80] sm:$0xff]
    %v2866 = vld [vmem:[%s374 + $0x88] sm:$0xff]
    %v2867 = vld [vmem:[%s374 + $0x90] sm:$0xff]
    %v2868 = vld [vmem:[%s374 + $0x98] sm:$0xff]
    %v2869 = vld [vmem:[%s374 + $0xa0] sm:$0xff]
    %v2870 = vld [vmem:[%s374 + $0xa8] sm:$0xff]
    %v2871 = vld [vmem:[%s374 + $0xb0] sm:$0xff]
    %v2872 = vld [vmem:[%s374 + $0xb8] sm:$0xff]
    %v2873 = vld [vmem:[%s374 + $0xc0] sm:$0xff]
    %v2874 = vld [vmem:[%s374 + $0xc8] sm:$0xff]
    %v2875 = vld [vmem:[%s374 + $0xd0] sm:$0xff]
    %v2876 = vld [vmem:[%s374 + $0xd8] sm:$0xff]
    %v2877 = vld [vmem:[%s374 + $0xe0] sm:$0xff]
    %v2878 = vld [vmem:[%s374 + $0xe8] sm:$0xff]
    %v2879 = vld [vmem:[%s374 + $0xf0] sm:$0xff]
    %v2880 = vld [vmem:[%s374 + $0xf8] sm:$0xff]
    %v2881 = vld [vmem:[%s374 + $0x100] sm:$0xff]
    %v2882 = vld [vmem:[%s374 + $0x108] sm:$0xff]
    %v2883 = vld [vmem:[%s374 + $0x110] sm:$0xff]
    %v2884 = vld [vmem:[%s374 + $0x118] sm:$0xff]
    %v2885 = vld [vmem:[%s374 + $0x120] sm:$0xff]
    %v2886 = vld [vmem:[%s374 + $0x128] sm:$0xff]
    %v2887 = vld [vmem:[%s374 + $0x130] sm:$0xff]
    %v2888 = vld [vmem:[%s374 + $0x138] sm:$0xff]
    %v2889 = vld [vmem:[%s374 + $0x140] sm:$0xff]
    %v2890 = vld [vmem:[%s374 + $0x148] sm:$0xff]
    %v2891 = vld [vmem:[%s374 + $0x150] sm:$0xff]
    %v2892 = vld [vmem:[%s374 + $0x158] sm:$0xff]
    %v2893 = vld [vmem:[%s374 + $0x160] sm:$0xff]
    %v2894 = vld [vmem:[%s374 + $0x168] sm:$0xff]
    %v2895 = vld [vmem:[%s374 + $0x170] sm:$0xff]
    %v2896 = vld [vmem:[%s374 + $0x178] sm:$0xff]
    %v2897 = vld [vmem:[%s374 + $0x180] sm:$0xff]
    %v2898 = vld [vmem:[%s374 + $0x188] sm:$0xff]
    %v2899 = vld [vmem:[%s374 + $0x190] sm:$0xff]
    %v2900 = vld [vmem:[%s374 + $0x198] sm:$0xff]
    %v2901 = vld [vmem:[%s374 + $0x1a0] sm:$0xff]
    %v2902 = vld [vmem:[%s374 + $0x1a8] sm:$0xff]
    %v2903 = vld [vmem:[%s374 + $0x1b0] sm:$0xff]
    %v2904 = vld [vmem:[%s374 + $0x1b8] sm:$0xff]
    %v2905 = vld [vmem:[%s374 + $0x1c0] sm:$0xff]
    %v2906 = vld [vmem:[%s374 + $0x1c8] sm:$0xff]
    %v2907 = vld [vmem:[%s374 + $0x1d0] sm:$0xff]
    %v2908 = vld [vmem:[%s374 + $0x1d8] sm:$0xff]
    %v2909 = vld [vmem:[%s374 + $0x1e0] sm:$0xff]
    %v2910 = vld [vmem:[%s374 + $0x1e8] sm:$0xff]
    %v2911 = vld [vmem:[%s374 + $0x1f0] sm:$0xff]
    %v2912 = vld [vmem:[%s374 + $0x1f8] sm:$0xff]
    %2913 = vmatpush.msra.mxu0 %v2909
    %2914 = vmatpush.msra.mxu0 %v2905
    %2915 = vmatpush.msra.mxu0 %v2901
    %2916 = vmatpush.msra.mxu0 %v2897
    %2917 = vmatpush.msra.mxu0 %v2893
    %2918 = vmatpush.msra.mxu0 %v2889
    %2919 = vmatpush.msra.mxu0 %v2885
    %2920 = vmatpush.msra.mxu0 %v2881
    %2921 = vmatpush.msra.mxu0 %v2877
    %2922 = vmatpush.msra.mxu0 %v2873
    %2923 = vmatpush.msra.mxu0 %v2869
    %2924 = vmatpush.msra.mxu0 %v2865
    %2925 = vmatpush.msra.mxu0 %v2861
    %2926 = vmatpush.msra.mxu0 %v2857
    %2927 = vmatpush.msra.mxu0 %v2853
    %2928 = vmatpush.msra.mxu0 %v2849
    %2929 = vmatmul.f32.gmra.mxu0 %v2783
    %v2930 = vpop.f32.mrf.mxu0
    %v2931 = vadd.f32 0.0, %v2930
    %2932 = vdwg.mxu0
    %2933 = vmatpush.msra.mxu0 %v2910
    %2934 = vmatpush.msra.mxu0 %v2906
    %2935 = vmatpush.msra.mxu0 %v2902
    %2936 = vmatpush.msra.mxu0 %v2898
    %2937 = vmatpush.msra.mxu0 %v2894
    %2938 = vmatpush.msra.mxu0 %v2890
    %2939 = vmatpush.msra.mxu0 %v2886
    %2940 = vmatpush.msra.mxu0 %v2882
    %2941 = vmatpush.msra.mxu0 %v2878
    %2942 = vmatpush.msra.mxu0 %v2874
    %2943 = vmatpush.msra.mxu0 %v2870
    %2944 = vmatpush.msra.mxu0 %v2866
    %2945 = vmatpush.msra.mxu0 %v2862
    %2946 = vmatpush.msra.mxu0 %v2858
    %2947 = vmatpush.msra.mxu0 %v2854
    %2948 = vmatpush.msra.mxu0 %v2850
    %2949 = vmatmul.f32.gmra.mxu0 %v2783
    %v2950 = vpop.f32.mrf.mxu0
    %v2951 = vadd.f32 0.0, %v2950
    %2952 = vdwg.mxu0
    %2953 = vmatpush.msra.mxu0 %v2911
    %2954 = vmatpush.msra.mxu0 %v2907
    %2955 = vmatpush.msra.mxu0 %v2903
    %2956 = vmatpush.msra.mxu0 %v2899
    %2957 = vmatpush.msra.mxu0 %v2895
    %2958 = vmatpush.msra.mxu0 %v2891
    %2959 = vmatpush.msra.mxu0 %v2887
    %2960 = vmatpush.msra.mxu0 %v2883
    %2961 = vmatpush.msra.mxu0 %v2879
    %2962 = vmatpush.msra.mxu0 %v2875
    %2963 = vmatpush.msra.mxu0 %v2871
    %2964 = vmatpush.msra.mxu0 %v2867
    %2965 = vmatpush.msra.mxu0 %v2863
    %2966 = vmatpush.msra.mxu0 %v2859
    %2967 = vmatpush.msra.mxu0 %v2855
    %2968 = vmatpush.msra.mxu0 %v2851
    %2969 = vmatmul.f32.gmra.mxu0 %v2783
    %v2970 = vpop.f32.mrf.mxu0
    %v2971 = vadd.f32 0.0, %v2970
    %2972 = vdwg.mxu0
    %2973 = vmatpush.msra.mxu0 %v2912
    %2974 = vmatpush.msra.mxu0 %v2908
    %2975 = vmatpush.msra.mxu0 %v2904
    %2976 = vmatpush.msra.mxu0 %v2900
    %2977 = vmatpush.msra.mxu0 %v2896
    %2978 = vmatpush.msra.mxu0 %v2892
    %2979 = vmatpush.msra.mxu0 %v2888
    %2980 = vmatpush.msra.mxu0 %v2884
    %2981 = vmatpush.msra.mxu0 %v2880
    %2982 = vmatpush.msra.mxu0 %v2876
    %2983 = vmatpush.msra.mxu0 %v2872
    %2984 = vmatpush.msra.mxu0 %v2868
    %2985 = vmatpush.msra.mxu0 %v2864
    %2986 = vmatpush.msra.mxu0 %v2860
    %2987 = vmatpush.msra.mxu0 %v2856
    %2988 = vmatpush.msra.mxu0 %v2852
    %2989 = vmatmul.f32.gmra.mxu0 %v2783
    %v2990 = vpop.f32.mrf.mxu0
    %v2991 = vadd.f32 0.0, %v2990
    %2992 = vdwg.mxu0
    %2993 = vmatpush.msra.mxu0 %v2845
    %2994 = vmatpush.msra.mxu0 %v2841
    %2995 = vmatpush.msra.mxu0 %v2837
    %2996 = vmatpush.msra.mxu0 %v2833
    %2997 = vmatpush.msra.mxu0 %v2829
    %2998 = vmatpush.msra.mxu0 %v2825
    %2999 = vmatpush.msra.mxu0 %v2821
    %3000 = vmatpush.msra.mxu0 %v2817
    %3001 = vmatpush.msra.mxu0 %v2813
    %3002 = vmatpush.msra.mxu0 %v2809
    %3003 = vmatpush.msra.mxu0 %v2805
    %3004 = vmatpush.msra.mxu0 %v2801
    %3005 = vmatpush.msra.mxu0 %v2797
    %3006 = vmatpush.msra.mxu0 %v2793
    %3007 = vmatpush.msra.mxu0 %v2789
    %3008 = vmatpush.msra.mxu0 %v2785
    %3009 = vmatmul.f32.gmra.mxu0 %v2780
    %v3010 = vpop.f32.mrf.mxu0
    %v3011 = vadd.f32 %v2931, %v3010
    %3012 = vdwg.mxu0
    %3013 = vmatpush.msra.mxu0 %v2846
    %3014 = vmatpush.msra.mxu0 %v2842
    %3015 = vmatpush.msra.mxu0 %v2838
    %3016 = vmatpush.msra.mxu0 %v2834
    %3017 = vmatpush.msra.mxu0 %v2830
    %3018 = vmatpush.msra.mxu0 %v2826
    %3019 = vmatpush.msra.mxu0 %v2822
    %3020 = vmatpush.msra.mxu0 %v2818
    %3021 = vmatpush.msra.mxu0 %v2814
    %3022 = vmatpush.msra.mxu0 %v2810
    %3023 = vmatpush.msra.mxu0 %v2806
    %3024 = vmatpush.msra.mxu0 %v2802
    %3025 = vmatpush.msra.mxu0 %v2798
    %3026 = vmatpush.msra.mxu0 %v2794
    %3027 = vmatpush.msra.mxu0 %v2790
    %3028 = vmatpush.msra.mxu0 %v2786
    %3029 = vmatmul.f32.gmra.mxu0 %v2780
    %v3030 = vpop.f32.mrf.mxu0
    %v3031 = vadd.f32 %v2951, %v3030
    %3032 = vdwg.mxu0
    %3033 = vmatpush.msra.mxu0 %v2847
    %3034 = vmatpush.msra.mxu0 %v2843
    %3035 = vmatpush.msra.mxu0 %v2839
    %3036 = vmatpush.msra.mxu0 %v2835
    %3037 = vmatpush.msra.mxu0 %v2831
    %3038 = vmatpush.msra.mxu0 %v2827
    %3039 = vmatpush.msra.mxu0 %v2823
    %3040 = vmatpush.msra.mxu0 %v2819
    %3041 = vmatpush.msra.mxu0 %v2815
    %3042 = vmatpush.msra.mxu0 %v2811
    %3043 = vmatpush.msra.mxu0 %v2807
    %3044 = vmatpush.msra.mxu0 %v2803
    %3045 = vmatpush.msra.mxu0 %v2799
    %3046 = vmatpush.msra.mxu0 %v2795
    %3047 = vmatpush.msra.mxu0 %v2791
    %3048 = vmatpush.msra.mxu0 %v2787
    %3049 = vmatmul.f32.gmra.mxu0 %v2780
    %v3050 = vpop.f32.mrf.mxu0
    %v3051 = vadd.f32 %v2971, %v3050
    %3052 = vdwg.mxu0
    %3053 = vmatpush.msra.mxu0 %v2848
    %3054 = vmatpush.msra.mxu0 %v2844
    %3055 = vmatpush.msra.mxu0 %v2840
    %3056 = vmatpush.msra.mxu0 %v2836
    %3057 = vmatpush.msra.mxu0 %v2832
    %3058 = vmatpush.msra.mxu0 %v2828
    %3059 = vmatpush.msra.mxu0 %v2824
    %3060 = vmatpush.msra.mxu0 %v2820
    %3061 = vmatpush.msra.mxu0 %v2816
    %3062 = vmatpush.msra.mxu0 %v2812
    %3063 = vmatpush.msra.mxu0 %v2808
    %3064 = vmatpush.msra.mxu0 %v2804
    %3065 = vmatpush.msra.mxu0 %v2800
    %3066 = vmatpush.msra.mxu0 %v2796
    %3067 = vmatpush.msra.mxu0 %v2792
    %3068 = vmatpush.msra.mxu0 %v2788
    %3069 = vmatmul.f32.gmra.mxu0 %v2780
    %v3070 = vpop.f32.mrf.mxu0
    %v3071 = vadd.f32 %v2991, %v3070
    %3072 = vdwg.mxu0
    %v3073 = vld [vmem:[#allocation11] sm:$0xff]
    %v3074 = vld [vmem:[#allocation11 + $0x8] sm:$0xff]
    %v3075 = vld [vmem:[#allocation11 + $0x10] sm:$0xff]
    %v3076 = vld [vmem:[#allocation11 + $0x18] sm:$0xff]
    %v3077 = vadd.f32 %v3011, %v3073
    %v3078 = vadd.f32 %v3031, %v3074
    %v3079 = vadd.f32 %v3051, %v3075
    %v3080 = vadd.f32 %v3071, %v3076
    %v3081 = vmul.f32 %v3077, 0.5
    %v3082 = vmul.f32 %v3078, 0.5
    %v3083 = vmul.f32 %v3079, 0.5
    %v3084 = vtanh.pop %v3081
    %v3085 = vtanh.pop %v3082
    %v3086 = vtanh.pop %v3083
    %v3087 = vmul.f32 %v3084, 0.5
    %v3088 = vmul.f32 %v3085, 0.5
    %v3089 = vmul.f32 %v3086, 0.5
    %v3090 = vadd.f32 %v3087, 0.5
    %v3091 = vadd.f32 %v3088, 0.5
    %v3092 = vadd.f32 %v3089, 0.5
    %v3093 = vtanh.pop %v3080
    %v3094 = vmul.f32 %v3091, %v2784
    %v3095 = vmul.f32 %v3090, %v3093
    %v3096 = vadd.f32 %v3094, %v3095
    %v3097 = vtanh.pop %v3096
    %v3098 = vmul.f32 %v3092, %v3097
    %3099 = vst [vmem:[%s306] sm:$0xff] %v3098
    %3100 = vst [vmem:[%s308] sm:$0xff] %v3096
    %s3101 = scalar_lea.vmem [#allocation13], 40
    %3102 = vst [vmem:[%s3101] sm:$0xff] %v3098
    %v3103 = vld [vmem:[#allocation14] sm:$0xff]
    %v3104 = vld [vmem:[#allocation16] sm:$0xff]
    %s3105 = scalar_lea.vmem [#allocation2], 192
    %v3106 = vld [vmem:[%s3105] sm:$0xff]
    %v3107 = vld [vmem:[%s3105 + $0x8] sm:$0xff]
    %v3108 = vld [vmem:[%s3105 + $0x10] sm:$0xff]
    %v3109 = vld [vmem:[%s3105 + $0x18] sm:$0xff]
    %v3110 = vld [vmem:[#allocation8] sm:$0xff]
    %v3111 = vld [vmem:[#allocation8 + $0x8] sm:$0xff]
    %v3112 = vld [vmem:[#allocation8 + $0x10] sm:$0xff]
    %v3113 = vld [vmem:[#allocation8 + $0x18] sm:$0xff]
    %v3114 = vld [vmem:[#allocation8 + $0x20] sm:$0xff]
    %v3115 = vld [vmem:[#allocation8 + $0x28] sm:$0xff]
    %v3116 = vld [vmem:[#allocation8 + $0x30] sm:$0xff]
    %v3117 = vld [vmem:[#allocation8 + $0x38] sm:$0xff]
    %v3118 = vld [vmem:[#allocation8 + $0x40] sm:$0xff]
    %v3119 = vld [vmem:[#allocation8 + $0x48] sm:$0xff]
    %v3120 = vld [vmem:[#allocation8 + $0x50] sm:$0xff]
    %v3121 = vld [vmem:[#allocation8 + $0x58] sm:$0xff]
    %v3122 = vld [vmem:[#allocation8 + $0x60] sm:$0xff]
    %v3123 = vld [vmem:[#allocation8 + $0x68] sm:$0xff]
    %v3124 = vld [vmem:[#allocation8 + $0x70] sm:$0xff]
    %v3125 = vld [vmem:[#allocation8 + $0x78] sm:$0xff]
    %v3126 = vld [vmem:[#allocation8 + $0x80] sm:$0xff]
    %v3127 = vld [vmem:[#allocation8 + $0x88] sm:$0xff]
    %v3128 = vld [vmem:[#allocation8 + $0x90] sm:$0xff]
    %v3129 = vld [vmem:[#allocation8 + $0x98] sm:$0xff]
    %v3130 = vld [vmem:[#allocation8 + $0xa0] sm:$0xff]
    %v3131 = vld [vmem:[#allocation8 + $0xa8] sm:$0xff]
    %v3132 = vld [vmem:[#allocation8 + $0xb0] sm:$0xff]
    %v3133 = vld [vmem:[#allocation8 + $0xb8] sm:$0xff]
    %v3134 = vld [vmem:[#allocation8 + $0xc0] sm:$0xff]
    %v3135 = vld [vmem:[#allocation8 + $0xc8] sm:$0xff]
    %v3136 = vld [vmem:[#allocation8 + $0xd0] sm:$0xff]
    %v3137 = vld [vmem:[#allocation8 + $0xd8] sm:$0xff]
    %v3138 = vld [vmem:[#allocation8 + $0xe0] sm:$0xff]
    %v3139 = vld [vmem:[#allocation8 + $0xe8] sm:$0xff]
    %v3140 = vld [vmem:[#allocation8 + $0xf0] sm:$0xff]
    %v3141 = vld [vmem:[#allocation8 + $0xf8] sm:$0xff]
    %v3142 = vld [vmem:[#allocation8 + $0x100] sm:$0xff]
    %v3143 = vld [vmem:[#allocation8 + $0x108] sm:$0xff]
    %v3144 = vld [vmem:[#allocation8 + $0x110] sm:$0xff]
    %v3145 = vld [vmem:[#allocation8 + $0x118] sm:$0xff]
    %v3146 = vld [vmem:[#allocation8 + $0x120] sm:$0xff]
    %v3147 = vld [vmem:[#allocation8 + $0x128] sm:$0xff]
    %v3148 = vld [vmem:[#allocation8 + $0x130] sm:$0xff]
    %v3149 = vld [vmem:[#allocation8 + $0x138] sm:$0xff]
    %v3150 = vld [vmem:[#allocation8 + $0x140] sm:$0xff]
    %v3151 = vld [vmem:[#allocation8 + $0x148] sm:$0xff]
    %v3152 = vld [vmem:[#allocation8 + $0x150] sm:$0xff]
    %v3153 = vld [vmem:[#allocation8 + $0x158] sm:$0xff]
    %v3154 = vld [vmem:[#allocation8 + $0x160] sm:$0xff]
    %v3155 = vld [vmem:[#allocation8 + $0x168] sm:$0xff]
    %v3156 = vld [vmem:[#allocation8 + $0x170] sm:$0xff]
    %v3157 = vld [vmem:[#allocation8 + $0x178] sm:$0xff]
    %v3158 = vld [vmem:[#allocation8 + $0x180] sm:$0xff]
    %v3159 = vld [vmem:[#allocation8 + $0x188] sm:$0xff]
    %v3160 = vld [vmem:[#allocation8 + $0x190] sm:$0xff]
    %v3161 = vld [vmem:[#allocation8 + $0x198] sm:$0xff]
    %v3162 = vld [vmem:[#allocation8 + $0x1a0] sm:$0xff]
    %v3163 = vld [vmem:[#allocation8 + $0x1a8] sm:$0xff]
    %v3164 = vld [vmem:[#allocation8 + $0x1b0] sm:$0xff]
    %v3165 = vld [vmem:[#allocation8 + $0x1b8] sm:$0xff]
    %v3166 = vld [vmem:[#allocation8 + $0x1c0] sm:$0xff]
    %v3167 = vld [vmem:[#allocation8 + $0x1c8] sm:$0xff]
    %v3168 = vld [vmem:[#allocation8 + $0x1d0] sm:$0xff]
    %v3169 = vld [vmem:[#allocation8 + $0x1d8] sm:$0xff]
    %v3170 = vld [vmem:[#allocation8 + $0x1e0] sm:$0xff]
    %v3171 = vld [vmem:[#allocation8 + $0x1e8] sm:$0xff]
    %v3172 = vld [vmem:[#allocation8 + $0x1f0] sm:$0xff]
    %v3173 = vld [vmem:[#allocation8 + $0x1f8] sm:$0xff]
    %3174 = vmatpush.msra.mxu0 %v3170
    %3175 = vmatpush.msra.mxu0 %v3166
    %3176 = vmatpush.msra.mxu0 %v3162
    %3177 = vmatpush.msra.mxu0 %v3158
    %3178 = vmatpush.msra.mxu0 %v3154
    %3179 = vmatpush.msra.mxu0 %v3150
    %3180 = vmatpush.msra.mxu0 %v3146
    %3181 = vmatpush.msra.mxu0 %v3142
    %3182 = vmatpush.msra.mxu0 %v3138
    %3183 = vmatpush.msra.mxu0 %v3134
    %3184 = vmatpush.msra.mxu0 %v3130
    %3185 = vmatpush.msra.mxu0 %v3126
    %3186 = vmatpush.msra.mxu0 %v3122
    %3187 = vmatpush.msra.mxu0 %v3118
    %3188 = vmatpush.msra.mxu0 %v3114
    %3189 = vmatpush.msra.mxu0 %v3110
    %3190 = vmatmul.f32.gmra.mxu0 %v3103
    %v3191 = vpop.f32.mrf.mxu0
    %v3192 = vadd.f32 0.0, %v3191
    %3193 = vdwg.mxu0
    %3194 = vmatpush.msra.mxu0 %v3171
    %3195 = vmatpush.msra.mxu0 %v3167
    %3196 = vmatpush.msra.mxu0 %v3163
    %3197 = vmatpush.msra.mxu0 %v3159
    %3198 = vmatpush.msra.mxu0 %v3155
    %3199 = vmatpush.msra.mxu0 %v3151
    %3200 = vmatpush.msra.mxu0 %v3147
    %3201 = vmatpush.msra.mxu0 %v3143
    %3202 = vmatpush.msra.mxu0 %v3139
    %3203 = vmatpush.msra.mxu0 %v3135
    %3204 = vmatpush.msra.mxu0 %v3131
    %3205 = vmatpush.msra.mxu0 %v3127
    %3206 = vmatpush.msra.mxu0 %v3123
    %3207 = vmatpush.msra.mxu0 %v3119
    %3208 = vmatpush.msra.mxu0 %v3115
    %3209 = vmatpush.msra.mxu0 %v3111
    %3210 = vmatmul.f32.gmra.mxu0 %v3103
    %v3211 = vpop.f32.mrf.mxu0
    %v3212 = vadd.f32 0.0, %v3211
    %3213 = vdwg.mxu0
    %3214 = vmatpush.msra.mxu0 %v3172
    %3215 = vmatpush.msra.mxu0 %v3168
    %3216 = vmatpush.msra.mxu0 %v3164
    %3217 = vmatpush.msra.mxu0 %v3160
    %3218 = vmatpush.msra.mxu0 %v3156
    %3219 = vmatpush.msra.mxu0 %v3152
    %3220 = vmatpush.msra.mxu0 %v3148
    %3221 = vmatpush.msra.mxu0 %v3144
    %3222 = vmatpush.msra.mxu0 %v3140
    %3223 = vmatpush.msra.mxu0 %v3136
    %3224 = vmatpush.msra.mxu0 %v3132
    %3225 = vmatpush.msra.mxu0 %v3128
    %3226 = vmatpush.msra.mxu0 %v3124
    %3227 = vmatpush.msra.mxu0 %v3120
    %3228 = vmatpush.msra.mxu0 %v3116
    %3229 = vmatpush.msra.mxu0 %v3112
    %3230 = vmatmul.f32.gmra.mxu0 %v3103
    %v3231 = vpop.f32.mrf.mxu0
    %v3232 = vadd.f32 0.0, %v3231
    %3233 = vdwg.mxu0
    %3234 = vmatpush.msra.mxu0 %v3173
    %3235 = vmatpush.msra.mxu0 %v3169
    %3236 = vmatpush.msra.mxu0 %v3165
    %3237 = vmatpush.msra.mxu0 %v3161
    %3238 = vmatpush.msra.mxu0 %v3157
    %3239 = vmatpush.msra.mxu0 %v3153
    %3240 = vmatpush.msra.mxu0 %v3149
    %3241 = vmatpush.msra.mxu0 %v3145
    %3242 = vmatpush.msra.mxu0 %v3141
    %3243 = vmatpush.msra.mxu0 %v3137
    %3244 = vmatpush.msra.mxu0 %v3133
    %3245 = vmatpush.msra.mxu0 %v3129
    %3246 = vmatpush.msra.mxu0 %v3125
    %3247 = vmatpush.msra.mxu0 %v3121
    %3248 = vmatpush.msra.mxu0 %v3117
    %3249 = vmatpush.msra.mxu0 %v3113
    %3250 = vmatmul.f32.gmra.mxu0 %v3103
    %v3251 = vpop.f32.mrf.mxu0
    %v3252 = vadd.f32 0.0, %v3251
    %3253 = vdwg.mxu0
    %v3254 = vadd.f32 %v3106, %v3192
    %v3255 = vadd.f32 %v3107, %v3212
    %v3256 = vadd.f32 %v3108, %v3232
    %v3257 = vadd.f32 %v3109, %v3252
    %v3258 = vmul.f32 %v3254, 0.5
    %v3259 = vmul.f32 %v3255, 0.5
    %v3260 = vmul.f32 %v3256, 0.5
    %v3261 = vtanh.pop %v3258
    %v3262 = vtanh.pop %v3259
    %v3263 = vtanh.pop %v3260
    %v3264 = vmul.f32 %v3261, 0.5
    %v3265 = vmul.f32 %v3262, 0.5
    %v3266 = vmul.f32 %v3263, 0.5
    %v3267 = vadd.f32 %v3264, 0.5
    %v3268 = vadd.f32 %v3265, 0.5
    %v3269 = vadd.f32 %v3266, 0.5
    %v3270 = vtanh.pop %v3257
    %v3271 = vmul.f32 %v3268, %v3104
    %v3272 = vmul.f32 %v3267, %v3270
    %v3273 = vadd.f32 %v3271, %v3272
    %v3274 = vtanh.pop %v3273
    %v3275 = vmul.f32 %v3269, %v3274
    %3276 = vst [vmem:[#allocation14] sm:$0xff] %v3275
    %3277 = vst [vmem:[#allocation16] sm:$0xff] %v3273
    %v3278 = vld [vmem:[%s306] sm:$0xff]
    %v3279 = vld [vmem:[%s308] sm:$0xff]
    %v3280 = vld [vmem:[#allocation10] sm:$0xff]
    %v3281 = vld [vmem:[#allocation10 + $0x8] sm:$0xff]
    %v3282 = vld [vmem:[#allocation10 + $0x10] sm:$0xff]
    %v3283 = vld [vmem:[#allocation10 + $0x18] sm:$0xff]
    %v3284 = vld [vmem:[#allocation10 + $0x20] sm:$0xff]
    %v3285 = vld [vmem:[#allocation10 + $0x28] sm:$0xff]
    %v3286 = vld [vmem:[#allocation10 + $0x30] sm:$0xff]
    %v3287 = vld [vmem:[#allocation10 + $0x38] sm:$0xff]
    %v3288 = vld [vmem:[#allocation10 + $0x40] sm:$0xff]
    %v3289 = vld [vmem:[#allocation10 + $0x48] sm:$0xff]
    %v3290 = vld [vmem:[#allocation10 + $0x50] sm:$0xff]
    %v3291 = vld [vmem:[#allocation10 + $0x58] sm:$0xff]
    %v3292 = vld [vmem:[#allocation10 + $0x60] sm:$0xff]
    %v3293 = vld [vmem:[#allocation10 + $0x68] sm:$0xff]
    %v3294 = vld [vmem:[#allocation10 + $0x70] sm:$0xff]
    %v3295 = vld [vmem:[#allocation10 + $0x78] sm:$0xff]
    %v3296 = vld [vmem:[#allocation10 + $0x80] sm:$0xff]
    %v3297 = vld [vmem:[#allocation10 + $0x88] sm:$0xff]
    %v3298 = vld [vmem:[#allocation10 + $0x90] sm:$0xff]
    %v3299 = vld [vmem:[#allocation10 + $0x98] sm:$0xff]
    %v3300 = vld [vmem:[#allocation10 + $0xa0] sm:$0xff]
    %v3301 = vld [vmem:[#allocation10 + $0xa8] sm:$0xff]
    %v3302 = vld [vmem:[#allocation10 + $0xb0] sm:$0xff]
    %v3303 = vld [vmem:[#allocation10 + $0xb8] sm:$0xff]
    %v3304 = vld [vmem:[#allocation10 + $0xc0] sm:$0xff]
    %v3305 = vld [vmem:[#allocation10 + $0xc8] sm:$0xff]
    %v3306 = vld [vmem:[#allocation10 + $0xd0] sm:$0xff]
    %v3307 = vld [vmem:[#allocation10 + $0xd8] sm:$0xff]
    %v3308 = vld [vmem:[#allocation10 + $0xe0] sm:$0xff]
    %v3309 = vld [vmem:[#allocation10 + $0xe8] sm:$0xff]
    %v3310 = vld [vmem:[#allocation10 + $0xf0] sm:$0xff]
    %v3311 = vld [vmem:[#allocation10 + $0xf8] sm:$0xff]
    %v3312 = vld [vmem:[#allocation10 + $0x100] sm:$0xff]
    %v3313 = vld [vmem:[#allocation10 + $0x108] sm:$0xff]
    %v3314 = vld [vmem:[#allocation10 + $0x110] sm:$0xff]
    %v3315 = vld [vmem:[#allocation10 + $0x118] sm:$0xff]
    %v3316 = vld [vmem:[#allocation10 + $0x120] sm:$0xff]
    %v3317 = vld [vmem:[#allocation10 + $0x128] sm:$0xff]
    %v3318 = vld [vmem:[#allocation10 + $0x130] sm:$0xff]
    %v3319 = vld [vmem:[#allocation10 + $0x138] sm:$0xff]
    %v3320 = vld [vmem:[#allocation10 + $0x140] sm:$0xff]
    %v3321 = vld [vmem:[#allocation10 + $0x148] sm:$0xff]
    %v3322 = vld [vmem:[#allocation10 + $0x150] sm:$0xff]
    %v3323 = vld [vmem:[#allocation10 + $0x158] sm:$0xff]
    %v3324 = vld [vmem:[#allocation10 + $0x160] sm:$0xff]
    %v3325 = vld [vmem:[#allocation10 + $0x168] sm:$0xff]
    %v3326 = vld [vmem:[#allocation10 + $0x170] sm:$0xff]
    %v3327 = vld [vmem:[#allocation10 + $0x178] sm:$0xff]
    %v3328 = vld [vmem:[#allocation10 + $0x180] sm:$0xff]
    %v3329 = vld [vmem:[#allocation10 + $0x188] sm:$0xff]
    %v3330 = vld [vmem:[#allocation10 + $0x190] sm:$0xff]
    %v3331 = vld [vmem:[#allocation10 + $0x198] sm:$0xff]
    %v3332 = vld [vmem:[#allocation10 + $0x1a0] sm:$0xff]
    %v3333 = vld [vmem:[#allocation10 + $0x1a8] sm:$0xff]
    %v3334 = vld [vmem:[#allocation10 + $0x1b0] sm:$0xff]
    %v3335 = vld [vmem:[#allocation10 + $0x1b8] sm:$0xff]
    %v3336 = vld [vmem:[#allocation10 + $0x1c0] sm:$0xff]
    %v3337 = vld [vmem:[#allocation10 + $0x1c8] sm:$0xff]
    %v3338 = vld [vmem:[#allocation10 + $0x1d0] sm:$0xff]
    %v3339 = vld [vmem:[#allocation10 + $0x1d8] sm:$0xff]
    %v3340 = vld [vmem:[#allocation10 + $0x1e0] sm:$0xff]
    %v3341 = vld [vmem:[#allocation10 + $0x1e8] sm:$0xff]
    %v3342 = vld [vmem:[#allocation10 + $0x1f0] sm:$0xff]
    %v3343 = vld [vmem:[#allocation10 + $0x1f8] sm:$0xff]
    %v3344 = vld [vmem:[%s374] sm:$0xff]
    %v3345 = vld [vmem:[%s374 + $0x8] sm:$0xff]
    %v3346 = vld [vmem:[%s374 + $0x10] sm:$0xff]
    %v3347 = vld [vmem:[%s374 + $0x18] sm:$0xff]
    %v3348 = vld [vmem:[%s374 + $0x20] sm:$0xff]
    %v3349 = vld [vmem:[%s374 + $0x28] sm:$0xff]
    %v3350 = vld [vmem:[%s374 + $0x30] sm:$0xff]
    %v3351 = vld [vmem:[%s374 + $0x38] sm:$0xff]
    %v3352 = vld [vmem:[%s374 + $0x40] sm:$0xff]
    %v3353 = vld [vmem:[%s374 + $0x48] sm:$0xff]
    %v3354 = vld [vmem:[%s374 + $0x50] sm:$0xff]
    %v3355 = vld [vmem:[%s374 + $0x58] sm:$0xff]
    %v3356 = vld [vmem:[%s374 + $0x60] sm:$0xff]
    %v3357 = vld [vmem:[%s374 + $0x68] sm:$0xff]
    %v3358 = vld [vmem:[%s374 + $0x70] sm:$0xff]
    %v3359 = vld [vmem:[%s374 + $0x78] sm:$0xff]
    %v3360 = vld [vmem:[%s374 + $0x80] sm:$0xff]
    %v3361 = vld [vmem:[%s374 + $0x88] sm:$0xff]
    %v3362 = vld [vmem:[%s374 + $0x90] sm:$0xff]
    %v3363 = vld [vmem:[%s374 + $0x98] sm:$0xff]
    %v3364 = vld [vmem:[%s374 + $0xa0] sm:$0xff]
    %v3365 = vld [vmem:[%s374 + $0xa8] sm:$0xff]
    %v3366 = vld [vmem:[%s374 + $0xb0] sm:$0xff]
    %v3367 = vld [vmem:[%s374 + $0xb8] sm:$0xff]
    %v3368 = vld [vmem:[%s374 + $0xc0] sm:$0xff]
    %v3369 = vld [vmem:[%s374 + $0xc8] sm:$0xff]
    %v3370 = vld [vmem:[%s374 + $0xd0] sm:$0xff]
    %v3371 = vld [vmem:[%s374 + $0xd8] sm:$0xff]
    %v3372 = vld [vmem:[%s374 + $0xe0] sm:$0xff]
    %v3373 = vld [vmem:[%s374 + $0xe8] sm:$0xff]
    %v3374 = vld [vmem:[%s374 + $0xf0] sm:$0xff]
    %v3375 = vld [vmem:[%s374 + $0xf8] sm:$0xff]
    %v3376 = vld [vmem:[%s374 + $0x100] sm:$0xff]
    %v3377 = vld [vmem:[%s374 + $0x108] sm:$0xff]
    %v3378 = vld [vmem:[%s374 + $0x110] sm:$0xff]
    %v3379 = vld [vmem:[%s374 + $0x118] sm:$0xff]
    %v3380 = vld [vmem:[%s374 + $0x120] sm:$0xff]
    %v3381 = vld [vmem:[%s374 + $0x128] sm:$0xff]
    %v3382 = vld [vmem:[%s374 + $0x130] sm:$0xff]
    %v3383 = vld [vmem:[%s374 + $0x138] sm:$0xff]
    %v3384 = vld [vmem:[%s374 + $0x140] sm:$0xff]
    %v3385 = vld [vmem:[%s374 + $0x148] sm:$0xff]
    %v3386 = vld [vmem:[%s374 + $0x150] sm:$0xff]
    %v3387 = vld [vmem:[%s374 + $0x158] sm:$0xff]
    %v3388 = vld [vmem:[%s374 + $0x160] sm:$0xff]
    %v3389 = vld [vmem:[%s374 + $0x168] sm:$0xff]
    %v3390 = vld [vmem:[%s374 + $0x170] sm:$0xff]
    %v3391 = vld [vmem:[%s374 + $0x178] sm:$0xff]
    %v3392 = vld [vmem:[%s374 + $0x180] sm:$0xff]
    %v3393 = vld [vmem:[%s374 + $0x188] sm:$0xff]
    %v3394 = vld [vmem:[%s374 + $0x190] sm:$0xff]
    %v3395 = vld [vmem:[%s374 + $0x198] sm:$0xff]
    %v3396 = vld [vmem:[%s374 + $0x1a0] sm:$0xff]
    %v3397 = vld [vmem:[%s374 + $0x1a8] sm:$0xff]
    %v3398 = vld [vmem:[%s374 + $0x1b0] sm:$0xff]
    %v3399 = vld [vmem:[%s374 + $0x1b8] sm:$0xff]
    %v3400 = vld [vmem:[%s374 + $0x1c0] sm:$0xff]
    %v3401 = vld [vmem:[%s374 + $0x1c8] sm:$0xff]
    %v3402 = vld [vmem:[%s374 + $0x1d0] sm:$0xff]
    %v3403 = vld [vmem:[%s374 + $0x1d8] sm:$0xff]
    %v3404 = vld [vmem:[%s374 + $0x1e0] sm:$0xff]
    %v3405 = vld [vmem:[%s374 + $0x1e8] sm:$0xff]
    %v3406 = vld [vmem:[%s374 + $0x1f0] sm:$0xff]
    %v3407 = vld [vmem:[%s374 + $0x1f8] sm:$0xff]
    %3408 = vmatpush.msra.mxu0 %v3404
    %3409 = vmatpush.msra.mxu0 %v3400
    %3410 = vmatpush.msra.mxu0 %v3396
    %3411 = vmatpush.msra.mxu0 %v3392
    %3412 = vmatpush.msra.mxu0 %v3388
    %3413 = vmatpush.msra.mxu0 %v3384
    %3414 = vmatpush.msra.mxu0 %v3380
    %3415 = vmatpush.msra.mxu0 %v3376
    %3416 = vmatpush.msra.mxu0 %v3372
    %3417 = vmatpush.msra.mxu0 %v3368
    %3418 = vmatpush.msra.mxu0 %v3364
    %3419 = vmatpush.msra.mxu0 %v3360
    %3420 = vmatpush.msra.mxu0 %v3356
    %3421 = vmatpush.msra.mxu0 %v3352
    %3422 = vmatpush.msra.mxu0 %v3348
    %3423 = vmatpush.msra.mxu0 %v3344
    %3424 = vmatmul.f32.gmra.mxu0 %v3278
    %v3425 = vpop.f32.mrf.mxu0
    %v3426 = vadd.f32 0.0, %v3425
    %3427 = vdwg.mxu0
    %3428 = vmatpush.msra.mxu0 %v3405
    %3429 = vmatpush.msra.mxu0 %v3401
    %3430 = vmatpush.msra.mxu0 %v3397
    %3431 = vmatpush.msra.mxu0 %v3393
    %3432 = vmatpush.msra.mxu0 %v3389
    %3433 = vmatpush.msra.mxu0 %v3385
    %3434 = vmatpush.msra.mxu0 %v3381
    %3435 = vmatpush.msra.mxu0 %v3377
    %3436 = vmatpush.msra.mxu0 %v3373
    %3437 = vmatpush.msra.mxu0 %v3369
    %3438 = vmatpush.msra.mxu0 %v3365
    %3439 = vmatpush.msra.mxu0 %v3361
    %3440 = vmatpush.msra.mxu0 %v3357
    %3441 = vmatpush.msra.mxu0 %v3353
    %3442 = vmatpush.msra.mxu0 %v3349
    %3443 = vmatpush.msra.mxu0 %v3345
    %3444 = vmatmul.f32.gmra.mxu0 %v3278
    %v3445 = vpop.f32.mrf.mxu0
    %v3446 = vadd.f32 0.0, %v3445
    %3447 = vdwg.mxu0
    %3448 = vmatpush.msra.mxu0 %v3406
    %3449 = vmatpush.msra.mxu0 %v3402
    %3450 = vmatpush.msra.mxu0 %v3398
    %3451 = vmatpush.msra.mxu0 %v3394
    %3452 = vmatpush.msra.mxu0 %v3390
    %3453 = vmatpush.msra.mxu0 %v3386
    %3454 = vmatpush.msra.mxu0 %v3382
    %3455 = vmatpush.msra.mxu0 %v3378
    %3456 = vmatpush.msra.mxu0 %v3374
    %3457 = vmatpush.msra.mxu0 %v3370
    %3458 = vmatpush.msra.mxu0 %v3366
    %3459 = vmatpush.msra.mxu0 %v3362
    %3460 = vmatpush.msra.mxu0 %v3358
    %3461 = vmatpush.msra.mxu0 %v3354
    %3462 = vmatpush.msra.mxu0 %v3350
    %3463 = vmatpush.msra.mxu0 %v3346
    %3464 = vmatmul.f32.gmra.mxu0 %v3278
    %v3465 = vpop.f32.mrf.mxu0
    %v3466 = vadd.f32 0.0, %v3465
    %3467 = vdwg.mxu0
    %3468 = vmatpush.msra.mxu0 %v3407
    %3469 = vmatpush.msra.mxu0 %v3403
    %3470 = vmatpush.msra.mxu0 %v3399
    %3471 = vmatpush.msra.mxu0 %v3395
    %3472 = vmatpush.msra.mxu0 %v3391
    %3473 = vmatpush.msra.mxu0 %v3387
    %3474 = vmatpush.msra.mxu0 %v3383
    %3475 = vmatpush.msra.mxu0 %v3379
    %3476 = vmatpush.msra.mxu0 %v3375
    %3477 = vmatpush.msra.mxu0 %v3371
    %3478 = vmatpush.msra.mxu0 %v3367
    %3479 = vmatpush.msra.mxu0 %v3363
    %3480 = vmatpush.msra.mxu0 %v3359
    %3481 = vmatpush.msra.mxu0 %v3355
    %3482 = vmatpush.msra.mxu0 %v3351
    %3483 = vmatpush.msra.mxu0 %v3347
    %3484 = vmatmul.f32.gmra.mxu0 %v3278
    %v3485 = vpop.f32.mrf.mxu0
    %v3486 = vadd.f32 0.0, %v3485
    %3487 = vdwg.mxu0
    %3488 = vmatpush.msra.mxu0 %v3340
    %3489 = vmatpush.msra.mxu0 %v3336
    %3490 = vmatpush.msra.mxu0 %v3332
    %3491 = vmatpush.msra.mxu0 %v3328
    %3492 = vmatpush.msra.mxu0 %v3324
    %3493 = vmatpush.msra.mxu0 %v3320
    %3494 = vmatpush.msra.mxu0 %v3316
    %3495 = vmatpush.msra.mxu0 %v3312
    %3496 = vmatpush.msra.mxu0 %v3308
    %3497 = vmatpush.msra.mxu0 %v3304
    %3498 = vmatpush.msra.mxu0 %v3300
    %3499 = vmatpush.msra.mxu0 %v3296
    %3500 = vmatpush.msra.mxu0 %v3292
    %3501 = vmatpush.msra.mxu0 %v3288
    %3502 = vmatpush.msra.mxu0 %v3284
    %3503 = vmatpush.msra.mxu0 %v3280
    %3504 = vmatmul.f32.gmra.mxu0 %v3275
    %v3505 = vpop.f32.mrf.mxu0
    %v3506 = vadd.f32 %v3426, %v3505
    %3507 = vdwg.mxu0
    %3508 = vmatpush.msra.mxu0 %v3341
    %3509 = vmatpush.msra.mxu0 %v3337
    %3510 = vmatpush.msra.mxu0 %v3333
    %3511 = vmatpush.msra.mxu0 %v3329
    %3512 = vmatpush.msra.mxu0 %v3325
    %3513 = vmatpush.msra.mxu0 %v3321
    %3514 = vmatpush.msra.mxu0 %v3317
    %3515 = vmatpush.msra.mxu0 %v3313
    %3516 = vmatpush.msra.mxu0 %v3309
    %3517 = vmatpush.msra.mxu0 %v3305
    %3518 = vmatpush.msra.mxu0 %v3301
    %3519 = vmatpush.msra.mxu0 %v3297
    %3520 = vmatpush.msra.mxu0 %v3293
    %3521 = vmatpush.msra.mxu0 %v3289
    %3522 = vmatpush.msra.mxu0 %v3285
    %3523 = vmatpush.msra.mxu0 %v3281
    %3524 = vmatmul.f32.gmra.mxu0 %v3275
    %v3525 = vpop.f32.mrf.mxu0
    %v3526 = vadd.f32 %v3446, %v3525
    %3527 = vdwg.mxu0
    %3528 = vmatpush.msra.mxu0 %v3342
    %3529 = vmatpush.msra.mxu0 %v3338
    %3530 = vmatpush.msra.mxu0 %v3334
    %3531 = vmatpush.msra.mxu0 %v3330
    %3532 = vmatpush.msra.mxu0 %v3326
    %3533 = vmatpush.msra.mxu0 %v3322
    %3534 = vmatpush.msra.mxu0 %v3318
    %3535 = vmatpush.msra.mxu0 %v3314
    %3536 = vmatpush.msra.mxu0 %v3310
    %3537 = vmatpush.msra.mxu0 %v3306
    %3538 = vmatpush.msra.mxu0 %v3302
    %3539 = vmatpush.msra.mxu0 %v3298
    %3540 = vmatpush.msra.mxu0 %v3294
    %3541 = vmatpush.msra.mxu0 %v3290
    %3542 = vmatpush.msra.mxu0 %v3286
    %3543 = vmatpush.msra.mxu0 %v3282
    %3544 = vmatmul.f32.gmra.mxu0 %v3275
    %v3545 = vpop.f32.mrf.mxu0
    %v3546 = vadd.f32 %v3466, %v3545
    %3547 = vdwg.mxu0
    %3548 = vmatpush.msra.mxu0 %v3343
    %3549 = vmatpush.msra.mxu0 %v3339
    %3550 = vmatpush.msra.mxu0 %v3335
    %3551 = vmatpush.msra.mxu0 %v3331
    %3552 = vmatpush.msra.mxu0 %v3327
    %3553 = vmatpush.msra.mxu0 %v3323
    %3554 = vmatpush.msra.mxu0 %v3319
    %3555 = vmatpush.msra.mxu0 %v3315
    %3556 = vmatpush.msra.mxu0 %v3311
    %3557 = vmatpush.msra.mxu0 %v3307
    %3558 = vmatpush.msra.mxu0 %v3303
    %3559 = vmatpush.msra.mxu0 %v3299
    %3560 = vmatpush.msra.mxu0 %v3295
    %3561 = vmatpush.msra.mxu0 %v3291
    %3562 = vmatpush.msra.mxu0 %v3287
    %3563 = vmatpush.msra.mxu0 %v3283
    %3564 = vmatmul.f32.gmra.mxu0 %v3275
    %v3565 = vpop.f32.mrf.mxu0
    %v3566 = vadd.f32 %v3486, %v3565
    %3567 = vdwg.mxu0
    %v3568 = vld [vmem:[#allocation11] sm:$0xff]
    %v3569 = vld [vmem:[#allocation11 + $0x8] sm:$0xff]
    %v3570 = vld [vmem:[#allocation11 + $0x10] sm:$0xff]
    %v3571 = vld [vmem:[#allocation11 + $0x18] sm:$0xff]
    %v3572 = vadd.f32 %v3506, %v3568
    %v3573 = vadd.f32 %v3526, %v3569
    %v3574 = vadd.f32 %v3546, %v3570
    %v3575 = vadd.f32 %v3566, %v3571
    %v3576 = vmul.f32 %v3572, 0.5
    %v3577 = vmul.f32 %v3573, 0.5
    %v3578 = vmul.f32 %v3574, 0.5
    %v3579 = vtanh.pop %v3576
    %v3580 = vtanh.pop %v3577
    %v3581 = vtanh.pop %v3578
    %v3582 = vmul.f32 %v3579, 0.5
    %v3583 = vmul.f32 %v3580, 0.5
    %v3584 = vmul.f32 %v3581, 0.5
    %v3585 = vadd.f32 %v3582, 0.5
    %v3586 = vadd.f32 %v3583, 0.5
    %v3587 = vadd.f32 %v3584, 0.5
    %v3588 = vtanh.pop %v3575
    %v3589 = vmul.f32 %v3586, %v3279
    %v3590 = vmul.f32 %v3585, %v3588
    %v3591 = vadd.f32 %v3589, %v3590
    %v3592 = vtanh.pop %v3591
    %v3593 = vmul.f32 %v3587, %v3592
    %3594 = vst [vmem:[%s306] sm:$0xff] %v3593
    %3595 = vst [vmem:[%s308] sm:$0xff] %v3591
    %s3596 = scalar_lea.vmem [#allocation13], 48
    %3597 = vst [vmem:[%s3596] sm:$0xff] %v3593
    %v3598 = vld [vmem:[#allocation14] sm:$0xff]
    %v3599 = vld [vmem:[#allocation16] sm:$0xff]
    %s3600 = scalar_lea.vmem [#allocation2], 224
    %v3601 = vld [vmem:[%s3600] sm:$0xff]
    %v3602 = vld [vmem:[%s3600 + $0x8] sm:$0xff]
    %v3603 = vld [vmem:[%s3600 + $0x10] sm:$0xff]
    %v3604 = vld [vmem:[%s3600 + $0x18] sm:$0xff]
    %v3605 = vld [vmem:[#allocation8] sm:$0xff]
    %v3606 = vld [vmem:[#allocation8 + $0x8] sm:$0xff]
    %v3607 = vld [vmem:[#allocation8 + $0x10] sm:$0xff]
    %v3608 = vld [vmem:[#allocation8 + $0x18] sm:$0xff]
    %v3609 = vld [vmem:[#allocation8 + $0x20] sm:$0xff]
    %v3610 = vld [vmem:[#allocation8 + $0x28] sm:$0xff]
    %v3611 = vld [vmem:[#allocation8 + $0x30] sm:$0xff]
    %v3612 = vld [vmem:[#allocation8 + $0x38] sm:$0xff]
    %v3613 = vld [vmem:[#allocation8 + $0x40] sm:$0xff]
    %v3614 = vld [vmem:[#allocation8 + $0x48] sm:$0xff]
    %v3615 = vld [vmem:[#allocation8 + $0x50] sm:$0xff]
    %v3616 = vld [vmem:[#allocation8 + $0x58] sm:$0xff]
    %v3617 = vld [vmem:[#allocation8 + $0x60] sm:$0xff]
    %v3618 = vld [vmem:[#allocation8 + $0x68] sm:$0xff]
    %v3619 = vld [vmem:[#allocation8 + $0x70] sm:$0xff]
    %v3620 = vld [vmem:[#allocation8 + $0x78] sm:$0xff]
    %v3621 = vld [vmem:[#allocation8 + $0x80] sm:$0xff]
    %v3622 = vld [vmem:[#allocation8 + $0x88] sm:$0xff]
    %v3623 = vld [vmem:[#allocation8 + $0x90] sm:$0xff]
    %v3624 = vld [vmem:[#allocation8 + $0x98] sm:$0xff]
    %v3625 = vld [vmem:[#allocation8 + $0xa0] sm:$0xff]
    %v3626 = vld [vmem:[#allocation8 + $0xa8] sm:$0xff]
    %v3627 = vld [vmem:[#allocation8 + $0xb0] sm:$0xff]
    %v3628 = vld [vmem:[#allocation8 + $0xb8] sm:$0xff]
    %v3629 = vld [vmem:[#allocation8 + $0xc0] sm:$0xff]
    %v3630 = vld [vmem:[#allocation8 + $0xc8] sm:$0xff]
    %v3631 = vld [vmem:[#allocation8 + $0xd0] sm:$0xff]
    %v3632 = vld [vmem:[#allocation8 + $0xd8] sm:$0xff]
    %v3633 = vld [vmem:[#allocation8 + $0xe0] sm:$0xff]
    %v3634 = vld [vmem:[#allocation8 + $0xe8] sm:$0xff]
    %v3635 = vld [vmem:[#allocation8 + $0xf0] sm:$0xff]
    %v3636 = vld [vmem:[#allocation8 + $0xf8] sm:$0xff]
    %v3637 = vld [vmem:[#allocation8 + $0x100] sm:$0xff]
    %v3638 = vld [vmem:[#allocation8 + $0x108] sm:$0xff]
    %v3639 = vld [vmem:[#allocation8 + $0x110] sm:$0xff]
    %v3640 = vld [vmem:[#allocation8 + $0x118] sm:$0xff]
    %v3641 = vld [vmem:[#allocation8 + $0x120] sm:$0xff]
    %v3642 = vld [vmem:[#allocation8 + $0x128] sm:$0xff]
    %v3643 = vld [vmem:[#allocation8 + $0x130] sm:$0xff]
    %v3644 = vld [vmem:[#allocation8 + $0x138] sm:$0xff]
    %v3645 = vld [vmem:[#allocation8 + $0x140] sm:$0xff]
    %v3646 = vld [vmem:[#allocation8 + $0x148] sm:$0xff]
    %v3647 = vld [vmem:[#allocation8 + $0x150] sm:$0xff]
    %v3648 = vld [vmem:[#allocation8 + $0x158] sm:$0xff]
    %v3649 = vld [vmem:[#allocation8 + $0x160] sm:$0xff]
    %v3650 = vld [vmem:[#allocation8 + $0x168] sm:$0xff]
    %v3651 = vld [vmem:[#allocation8 + $0x170] sm:$0xff]
    %v3652 = vld [vmem:[#allocation8 + $0x178] sm:$0xff]
    %v3653 = vld [vmem:[#allocation8 + $0x180] sm:$0xff]
    %v3654 = vld [vmem:[#allocation8 + $0x188] sm:$0xff]
    %v3655 = vld [vmem:[#allocation8 + $0x190] sm:$0xff]
    %v3656 = vld [vmem:[#allocation8 + $0x198] sm:$0xff]
    %v3657 = vld [vmem:[#allocation8 + $0x1a0] sm:$0xff]
    %v3658 = vld [vmem:[#allocation8 + $0x1a8] sm:$0xff]
    %v3659 = vld [vmem:[#allocation8 + $0x1b0] sm:$0xff]
    %v3660 = vld [vmem:[#allocation8 + $0x1b8] sm:$0xff]
    %v3661 = vld [vmem:[#allocation8 + $0x1c0] sm:$0xff]
    %v3662 = vld [vmem:[#allocation8 + $0x1c8] sm:$0xff]
    %v3663 = vld [vmem:[#allocation8 + $0x1d0] sm:$0xff]
    %v3664 = vld [vmem:[#allocation8 + $0x1d8] sm:$0xff]
    %v3665 = vld [vmem:[#allocation8 + $0x1e0] sm:$0xff]
    %v3666 = vld [vmem:[#allocation8 + $0x1e8] sm:$0xff]
    %v3667 = vld [vmem:[#allocation8 + $0x1f0] sm:$0xff]
    %v3668 = vld [vmem:[#allocation8 + $0x1f8] sm:$0xff]
    %3669 = vmatpush.msra.mxu0 %v3665
    %3670 = vmatpush.msra.mxu0 %v3661
    %3671 = vmatpush.msra.mxu0 %v3657
    %3672 = vmatpush.msra.mxu0 %v3653
    %3673 = vmatpush.msra.mxu0 %v3649
    %3674 = vmatpush.msra.mxu0 %v3645
    %3675 = vmatpush.msra.mxu0 %v3641
    %3676 = vmatpush.msra.mxu0 %v3637
    %3677 = vmatpush.msra.mxu0 %v3633
    %3678 = vmatpush.msra.mxu0 %v3629
    %3679 = vmatpush.msra.mxu0 %v3625
    %3680 = vmatpush.msra.mxu0 %v3621
    %3681 = vmatpush.msra.mxu0 %v3617
    %3682 = vmatpush.msra.mxu0 %v3613
    %3683 = vmatpush.msra.mxu0 %v3609
    %3684 = vmatpush.msra.mxu0 %v3605
    %3685 = vmatmul.f32.gmra.mxu0 %v3598
    %v3686 = vpop.f32.mrf.mxu0
    %v3687 = vadd.f32 0.0, %v3686
    %3688 = vdwg.mxu0
    %3689 = vmatpush.msra.mxu0 %v3666
    %3690 = vmatpush.msra.mxu0 %v3662
    %3691 = vmatpush.msra.mxu0 %v3658
    %3692 = vmatpush.msra.mxu0 %v3654
    %3693 = vmatpush.msra.mxu0 %v3650
    %3694 = vmatpush.msra.mxu0 %v3646
    %3695 = vmatpush.msra.mxu0 %v3642
    %3696 = vmatpush.msra.mxu0 %v3638
    %3697 = vmatpush.msra.mxu0 %v3634
    %3698 = vmatpush.msra.mxu0 %v3630
    %3699 = vmatpush.msra.mxu0 %v3626
    %3700 = vmatpush.msra.mxu0 %v3622
    %3701 = vmatpush.msra.mxu0 %v3618
    %3702 = vmatpush.msra.mxu0 %v3614
    %3703 = vmatpush.msra.mxu0 %v3610
    %3704 = vmatpush.msra.mxu0 %v3606
    %3705 = vmatmul.f32.gmra.mxu0 %v3598
    %v3706 = vpop.f32.mrf.mxu0
    %v3707 = vadd.f32 0.0, %v3706
    %3708 = vdwg.mxu0
    %3709 = vmatpush.msra.mxu0 %v3667
    %3710 = vmatpush.msra.mxu0 %v3663
    %3711 = vmatpush.msra.mxu0 %v3659
    %3712 = vmatpush.msra.mxu0 %v3655
    %3713 = vmatpush.msra.mxu0 %v3651
    %3714 = vmatpush.msra.mxu0 %v3647
    %3715 = vmatpush.msra.mxu0 %v3643
    %3716 = vmatpush.msra.mxu0 %v3639
    %3717 = vmatpush.msra.mxu0 %v3635
    %3718 = vmatpush.msra.mxu0 %v3631
    %3719 = vmatpush.msra.mxu0 %v3627
    %3720 = vmatpush.msra.mxu0 %v3623
    %3721 = vmatpush.msra.mxu0 %v3619
    %3722 = vmatpush.msra.mxu0 %v3615
    %3723 = vmatpush.msra.mxu0 %v3611
    %3724 = vmatpush.msra.mxu0 %v3607
    %3725 = vmatmul.f32.gmra.mxu0 %v3598
    %v3726 = vpop.f32.mrf.mxu0
    %v3727 = vadd.f32 0.0, %v3726
    %3728 = vdwg.mxu0
    %3729 = vmatpush.msra.mxu0 %v3668
    %3730 = vmatpush.msra.mxu0 %v3664
    %3731 = vmatpush.msra.mxu0 %v3660
    %3732 = vmatpush.msra.mxu0 %v3656
    %3733 = vmatpush.msra.mxu0 %v3652
    %3734 = vmatpush.msra.mxu0 %v3648
    %3735 = vmatpush.msra.mxu0 %v3644
    %3736 = vmatpush.msra.mxu0 %v3640
    %3737 = vmatpush.msra.mxu0 %v3636
    %3738 = vmatpush.msra.mxu0 %v3632
    %3739 = vmatpush.msra.mxu0 %v3628
    %3740 = vmatpush.msra.mxu0 %v3624
    %3741 = vmatpush.msra.mxu0 %v3620
    %3742 = vmatpush.msra.mxu0 %v3616
    %3743 = vmatpush.msra.mxu0 %v3612
    %3744 = vmatpush.msra.mxu0 %v3608
    %3745 = vmatmul.f32.gmra.mxu0 %v3598
    %v3746 = vpop.f32.mrf.mxu0
    %v3747 = vadd.f32 0.0, %v3746
    %3748 = vdwg.mxu0
    %v3749 = vadd.f32 %v3601, %v3687
    %v3750 = vadd.f32 %v3602, %v3707
    %v3751 = vadd.f32 %v3603, %v3727
    %v3752 = vadd.f32 %v3604, %v3747
    %v3753 = vmul.f32 %v3749, 0.5
    %v3754 = vmul.f32 %v3750, 0.5
    %v3755 = vmul.f32 %v3751, 0.5
    %v3756 = vtanh.pop %v3753
    %v3757 = vtanh.pop %v3754
    %v3758 = vtanh.pop %v3755
    %v3759 = vmul.f32 %v3756, 0.5
    %v3760 = vmul.f32 %v3757, 0.5
    %v3761 = vmul.f32 %v3758, 0.5
    %v3762 = vadd.f32 %v3759, 0.5
    %v3763 = vadd.f32 %v3760, 0.5
    %v3764 = vadd.f32 %v3761, 0.5
    %v3765 = vtanh.pop %v3752
    %v3766 = vmul.f32 %v3763, %v3599
    %v3767 = vmul.f32 %v3762, %v3765
    %v3768 = vadd.f32 %v3766, %v3767
    %v3769 = vtanh.pop %v3768
    %v3770 = vmul.f32 %v3764, %v3769
    %3771 = vst [vmem:[#allocation14] sm:$0xff] %v3770
    %3772 = vst [vmem:[#allocation16] sm:$0xff] %v3768
    %v3773 = vld [vmem:[%s306] sm:$0xff]
    %v3774 = vld [vmem:[%s308] sm:$0xff]
    %v3775 = vld [vmem:[#allocation10] sm:$0xff]
    %v3776 = vld [vmem:[#allocation10 + $0x8] sm:$0xff]
    %v3777 = vld [vmem:[#allocation10 + $0x10] sm:$0xff]
    %v3778 = vld [vmem:[#allocation10 + $0x18] sm:$0xff]
    %v3779 = vld [vmem:[#allocation10 + $0x20] sm:$0xff]
    %v3780 = vld [vmem:[#allocation10 + $0x28] sm:$0xff]
    %v3781 = vld [vmem:[#allocation10 + $0x30] sm:$0xff]
    %v3782 = vld [vmem:[#allocation10 + $0x38] sm:$0xff]
    %v3783 = vld [vmem:[#allocation10 + $0x40] sm:$0xff]
    %v3784 = vld [vmem:[#allocation10 + $0x48] sm:$0xff]
    %v3785 = vld [vmem:[#allocation10 + $0x50] sm:$0xff]
    %v3786 = vld [vmem:[#allocation10 + $0x58] sm:$0xff]
    %v3787 = vld [vmem:[#allocation10 + $0x60] sm:$0xff]
    %v3788 = vld [vmem:[#allocation10 + $0x68] sm:$0xff]
    %v3789 = vld [vmem:[#allocation10 + $0x70] sm:$0xff]
    %v3790 = vld [vmem:[#allocation10 + $0x78] sm:$0xff]
    %v3791 = vld [vmem:[#allocation10 + $0x80] sm:$0xff]
    %v3792 = vld [vmem:[#allocation10 + $0x88] sm:$0xff]
    %v3793 = vld [vmem:[#allocation10 + $0x90] sm:$0xff]
    %v3794 = vld [vmem:[#allocation10 + $0x98] sm:$0xff]
    %v3795 = vld [vmem:[#allocation10 + $0xa0] sm:$0xff]
    %v3796 = vld [vmem:[#allocation10 + $0xa8] sm:$0xff]
    %v3797 = vld [vmem:[#allocation10 + $0xb0] sm:$0xff]
    %v3798 = vld [vmem:[#allocation10 + $0xb8] sm:$0xff]
    %v3799 = vld [vmem:[#allocation10 + $0xc0] sm:$0xff]
    %v3800 = vld [vmem:[#allocation10 + $0xc8] sm:$0xff]
    %v3801 = vld [vmem:[#allocation10 + $0xd0] sm:$0xff]
    %v3802 = vld [vmem:[#allocation10 + $0xd8] sm:$0xff]
    %v3803 = vld [vmem:[#allocation10 + $0xe0] sm:$0xff]
    %v3804 = vld [vmem:[#allocation10 + $0xe8] sm:$0xff]
    %v3805 = vld [vmem:[#allocation10 + $0xf0] sm:$0xff]
    %v3806 = vld [vmem:[#allocation10 + $0xf8] sm:$0xff]
    %v3807 = vld [vmem:[#allocation10 + $0x100] sm:$0xff]
    %v3808 = vld [vmem:[#allocation10 + $0x108] sm:$0xff]
    %v3809 = vld [vmem:[#allocation10 + $0x110] sm:$0xff]
    %v3810 = vld [vmem:[#allocation10 + $0x118] sm:$0xff]
    %v3811 = vld [vmem:[#allocation10 + $0x120] sm:$0xff]
    %v3812 = vld [vmem:[#allocation10 + $0x128] sm:$0xff]
    %v3813 = vld [vmem:[#allocation10 + $0x130] sm:$0xff]
    %v3814 = vld [vmem:[#allocation10 + $0x138] sm:$0xff]
    %v3815 = vld [vmem:[#allocation10 + $0x140] sm:$0xff]
    %v3816 = vld [vmem:[#allocation10 + $0x148] sm:$0xff]
    %v3817 = vld [vmem:[#allocation10 + $0x150] sm:$0xff]
    %v3818 = vld [vmem:[#allocation10 + $0x158] sm:$0xff]
    %v3819 = vld [vmem:[#allocation10 + $0x160] sm:$0xff]
    %v3820 = vld [vmem:[#allocation10 + $0x168] sm:$0xff]
    %v3821 = vld [vmem:[#allocation10 + $0x170] sm:$0xff]
    %v3822 = vld [vmem:[#allocation10 + $0x178] sm:$0xff]
    %v3823 = vld [vmem:[#allocation10 + $0x180] sm:$0xff]
    %v3824 = vld [vmem:[#allocation10 + $0x188] sm:$0xff]
    %v3825 = vld [vmem:[#allocation10 + $0x190] sm:$0xff]
    %v3826 = vld [vmem:[#allocation10 + $0x198] sm:$0xff]
    %v3827 = vld [vmem:[#allocation10 + $0x1a0] sm:$0xff]
    %v3828 = vld [vmem:[#allocation10 + $0x1a8] sm:$0xff]
    %v3829 = vld [vmem:[#allocation10 + $0x1b0] sm:$0xff]
    %v3830 = vld [vmem:[#allocation10 + $0x1b8] sm:$0xff]
    %v3831 = vld [vmem:[#allocation10 + $0x1c0] sm:$0xff]
    %v3832 = vld [vmem:[#allocation10 + $0x1c8] sm:$0xff]
    %v3833 = vld [vmem:[#allocation10 + $0x1d0] sm:$0xff]
    %v3834 = vld [vmem:[#allocation10 + $0x1d8] sm:$0xff]
    %v3835 = vld [vmem:[#allocation10 + $0x1e0] sm:$0xff]
    %v3836 = vld [vmem:[#allocation10 + $0x1e8] sm:$0xff]
    %v3837 = vld [vmem:[#allocation10 + $0x1f0] sm:$0xff]
    %v3838 = vld [vmem:[#allocation10 + $0x1f8] sm:$0xff]
    %v3839 = vld [vmem:[%s374] sm:$0xff]
    %v3840 = vld [vmem:[%s374 + $0x8] sm:$0xff]
    %v3841 = vld [vmem:[%s374 + $0x10] sm:$0xff]
    %v3842 = vld [vmem:[%s374 + $0x18] sm:$0xff]
    %v3843 = vld [vmem:[%s374 + $0x20] sm:$0xff]
    %v3844 = vld [vmem:[%s374 + $0x28] sm:$0xff]
    %v3845 = vld [vmem:[%s374 + $0x30] sm:$0xff]
    %v3846 = vld [vmem:[%s374 + $0x38] sm:$0xff]
    %v3847 = vld [vmem:[%s374 + $0x40] sm:$0xff]
    %v3848 = vld [vmem:[%s374 + $0x48] sm:$0xff]
    %v3849 = vld [vmem:[%s374 + $0x50] sm:$0xff]
    %v3850 = vld [vmem:[%s374 + $0x58] sm:$0xff]
    %v3851 = vld [vmem:[%s374 + $0x60] sm:$0xff]
    %v3852 = vld [vmem:[%s374 + $0x68] sm:$0xff]
    %v3853 = vld [vmem:[%s374 + $0x70] sm:$0xff]
    %v3854 = vld [vmem:[%s374 + $0x78] sm:$0xff]
    %v3855 = vld [vmem:[%s374 + $0x80] sm:$0xff]
    %v3856 = vld [vmem:[%s374 + $0x88] sm:$0xff]
    %v3857 = vld [vmem:[%s374 + $0x90] sm:$0xff]
    %v3858 = vld [vmem:[%s374 + $0x98] sm:$0xff]
    %v3859 = vld [vmem:[%s374 + $0xa0] sm:$0xff]
    %v3860 = vld [vmem:[%s374 + $0xa8] sm:$0xff]
    %v3861 = vld [vmem:[%s374 + $0xb0] sm:$0xff]
    %v3862 = vld [vmem:[%s374 + $0xb8] sm:$0xff]
    %v3863 = vld [vmem:[%s374 + $0xc0] sm:$0xff]
    %v3864 = vld [vmem:[%s374 + $0xc8] sm:$0xff]
    %v3865 = vld [vmem:[%s374 + $0xd0] sm:$0xff]
    %v3866 = vld [vmem:[%s374 + $0xd8] sm:$0xff]
    %v3867 = vld [vmem:[%s374 + $0xe0] sm:$0xff]
    %v3868 = vld [vmem:[%s374 + $0xe8] sm:$0xff]
    %v3869 = vld [vmem:[%s374 + $0xf0] sm:$0xff]
    %v3870 = vld [vmem:[%s374 + $0xf8] sm:$0xff]
    %v3871 = vld [vmem:[%s374 + $0x100] sm:$0xff]
    %v3872 = vld [vmem:[%s374 + $0x108] sm:$0xff]
    %v3873 = vld [vmem:[%s374 + $0x110] sm:$0xff]
    %v3874 = vld [vmem:[%s374 + $0x118] sm:$0xff]
    %v3875 = vld [vmem:[%s374 + $0x120] sm:$0xff]
    %v3876 = vld [vmem:[%s374 + $0x128] sm:$0xff]
    %v3877 = vld [vmem:[%s374 + $0x130] sm:$0xff]
    %v3878 = vld [vmem:[%s374 + $0x138] sm:$0xff]
    %v3879 = vld [vmem:[%s374 + $0x140] sm:$0xff]
    %v3880 = vld [vmem:[%s374 + $0x148] sm:$0xff]
    %v3881 = vld [vmem:[%s374 + $0x150] sm:$0xff]
    %v3882 = vld [vmem:[%s374 + $0x158] sm:$0xff]
    %v3883 = vld [vmem:[%s374 + $0x160] sm:$0xff]
    %v3884 = vld [vmem:[%s374 + $0x168] sm:$0xff]
    %v3885 = vld [vmem:[%s374 + $0x170] sm:$0xff]
    %v3886 = vld [vmem:[%s374 + $0x178] sm:$0xff]
    %v3887 = vld [vmem:[%s374 + $0x180] sm:$0xff]
    %v3888 = vld [vmem:[%s374 + $0x188] sm:$0xff]
    %v3889 = vld [vmem:[%s374 + $0x190] sm:$0xff]
    %v3890 = vld [vmem:[%s374 + $0x198] sm:$0xff]
    %v3891 = vld [vmem:[%s374 + $0x1a0] sm:$0xff]
    %v3892 = vld [vmem:[%s374 + $0x1a8] sm:$0xff]
    %v3893 = vld [vmem:[%s374 + $0x1b0] sm:$0xff]
    %v3894 = vld [vmem:[%s374 + $0x1b8] sm:$0xff]
    %v3895 = vld [vmem:[%s374 + $0x1c0] sm:$0xff]
    %v3896 = vld [vmem:[%s374 + $0x1c8] sm:$0xff]
    %v3897 = vld [vmem:[%s374 + $0x1d0] sm:$0xff]
    %v3898 = vld [vmem:[%s374 + $0x1d8] sm:$0xff]
    %v3899 = vld [vmem:[%s374 + $0x1e0] sm:$0xff]
    %v3900 = vld [vmem:[%s374 + $0x1e8] sm:$0xff]
    %v3901 = vld [vmem:[%s374 + $0x1f0] sm:$0xff]
    %v3902 = vld [vmem:[%s374 + $0x1f8] sm:$0xff]
    %3903 = vmatpush.msra.mxu0 %v3899
    %3904 = vmatpush.msra.mxu0 %v3895
    %3905 = vmatpush.msra.mxu0 %v3891
    %3906 = vmatpush.msra.mxu0 %v3887
    %3907 = vmatpush.msra.mxu0 %v3883
    %3908 = vmatpush.msra.mxu0 %v3879
    %3909 = vmatpush.msra.mxu0 %v3875
    %3910 = vmatpush.msra.mxu0 %v3871
    %3911 = vmatpush.msra.mxu0 %v3867
    %3912 = vmatpush.msra.mxu0 %v3863
    %3913 = vmatpush.msra.mxu0 %v3859
    %3914 = vmatpush.msra.mxu0 %v3855
    %3915 = vmatpush.msra.mxu0 %v3851
    %3916 = vmatpush.msra.mxu0 %v3847
    %3917 = vmatpush.msra.mxu0 %v3843
    %3918 = vmatpush.msra.mxu0 %v3839
    %3919 = vmatmul.f32.gmra.mxu0 %v3773
    %v3920 = vpop.f32.mrf.mxu0
    %v3921 = vadd.f32 0.0, %v3920
    %3922 = vdwg.mxu0
    %3923 = vmatpush.msra.mxu0 %v3900
    %3924 = vmatpush.msra.mxu0 %v3896
    %3925 = vmatpush.msra.mxu0 %v3892
    %3926 = vmatpush.msra.mxu0 %v3888
    %3927 = vmatpush.msra.mxu0 %v3884
    %3928 = vmatpush.msra.mxu0 %v3880
    %3929 = vmatpush.msra.mxu0 %v3876
    %3930 = vmatpush.msra.mxu0 %v3872
    %3931 = vmatpush.msra.mxu0 %v3868
    %3932 = vmatpush.msra.mxu0 %v3864
    %3933 = vmatpush.msra.mxu0 %v3860
    %3934 = vmatpush.msra.mxu0 %v3856
    %3935 = vmatpush.msra.mxu0 %v3852
    %3936 = vmatpush.msra.mxu0 %v3848
    %3937 = vmatpush.msra.mxu0 %v3844
    %3938 = vmatpush.msra.mxu0 %v3840
    %3939 = vmatmul.f32.gmra.mxu0 %v3773
    %v3940 = vpop.f32.mrf.mxu0
    %v3941 = vadd.f32 0.0, %v3940
    %3942 = vdwg.mxu0
    %3943 = vmatpush.msra.mxu0 %v3901
    %3944 = vmatpush.msra.mxu0 %v3897
    %3945 = vmatpush.msra.mxu0 %v3893
    %3946 = vmatpush.msra.mxu0 %v3889
    %3947 = vmatpush.msra.mxu0 %v3885
    %3948 = vmatpush.msra.mxu0 %v3881
    %3949 = vmatpush.msra.mxu0 %v3877
    %3950 = vmatpush.msra.mxu0 %v3873
    %3951 = vmatpush.msra.mxu0 %v3869
    %3952 = vmatpush.msra.mxu0 %v3865
    %3953 = vmatpush.msra.mxu0 %v3861
    %3954 = vmatpush.msra.mxu0 %v3857
    %3955 = vmatpush.msra.mxu0 %v3853
    %3956 = vmatpush.msra.mxu0 %v3849
    %3957 = vmatpush.msra.mxu0 %v3845
    %3958 = vmatpush.msra.mxu0 %v3841
    %3959 = vmatmul.f32.gmra.mxu0 %v3773
    %v3960 = vpop.f32.mrf.mxu0
    %v3961 = vadd.f32 0.0, %v3960
    %3962 = vdwg.mxu0
    %3963 = vmatpush.msra.mxu0 %v3902
    %3964 = vmatpush.msra.mxu0 %v3898
    %3965 = vmatpush.msra.mxu0 %v3894
    %3966 = vmatpush.msra.mxu0 %v3890
    %3967 = vmatpush.msra.mxu0 %v3886
    %3968 = vmatpush.msra.mxu0 %v3882
    %3969 = vmatpush.msra.mxu0 %v3878
    %3970 = vmatpush.msra.mxu0 %v3874
    %3971 = vmatpush.msra.mxu0 %v3870
    %3972 = vmatpush.msra.mxu0 %v3866
    %3973 = vmatpush.msra.mxu0 %v3862
    %3974 = vmatpush.msra.mxu0 %v3858
    %3975 = vmatpush.msra.mxu0 %v3854
    %3976 = vmatpush.msra.mxu0 %v3850
    %3977 = vmatpush.msra.mxu0 %v3846
    %3978 = vmatpush.msra.mxu0 %v3842
    %3979 = vmatmul.f32.gmra.mxu0 %v3773
    %v3980 = vpop.f32.mrf.mxu0
    %v3981 = vadd.f32 0.0, %v3980
    %3982 = vdwg.mxu0
    %3983 = vmatpush.msra.mxu0 %v3835
    %3984 = vmatpush.msra.mxu0 %v3831
    %3985 = vmatpush.msra.mxu0 %v3827
    %3986 = vmatpush.msra.mxu0 %v3823
    %3987 = vmatpush.msra.mxu0 %v3819
    %3988 = vmatpush.msra.mxu0 %v3815
    %3989 = vmatpush.msra.mxu0 %v3811
    %3990 = vmatpush.msra.mxu0 %v3807
    %3991 = vmatpush.msra.mxu0 %v3803
    %3992 = vmatpush.msra.mxu0 %v3799
    %3993 = vmatpush.msra.mxu0 %v3795
    %3994 = vmatpush.msra.mxu0 %v3791
    %3995 = vmatpush.msra.mxu0 %v3787
    %3996 = vmatpush.msra.mxu0 %v3783
    %3997 = vmatpush.msra.mxu0 %v3779
    %3998 = vmatpush.msra.mxu0 %v3775
    %3999 = vmatmul.f32.gmra.mxu0 %v3770
    %v4000 = vpop.f32.mrf.mxu0
    %v4001 = vadd.f32 %v3921, %v4000
    %4002 = vdwg.mxu0
    %4003 = vmatpush.msra.mxu0 %v3836
    %4004 = vmatpush.msra.mxu0 %v3832
    %4005 = vmatpush.msra.mxu0 %v3828
    %4006 = vmatpush.msra.mxu0 %v3824
    %4007 = vmatpush.msra.mxu0 %v3820
    %4008 = vmatpush.msra.mxu0 %v3816
    %4009 = vmatpush.msra.mxu0 %v3812
    %4010 = vmatpush.msra.mxu0 %v3808
    %4011 = vmatpush.msra.mxu0 %v3804
    %4012 = vmatpush.msra.mxu0 %v3800
    %4013 = vmatpush.msra.mxu0 %v3796
    %4014 = vmatpush.msra.mxu0 %v3792
    %4015 = vmatpush.msra.mxu0 %v3788
    %4016 = vmatpush.msra.mxu0 %v3784
    %4017 = vmatpush.msra.mxu0 %v3780
    %4018 = vmatpush.msra.mxu0 %v3776
    %4019 = vmatmul.f32.gmra.mxu0 %v3770
    %v4020 = vpop.f32.mrf.mxu0
    %v4021 = vadd.f32 %v3941, %v4020
    %4022 = vdwg.mxu0
    %4023 = vmatpush.msra.mxu0 %v3837
    %4024 = vmatpush.msra.mxu0 %v3833
    %4025 = vmatpush.msra.mxu0 %v3829
    %4026 = vmatpush.msra.mxu0 %v3825
    %4027 = vmatpush.msra.mxu0 %v3821
    %4028 = vmatpush.msra.mxu0 %v3817
    %4029 = vmatpush.msra.mxu0 %v3813
    %4030 = vmatpush.msra.mxu0 %v3809
    %4031 = vmatpush.msra.mxu0 %v3805
    %4032 = vmatpush.msra.mxu0 %v3801
    %4033 = vmatpush.msra.mxu0 %v3797
    %4034 = vmatpush.msra.mxu0 %v3793
    %4035 = vmatpush.msra.mxu0 %v3789
    %4036 = vmatpush.msra.mxu0 %v3785
    %4037 = vmatpush.msra.mxu0 %v3781
    %4038 = vmatpush.msra.mxu0 %v3777
    %4039 = vmatmul.f32.gmra.mxu0 %v3770
    %v4040 = vpop.f32.mrf.mxu0
    %v4041 = vadd.f32 %v3961, %v4040
    %4042 = vdwg.mxu0
    %4043 = vmatpush.msra.mxu0 %v3838
    %4044 = vmatpush.msra.mxu0 %v3834
    %4045 = vmatpush.msra.mxu0 %v3830
    %4046 = vmatpush.msra.mxu0 %v3826
    %4047 = vmatpush.msra.mxu0 %v3822
    %4048 = vmatpush.msra.mxu0 %v3818
    %4049 = vmatpush.msra.mxu0 %v3814
    %4050 = vmatpush.msra.mxu0 %v3810
    %4051 = vmatpush.msra.mxu0 %v3806
    %4052 = vmatpush.msra.mxu0 %v3802
    %4053 = vmatpush.msra.mxu0 %v3798
    %4054 = vmatpush.msra.mxu0 %v3794
    %4055 = vmatpush.msra.mxu0 %v3790
    %4056 = vmatpush.msra.mxu0 %v3786
    %4057 = vmatpush.msra.mxu0 %v3782
    %4058 = vmatpush.msra.mxu0 %v3778
    %4059 = vmatmul.f32.gmra.mxu0 %v3770
    %v4060 = vpop.f32.mrf.mxu0
    %v4061 = vadd.f32 %v3981, %v4060
    %4062 = vdwg.mxu0
    %v4063 = vld [vmem:[#allocation11] sm:$0xff]
    %v4064 = vld [vmem:[#allocation11 + $0x8] sm:$0xff]
    %v4065 = vld [vmem:[#allocation11 + $0x10] sm:$0xff]
    %v4066 = vld [vmem:[#allocation11 + $0x18] sm:$0xff]
    %v4067 = vadd.f32 %v4001, %v4063
    %v4068 = vadd.f32 %v4021, %v4064
    %v4069 = vadd.f32 %v4041, %v4065
    %v4070 = vadd.f32 %v4061, %v4066
    %v4071 = vmul.f32 %v4067, 0.5
    %v4072 = vmul.f32 %v4068, 0.5
    %v4073 = vmul.f32 %v4069, 0.5
    %v4074 = vtanh.pop %v4071
    %v4075 = vtanh.pop %v4072
    %v4076 = vtanh.pop %v4073
    %v4077 = vmul.f32 %v4074, 0.5
    %v4078 = vmul.f32 %v4075, 0.5
    %v4079 = vmul.f32 %v4076, 0.5
    %v4080 = vadd.f32 %v4077, 0.5
    %v4081 = vadd.f32 %v4078, 0.5
    %v4082 = vadd.f32 %v4079, 0.5
    %v4083 = vtanh.pop %v4070
    %v4084 = vmul.f32 %v4081, %v3774
    %v4085 = vmul.f32 %v4080, %v4083
    %v4086 = vadd.f32 %v4084, %v4085
    %v4087 = vtanh.pop %v4086
    %v4088 = vmul.f32 %v4082, %v4087
    %4089 = vst [vmem:[%s306] sm:$0xff] %v4088
    %4090 = vst [vmem:[%s308] sm:$0xff] %v4086
    %s4091 = scalar_lea.vmem [#allocation13], 56
    %4092 = vst [vmem:[%s4091] sm:$0xff] %v4088
    // Predicated region
    $region54: #{tpu_custom_call.1} parent=1 // pred_check
      _
    $region55: #{tpu_custom_call.1} parent=1 // pred_check_branch
      %4094 = sbr.rel (0) target = $region57
    $region56: #{tpu_custom_call.1} parent=1 // pred_region
      %4096 = vsyncadd [#allocation4], 0
      %s4097 = sshll.u32 [#allocation13], 4
      %s4098 = int_to_ptr.vmem [resolvable:$true] %s4097
      %s4099 = sshll.u32 %s6, 4
      %s4100 = int_to_ptr.hbm [resolvable:$true] %s4099
      %4105 = dma.vmem_to_hbm [thread:$0]  %s4098, 1024, %s4100, [#allocation4], 128, 128, 8
    $region57: #{tpu_custom_call.1} parent=1 // pred_fallthru
      _
    // Predicated region
    $region58: #{tpu_custom_call.1} parent=1 // pred_check
      _
    $region59: #{tpu_custom_call.1} parent=1 // pred_check_branch
      %4107 = sbr.rel (0) target = $region61
    $region60: #{tpu_custom_call.1} parent=1 // pred_region
      %4109 = vsyncadd [#allocation15], 0
      %s4110 = sshll.u32 [#allocation14], 4
      %s4111 = int_to_ptr.vmem [resolvable:$true] %s4110
      %s4112 = sshll.u32 %s7, 4
      %s4113 = int_to_ptr.hbm [resolvable:$true] %s4112
      %4118 = dma.vmem_to_hbm [thread:$0]  %s4111, 256, %s4113, [#allocation15], 128, 128, 8
    $region61: #{tpu_custom_call.1} parent=1 // pred_fallthru
      _
    // Predicated region
    $region62: #{tpu_custom_call.1} parent=1 // pred_check
      _
    $region63: #{tpu_custom_call.1} parent=1 // pred_check_branch
      %4120 = sbr.rel (0) target = $region65
    $region64: #{tpu_custom_call.1} parent=1 // pred_region
      %4122 = vsyncadd [#allocation15], 0
      %s4123 = sshll.u32 [#allocation16], 4
      %s4124 = int_to_ptr.vmem [resolvable:$true] %s4123
      %s4125 = sshll.u32 %s8, 4
      %s4126 = int_to_ptr.hbm [resolvable:$true] %s4125
      %4131 = dma.vmem_to_hbm [thread:$0]  %s4124, 256, %s4126, [#allocation15], 128, 128, 8
    $region65: #{tpu_custom_call.1} parent=1 // pred_fallthru
      _
    // Predicated region
    $region66: #{tpu_custom_call.1} parent=1 // pred_check
      _
    $region67: #{tpu_custom_call.1} parent=1 // pred_check_branch
      %4133 = sbr.rel (0) target = $region69
    $region68: #{tpu_custom_call.1} parent=1 // pred_region
      %4135 = dma.done [#allocation4], 1024
    $region69: #{tpu_custom_call.1} parent=1 // pred_fallthru
      _
    // Predicated region
    $region70: #{tpu_custom_call.1} parent=1 // pred_check
      _
    $region71: #{tpu_custom_call.1} parent=1 // pred_check_branch
      %4137 = sbr.rel (0) target = $region73
    $region72: #{tpu_custom_call.1} parent=1 // pred_region
      %4139 = dma.done [#allocation15], 256
    $region73: #{tpu_custom_call.1} parent=1 // pred_fallthru
      _
    // Predicated region
    $region74: #{tpu_custom_call.1} parent=1 // pred_check
      _
    $region75: #{tpu_custom_call.1} parent=1 // pred_check_branch
      %4141 = sbr.rel (0) target = $region77
    $region76: #{tpu_custom_call.1} parent=1 // pred_region
      %4143 = dma.done [#allocation15], 256
    $region77: #{tpu_custom_call.1} parent=1 // pred_fallthru
      _
    %4144 = vsyncpa [#allocation3], 1
    %4145 = vsyncpa [#allocation6], 1
    %4146 = vsyncpa [#allocation9], 1
    %4147 = vsyncpa [#allocation12], 1
    %4148 = vsyncpa [#allocation4], 1
    %4149 = vsyncpa [#allocation15], 1

</llo_original>
